<compile_context>
chip_gen: v7x
topology: tpu7x:2x2x1
jax: 0.10.0
libtpu: 0.0.40
codegen_flags: <defaults>
</compile_context>

<pallas_src>
import jax
import jax.numpy as jnp
from jax.experimental import pallas as pl
from jax.experimental.pallas import tpu as pltpu

LANE = 128        # one vreg lane tile; each gate gets its own 128-lane block
N_GATES = 4       # kernel gate block order: (i, f, o, g)
GATE_PERM = (0, 1, 3, 2)   # PyTorch (i, f, g, o) -> kernel blocks (i, f, o, g)
B_PAD = 8         # pad batch to one full sublane tile


# ----------------------------- Pallas kernel ------------------------------- #
def voice_encoder_kernel(mels_ref,
                         wih0_ref, whh0_ref, b0_ref,
                         wih1_ref, whh1_ref, b1_ref,
                         wih2_ref, whh2_ref, b2_ref,
                         lin_w_ref, lin_b_ref,
                         out_ref):
    """Whole forward pass, grid-less (shapes are tiny; everything fits VMEM).

    mels_ref : (T*Bp, n_mel)  bf16   time-major, batch padded to Bp=8
    wihL_ref : (in_dim, 4*128) bf16  gate blk L at columns [blk*128, blk*128+H)
    whhL_ref : (H, 4*128)      bf16  same column layout
    bL_ref   : (Bp, 4*128)     f32   combined bias (b_ih+b_hh), pre-broadcast
    lin_w_ref: (H, S)          f32
    lin_b_ref: (1, S)          f32
    out_ref  : (Bp, S)         f32
    """
    Bp = out_ref.shape[0]
    TB = mels_ref.shape[0]
    T = TB // Bp
    H = lin_w_ref.shape[0]
    f32, bf16 = jnp.float32, jnp.bfloat16

    def gate(gates, blk):
        # Block start is 128-aligned and the H-wide payload sits at lane
        # offset 0 of that vreg -> pure vreg selection, no lane rotation.
        return gates[:, blk * LANE: blk * LANE + H]

    def lstm_cell(gates, c):
        i = jax.nn.sigmoid(gate(gates, 0))
        f = jax.nn.sigmoid(gate(gates, 1))
        o = jax.nn.sigmoid(gate(gates, 2))
        g = jnp.tanh(gate(gates, 3))
        c_new = f * c + i * g
        h_new = o * jnp.tanh(c_new)
        return h_new, c_new

    zeros = jnp.zeros((Bp, H), f32)
    h0, c0 = zeros, zeros
    h1, c1 = zeros, zeros
    h2, c2 = zeros, zeros

    # Wavefront: step s handles layer0@t=s, layer1@t=s-1, layer2@t=s-2.
    # h0/h1/h2 captured (and cast to bf16) at step start are exactly the
    # inputs every active layer needs, so the 6 dots per step are independent.
    for s in range(T + 2):
        h0_b = h0.astype(bf16)
        h1_b = h1.astype(bf16)
        h2_b = h2.astype(bf16)

        if s < T:                                   # layer 0, time t = s
            x0 = mels_ref[s * Bp:(s + 1) * Bp, :]   # aligned (Bp, n_mel) tile
            g0 = (jnp.dot(x0, wih0_ref[...], preferred_element_type=f32)
                  + jnp.dot(h0_b, whh0_ref[...], preferred_element_type=f32)
                  + b0_ref[...])
            h0, c0 = lstm_cell(g0, c0)

        if 1 <= s <= T:                             # layer 1, time t = s - 1
            g1 = (jnp.dot(h0_b, wih1_ref[...], preferred_element_type=f32)
                  + jnp.dot(h1_b, whh1_ref[...], preferred_element_type=f32)
                  + b1_ref[...])
            h1, c1 = lstm_cell(g1, c1)

        if 2 <= s <= T + 1:                         # layer 2, time t = s - 2
            g2 = (jnp.dot(h1_b, wih2_ref[...], preferred_element_type=f32)
                  + jnp.dot(h2_b, whh2_ref[...], preferred_element_type=f32)
                  + b2_ref[...])
            h2, c2 = lstm_cell(g2, c2)

    # Linear -> ReLU -> L2 normalize (kept in f32; one-time epilogue).
    emb = jnp.dot(h2, lin_w_ref[...], preferred_element_type=f32) + lin_b_ref[...]
    emb = jnp.maximum(emb, 0.0)
    ss = jnp.sum(emb * emb, axis=1, keepdims=True)
    # Single EUP rsqrt instead of sqrt + reciprocal; eps placement differs
    # slightly from /(norm + 1e-5) -> covered by the tolerance in __main__.
    out_ref[...] = emb * jax.lax.rsqrt(ss + 1e-12)


# -------------------- raw -> kernel parameter preparation ------------------ #
def _pad_gate_cols(w, H):
    """(4H, in_dim) PyTorch-layout weight -> (in_dim, 4*128) bf16, each gate's
    H columns at a 128-aligned block start, zero elsewhere."""
    in_dim = w.shape[1]
    w4 = w.reshape(4, H, in_dim)                       # PyTorch order i,f,g,o
    out = jnp.zeros((in_dim, N_GATES * LANE), jnp.float32)
    for blk, gsel in enumerate(GATE_PERM):
        out = out.at[:, blk * LANE: blk * LANE + H].set(w4[gsel].T)
    return out.astype(jnp.bfloat16)


def _pad_gate_bias(b_ih, b_hh, H, Bp):
    b4 = (b_ih + b_hh).reshape(4, H)
    out = jnp.zeros((Bp, N_GATES * LANE), jnp.float32)
    for blk, gsel in enumerate(GATE_PERM):
        out = out.at[:, blk * LANE: blk * LANE + H].set(b4[gsel][None, :])
    return out


def prepare_kernel_params(raw, Bp):
    H = raw["w_hh_0"].shape[1]
    S = raw["lin_w"].shape[0]
    kp = {}
    for l in range(3):
        kp[f"wih{l}"] = _pad_gate_cols(raw[f"w_ih_{l}"], H)
        kp[f"whh{l}"] = _pad_gate_cols(raw[f"w_hh_{l}"], H)
        kp[f"b{l}"] = _pad_gate_bias(raw[f"b_ih_{l}"], raw[f"b_hh_{l}"], H, Bp)
    kp["lin_w"] = raw["lin_w"].T.astype(jnp.float32)        # (H, S)
    kp["lin_b"] = raw["lin_b"].reshape(1, S).astype(jnp.float32)
    return kp


# ------------------------------ JAX wrapper -------------------------------- #
@jax.jit
def voice_encoder_forward(mels, raw_params):
    """mels: (B, T, n_mel) float32, batch_first like the PyTorch module."""
    B, T, n_mel = mels.shape
    assert B <= B_PAD, "pad/loop over batch tiles for B > 8"
    S = raw_params["lin_w"].shape[0]
    Bp = B_PAD

    kp = prepare_kernel_params(raw_params, Bp)

    # Zero-pad batch to 8 sublanes, time-major flatten, bf16 MXU operand.
    mels_p = jnp.zeros((Bp, T, n_mel), jnp.float32).at[:B].set(mels)
    mels_tm = jnp.transpose(mels_p, (1, 0, 2)).reshape(T * Bp, n_mel)
    mels_tm = mels_tm.astype(jnp.bfloat16)

    args = (mels_tm,
            kp["wih0"], kp["whh0"], kp["b0"],
            kp["wih1"], kp["whh1"], kp["b1"],
            kp["wih2"], kp["whh2"], kp["b2"],
            kp["lin_w"], kp["lin_b"])

    vmem = pl.BlockSpec(memory_space=pltpu.MemorySpace.VMEM)
    out_p = pl.pallas_call(
        voice_encoder_kernel,
        out_shape=jax.ShapeDtypeStruct((Bp, S), jnp.float32),
        in_specs=[vmem] * len(args),
        out_specs=vmem,
        # Total footprint < 1 MiB; explicit limit keeps headroom even against
        # v7x's smaller 64 MiB (32 MiB scoped-default) VMEM.
        compiler_params=pltpu.CompilerParams(vmem_limit_bytes=32 * 1024 * 1024),
    )(*args)
    return out_p[:B]


# -------------------------- parameter construction ------------------------- #
def init_raw_params(key, n_mel, channels, speaker_dim):
    """PyTorch-default U(-1/sqrt(H), 1/sqrt(H)) init, PyTorch layouts/ordering."""
    H = channels
    scale = 1.0 / jnp.sqrt(jnp.float32(H))
    keys = jax.random.split(key, 3 * 4 + 2)
    k_idx = 0

    def unif(shape):
        nonlocal k_idx
        out = jax.random.uniform(keys[k_idx], shape, jnp.float32, -scale, scale)
        k_idx += 1
        return out

    raw = {}
    for l in range(3):
        in_dim = n_mel if l == 0 else H
        raw[f"w_ih_{l}"] = unif((4 * H, in_dim))   # gate order i, f, g, o
        raw[f"w_hh_{l}"] = unif((4 * H, H))
        raw[f"b_ih_{l}"] = unif((4 * H,))
        raw[f"b_hh_{l}"] = unif((4 * H,))
    raw["lin_w"] = unif((speaker_dim, H))          # PyTorch Linear (S, H)
    raw["lin_b"] = unif((speaker_dim,))
    return raw


# ----------------------------- pure-JAX reference --------------------------- #
def reference_forward(mels, raw):
    """f32 reference built directly from the raw PyTorch-layout weights."""
    B, T, _ = mels.shape
    H = raw["w_hh_0"].shape[1]
    x_seq = mels
    h = None
    for l in range(3):
        w_ih, w_hh = raw[f"w_ih_{l}"], raw[f"w_hh_{l}"]
        b = raw[f"b_ih_{l}"] + raw[f"b_hh_{l}"]
        h = jnp.zeros((B, H), jnp.float32)
        c = jnp.zeros((B, H), jnp.float32)
        outs = []
        for t in range(T):
            gates = x_seq[:, t, :] @ w_ih.T + h @ w_hh.T + b    # i | f | g | o
            i = jax.nn.sigmoid(gates[:, 0:H])
            f = jax.nn.sigmoid(gates[:, H:2 * H])
            g = jnp.tanh(gates[:, 2 * H:3 * H])
            o = jax.nn.sigmoid(gates[:, 3 * H:4 * H])
            c = f * c + i * g
            h = o * jnp.tanh(c)
            outs.append(h)
        x_seq = jnp.stack(outs, axis=1)
    emb = jnp.maximum(h @ raw["lin_w"].T + raw["lin_b"], 0.0)
    norm = jnp.sqrt(jnp.sum(emb * emb, axis=1, keepdims=True))
    return emb / (norm + 1e-5)


# ----------------------------------- main ----------------------------------- #
if __name__ == "__main__":
    # hp.n_mel_channels=32, hp.channels=32, hp.speaker_dim=16
    B, T, N_MEL, CHANNELS, SPK_DIM = 2, 8, 32, 32, 16

    key = jax.random.PRNGKey(0)
    key_p, key_x = jax.random.split(key)
    raw_params = init_raw_params(key_p, N_MEL, CHANNELS, SPK_DIM)
    mels = jax.random.normal(key_x, (B, T, N_MEL), jnp.float32)

    out = jax.block_until_ready(voice_encoder_forward(mels, raw_params))
    ref = reference_forward(mels, raw_params)

    assert out.shape == (B, SPK_DIM)
    # Tolerance covers bf16 MXU operands (compounded over 3 layers x 8 steps)
    # and the rsqrt-based normalization; reference is exact f32.
    assert jnp.allclose(out, ref, rtol=2e-2, atol=2e-2), "mismatch vs reference"

    print("KERNEL_OK")
</pallas_src>

<mosaic_0001>
module attributes {stable_mosaic.version = 11 : i64} {
  func.func @voice_encoder_kernel(%arg0: memref<64x32xbf16, #tpu.memory_space<vmem>>, %arg1: memref<32x512xbf16, #tpu.memory_space<vmem>>, %arg2: memref<32x512xbf16, #tpu.memory_space<vmem>>, %arg3: memref<8x512xf32, #tpu.memory_space<vmem>>, %arg4: memref<32x512xbf16, #tpu.memory_space<vmem>>, %arg5: memref<32x512xbf16, #tpu.memory_space<vmem>>, %arg6: memref<8x512xf32, #tpu.memory_space<vmem>>, %arg7: memref<32x512xbf16, #tpu.memory_space<vmem>>, %arg8: memref<32x512xbf16, #tpu.memory_space<vmem>>, %arg9: memref<8x512xf32, #tpu.memory_space<vmem>>, %arg10: memref<32x16xf32, #tpu.memory_space<vmem>>, %arg11: memref<1x16xf32, #tpu.memory_space<vmem>>, %arg12: memref<8x16xf32, #tpu.memory_space<vmem>>) attributes {dimension_semantics = [], scalar_prefetch = 0 : i64, scratch_operands = 0 : i64, tpu.core_type = #tpu.core_type<tc>} {
    %cst = arith.constant 0.000000e+00 : f32
    %0 = vector.broadcast %cst : f32 to vector<8x32xf32>
    %1 = arith.truncf %0 : vector<8x32xf32> to vector<8x32xbf16>
    %c0 = arith.constant 0 : index
    %c0_0 = arith.constant 0 : index
    %2 = vector.load %arg0[%c0, %c0_0] : memref<64x32xbf16, #tpu.memory_space<vmem>>, vector<8x32xbf16>
    %c0_1 = arith.constant 0 : index
    %c0_2 = arith.constant 0 : index
    %3 = vector.load %arg1[%c0_1, %c0_2] : memref<32x512xbf16, #tpu.memory_space<vmem>>, vector<32x512xbf16>
    %cst_3 = arith.constant dense<0.000000e+00> : vector<8x512xf32>
    %4 = tpu.matmul %2, %3, %cst_3 {dimension_numbers = #tpu.dot_dimension_numbers<[1], [0], [0], [1], [0, 0, 1, 1], [], []>} : vector<8x32xbf16>, vector<32x512xbf16>, vector<8x512xf32> -> vector<8x512xf32>
    %c0_4 = arith.constant 0 : index
    %c0_5 = arith.constant 0 : index
    %5 = vector.load %arg2[%c0_4, %c0_5] : memref<32x512xbf16, #tpu.memory_space<vmem>>, vector<32x512xbf16>
    %cst_6 = arith.constant dense<0.000000e+00> : vector<8x512xf32>
    %6 = tpu.matmul %1, %5, %cst_6 {dimension_numbers = #tpu.dot_dimension_numbers<[1], [0], [0], [1], [0, 0, 1, 1], [], []>} : vector<8x32xbf16>, vector<32x512xbf16>, vector<8x512xf32> -> vector<8x512xf32>
    %7 = arith.addf %4, %6 : vector<8x512xf32>
    %c0_7 = arith.constant 0 : index
    %c0_8 = arith.constant 0 : index
    %8 = vector.load %arg3[%c0_7, %c0_8] : memref<8x512xf32, #tpu.memory_space<vmem>>, vector<8x512xf32>
    %9 = arith.addf %7, %8 : vector<8x512xf32>
    %10 = vector.extract_strided_slice %9 {offsets = [0, 0], sizes = [8, 32], strides = [1, 1]} : vector<8x512xf32> to vector<8x32xf32>
    %11 = arith.negf %10 : vector<8x32xf32>
    %12 = math.exp %11 : vector<8x32xf32>
    %cst_9 = arith.constant 1.000000e+00 : f32
    %13 = vector.broadcast %cst_9 : f32 to vector<8x32xf32>
    %14 = arith.addf %13, %12 : vector<8x32xf32>
    %15 = arith.divf %13, %14 : vector<8x32xf32>
    %16 = vector.extract_strided_slice %9 {offsets = [0, 128], sizes = [8, 32], strides = [1, 1]} : vector<8x512xf32> to vector<8x32xf32>
    %17 = arith.negf %16 : vector<8x32xf32>
    %18 = math.exp %17 : vector<8x32xf32>
    %cst_10 = arith.constant 1.000000e+00 : f32
    %19 = vector.broadcast %cst_10 : f32 to vector<8x32xf32>
    %20 = arith.addf %19, %18 : vector<8x32xf32>
    %21 = arith.divf %19, %20 : vector<8x32xf32>
    %22 = vector.extract_strided_slice %9 {offsets = [0, 256], sizes = [8, 32], strides = [1, 1]} : vector<8x512xf32> to vector<8x32xf32>
    %23 = arith.negf %22 : vector<8x32xf32>
    %24 = math.exp %23 : vector<8x32xf32>
    %cst_11 = arith.constant 1.000000e+00 : f32
    %25 = vector.broadcast %cst_11 : f32 to vector<8x32xf32>
    %26 = arith.addf %25, %24 : vector<8x32xf32>
    %27 = arith.divf %25, %26 : vector<8x32xf32>
    %28 = vector.extract_strided_slice %9 {offsets = [0, 384], sizes = [8, 32], strides = [1, 1]} : vector<8x512xf32> to vector<8x32xf32>
    %29 = math.tanh %28 : vector<8x32xf32>
    %30 = arith.mulf %21, %0 : vector<8x32xf32>
    %31 = arith.mulf %15, %29 : vector<8x32xf32>
    %32 = arith.addf %30, %31 : vector<8x32xf32>
    %33 = math.tanh %32 : vector<8x32xf32>
    %34 = arith.mulf %27, %33 : vector<8x32xf32>
    %35 = arith.truncf %34 : vector<8x32xf32> to vector<8x32xbf16>
    %36 = arith.truncf %0 : vector<8x32xf32> to vector<8x32xbf16>
    %c8 = arith.constant 8 : index
    %c0_12 = arith.constant 0 : index
    %37 = vector.load %arg0[%c8, %c0_12] : memref<64x32xbf16, #tpu.memory_space<vmem>>, vector<8x32xbf16>
    %c0_13 = arith.constant 0 : index
    %c0_14 = arith.constant 0 : index
    %38 = vector.load %arg1[%c0_13, %c0_14] : memref<32x512xbf16, #tpu.memory_space<vmem>>, vector<32x512xbf16>
    %cst_15 = arith.constant dense<0.000000e+00> : vector<8x512xf32>
    %39 = tpu.matmul %37, %38, %cst_15 {dimension_numbers = #tpu.dot_dimension_numbers<[1], [0], [0], [1], [0, 0, 1, 1], [], []>} : vector<8x32xbf16>, vector<32x512xbf16>, vector<8x512xf32> -> vector<8x512xf32>
    %c0_16 = arith.constant 0 : index
    %c0_17 = arith.constant 0 : index
    %40 = vector.load %arg2[%c0_16, %c0_17] : memref<32x512xbf16, #tpu.memory_space<vmem>>, vector<32x512xbf16>
    %cst_18 = arith.constant dense<0.000000e+00> : vector<8x512xf32>
    %41 = tpu.matmul %35, %40, %cst_18 {dimension_numbers = #tpu.dot_dimension_numbers<[1], [0], [0], [1], [0, 0, 1, 1], [], []>} : vector<8x32xbf16>, vector<32x512xbf16>, vector<8x512xf32> -> vector<8x512xf32>
    %42 = arith.addf %39, %41 : vector<8x512xf32>
    %c0_19 = arith.constant 0 : index
    %c0_20 = arith.constant 0 : index
    %43 = vector.load %arg3[%c0_19, %c0_20] : memref<8x512xf32, #tpu.memory_space<vmem>>, vector<8x512xf32>
    %44 = arith.addf %42, %43 : vector<8x512xf32>
    %45 = vector.extract_strided_slice %44 {offsets = [0, 0], sizes = [8, 32], strides = [1, 1]} : vector<8x512xf32> to vector<8x32xf32>
    %46 = arith.negf %45 : vector<8x32xf32>
    %47 = math.exp %46 : vector<8x32xf32>
    %cst_21 = arith.constant 1.000000e+00 : f32
    %48 = vector.broadcast %cst_21 : f32 to vector<8x32xf32>
    %49 = arith.addf %48, %47 : vector<8x32xf32>
    %50 = arith.divf %48, %49 : vector<8x32xf32>
    %51 = vector.extract_strided_slice %44 {offsets = [0, 128], sizes = [8, 32], strides = [1, 1]} : vector<8x512xf32> to vector<8x32xf32>
    %52 = arith.negf %51 : vector<8x32xf32>
    %53 = math.exp %52 : vector<8x32xf32>
    %cst_22 = arith.constant 1.000000e+00 : f32
    %54 = vector.broadcast %cst_22 : f32 to vector<8x32xf32>
    %55 = arith.addf %54, %53 : vector<8x32xf32>
    %56 = arith.divf %54, %55 : vector<8x32xf32>
    %57 = vector.extract_strided_slice %44 {offsets = [0, 256], sizes = [8, 32], strides = [1, 1]} : vector<8x512xf32> to vector<8x32xf32>
    %58 = arith.negf %57 : vector<8x32xf32>
    %59 = math.exp %58 : vector<8x32xf32>
    %cst_23 = arith.constant 1.000000e+00 : f32
    %60 = vector.broadcast %cst_23 : f32 to vector<8x32xf32>
    %61 = arith.addf %60, %59 : vector<8x32xf32>
    %62 = arith.divf %60, %61 : vector<8x32xf32>
    %63 = vector.extract_strided_slice %44 {offsets = [0, 384], sizes = [8, 32], strides = [1, 1]} : vector<8x512xf32> to vector<8x32xf32>
    %64 = math.tanh %63 : vector<8x32xf32>
    %65 = arith.mulf %56, %32 : vector<8x32xf32>
    %66 = arith.mulf %50, %64 : vector<8x32xf32>
    %67 = arith.addf %65, %66 : vector<8x32xf32>
    %68 = math.tanh %67 : vector<8x32xf32>
    %69 = arith.mulf %62, %68 : vector<8x32xf32>
    %c0_24 = arith.constant 0 : index
    %c0_25 = arith.constant 0 : index
    %70 = vector.load %arg4[%c0_24, %c0_25] : memref<32x512xbf16, #tpu.memory_space<vmem>>, vector<32x512xbf16>
    %cst_26 = arith.constant dense<0.000000e+00> : vector<8x512xf32>
    %71 = tpu.matmul %35, %70, %cst_26 {dimension_numbers = #tpu.dot_dimension_numbers<[1], [0], [0], [1], [0, 0, 1, 1], [], []>} : vector<8x32xbf16>, vector<32x512xbf16>, vector<8x512xf32> -> vector<8x512xf32>
    %c0_27 = arith.constant 0 : index
    %c0_28 = arith.constant 0 : index
    %72 = vector.load %arg5[%c0_27, %c0_28] : memref<32x512xbf16, #tpu.memory_space<vmem>>, vector<32x512xbf16>
    %cst_29 = arith.constant dense<0.000000e+00> : vector<8x512xf32>
    %73 = tpu.matmul %36, %72, %cst_29 {dimension_numbers = #tpu.dot_dimension_numbers<[1], [0], [0], [1], [0, 0, 1, 1], [], []>} : vector<8x32xbf16>, vector<32x512xbf16>, vector<8x512xf32> -> vector<8x512xf32>
    %74 = arith.addf %71, %73 : vector<8x512xf32>
    %c0_30 = arith.constant 0 : index
    %c0_31 = arith.constant 0 : index
    %75 = vector.load %arg6[%c0_30, %c0_31] : memref<8x512xf32, #tpu.memory_space<vmem>>, vector<8x512xf32>
    %76 = arith.addf %74, %75 : vector<8x512xf32>
    %77 = vector.extract_strided_slice %76 {offsets = [0, 0], sizes = [8, 32], strides = [1, 1]} : vector<8x512xf32> to vector<8x32xf32>
    %78 = arith.negf %77 : vector<8x32xf32>
    %79 = math.exp %78 : vector<8x32xf32>
    %cst_32 = arith.constant 1.000000e+00 : f32
    %80 = vector.broadcast %cst_32 : f32 to vector<8x32xf32>
    %81 = arith.addf %80, %79 : vector<8x32xf32>
    %82 = arith.divf %80, %81 : vector<8x32xf32>
    %83 = vector.extract_strided_slice %76 {offsets = [0, 128], sizes = [8, 32], strides = [1, 1]} : vector<8x512xf32> to vector<8x32xf32>
    %84 = arith.negf %83 : vector<8x32xf32>
    %85 = math.exp %84 : vector<8x32xf32>
    %cst_33 = arith.constant 1.000000e+00 : f32
    %86 = vector.broadcast %cst_33 : f32 to vector<8x32xf32>
    %87 = arith.addf %86, %85 : vector<8x32xf32>
    %88 = arith.divf %86, %87 : vector<8x32xf32>
    %89 = vector.extract_strided_slice %76 {offsets = [0, 256], sizes = [8, 32], strides = [1, 1]} : vector<8x512xf32> to vector<8x32xf32>
    %90 = arith.negf %89 : vector<8x32xf32>
    %91 = math.exp %90 : vector<8x32xf32>
    %cst_34 = arith.constant 1.000000e+00 : f32
    %92 = vector.broadcast %cst_34 : f32 to vector<8x32xf32>
    %93 = arith.addf %92, %91 : vector<8x32xf32>
    %94 = arith.divf %92, %93 : vector<8x32xf32>
    %95 = vector.extract_strided_slice %76 {offsets = [0, 384], sizes = [8, 32], strides = [1, 1]} : vector<8x512xf32> to vector<8x32xf32>
    %96 = math.tanh %95 : vector<8x32xf32>
    %97 = arith.mulf %88, %0 : vector<8x32xf32>
    %98 = arith.mulf %82, %96 : vector<8x32xf32>
    %99 = arith.addf %97, %98 : vector<8x32xf32>
    %100 = math.tanh %99 : vector<8x32xf32>
    %101 = arith.mulf %94, %100 : vector<8x32xf32>
    %102 = arith.truncf %69 : vector<8x32xf32> to vector<8x32xbf16>
    %103 = arith.truncf %101 : vector<8x32xf32> to vector<8x32xbf16>
    %104 = arith.truncf %0 : vector<8x32xf32> to vector<8x32xbf16>
    %c16 = arith.constant 16 : index
    %c0_35 = arith.constant 0 : index
    %105 = vector.load %arg0[%c16, %c0_35] : memref<64x32xbf16, #tpu.memory_space<vmem>>, vector<8x32xbf16>
    %c0_36 = arith.constant 0 : index
    %c0_37 = arith.constant 0 : index
    %106 = vector.load %arg1[%c0_36, %c0_37] : memref<32x512xbf16, #tpu.memory_space<vmem>>, vector<32x512xbf16>
    %cst_38 = arith.constant dense<0.000000e+00> : vector<8x512xf32>
    %107 = tpu.matmul %105, %106, %cst_38 {dimension_numbers = #tpu.dot_dimension_numbers<[1], [0], [0], [1], [0, 0, 1, 1], [], []>} : vector<8x32xbf16>, vector<32x512xbf16>, vector<8x512xf32> -> vector<8x512xf32>
    %c0_39 = arith.constant 0 : index
    %c0_40 = arith.constant 0 : index
    %108 = vector.load %arg2[%c0_39, %c0_40] : memref<32x512xbf16, #tpu.memory_space<vmem>>, vector<32x512xbf16>
    %cst_41 = arith.constant dense<0.000000e+00> : vector<8x512xf32>
    %109 = tpu.matmul %102, %108, %cst_41 {dimension_numbers = #tpu.dot_dimension_numbers<[1], [0], [0], [1], [0, 0, 1, 1], [], []>} : vector<8x32xbf16>, vector<32x512xbf16>, vector<8x512xf32> -> vector<8x512xf32>
    %110 = arith.addf %107, %109 : vector<8x512xf32>
    %c0_42 = arith.constant 0 : index
    %c0_43 = arith.constant 0 : index
    %111 = vector.load %arg3[%c0_42, %c0_43] : memref<8x512xf32, #tpu.memory_space<vmem>>, vector<8x512xf32>
    %112 = arith.addf %110, %111 : vector<8x512xf32>
    %113 = vector.extract_strided_slice %112 {offsets = [0, 0], sizes = [8, 32], strides = [1, 1]} : vector<8x512xf32> to vector<8x32xf32>
    %114 = arith.negf %113 : vector<8x32xf32>
    %115 = math.exp %114 : vector<8x32xf32>
    %cst_44 = arith.constant 1.000000e+00 : f32
    %116 = vector.broadcast %cst_44 : f32 to vector<8x32xf32>
    %117 = arith.addf %116, %115 : vector<8x32xf32>
    %118 = arith.divf %116, %117 : vector<8x32xf32>
    %119 = vector.extract_strided_slice %112 {offsets = [0, 128], sizes = [8, 32], strides = [1, 1]} : vector<8x512xf32> to vector<8x32xf32>
    %120 = arith.negf %119 : vector<8x32xf32>
    %121 = math.exp %120 : vector<8x32xf32>
    %cst_45 = arith.constant 1.000000e+00 : f32
    %122 = vector.broadcast %cst_45 : f32 to vector<8x32xf32>
    %123 = arith.addf %122, %121 : vector<8x32xf32>
    %124 = arith.divf %122, %123 : vector<8x32xf32>
    %125 = vector.extract_strided_slice %112 {offsets = [0, 256], sizes = [8, 32], strides = [1, 1]} : vector<8x512xf32> to vector<8x32xf32>
    %126 = arith.negf %125 : vector<8x32xf32>
    %127 = math.exp %126 : vector<8x32xf32>
    %cst_46 = arith.constant 1.000000e+00 : f32
    %128 = vector.broadcast %cst_46 : f32 to vector<8x32xf32>
    %129 = arith.addf %128, %127 : vector<8x32xf32>
    %130 = arith.divf %128, %129 : vector<8x32xf32>
    %131 = vector.extract_strided_slice %112 {offsets = [0, 384], sizes = [8, 32], strides = [1, 1]} : vector<8x512xf32> to vector<8x32xf32>
    %132 = math.tanh %131 : vector<8x32xf32>
    %133 = arith.mulf %124, %67 : vector<8x32xf32>
    %134 = arith.mulf %118, %132 : vector<8x32xf32>
    %135 = arith.addf %133, %134 : vector<8x32xf32>
    %136 = math.tanh %135 : vector<8x32xf32>
    %137 = arith.mulf %130, %136 : vector<8x32xf32>
    %c0_47 = arith.constant 0 : index
    %c0_48 = arith.constant 0 : index
    %138 = vector.load %arg4[%c0_47, %c0_48] : memref<32x512xbf16, #tpu.memory_space<vmem>>, vector<32x512xbf16>
    %cst_49 = arith.constant dense<0.000000e+00> : vector<8x512xf32>
    %139 = tpu.matmul %102, %138, %cst_49 {dimension_numbers = #tpu.dot_dimension_numbers<[1], [0], [0], [1], [0, 0, 1, 1], [], []>} : vector<8x32xbf16>, vector<32x512xbf16>, vector<8x512xf32> -> vector<8x512xf32>
    %c0_50 = arith.constant 0 : index
    %c0_51 = arith.constant 0 : index
    %140 = vector.load %arg5[%c0_50, %c0_51] : memref<32x512xbf16, #tpu.memory_space<vmem>>, vector<32x512xbf16>
    %cst_52 = arith.constant dense<0.000000e+00> : vector<8x512xf32>
    %141 = tpu.matmul %103, %140, %cst_52 {dimension_numbers = #tpu.dot_dimension_numbers<[1], [0], [0], [1], [0, 0, 1, 1], [], []>} : vector<8x32xbf16>, vector<32x512xbf16>, vector<8x512xf32> -> vector<8x512xf32>
    %142 = arith.addf %139, %141 : vector<8x512xf32>
    %c0_53 = arith.constant 0 : index
    %c0_54 = arith.constant 0 : index
    %143 = vector.load %arg6[%c0_53, %c0_54] : memref<8x512xf32, #tpu.memory_space<vmem>>, vector<8x512xf32>
    %144 = arith.addf %142, %143 : vector<8x512xf32>
    %145 = vector.extract_strided_slice %144 {offsets = [0, 0], sizes = [8, 32], strides = [1, 1]} : vector<8x512xf32> to vector<8x32xf32>
    %146 = arith.negf %145 : vector<8x32xf32>
    %147 = math.exp %146 : vector<8x32xf32>
    %cst_55 = arith.constant 1.000000e+00 : f32
    %148 = vector.broadcast %cst_55 : f32 to vector<8x32xf32>
    %149 = arith.addf %148, %147 : vector<8x32xf32>
    %150 = arith.divf %148, %149 : vector<8x32xf32>
    %151 = vector.extract_strided_slice %144 {offsets = [0, 128], sizes = [8, 32], strides = [1, 1]} : vector<8x512xf32> to vector<8x32xf32>
    %152 = arith.negf %151 : vector<8x32xf32>
    %153 = math.exp %152 : vector<8x32xf32>
    %cst_56 = arith.constant 1.000000e+00 : f32
    %154 = vector.broadcast %cst_56 : f32 to vector<8x32xf32>
    %155 = arith.addf %154, %153 : vector<8x32xf32>
    %156 = arith.divf %154, %155 : vector<8x32xf32>
    %157 = vector.extract_strided_slice %144 {offsets = [0, 256], sizes = [8, 32], strides = [1, 1]} : vector<8x512xf32> to vector<8x32xf32>
    %158 = arith.negf %157 : vector<8x32xf32>
    %159 = math.exp %158 : vector<8x32xf32>
    %cst_57 = arith.constant 1.000000e+00 : f32
    %160 = vector.broadcast %cst_57 : f32 to vector<8x32xf32>
    %161 = arith.addf %160, %159 : vector<8x32xf32>
    %162 = arith.divf %160, %161 : vector<8x32xf32>
    %163 = vector.extract_strided_slice %144 {offsets = [0, 384], sizes = [8, 32], strides = [1, 1]} : vector<8x512xf32> to vector<8x32xf32>
    %164 = math.tanh %163 : vector<8x32xf32>
    %165 = arith.mulf %156, %99 : vector<8x32xf32>
    %166 = arith.mulf %150, %164 : vector<8x32xf32>
    %167 = arith.addf %165, %166 : vector<8x32xf32>
    %168 = math.tanh %167 : vector<8x32xf32>
    %169 = arith.mulf %162, %168 : vector<8x32xf32>
    %c0_58 = arith.constant 0 : index
    %c0_59 = arith.constant 0 : index
    %170 = vector.load %arg7[%c0_58, %c0_59] : memref<32x512xbf16, #tpu.memory_space<vmem>>, vector<32x512xbf16>
    %cst_60 = arith.constant dense<0.000000e+00> : vector<8x512xf32>
    %171 = tpu.matmul %103, %170, %cst_60 {dimension_numbers = #tpu.dot_dimension_numbers<[1], [0], [0], [1], [0, 0, 1, 1], [], []>} : vector<8x32xbf16>, vector<32x512xbf16>, vector<8x512xf32> -> vector<8x512xf32>
    %c0_61 = arith.constant 0 : index
    %c0_62 = arith.constant 0 : index
    %172 = vector.load %arg8[%c0_61, %c0_62] : memref<32x512xbf16, #tpu.memory_space<vmem>>, vector<32x512xbf16>
    %cst_63 = arith.constant dense<0.000000e+00> : vector<8x512xf32>
    %173 = tpu.matmul %104, %172, %cst_63 {dimension_numbers = #tpu.dot_dimension_numbers<[1], [0], [0], [1], [0, 0, 1, 1], [], []>} : vector<8x32xbf16>, vector<32x512xbf16>, vector<8x512xf32> -> vector<8x512xf32>
    %174 = arith.addf %171, %173 : vector<8x512xf32>
    %c0_64 = arith.constant 0 : index
    %c0_65 = arith.constant 0 : index
    %175 = vector.load %arg9[%c0_64, %c0_65] : memref<8x512xf32, #tpu.memory_space<vmem>>, vector<8x512xf32>
    %176 = arith.addf %174, %175 : vector<8x512xf32>
    %177 = vector.extract_strided_slice %176 {offsets = [0, 0], sizes = [8, 32], strides = [1, 1]} : vector<8x512xf32> to vector<8x32xf32>
    %178 = arith.negf %177 : vector<8x32xf32>
    %179 = math.exp %178 : vector<8x32xf32>
    %cst_66 = arith.constant 1.000000e+00 : f32
    %180 = vector.broadcast %cst_66 : f32 to vector<8x32xf32>
    %181 = arith.addf %180, %179 : vector<8x32xf32>
    %182 = arith.divf %180, %181 : vector<8x32xf32>
    %183 = vector.extract_strided_slice %176 {offsets = [0, 128], sizes = [8, 32], strides = [1, 1]} : vector<8x512xf32> to vector<8x32xf32>
    %184 = arith.negf %183 : vector<8x32xf32>
    %185 = math.exp %184 : vector<8x32xf32>
    %cst_67 = arith.constant 1.000000e+00 : f32
    %186 = vector.broadcast %cst_67 : f32 to vector<8x32xf32>
    %187 = arith.addf %186, %185 : vector<8x32xf32>
    %188 = arith.divf %186, %187 : vector<8x32xf32>
    %189 = vector.extract_strided_slice %176 {offsets = [0, 256], sizes = [8, 32], strides = [1, 1]} : vector<8x512xf32> to vector<8x32xf32>
    %190 = arith.negf %189 : vector<8x32xf32>
    %191 = math.exp %190 : vector<8x32xf32>
    %cst_68 = arith.constant 1.000000e+00 : f32
    %192 = vector.broadcast %cst_68 : f32 to vector<8x32xf32>
    %193 = arith.addf %192, %191 : vector<8x32xf32>
    %194 = arith.divf %192, %193 : vector<8x32xf32>
    %195 = vector.extract_strided_slice %176 {offsets = [0, 384], sizes = [8, 32], strides = [1, 1]} : vector<8x512xf32> to vector<8x32xf32>
    %196 = math.tanh %195 : vector<8x32xf32>
    %197 = arith.mulf %188, %0 : vector<8x32xf32>
    %198 = arith.mulf %182, %196 : vector<8x32xf32>
    %199 = arith.addf %197, %198 : vector<8x32xf32>
    %200 = math.tanh %199 : vector<8x32xf32>
    %201 = arith.mulf %194, %200 : vector<8x32xf32>
    %202 = arith.truncf %137 : vector<8x32xf32> to vector<8x32xbf16>
    %203 = arith.truncf %169 : vector<8x32xf32> to vector<8x32xbf16>
    %204 = arith.truncf %201 : vector<8x32xf32> to vector<8x32xbf16>
    %c24 = arith.constant 24 : index
    %c0_69 = arith.constant 0 : index
    %205 = vector.load %arg0[%c24, %c0_69] : memref<64x32xbf16, #tpu.memory_space<vmem>>, vector<8x32xbf16>
    %c0_70 = arith.constant 0 : index
    %c0_71 = arith.constant 0 : index
    %206 = vector.load %arg1[%c0_70, %c0_71] : memref<32x512xbf16, #tpu.memory_space<vmem>>, vector<32x512xbf16>
    %cst_72 = arith.constant dense<0.000000e+00> : vector<8x512xf32>
    %207 = tpu.matmul %205, %206, %cst_72 {dimension_numbers = #tpu.dot_dimension_numbers<[1], [0], [0], [1], [0, 0, 1, 1], [], []>} : vector<8x32xbf16>, vector<32x512xbf16>, vector<8x512xf32> -> vector<8x512xf32>
    %c0_73 = arith.constant 0 : index
    %c0_74 = arith.constant 0 : index
    %208 = vector.load %arg2[%c0_73, %c0_74] : memref<32x512xbf16, #tpu.memory_space<vmem>>, vector<32x512xbf16>
    %cst_75 = arith.constant dense<0.000000e+00> : vector<8x512xf32>
    %209 = tpu.matmul %202, %208, %cst_75 {dimension_numbers = #tpu.dot_dimension_numbers<[1], [0], [0], [1], [0, 0, 1, 1], [], []>} : vector<8x32xbf16>, vector<32x512xbf16>, vector<8x512xf32> -> vector<8x512xf32>
    %210 = arith.addf %207, %209 : vector<8x512xf32>
    %c0_76 = arith.constant 0 : index
    %c0_77 = arith.constant 0 : index
    %211 = vector.load %arg3[%c0_76, %c0_77] : memref<8x512xf32, #tpu.memory_space<vmem>>, vector<8x512xf32>
    %212 = arith.addf %210, %211 : vector<8x512xf32>
    %213 = vector.extract_strided_slice %212 {offsets = [0, 0], sizes = [8, 32], strides = [1, 1]} : vector<8x512xf32> to vector<8x32xf32>
    %214 = arith.negf %213 : vector<8x32xf32>
    %215 = math.exp %214 : vector<8x32xf32>
    %cst_78 = arith.constant 1.000000e+00 : f32
    %216 = vector.broadcast %cst_78 : f32 to vector<8x32xf32>
    %217 = arith.addf %216, %215 : vector<8x32xf32>
    %218 = arith.divf %216, %217 : vector<8x32xf32>
    %219 = vector.extract_strided_slice %212 {offsets = [0, 128], sizes = [8, 32], strides = [1, 1]} : vector<8x512xf32> to vector<8x32xf32>
    %220 = arith.negf %219 : vector<8x32xf32>
    %221 = math.exp %220 : vector<8x32xf32>
    %cst_79 = arith.constant 1.000000e+00 : f32
    %222 = vector.broadcast %cst_79 : f32 to vector<8x32xf32>
    %223 = arith.addf %222, %221 : vector<8x32xf32>
    %224 = arith.divf %222, %223 : vector<8x32xf32>
    %225 = vector.extract_strided_slice %212 {offsets = [0, 256], sizes = [8, 32], strides = [1, 1]} : vector<8x512xf32> to vector<8x32xf32>
    %226 = arith.negf %225 : vector<8x32xf32>
    %227 = math.exp %226 : vector<8x32xf32>
    %cst_80 = arith.constant 1.000000e+00 : f32
    %228 = vector.broadcast %cst_80 : f32 to vector<8x32xf32>
    %229 = arith.addf %228, %227 : vector<8x32xf32>
    %230 = arith.divf %228, %229 : vector<8x32xf32>
    %231 = vector.extract_strided_slice %212 {offsets = [0, 384], sizes = [8, 32], strides = [1, 1]} : vector<8x512xf32> to vector<8x32xf32>
    %232 = math.tanh %231 : vector<8x32xf32>
    %233 = arith.mulf %224, %135 : vector<8x32xf32>
    %234 = arith.mulf %218, %232 : vector<8x32xf32>
    %235 = arith.addf %233, %234 : vector<8x32xf32>
    %236 = math.tanh %235 : vector<8x32xf32>
    %237 = arith.mulf %230, %236 : vector<8x32xf32>
    %c0_81 = arith.constant 0 : index
    %c0_82 = arith.constant 0 : index
    %238 = vector.load %arg4[%c0_81, %c0_82] : memref<32x512xbf16, #tpu.memory_space<vmem>>, vector<32x512xbf16>
    %cst_83 = arith.constant dense<0.000000e+00> : vector<8x512xf32>
    %239 = tpu.matmul %202, %238, %cst_83 {dimension_numbers = #tpu.dot_dimension_numbers<[1], [0], [0], [1], [0, 0, 1, 1], [], []>} : vector<8x32xbf16>, vector<32x512xbf16>, vector<8x512xf32> -> vector<8x512xf32>
    %c0_84 = arith.constant 0 : index
    %c0_85 = arith.constant 0 : index
    %240 = vector.load %arg5[%c0_84, %c0_85] : memref<32x512xbf16, #tpu.memory_space<vmem>>, vector<32x512xbf16>
    %cst_86 = arith.constant dense<0.000000e+00> : vector<8x512xf32>
    %241 = tpu.matmul %203, %240, %cst_86 {dimension_numbers = #tpu.dot_dimension_numbers<[1], [0], [0], [1], [0, 0, 1, 1], [], []>} : vector<8x32xbf16>, vector<32x512xbf16>, vector<8x512xf32> -> vector<8x512xf32>
    %242 = arith.addf %239, %241 : vector<8x512xf32>
    %c0_87 = arith.constant 0 : index
    %c0_88 = arith.constant 0 : index
    %243 = vector.load %arg6[%c0_87, %c0_88] : memref<8x512xf32, #tpu.memory_space<vmem>>, vector<8x512xf32>
    %244 = arith.addf %242, %243 : vector<8x512xf32>
    %245 = vector.extract_strided_slice %244 {offsets = [0, 0], sizes = [8, 32], strides = [1, 1]} : vector<8x512xf32> to vector<8x32xf32>
    %246 = arith.negf %245 : vector<8x32xf32>
    %247 = math.exp %246 : vector<8x32xf32>
    %cst_89 = arith.constant 1.000000e+00 : f32
    %248 = vector.broadcast %cst_89 : f32 to vector<8x32xf32>
    %249 = arith.addf %248, %247 : vector<8x32xf32>
    %250 = arith.divf %248, %249 : vector<8x32xf32>
    %251 = vector.extract_strided_slice %244 {offsets = [0, 128], sizes = [8, 32], strides = [1, 1]} : vector<8x512xf32> to vector<8x32xf32>
    %252 = arith.negf %251 : vector<8x32xf32>
    %253 = math.exp %252 : vector<8x32xf32>
    %cst_90 = arith.constant 1.000000e+00 : f32
    %254 = vector.broadcast %cst_90 : f32 to vector<8x32xf32>
    %255 = arith.addf %254, %253 : vector<8x32xf32>
    %256 = arith.divf %254, %255 : vector<8x32xf32>
    %257 = vector.extract_strided_slice %244 {offsets = [0, 256], sizes = [8, 32], strides = [1, 1]} : vector<8x512xf32> to vector<8x32xf32>
    %258 = arith.negf %257 : vector<8x32xf32>
    %259 = math.exp %258 : vector<8x32xf32>
    %cst_91 = arith.constant 1.000000e+00 : f32
    %260 = vector.broadcast %cst_91 : f32 to vector<8x32xf32>
    %261 = arith.addf %260, %259 : vector<8x32xf32>
    %262 = arith.divf %260, %261 : vector<8x32xf32>
    %263 = vector.extract_strided_slice %244 {offsets = [0, 384], sizes = [8, 32], strides = [1, 1]} : vector<8x512xf32> to vector<8x32xf32>
    %264 = math.tanh %263 : vector<8x32xf32>
    %265 = arith.mulf %256, %167 : vector<8x32xf32>
    %266 = arith.mulf %250, %264 : vector<8x32xf32>
    %267 = arith.addf %265, %266 : vector<8x32xf32>
    %268 = math.tanh %267 : vector<8x32xf32>
    %269 = arith.mulf %262, %268 : vector<8x32xf32>
    %c0_92 = arith.constant 0 : index
    %c0_93 = arith.constant 0 : index
    %270 = vector.load %arg7[%c0_92, %c0_93] : memref<32x512xbf16, #tpu.memory_space<vmem>>, vector<32x512xbf16>
    %cst_94 = arith.constant dense<0.000000e+00> : vector<8x512xf32>
    %271 = tpu.matmul %203, %270, %cst_94 {dimension_numbers = #tpu.dot_dimension_numbers<[1], [0], [0], [1], [0, 0, 1, 1], [], []>} : vector<8x32xbf16>, vector<32x512xbf16>, vector<8x512xf32> -> vector<8x512xf32>
    %c0_95 = arith.constant 0 : index
    %c0_96 = arith.constant 0 : index
    %272 = vector.load %arg8[%c0_95, %c0_96] : memref<32x512xbf16, #tpu.memory_space<vmem>>, vector<32x512xbf16>
    %cst_97 = arith.constant dense<0.000000e+00> : vector<8x512xf32>
    %273 = tpu.matmul %204, %272, %cst_97 {dimension_numbers = #tpu.dot_dimension_numbers<[1], [0], [0], [1], [0, 0, 1, 1], [], []>} : vector<8x32xbf16>, vector<32x512xbf16>, vector<8x512xf32> -> vector<8x512xf32>
    %274 = arith.addf %271, %273 : vector<8x512xf32>
    %c0_98 = arith.constant 0 : index
    %c0_99 = arith.constant 0 : index
    %275 = vector.load %arg9[%c0_98, %c0_99] : memref<8x512xf32, #tpu.memory_space<vmem>>, vector<8x512xf32>
    %276 = arith.addf %274, %275 : vector<8x512xf32>
    %277 = vector.extract_strided_slice %276 {offsets = [0, 0], sizes = [8, 32], strides = [1, 1]} : vector<8x512xf32> to vector<8x32xf32>
    %278 = arith.negf %277 : vector<8x32xf32>
    %279 = math.exp %278 : vector<8x32xf32>
    %cst_100 = arith.constant 1.000000e+00 : f32
    %280 = vector.broadcast %cst_100 : f32 to vector<8x32xf32>
    %281 = arith.addf %280, %279 : vector<8x32xf32>
    %282 = arith.divf %280, %281 : vector<8x32xf32>
    %283 = vector.extract_strided_slice %276 {offsets = [0, 128], sizes = [8, 32], strides = [1, 1]} : vector<8x512xf32> to vector<8x32xf32>
    %284 = arith.negf %283 : vector<8x32xf32>
    %285 = math.exp %284 : vector<8x32xf32>
    %cst_101 = arith.constant 1.000000e+00 : f32
    %286 = vector.broadcast %cst_101 : f32 to vector<8x32xf32>
    %287 = arith.addf %286, %285 : vector<8x32xf32>
    %288 = arith.divf %286, %287 : vector<8x32xf32>
    %289 = vector.extract_strided_slice %276 {offsets = [0, 256], sizes = [8, 32], strides = [1, 1]} : vector<8x512xf32> to vector<8x32xf32>
    %290 = arith.negf %289 : vector<8x32xf32>
    %291 = math.exp %290 : vector<8x32xf32>
    %cst_102 = arith.constant 1.000000e+00 : f32
    %292 = vector.broadcast %cst_102 : f32 to vector<8x32xf32>
    %293 = arith.addf %292, %291 : vector<8x32xf32>
    %294 = arith.divf %292, %293 : vector<8x32xf32>
    %295 = vector.extract_strided_slice %276 {offsets = [0, 384], sizes = [8, 32], strides = [1, 1]} : vector<8x512xf32> to vector<8x32xf32>
    %296 = math.tanh %295 : vector<8x32xf32>
    %297 = arith.mulf %288, %199 : vector<8x32xf32>
    %298 = arith.mulf %282, %296 : vector<8x32xf32>
    %299 = arith.addf %297, %298 : vector<8x32xf32>
    %300 = math.tanh %299 : vector<8x32xf32>
    %301 = arith.mulf %294, %300 : vector<8x32xf32>
    %302 = arith.truncf %237 : vector<8x32xf32> to vector<8x32xbf16>
    %303 = arith.truncf %269 : vector<8x32xf32> to vector<8x32xbf16>
    %304 = arith.truncf %301 : vector<8x32xf32> to vector<8x32xbf16>
    %c32 = arith.constant 32 : index
    %c0_103 = arith.constant 0 : index
    %305 = vector.load %arg0[%c32, %c0_103] : memref<64x32xbf16, #tpu.memory_space<vmem>>, vector<8x32xbf16>
    %c0_104 = arith.constant 0 : index
    %c0_105 = arith.constant 0 : index
    %306 = vector.load %arg1[%c0_104, %c0_105] : memref<32x512xbf16, #tpu.memory_space<vmem>>, vector<32x512xbf16>
    %cst_106 = arith.constant dense<0.000000e+00> : vector<8x512xf32>
    %307 = tpu.matmul %305, %306, %cst_106 {dimension_numbers = #tpu.dot_dimension_numbers<[1], [0], [0], [1], [0, 0, 1, 1], [], []>} : vector<8x32xbf16>, vector<32x512xbf16>, vector<8x512xf32> -> vector<8x512xf32>
    %c0_107 = arith.constant 0 : index
    %c0_108 = arith.constant 0 : index
    %308 = vector.load %arg2[%c0_107, %c0_108] : memref<32x512xbf16, #tpu.memory_space<vmem>>, vector<32x512xbf16>
    %cst_109 = arith.constant dense<0.000000e+00> : vector<8x512xf32>
    %309 = tpu.matmul %302, %308, %cst_109 {dimension_numbers = #tpu.dot_dimension_numbers<[1], [0], [0], [1], [0, 0, 1, 1], [], []>} : vector<8x32xbf16>, vector<32x512xbf16>, vector<8x512xf32> -> vector<8x512xf32>
    %310 = arith.addf %307, %309 : vector<8x512xf32>
    %c0_110 = arith.constant 0 : index
    %c0_111 = arith.constant 0 : index
    %311 = vector.load %arg3[%c0_110, %c0_111] : memref<8x512xf32, #tpu.memory_space<vmem>>, vector<8x512xf32>
    %312 = arith.addf %310, %311 : vector<8x512xf32>
    %313 = vector.extract_strided_slice %312 {offsets = [0, 0], sizes = [8, 32], strides = [1, 1]} : vector<8x512xf32> to vector<8x32xf32>
    %314 = arith.negf %313 : vector<8x32xf32>
    %315 = math.exp %314 : vector<8x32xf32>
    %cst_112 = arith.constant 1.000000e+00 : f32
    %316 = vector.broadcast %cst_112 : f32 to vector<8x32xf32>
    %317 = arith.addf %316, %315 : vector<8x32xf32>
    %318 = arith.divf %316, %317 : vector<8x32xf32>
    %319 = vector.extract_strided_slice %312 {offsets = [0, 128], sizes = [8, 32], strides = [1, 1]} : vector<8x512xf32> to vector<8x32xf32>
    %320 = arith.negf %319 : vector<8x32xf32>
    %321 = math.exp %320 : vector<8x32xf32>
    %cst_113 = arith.constant 1.000000e+00 : f32
    %322 = vector.broadcast %cst_113 : f32 to vector<8x32xf32>
    %323 = arith.addf %322, %321 : vector<8x32xf32>
    %324 = arith.divf %322, %323 : vector<8x32xf32>
    %325 = vector.extract_strided_slice %312 {offsets = [0, 256], sizes = [8, 32], strides = [1, 1]} : vector<8x512xf32> to vector<8x32xf32>
    %326 = arith.negf %325 : vector<8x32xf32>
    %327 = math.exp %326 : vector<8x32xf32>
    %cst_114 = arith.constant 1.000000e+00 : f32
    %328 = vector.broadcast %cst_114 : f32 to vector<8x32xf32>
    %329 = arith.addf %328, %327 : vector<8x32xf32>
    %330 = arith.divf %328, %329 : vector<8x32xf32>
    %331 = vector.extract_strided_slice %312 {offsets = [0, 384], sizes = [8, 32], strides = [1, 1]} : vector<8x512xf32> to vector<8x32xf32>
    %332 = math.tanh %331 : vector<8x32xf32>
    %333 = arith.mulf %324, %235 : vector<8x32xf32>
    %334 = arith.mulf %318, %332 : vector<8x32xf32>
    %335 = arith.addf %333, %334 : vector<8x32xf32>
    %336 = math.tanh %335 : vector<8x32xf32>
    %337 = arith.mulf %330, %336 : vector<8x32xf32>
    %c0_115 = arith.constant 0 : index
    %c0_116 = arith.constant 0 : index
    %338 = vector.load %arg4[%c0_115, %c0_116] : memref<32x512xbf16, #tpu.memory_space<vmem>>, vector<32x512xbf16>
    %cst_117 = arith.constant dense<0.000000e+00> : vector<8x512xf32>
    %339 = tpu.matmul %302, %338, %cst_117 {dimension_numbers = #tpu.dot_dimension_numbers<[1], [0], [0], [1], [0, 0, 1, 1], [], []>} : vector<8x32xbf16>, vector<32x512xbf16>, vector<8x512xf32> -> vector<8x512xf32>
    %c0_118 = arith.constant 0 : index
    %c0_119 = arith.constant 0 : index
    %340 = vector.load %arg5[%c0_118, %c0_119] : memref<32x512xbf16, #tpu.memory_space<vmem>>, vector<32x512xbf16>
    %cst_120 = arith.constant dense<0.000000e+00> : vector<8x512xf32>
    %341 = tpu.matmul %303, %340, %cst_120 {dimension_numbers = #tpu.dot_dimension_numbers<[1], [0], [0], [1], [0, 0, 1, 1], [], []>} : vector<8x32xbf16>, vector<32x512xbf16>, vector<8x512xf32> -> vector<8x512xf32>
    %342 = arith.addf %339, %341 : vector<8x512xf32>
    %c0_121 = arith.constant 0 : index
    %c0_122 = arith.constant 0 : index
    %343 = vector.load %arg6[%c0_121, %c0_122] : memref<8x512xf32, #tpu.memory_space<vmem>>, vector<8x512xf32>
    %344 = arith.addf %342, %343 : vector<8x512xf32>
    %345 = vector.extract_strided_slice %344 {offsets = [0, 0], sizes = [8, 32], strides = [1, 1]} : vector<8x512xf32> to vector<8x32xf32>
    %346 = arith.negf %345 : vector<8x32xf32>
    %347 = math.exp %346 : vector<8x32xf32>
    %cst_123 = arith.constant 1.000000e+00 : f32
    %348 = vector.broadcast %cst_123 : f32 to vector<8x32xf32>
    %349 = arith.addf %348, %347 : vector<8x32xf32>
    %350 = arith.divf %348, %349 : vector<8x32xf32>
    %351 = vector.extract_strided_slice %344 {offsets = [0, 128], sizes = [8, 32], strides = [1, 1]} : vector<8x512xf32> to vector<8x32xf32>
    %352 = arith.negf %351 : vector<8x32xf32>
    %353 = math.exp %352 : vector<8x32xf32>
    %cst_124 = arith.constant 1.000000e+00 : f32
    %354 = vector.broadcast %cst_124 : f32 to vector<8x32xf32>
    %355 = arith.addf %354, %353 : vector<8x32xf32>
    %356 = arith.divf %354, %355 : vector<8x32xf32>
    %357 = vector.extract_strided_slice %344 {offsets = [0, 256], sizes = [8, 32], strides = [1, 1]} : vector<8x512xf32> to vector<8x32xf32>
    %358 = arith.negf %357 : vector<8x32xf32>
    %359 = math.exp %358 : vector<8x32xf32>
    %cst_125 = arith.constant 1.000000e+00 : f32
    %360 = vector.broadcast %cst_125 : f32 to vector<8x32xf32>
    %361 = arith.addf %360, %359 : vector<8x32xf32>
    %362 = arith.divf %360, %361 : vector<8x32xf32>
    %363 = vector.extract_strided_slice %344 {offsets = [0, 384], sizes = [8, 32], strides = [1, 1]} : vector<8x512xf32> to vector<8x32xf32>
    %364 = math.tanh %363 : vector<8x32xf32>
    %365 = arith.mulf %356, %267 : vector<8x32xf32>
    %366 = arith.mulf %350, %364 : vector<8x32xf32>
    %367 = arith.addf %365, %366 : vector<8x32xf32>
    %368 = math.tanh %367 : vector<8x32xf32>
    %369 = arith.mulf %362, %368 : vector<8x32xf32>
    %c0_126 = arith.constant 0 : index
    %c0_127 = arith.constant 0 : index
    %370 = vector.load %arg7[%c0_126, %c0_127] : memref<32x512xbf16, #tpu.memory_space<vmem>>, vector<32x512xbf16>
    %cst_128 = arith.constant dense<0.000000e+00> : vector<8x512xf32>
    %371 = tpu.matmul %303, %370, %cst_128 {dimension_numbers = #tpu.dot_dimension_numbers<[1], [0], [0], [1], [0, 0, 1, 1], [], []>} : vector<8x32xbf16>, vector<32x512xbf16>, vector<8x512xf32> -> vector<8x512xf32>
    %c0_129 = arith.constant 0 : index
    %c0_130 = arith.constant 0 : index
    %372 = vector.load %arg8[%c0_129, %c0_130] : memref<32x512xbf16, #tpu.memory_space<vmem>>, vector<32x512xbf16>
    %cst_131 = arith.constant dense<0.000000e+00> : vector<8x512xf32>
    %373 = tpu.matmul %304, %372, %cst_131 {dimension_numbers = #tpu.dot_dimension_numbers<[1], [0], [0], [1], [0, 0, 1, 1], [], []>} : vector<8x32xbf16>, vector<32x512xbf16>, vector<8x512xf32> -> vector<8x512xf32>
    %374 = arith.addf %371, %373 : vector<8x512xf32>
    %c0_132 = arith.constant 0 : index
    %c0_133 = arith.constant 0 : index
    %375 = vector.load %arg9[%c0_132, %c0_133] : memref<8x512xf32, #tpu.memory_space<vmem>>, vector<8x512xf32>
    %376 = arith.addf %374, %375 : vector<8x512xf32>
    %377 = vector.extract_strided_slice %376 {offsets = [0, 0], sizes = [8, 32], strides = [1, 1]} : vector<8x512xf32> to vector<8x32xf32>
    %378 = arith.negf %377 : vector<8x32xf32>
    %379 = math.exp %378 : vector<8x32xf32>
    %cst_134 = arith.constant 1.000000e+00 : f32
    %380 = vector.broadcast %cst_134 : f32 to vector<8x32xf32>
    %381 = arith.addf %380, %379 : vector<8x32xf32>
    %382 = arith.divf %380, %381 : vector<8x32xf32>
    %383 = vector.extract_strided_slice %376 {offsets = [0, 128], sizes = [8, 32], strides = [1, 1]} : vector<8x512xf32> to vector<8x32xf32>
    %384 = arith.negf %383 : vector<8x32xf32>
    %385 = math.exp %384 : vector<8x32xf32>
    %cst_135 = arith.constant 1.000000e+00 : f32
    %386 = vector.broadcast %cst_135 : f32 to vector<8x32xf32>
    %387 = arith.addf %386, %385 : vector<8x32xf32>
    %388 = arith.divf %386, %387 : vector<8x32xf32>
    %389 = vector.extract_strided_slice %376 {offsets = [0, 256], sizes = [8, 32], strides = [1, 1]} : vector<8x512xf32> to vector<8x32xf32>
    %390 = arith.negf %389 : vector<8x32xf32>
    %391 = math.exp %390 : vector<8x32xf32>
    %cst_136 = arith.constant 1.000000e+00 : f32
    %392 = vector.broadcast %cst_136 : f32 to vector<8x32xf32>
    %393 = arith.addf %392, %391 : vector<8x32xf32>
    %394 = arith.divf %392, %393 : vector<8x32xf32>
    %395 = vector.extract_strided_slice %376 {offsets = [0, 384], sizes = [8, 32], strides = [1, 1]} : vector<8x512xf32> to vector<8x32xf32>
    %396 = math.tanh %395 : vector<8x32xf32>
    %397 = arith.mulf %388, %299 : vector<8x32xf32>
    %398 = arith.mulf %382, %396 : vector<8x32xf32>
    %399 = arith.addf %397, %398 : vector<8x32xf32>
    %400 = math.tanh %399 : vector<8x32xf32>
    %401 = arith.mulf %394, %400 : vector<8x32xf32>
    %402 = arith.truncf %337 : vector<8x32xf32> to vector<8x32xbf16>
    %403 = arith.truncf %369 : vector<8x32xf32> to vector<8x32xbf16>
    %404 = arith.truncf %401 : vector<8x32xf32> to vector<8x32xbf16>
    %c40 = arith.constant 40 : index
    %c0_137 = arith.constant 0 : index
    %405 = vector.load %arg0[%c40, %c0_137] : memref<64x32xbf16, #tpu.memory_space<vmem>>, vector<8x32xbf16>
    %c0_138 = arith.constant 0 : index
    %c0_139 = arith.constant 0 : index
    %406 = vector.load %arg1[%c0_138, %c0_139] : memref<32x512xbf16, #tpu.memory_space<vmem>>, vector<32x512xbf16>
    %cst_140 = arith.constant dense<0.000000e+00> : vector<8x512xf32>
    %407 = tpu.matmul %405, %406, %cst_140 {dimension_numbers = #tpu.dot_dimension_numbers<[1], [0], [0], [1], [0, 0, 1, 1], [], []>} : vector<8x32xbf16>, vector<32x512xbf16>, vector<8x512xf32> -> vector<8x512xf32>
    %c0_141 = arith.constant 0 : index
    %c0_142 = arith.constant 0 : index
    %408 = vector.load %arg2[%c0_141, %c0_142] : memref<32x512xbf16, #tpu.memory_space<vmem>>, vector<32x512xbf16>
    %cst_143 = arith.constant dense<0.000000e+00> : vector<8x512xf32>
    %409 = tpu.matmul %402, %408, %cst_143 {dimension_numbers = #tpu.dot_dimension_numbers<[1], [0], [0], [1], [0, 0, 1, 1], [], []>} : vector<8x32xbf16>, vector<32x512xbf16>, vector<8x512xf32> -> vector<8x512xf32>
    %410 = arith.addf %407, %409 : vector<8x512xf32>
    %c0_144 = arith.constant 0 : index
    %c0_145 = arith.constant 0 : index
    %411 = vector.load %arg3[%c0_144, %c0_145] : memref<8x512xf32, #tpu.memory_space<vmem>>, vector<8x512xf32>
    %412 = arith.addf %410, %411 : vector<8x512xf32>
    %413 = vector.extract_strided_slice %412 {offsets = [0, 0], sizes = [8, 32], strides = [1, 1]} : vector<8x512xf32> to vector<8x32xf32>
    %414 = arith.negf %413 : vector<8x32xf32>
    %415 = math.exp %414 : vector<8x32xf32>
    %cst_146 = arith.constant 1.000000e+00 : f32
    %416 = vector.broadcast %cst_146 : f32 to vector<8x32xf32>
    %417 = arith.addf %416, %415 : vector<8x32xf32>
    %418 = arith.divf %416, %417 : vector<8x32xf32>
    %419 = vector.extract_strided_slice %412 {offsets = [0, 128], sizes = [8, 32], strides = [1, 1]} : vector<8x512xf32> to vector<8x32xf32>
    %420 = arith.negf %419 : vector<8x32xf32>
    %421 = math.exp %420 : vector<8x32xf32>
    %cst_147 = arith.constant 1.000000e+00 : f32
    %422 = vector.broadcast %cst_147 : f32 to vector<8x32xf32>
    %423 = arith.addf %422, %421 : vector<8x32xf32>
    %424 = arith.divf %422, %423 : vector<8x32xf32>
    %425 = vector.extract_strided_slice %412 {offsets = [0, 256], sizes = [8, 32], strides = [1, 1]} : vector<8x512xf32> to vector<8x32xf32>
    %426 = arith.negf %425 : vector<8x32xf32>
    %427 = math.exp %426 : vector<8x32xf32>
    %cst_148 = arith.constant 1.000000e+00 : f32
    %428 = vector.broadcast %cst_148 : f32 to vector<8x32xf32>
    %429 = arith.addf %428, %427 : vector<8x32xf32>
    %430 = arith.divf %428, %429 : vector<8x32xf32>
    %431 = vector.extract_strided_slice %412 {offsets = [0, 384], sizes = [8, 32], strides = [1, 1]} : vector<8x512xf32> to vector<8x32xf32>
    %432 = math.tanh %431 : vector<8x32xf32>
    %433 = arith.mulf %424, %335 : vector<8x32xf32>
    %434 = arith.mulf %418, %432 : vector<8x32xf32>
    %435 = arith.addf %433, %434 : vector<8x32xf32>
    %436 = math.tanh %435 : vector<8x32xf32>
    %437 = arith.mulf %430, %436 : vector<8x32xf32>
    %c0_149 = arith.constant 0 : index
    %c0_150 = arith.constant 0 : index
    %438 = vector.load %arg4[%c0_149, %c0_150] : memref<32x512xbf16, #tpu.memory_space<vmem>>, vector<32x512xbf16>
    %cst_151 = arith.constant dense<0.000000e+00> : vector<8x512xf32>
    %439 = tpu.matmul %402, %438, %cst_151 {dimension_numbers = #tpu.dot_dimension_numbers<[1], [0], [0], [1], [0, 0, 1, 1], [], []>} : vector<8x32xbf16>, vector<32x512xbf16>, vector<8x512xf32> -> vector<8x512xf32>
    %c0_152 = arith.constant 0 : index
    %c0_153 = arith.constant 0 : index
    %440 = vector.load %arg5[%c0_152, %c0_153] : memref<32x512xbf16, #tpu.memory_space<vmem>>, vector<32x512xbf16>
    %cst_154 = arith.constant dense<0.000000e+00> : vector<8x512xf32>
    %441 = tpu.matmul %403, %440, %cst_154 {dimension_numbers = #tpu.dot_dimension_numbers<[1], [0], [0], [1], [0, 0, 1, 1], [], []>} : vector<8x32xbf16>, vector<32x512xbf16>, vector<8x512xf32> -> vector<8x512xf32>
    %442 = arith.addf %439, %441 : vector<8x512xf32>
    %c0_155 = arith.constant 0 : index
    %c0_156 = arith.constant 0 : index
    %443 = vector.load %arg6[%c0_155, %c0_156] : memref<8x512xf32, #tpu.memory_space<vmem>>, vector<8x512xf32>
    %444 = arith.addf %442, %443 : vector<8x512xf32>
    %445 = vector.extract_strided_slice %444 {offsets = [0, 0], sizes = [8, 32], strides = [1, 1]} : vector<8x512xf32> to vector<8x32xf32>
    %446 = arith.negf %445 : vector<8x32xf32>
    %447 = math.exp %446 : vector<8x32xf32>
    %cst_157 = arith.constant 1.000000e+00 : f32
    %448 = vector.broadcast %cst_157 : f32 to vector<8x32xf32>
    %449 = arith.addf %448, %447 : vector<8x32xf32>
    %450 = arith.divf %448, %449 : vector<8x32xf32>
    %451 = vector.extract_strided_slice %444 {offsets = [0, 128], sizes = [8, 32], strides = [1, 1]} : vector<8x512xf32> to vector<8x32xf32>
    %452 = arith.negf %451 : vector<8x32xf32>
    %453 = math.exp %452 : vector<8x32xf32>
    %cst_158 = arith.constant 1.000000e+00 : f32
    %454 = vector.broadcast %cst_158 : f32 to vector<8x32xf32>
    %455 = arith.addf %454, %453 : vector<8x32xf32>
    %456 = arith.divf %454, %455 : vector<8x32xf32>
    %457 = vector.extract_strided_slice %444 {offsets = [0, 256], sizes = [8, 32], strides = [1, 1]} : vector<8x512xf32> to vector<8x32xf32>
    %458 = arith.negf %457 : vector<8x32xf32>
    %459 = math.exp %458 : vector<8x32xf32>
    %cst_159 = arith.constant 1.000000e+00 : f32
    %460 = vector.broadcast %cst_159 : f32 to vector<8x32xf32>
    %461 = arith.addf %460, %459 : vector<8x32xf32>
    %462 = arith.divf %460, %461 : vector<8x32xf32>
    %463 = vector.extract_strided_slice %444 {offsets = [0, 384], sizes = [8, 32], strides = [1, 1]} : vector<8x512xf32> to vector<8x32xf32>
    %464 = math.tanh %463 : vector<8x32xf32>
    %465 = arith.mulf %456, %367 : vector<8x32xf32>
    %466 = arith.mulf %450, %464 : vector<8x32xf32>
    %467 = arith.addf %465, %466 : vector<8x32xf32>
    %468 = math.tanh %467 : vector<8x32xf32>
    %469 = arith.mulf %462, %468 : vector<8x32xf32>
    %c0_160 = arith.constant 0 : index
    %c0_161 = arith.constant 0 : index
    %470 = vector.load %arg7[%c0_160, %c0_161] : memref<32x512xbf16, #tpu.memory_space<vmem>>, vector<32x512xbf16>
    %cst_162 = arith.constant dense<0.000000e+00> : vector<8x512xf32>
    %471 = tpu.matmul %403, %470, %cst_162 {dimension_numbers = #tpu.dot_dimension_numbers<[1], [0], [0], [1], [0, 0, 1, 1], [], []>} : vector<8x32xbf16>, vector<32x512xbf16>, vector<8x512xf32> -> vector<8x512xf32>
    %c0_163 = arith.constant 0 : index
    %c0_164 = arith.constant 0 : index
    %472 = vector.load %arg8[%c0_163, %c0_164] : memref<32x512xbf16, #tpu.memory_space<vmem>>, vector<32x512xbf16>
    %cst_165 = arith.constant dense<0.000000e+00> : vector<8x512xf32>
    %473 = tpu.matmul %404, %472, %cst_165 {dimension_numbers = #tpu.dot_dimension_numbers<[1], [0], [0], [1], [0, 0, 1, 1], [], []>} : vector<8x32xbf16>, vector<32x512xbf16>, vector<8x512xf32> -> vector<8x512xf32>
    %474 = arith.addf %471, %473 : vector<8x512xf32>
    %c0_166 = arith.constant 0 : index
    %c0_167 = arith.constant 0 : index
    %475 = vector.load %arg9[%c0_166, %c0_167] : memref<8x512xf32, #tpu.memory_space<vmem>>, vector<8x512xf32>
    %476 = arith.addf %474, %475 : vector<8x512xf32>
    %477 = vector.extract_strided_slice %476 {offsets = [0, 0], sizes = [8, 32], strides = [1, 1]} : vector<8x512xf32> to vector<8x32xf32>
    %478 = arith.negf %477 : vector<8x32xf32>
    %479 = math.exp %478 : vector<8x32xf32>
    %cst_168 = arith.constant 1.000000e+00 : f32
    %480 = vector.broadcast %cst_168 : f32 to vector<8x32xf32>
    %481 = arith.addf %480, %479 : vector<8x32xf32>
    %482 = arith.divf %480, %481 : vector<8x32xf32>
    %483 = vector.extract_strided_slice %476 {offsets = [0, 128], sizes = [8, 32], strides = [1, 1]} : vector<8x512xf32> to vector<8x32xf32>
    %484 = arith.negf %483 : vector<8x32xf32>
    %485 = math.exp %484 : vector<8x32xf32>
    %cst_169 = arith.constant 1.000000e+00 : f32
    %486 = vector.broadcast %cst_169 : f32 to vector<8x32xf32>
    %487 = arith.addf %486, %485 : vector<8x32xf32>
    %488 = arith.divf %486, %487 : vector<8x32xf32>
    %489 = vector.extract_strided_slice %476 {offsets = [0, 256], sizes = [8, 32], strides = [1, 1]} : vector<8x512xf32> to vector<8x32xf32>
    %490 = arith.negf %489 : vector<8x32xf32>
    %491 = math.exp %490 : vector<8x32xf32>
    %cst_170 = arith.constant 1.000000e+00 : f32
    %492 = vector.broadcast %cst_170 : f32 to vector<8x32xf32>
    %493 = arith.addf %492, %491 : vector<8x32xf32>
    %494 = arith.divf %492, %493 : vector<8x32xf32>
    %495 = vector.extract_strided_slice %476 {offsets = [0, 384], sizes = [8, 32], strides = [1, 1]} : vector<8x512xf32> to vector<8x32xf32>
    %496 = math.tanh %495 : vector<8x32xf32>
    %497 = arith.mulf %488, %399 : vector<8x32xf32>
    %498 = arith.mulf %482, %496 : vector<8x32xf32>
    %499 = arith.addf %497, %498 : vector<8x32xf32>
    %500 = math.tanh %499 : vector<8x32xf32>
    %501 = arith.mulf %494, %500 : vector<8x32xf32>
    %502 = arith.truncf %437 : vector<8x32xf32> to vector<8x32xbf16>
    %503 = arith.truncf %469 : vector<8x32xf32> to vector<8x32xbf16>
    %504 = arith.truncf %501 : vector<8x32xf32> to vector<8x32xbf16>
    %c48 = arith.constant 48 : index
    %c0_171 = arith.constant 0 : index
    %505 = vector.load %arg0[%c48, %c0_171] : memref<64x32xbf16, #tpu.memory_space<vmem>>, vector<8x32xbf16>
    %c0_172 = arith.constant 0 : index
    %c0_173 = arith.constant 0 : index
    %506 = vector.load %arg1[%c0_172, %c0_173] : memref<32x512xbf16, #tpu.memory_space<vmem>>, vector<32x512xbf16>
    %cst_174 = arith.constant dense<0.000000e+00> : vector<8x512xf32>
    %507 = tpu.matmul %505, %506, %cst_174 {dimension_numbers = #tpu.dot_dimension_numbers<[1], [0], [0], [1], [0, 0, 1, 1], [], []>} : vector<8x32xbf16>, vector<32x512xbf16>, vector<8x512xf32> -> vector<8x512xf32>
    %c0_175 = arith.constant 0 : index
    %c0_176 = arith.constant 0 : index
    %508 = vector.load %arg2[%c0_175, %c0_176] : memref<32x512xbf16, #tpu.memory_space<vmem>>, vector<32x512xbf16>
    %cst_177 = arith.constant dense<0.000000e+00> : vector<8x512xf32>
    %509 = tpu.matmul %502, %508, %cst_177 {dimension_numbers = #tpu.dot_dimension_numbers<[1], [0], [0], [1], [0, 0, 1, 1], [], []>} : vector<8x32xbf16>, vector<32x512xbf16>, vector<8x512xf32> -> vector<8x512xf32>
    %510 = arith.addf %507, %509 : vector<8x512xf32>
    %c0_178 = arith.constant 0 : index
    %c0_179 = arith.constant 0 : index
    %511 = vector.load %arg3[%c0_178, %c0_179] : memref<8x512xf32, #tpu.memory_space<vmem>>, vector<8x512xf32>
    %512 = arith.addf %510, %511 : vector<8x512xf32>
    %513 = vector.extract_strided_slice %512 {offsets = [0, 0], sizes = [8, 32], strides = [1, 1]} : vector<8x512xf32> to vector<8x32xf32>
    %514 = arith.negf %513 : vector<8x32xf32>
    %515 = math.exp %514 : vector<8x32xf32>
    %cst_180 = arith.constant 1.000000e+00 : f32
    %516 = vector.broadcast %cst_180 : f32 to vector<8x32xf32>
    %517 = arith.addf %516, %515 : vector<8x32xf32>
    %518 = arith.divf %516, %517 : vector<8x32xf32>
    %519 = vector.extract_strided_slice %512 {offsets = [0, 128], sizes = [8, 32], strides = [1, 1]} : vector<8x512xf32> to vector<8x32xf32>
    %520 = arith.negf %519 : vector<8x32xf32>
    %521 = math.exp %520 : vector<8x32xf32>
    %cst_181 = arith.constant 1.000000e+00 : f32
    %522 = vector.broadcast %cst_181 : f32 to vector<8x32xf32>
    %523 = arith.addf %522, %521 : vector<8x32xf32>
    %524 = arith.divf %522, %523 : vector<8x32xf32>
    %525 = vector.extract_strided_slice %512 {offsets = [0, 256], sizes = [8, 32], strides = [1, 1]} : vector<8x512xf32> to vector<8x32xf32>
    %526 = arith.negf %525 : vector<8x32xf32>
    %527 = math.exp %526 : vector<8x32xf32>
    %cst_182 = arith.constant 1.000000e+00 : f32
    %528 = vector.broadcast %cst_182 : f32 to vector<8x32xf32>
    %529 = arith.addf %528, %527 : vector<8x32xf32>
    %530 = arith.divf %528, %529 : vector<8x32xf32>
    %531 = vector.extract_strided_slice %512 {offsets = [0, 384], sizes = [8, 32], strides = [1, 1]} : vector<8x512xf32> to vector<8x32xf32>
    %532 = math.tanh %531 : vector<8x32xf32>
    %533 = arith.mulf %524, %435 : vector<8x32xf32>
    %534 = arith.mulf %518, %532 : vector<8x32xf32>
    %535 = arith.addf %533, %534 : vector<8x32xf32>
    %536 = math.tanh %535 : vector<8x32xf32>
    %537 = arith.mulf %530, %536 : vector<8x32xf32>
    %c0_183 = arith.constant 0 : index
    %c0_184 = arith.constant 0 : index
    %538 = vector.load %arg4[%c0_183, %c0_184] : memref<32x512xbf16, #tpu.memory_space<vmem>>, vector<32x512xbf16>
    %cst_185 = arith.constant dense<0.000000e+00> : vector<8x512xf32>
    %539 = tpu.matmul %502, %538, %cst_185 {dimension_numbers = #tpu.dot_dimension_numbers<[1], [0], [0], [1], [0, 0, 1, 1], [], []>} : vector<8x32xbf16>, vector<32x512xbf16>, vector<8x512xf32> -> vector<8x512xf32>
    %c0_186 = arith.constant 0 : index
    %c0_187 = arith.constant 0 : index
    %540 = vector.load %arg5[%c0_186, %c0_187] : memref<32x512xbf16, #tpu.memory_space<vmem>>, vector<32x512xbf16>
    %cst_188 = arith.constant dense<0.000000e+00> : vector<8x512xf32>
    %541 = tpu.matmul %503, %540, %cst_188 {dimension_numbers = #tpu.dot_dimension_numbers<[1], [0], [0], [1], [0, 0, 1, 1], [], []>} : vector<8x32xbf16>, vector<32x512xbf16>, vector<8x512xf32> -> vector<8x512xf32>
    %542 = arith.addf %539, %541 : vector<8x512xf32>
    %c0_189 = arith.constant 0 : index
    %c0_190 = arith.constant 0 : index
    %543 = vector.load %arg6[%c0_189, %c0_190] : memref<8x512xf32, #tpu.memory_space<vmem>>, vector<8x512xf32>
    %544 = arith.addf %542, %543 : vector<8x512xf32>
    %545 = vector.extract_strided_slice %544 {offsets = [0, 0], sizes = [8, 32], strides = [1, 1]} : vector<8x512xf32> to vector<8x32xf32>
    %546 = arith.negf %545 : vector<8x32xf32>
    %547 = math.exp %546 : vector<8x32xf32>
    %cst_191 = arith.constant 1.000000e+00 : f32
    %548 = vector.broadcast %cst_191 : f32 to vector<8x32xf32>
    %549 = arith.addf %548, %547 : vector<8x32xf32>
    %550 = arith.divf %548, %549 : vector<8x32xf32>
    %551 = vector.extract_strided_slice %544 {offsets = [0, 128], sizes = [8, 32], strides = [1, 1]} : vector<8x512xf32> to vector<8x32xf32>
    %552 = arith.negf %551 : vector<8x32xf32>
    %553 = math.exp %552 : vector<8x32xf32>
    %cst_192 = arith.constant 1.000000e+00 : f32
    %554 = vector.broadcast %cst_192 : f32 to vector<8x32xf32>
    %555 = arith.addf %554, %553 : vector<8x32xf32>
    %556 = arith.divf %554, %555 : vector<8x32xf32>
    %557 = vector.extract_strided_slice %544 {offsets = [0, 256], sizes = [8, 32], strides = [1, 1]} : vector<8x512xf32> to vector<8x32xf32>
    %558 = arith.negf %557 : vector<8x32xf32>
    %559 = math.exp %558 : vector<8x32xf32>
    %cst_193 = arith.constant 1.000000e+00 : f32
    %560 = vector.broadcast %cst_193 : f32 to vector<8x32xf32>
    %561 = arith.addf %560, %559 : vector<8x32xf32>
    %562 = arith.divf %560, %561 : vector<8x32xf32>
    %563 = vector.extract_strided_slice %544 {offsets = [0, 384], sizes = [8, 32], strides = [1, 1]} : vector<8x512xf32> to vector<8x32xf32>
    %564 = math.tanh %563 : vector<8x32xf32>
    %565 = arith.mulf %556, %467 : vector<8x32xf32>
    %566 = arith.mulf %550, %564 : vector<8x32xf32>
    %567 = arith.addf %565, %566 : vector<8x32xf32>
    %568 = math.tanh %567 : vector<8x32xf32>
    %569 = arith.mulf %562, %568 : vector<8x32xf32>
    %c0_194 = arith.constant 0 : index
    %c0_195 = arith.constant 0 : index
    %570 = vector.load %arg7[%c0_194, %c0_195] : memref<32x512xbf16, #tpu.memory_space<vmem>>, vector<32x512xbf16>
    %cst_196 = arith.constant dense<0.000000e+00> : vector<8x512xf32>
    %571 = tpu.matmul %503, %570, %cst_196 {dimension_numbers = #tpu.dot_dimension_numbers<[1], [0], [0], [1], [0, 0, 1, 1], [], []>} : vector<8x32xbf16>, vector<32x512xbf16>, vector<8x512xf32> -> vector<8x512xf32>
    %c0_197 = arith.constant 0 : index
    %c0_198 = arith.constant 0 : index
    %572 = vector.load %arg8[%c0_197, %c0_198] : memref<32x512xbf16, #tpu.memory_space<vmem>>, vector<32x512xbf16>
    %cst_199 = arith.constant dense<0.000000e+00> : vector<8x512xf32>
    %573 = tpu.matmul %504, %572, %cst_199 {dimension_numbers = #tpu.dot_dimension_numbers<[1], [0], [0], [1], [0, 0, 1, 1], [], []>} : vector<8x32xbf16>, vector<32x512xbf16>, vector<8x512xf32> -> vector<8x512xf32>
    %574 = arith.addf %571, %573 : vector<8x512xf32>
    %c0_200 = arith.constant 0 : index
    %c0_201 = arith.constant 0 : index
    %575 = vector.load %arg9[%c0_200, %c0_201] : memref<8x512xf32, #tpu.memory_space<vmem>>, vector<8x512xf32>
    %576 = arith.addf %574, %575 : vector<8x512xf32>
    %577 = vector.extract_strided_slice %576 {offsets = [0, 0], sizes = [8, 32], strides = [1, 1]} : vector<8x512xf32> to vector<8x32xf32>
    %578 = arith.negf %577 : vector<8x32xf32>
    %579 = math.exp %578 : vector<8x32xf32>
    %cst_202 = arith.constant 1.000000e+00 : f32
    %580 = vector.broadcast %cst_202 : f32 to vector<8x32xf32>
    %581 = arith.addf %580, %579 : vector<8x32xf32>
    %582 = arith.divf %580, %581 : vector<8x32xf32>
    %583 = vector.extract_strided_slice %576 {offsets = [0, 128], sizes = [8, 32], strides = [1, 1]} : vector<8x512xf32> to vector<8x32xf32>
    %584 = arith.negf %583 : vector<8x32xf32>
    %585 = math.exp %584 : vector<8x32xf32>
    %cst_203 = arith.constant 1.000000e+00 : f32
    %586 = vector.broadcast %cst_203 : f32 to vector<8x32xf32>
    %587 = arith.addf %586, %585 : vector<8x32xf32>
    %588 = arith.divf %586, %587 : vector<8x32xf32>
    %589 = vector.extract_strided_slice %576 {offsets = [0, 256], sizes = [8, 32], strides = [1, 1]} : vector<8x512xf32> to vector<8x32xf32>
    %590 = arith.negf %589 : vector<8x32xf32>
    %591 = math.exp %590 : vector<8x32xf32>
    %cst_204 = arith.constant 1.000000e+00 : f32
    %592 = vector.broadcast %cst_204 : f32 to vector<8x32xf32>
    %593 = arith.addf %592, %591 : vector<8x32xf32>
    %594 = arith.divf %592, %593 : vector<8x32xf32>
    %595 = vector.extract_strided_slice %576 {offsets = [0, 384], sizes = [8, 32], strides = [1, 1]} : vector<8x512xf32> to vector<8x32xf32>
    %596 = math.tanh %595 : vector<8x32xf32>
    %597 = arith.mulf %588, %499 : vector<8x32xf32>
    %598 = arith.mulf %582, %596 : vector<8x32xf32>
    %599 = arith.addf %597, %598 : vector<8x32xf32>
    %600 = math.tanh %599 : vector<8x32xf32>
    %601 = arith.mulf %594, %600 : vector<8x32xf32>
    %602 = arith.truncf %537 : vector<8x32xf32> to vector<8x32xbf16>
    %603 = arith.truncf %569 : vector<8x32xf32> to vector<8x32xbf16>
    %604 = arith.truncf %601 : vector<8x32xf32> to vector<8x32xbf16>
    %c56 = arith.constant 56 : index
    %c0_205 = arith.constant 0 : index
    %605 = vector.load %arg0[%c56, %c0_205] : memref<64x32xbf16, #tpu.memory_space<vmem>>, vector<8x32xbf16>
    %c0_206 = arith.constant 0 : index
    %c0_207 = arith.constant 0 : index
    %606 = vector.load %arg1[%c0_206, %c0_207] : memref<32x512xbf16, #tpu.memory_space<vmem>>, vector<32x512xbf16>
    %cst_208 = arith.constant dense<0.000000e+00> : vector<8x512xf32>
    %607 = tpu.matmul %605, %606, %cst_208 {dimension_numbers = #tpu.dot_dimension_numbers<[1], [0], [0], [1], [0, 0, 1, 1], [], []>} : vector<8x32xbf16>, vector<32x512xbf16>, vector<8x512xf32> -> vector<8x512xf32>
    %c0_209 = arith.constant 0 : index
    %c0_210 = arith.constant 0 : index
    %608 = vector.load %arg2[%c0_209, %c0_210] : memref<32x512xbf16, #tpu.memory_space<vmem>>, vector<32x512xbf16>
    %cst_211 = arith.constant dense<0.000000e+00> : vector<8x512xf32>
    %609 = tpu.matmul %602, %608, %cst_211 {dimension_numbers = #tpu.dot_dimension_numbers<[1], [0], [0], [1], [0, 0, 1, 1], [], []>} : vector<8x32xbf16>, vector<32x512xbf16>, vector<8x512xf32> -> vector<8x512xf32>
    %610 = arith.addf %607, %609 : vector<8x512xf32>
    %c0_212 = arith.constant 0 : index
    %c0_213 = arith.constant 0 : index
    %611 = vector.load %arg3[%c0_212, %c0_213] : memref<8x512xf32, #tpu.memory_space<vmem>>, vector<8x512xf32>
    %612 = arith.addf %610, %611 : vector<8x512xf32>
    %613 = vector.extract_strided_slice %612 {offsets = [0, 0], sizes = [8, 32], strides = [1, 1]} : vector<8x512xf32> to vector<8x32xf32>
    %614 = arith.negf %613 : vector<8x32xf32>
    %615 = math.exp %614 : vector<8x32xf32>
    %cst_214 = arith.constant 1.000000e+00 : f32
    %616 = vector.broadcast %cst_214 : f32 to vector<8x32xf32>
    %617 = arith.addf %616, %615 : vector<8x32xf32>
    %618 = arith.divf %616, %617 : vector<8x32xf32>
    %619 = vector.extract_strided_slice %612 {offsets = [0, 128], sizes = [8, 32], strides = [1, 1]} : vector<8x512xf32> to vector<8x32xf32>
    %620 = arith.negf %619 : vector<8x32xf32>
    %621 = math.exp %620 : vector<8x32xf32>
    %cst_215 = arith.constant 1.000000e+00 : f32
    %622 = vector.broadcast %cst_215 : f32 to vector<8x32xf32>
    %623 = arith.addf %622, %621 : vector<8x32xf32>
    %624 = arith.divf %622, %623 : vector<8x32xf32>
    %625 = vector.extract_strided_slice %612 {offsets = [0, 256], sizes = [8, 32], strides = [1, 1]} : vector<8x512xf32> to vector<8x32xf32>
    %626 = arith.negf %625 : vector<8x32xf32>
    %627 = math.exp %626 : vector<8x32xf32>
    %cst_216 = arith.constant 1.000000e+00 : f32
    %628 = vector.broadcast %cst_216 : f32 to vector<8x32xf32>
    %629 = arith.addf %628, %627 : vector<8x32xf32>
    %630 = arith.divf %628, %629 : vector<8x32xf32>
    %631 = vector.extract_strided_slice %612 {offsets = [0, 384], sizes = [8, 32], strides = [1, 1]} : vector<8x512xf32> to vector<8x32xf32>
    %632 = math.tanh %631 : vector<8x32xf32>
    %633 = arith.mulf %624, %535 : vector<8x32xf32>
    %634 = arith.mulf %618, %632 : vector<8x32xf32>
    %635 = arith.addf %633, %634 : vector<8x32xf32>
    %636 = math.tanh %635 : vector<8x32xf32>
    %637 = arith.mulf %630, %636 : vector<8x32xf32>
    %c0_217 = arith.constant 0 : index
    %c0_218 = arith.constant 0 : index
    %638 = vector.load %arg4[%c0_217, %c0_218] : memref<32x512xbf16, #tpu.memory_space<vmem>>, vector<32x512xbf16>
    %cst_219 = arith.constant dense<0.000000e+00> : vector<8x512xf32>
    %639 = tpu.matmul %602, %638, %cst_219 {dimension_numbers = #tpu.dot_dimension_numbers<[1], [0], [0], [1], [0, 0, 1, 1], [], []>} : vector<8x32xbf16>, vector<32x512xbf16>, vector<8x512xf32> -> vector<8x512xf32>
    %c0_220 = arith.constant 0 : index
    %c0_221 = arith.constant 0 : index
    %640 = vector.load %arg5[%c0_220, %c0_221] : memref<32x512xbf16, #tpu.memory_space<vmem>>, vector<32x512xbf16>
    %cst_222 = arith.constant dense<0.000000e+00> : vector<8x512xf32>
    %641 = tpu.matmul %603, %640, %cst_222 {dimension_numbers = #tpu.dot_dimension_numbers<[1], [0], [0], [1], [0, 0, 1, 1], [], []>} : vector<8x32xbf16>, vector<32x512xbf16>, vector<8x512xf32> -> vector<8x512xf32>
    %642 = arith.addf %639, %641 : vector<8x512xf32>
    %c0_223 = arith.constant 0 : index
    %c0_224 = arith.constant 0 : index
    %643 = vector.load %arg6[%c0_223, %c0_224] : memref<8x512xf32, #tpu.memory_space<vmem>>, vector<8x512xf32>
    %644 = arith.addf %642, %643 : vector<8x512xf32>
    %645 = vector.extract_strided_slice %644 {offsets = [0, 0], sizes = [8, 32], strides = [1, 1]} : vector<8x512xf32> to vector<8x32xf32>
    %646 = arith.negf %645 : vector<8x32xf32>
    %647 = math.exp %646 : vector<8x32xf32>
    %cst_225 = arith.constant 1.000000e+00 : f32
    %648 = vector.broadcast %cst_225 : f32 to vector<8x32xf32>
    %649 = arith.addf %648, %647 : vector<8x32xf32>
    %650 = arith.divf %648, %649 : vector<8x32xf32>
    %651 = vector.extract_strided_slice %644 {offsets = [0, 128], sizes = [8, 32], strides = [1, 1]} : vector<8x512xf32> to vector<8x32xf32>
    %652 = arith.negf %651 : vector<8x32xf32>
    %653 = math.exp %652 : vector<8x32xf32>
    %cst_226 = arith.constant 1.000000e+00 : f32
    %654 = vector.broadcast %cst_226 : f32 to vector<8x32xf32>
    %655 = arith.addf %654, %653 : vector<8x32xf32>
    %656 = arith.divf %654, %655 : vector<8x32xf32>
    %657 = vector.extract_strided_slice %644 {offsets = [0, 256], sizes = [8, 32], strides = [1, 1]} : vector<8x512xf32> to vector<8x32xf32>
    %658 = arith.negf %657 : vector<8x32xf32>
    %659 = math.exp %658 : vector<8x32xf32>
    %cst_227 = arith.constant 1.000000e+00 : f32
    %660 = vector.broadcast %cst_227 : f32 to vector<8x32xf32>
    %661 = arith.addf %660, %659 : vector<8x32xf32>
    %662 = arith.divf %660, %661 : vector<8x32xf32>
    %663 = vector.extract_strided_slice %644 {offsets = [0, 384], sizes = [8, 32], strides = [1, 1]} : vector<8x512xf32> to vector<8x32xf32>
    %664 = math.tanh %663 : vector<8x32xf32>
    %665 = arith.mulf %656, %567 : vector<8x32xf32>
    %666 = arith.mulf %650, %664 : vector<8x32xf32>
    %667 = arith.addf %665, %666 : vector<8x32xf32>
    %668 = math.tanh %667 : vector<8x32xf32>
    %669 = arith.mulf %662, %668 : vector<8x32xf32>
    %c0_228 = arith.constant 0 : index
    %c0_229 = arith.constant 0 : index
    %670 = vector.load %arg7[%c0_228, %c0_229] : memref<32x512xbf16, #tpu.memory_space<vmem>>, vector<32x512xbf16>
    %cst_230 = arith.constant dense<0.000000e+00> : vector<8x512xf32>
    %671 = tpu.matmul %603, %670, %cst_230 {dimension_numbers = #tpu.dot_dimension_numbers<[1], [0], [0], [1], [0, 0, 1, 1], [], []>} : vector<8x32xbf16>, vector<32x512xbf16>, vector<8x512xf32> -> vector<8x512xf32>
    %c0_231 = arith.constant 0 : index
    %c0_232 = arith.constant 0 : index
    %672 = vector.load %arg8[%c0_231, %c0_232] : memref<32x512xbf16, #tpu.memory_space<vmem>>, vector<32x512xbf16>
    %cst_233 = arith.constant dense<0.000000e+00> : vector<8x512xf32>
    %673 = tpu.matmul %604, %672, %cst_233 {dimension_numbers = #tpu.dot_dimension_numbers<[1], [0], [0], [1], [0, 0, 1, 1], [], []>} : vector<8x32xbf16>, vector<32x512xbf16>, vector<8x512xf32> -> vector<8x512xf32>
    %674 = arith.addf %671, %673 : vector<8x512xf32>
    %c0_234 = arith.constant 0 : index
    %c0_235 = arith.constant 0 : index
    %675 = vector.load %arg9[%c0_234, %c0_235] : memref<8x512xf32, #tpu.memory_space<vmem>>, vector<8x512xf32>
    %676 = arith.addf %674, %675 : vector<8x512xf32>
    %677 = vector.extract_strided_slice %676 {offsets = [0, 0], sizes = [8, 32], strides = [1, 1]} : vector<8x512xf32> to vector<8x32xf32>
    %678 = arith.negf %677 : vector<8x32xf32>
    %679 = math.exp %678 : vector<8x32xf32>
    %cst_236 = arith.constant 1.000000e+00 : f32
    %680 = vector.broadcast %cst_236 : f32 to vector<8x32xf32>
    %681 = arith.addf %680, %679 : vector<8x32xf32>
    %682 = arith.divf %680, %681 : vector<8x32xf32>
    %683 = vector.extract_strided_slice %676 {offsets = [0, 128], sizes = [8, 32], strides = [1, 1]} : vector<8x512xf32> to vector<8x32xf32>
    %684 = arith.negf %683 : vector<8x32xf32>
    %685 = math.exp %684 : vector<8x32xf32>
    %cst_237 = arith.constant 1.000000e+00 : f32
    %686 = vector.broadcast %cst_237 : f32 to vector<8x32xf32>
    %687 = arith.addf %686, %685 : vector<8x32xf32>
    %688 = arith.divf %686, %687 : vector<8x32xf32>
    %689 = vector.extract_strided_slice %676 {offsets = [0, 256], sizes = [8, 32], strides = [1, 1]} : vector<8x512xf32> to vector<8x32xf32>
    %690 = arith.negf %689 : vector<8x32xf32>
    %691 = math.exp %690 : vector<8x32xf32>
    %cst_238 = arith.constant 1.000000e+00 : f32
    %692 = vector.broadcast %cst_238 : f32 to vector<8x32xf32>
    %693 = arith.addf %692, %691 : vector<8x32xf32>
    %694 = arith.divf %692, %693 : vector<8x32xf32>
    %695 = vector.extract_strided_slice %676 {offsets = [0, 384], sizes = [8, 32], strides = [1, 1]} : vector<8x512xf32> to vector<8x32xf32>
    %696 = math.tanh %695 : vector<8x32xf32>
    %697 = arith.mulf %688, %599 : vector<8x32xf32>
    %698 = arith.mulf %682, %696 : vector<8x32xf32>
    %699 = arith.addf %697, %698 : vector<8x32xf32>
    %700 = math.tanh %699 : vector<8x32xf32>
    %701 = arith.mulf %694, %700 : vector<8x32xf32>
    %702 = arith.truncf %637 : vector<8x32xf32> to vector<8x32xbf16>
    %703 = arith.truncf %669 : vector<8x32xf32> to vector<8x32xbf16>
    %704 = arith.truncf %701 : vector<8x32xf32> to vector<8x32xbf16>
    %c0_239 = arith.constant 0 : index
    %c0_240 = arith.constant 0 : index
    %705 = vector.load %arg4[%c0_239, %c0_240] : memref<32x512xbf16, #tpu.memory_space<vmem>>, vector<32x512xbf16>
    %cst_241 = arith.constant dense<0.000000e+00> : vector<8x512xf32>
    %706 = tpu.matmul %702, %705, %cst_241 {dimension_numbers = #tpu.dot_dimension_numbers<[1], [0], [0], [1], [0, 0, 1, 1], [], []>} : vector<8x32xbf16>, vector<32x512xbf16>, vector<8x512xf32> -> vector<8x512xf32>
    %c0_242 = arith.constant 0 : index
    %c0_243 = arith.constant 0 : index
    %707 = vector.load %arg5[%c0_242, %c0_243] : memref<32x512xbf16, #tpu.memory_space<vmem>>, vector<32x512xbf16>
    %cst_244 = arith.constant dense<0.000000e+00> : vector<8x512xf32>
    %708 = tpu.matmul %703, %707, %cst_244 {dimension_numbers = #tpu.dot_dimension_numbers<[1], [0], [0], [1], [0, 0, 1, 1], [], []>} : vector<8x32xbf16>, vector<32x512xbf16>, vector<8x512xf32> -> vector<8x512xf32>
    %709 = arith.addf %706, %708 : vector<8x512xf32>
    %c0_245 = arith.constant 0 : index
    %c0_246 = arith.constant 0 : index
    %710 = vector.load %arg6[%c0_245, %c0_246] : memref<8x512xf32, #tpu.memory_space<vmem>>, vector<8x512xf32>
    %711 = arith.addf %709, %710 : vector<8x512xf32>
    %712 = vector.extract_strided_slice %711 {offsets = [0, 0], sizes = [8, 32], strides = [1, 1]} : vector<8x512xf32> to vector<8x32xf32>
    %713 = arith.negf %712 : vector<8x32xf32>
    %714 = math.exp %713 : vector<8x32xf32>
    %cst_247 = arith.constant 1.000000e+00 : f32
    %715 = vector.broadcast %cst_247 : f32 to vector<8x32xf32>
    %716 = arith.addf %715, %714 : vector<8x32xf32>
    %717 = arith.divf %715, %716 : vector<8x32xf32>
    %718 = vector.extract_strided_slice %711 {offsets = [0, 128], sizes = [8, 32], strides = [1, 1]} : vector<8x512xf32> to vector<8x32xf32>
    %719 = arith.negf %718 : vector<8x32xf32>
    %720 = math.exp %719 : vector<8x32xf32>
    %cst_248 = arith.constant 1.000000e+00 : f32
    %721 = vector.broadcast %cst_248 : f32 to vector<8x32xf32>
    %722 = arith.addf %721, %720 : vector<8x32xf32>
    %723 = arith.divf %721, %722 : vector<8x32xf32>
    %724 = vector.extract_strided_slice %711 {offsets = [0, 256], sizes = [8, 32], strides = [1, 1]} : vector<8x512xf32> to vector<8x32xf32>
    %725 = arith.negf %724 : vector<8x32xf32>
    %726 = math.exp %725 : vector<8x32xf32>
    %cst_249 = arith.constant 1.000000e+00 : f32
    %727 = vector.broadcast %cst_249 : f32 to vector<8x32xf32>
    %728 = arith.addf %727, %726 : vector<8x32xf32>
    %729 = arith.divf %727, %728 : vector<8x32xf32>
    %730 = vector.extract_strided_slice %711 {offsets = [0, 384], sizes = [8, 32], strides = [1, 1]} : vector<8x512xf32> to vector<8x32xf32>
    %731 = math.tanh %730 : vector<8x32xf32>
    %732 = arith.mulf %723, %667 : vector<8x32xf32>
    %733 = arith.mulf %717, %731 : vector<8x32xf32>
    %734 = arith.addf %732, %733 : vector<8x32xf32>
    %735 = math.tanh %734 : vector<8x32xf32>
    %736 = arith.mulf %729, %735 : vector<8x32xf32>
    %c0_250 = arith.constant 0 : index
    %c0_251 = arith.constant 0 : index
    %737 = vector.load %arg7[%c0_250, %c0_251] : memref<32x512xbf16, #tpu.memory_space<vmem>>, vector<32x512xbf16>
    %cst_252 = arith.constant dense<0.000000e+00> : vector<8x512xf32>
    %738 = tpu.matmul %703, %737, %cst_252 {dimension_numbers = #tpu.dot_dimension_numbers<[1], [0], [0], [1], [0, 0, 1, 1], [], []>} : vector<8x32xbf16>, vector<32x512xbf16>, vector<8x512xf32> -> vector<8x512xf32>
    %c0_253 = arith.constant 0 : index
    %c0_254 = arith.constant 0 : index
    %739 = vector.load %arg8[%c0_253, %c0_254] : memref<32x512xbf16, #tpu.memory_space<vmem>>, vector<32x512xbf16>
    %cst_255 = arith.constant dense<0.000000e+00> : vector<8x512xf32>
    %740 = tpu.matmul %704, %739, %cst_255 {dimension_numbers = #tpu.dot_dimension_numbers<[1], [0], [0], [1], [0, 0, 1, 1], [], []>} : vector<8x32xbf16>, vector<32x512xbf16>, vector<8x512xf32> -> vector<8x512xf32>
    %741 = arith.addf %738, %740 : vector<8x512xf32>
    %c0_256 = arith.constant 0 : index
    %c0_257 = arith.constant 0 : index
    %742 = vector.load %arg9[%c0_256, %c0_257] : memref<8x512xf32, #tpu.memory_space<vmem>>, vector<8x512xf32>
    %743 = arith.addf %741, %742 : vector<8x512xf32>
    %744 = vector.extract_strided_slice %743 {offsets = [0, 0], sizes = [8, 32], strides = [1, 1]} : vector<8x512xf32> to vector<8x32xf32>
    %745 = arith.negf %744 : vector<8x32xf32>
    %746 = math.exp %745 : vector<8x32xf32>
    %cst_258 = arith.constant 1.000000e+00 : f32
    %747 = vector.broadcast %cst_258 : f32 to vector<8x32xf32>
    %748 = arith.addf %747, %746 : vector<8x32xf32>
    %749 = arith.divf %747, %748 : vector<8x32xf32>
    %750 = vector.extract_strided_slice %743 {offsets = [0, 128], sizes = [8, 32], strides = [1, 1]} : vector<8x512xf32> to vector<8x32xf32>
    %751 = arith.negf %750 : vector<8x32xf32>
    %752 = math.exp %751 : vector<8x32xf32>
    %cst_259 = arith.constant 1.000000e+00 : f32
    %753 = vector.broadcast %cst_259 : f32 to vector<8x32xf32>
    %754 = arith.addf %753, %752 : vector<8x32xf32>
    %755 = arith.divf %753, %754 : vector<8x32xf32>
    %756 = vector.extract_strided_slice %743 {offsets = [0, 256], sizes = [8, 32], strides = [1, 1]} : vector<8x512xf32> to vector<8x32xf32>
    %757 = arith.negf %756 : vector<8x32xf32>
    %758 = math.exp %757 : vector<8x32xf32>
    %cst_260 = arith.constant 1.000000e+00 : f32
    %759 = vector.broadcast %cst_260 : f32 to vector<8x32xf32>
    %760 = arith.addf %759, %758 : vector<8x32xf32>
    %761 = arith.divf %759, %760 : vector<8x32xf32>
    %762 = vector.extract_strided_slice %743 {offsets = [0, 384], sizes = [8, 32], strides = [1, 1]} : vector<8x512xf32> to vector<8x32xf32>
    %763 = math.tanh %762 : vector<8x32xf32>
    %764 = arith.mulf %755, %699 : vector<8x32xf32>
    %765 = arith.mulf %749, %763 : vector<8x32xf32>
    %766 = arith.addf %764, %765 : vector<8x32xf32>
    %767 = math.tanh %766 : vector<8x32xf32>
    %768 = arith.mulf %761, %767 : vector<8x32xf32>
    %769 = arith.truncf %736 : vector<8x32xf32> to vector<8x32xbf16>
    %770 = arith.truncf %768 : vector<8x32xf32> to vector<8x32xbf16>
    %c0_261 = arith.constant 0 : index
    %c0_262 = arith.constant 0 : index
    %771 = vector.load %arg7[%c0_261, %c0_262] : memref<32x512xbf16, #tpu.memory_space<vmem>>, vector<32x512xbf16>
    %cst_263 = arith.constant dense<0.000000e+00> : vector<8x512xf32>
    %772 = tpu.matmul %769, %771, %cst_263 {dimension_numbers = #tpu.dot_dimension_numbers<[1], [0], [0], [1], [0, 0, 1, 1], [], []>} : vector<8x32xbf16>, vector<32x512xbf16>, vector<8x512xf32> -> vector<8x512xf32>
    %c0_264 = arith.constant 0 : index
    %c0_265 = arith.constant 0 : index
    %773 = vector.load %arg8[%c0_264, %c0_265] : memref<32x512xbf16, #tpu.memory_space<vmem>>, vector<32x512xbf16>
    %cst_266 = arith.constant dense<0.000000e+00> : vector<8x512xf32>
    %774 = tpu.matmul %770, %773, %cst_266 {dimension_numbers = #tpu.dot_dimension_numbers<[1], [0], [0], [1], [0, 0, 1, 1], [], []>} : vector<8x32xbf16>, vector<32x512xbf16>, vector<8x512xf32> -> vector<8x512xf32>
    %775 = arith.addf %772, %774 : vector<8x512xf32>
    %c0_267 = arith.constant 0 : index
    %c0_268 = arith.constant 0 : index
    %776 = vector.load %arg9[%c0_267, %c0_268] : memref<8x512xf32, #tpu.memory_space<vmem>>, vector<8x512xf32>
    %777 = arith.addf %775, %776 : vector<8x512xf32>
    %778 = vector.extract_strided_slice %777 {offsets = [0, 0], sizes = [8, 32], strides = [1, 1]} : vector<8x512xf32> to vector<8x32xf32>
    %779 = arith.negf %778 : vector<8x32xf32>
    %780 = math.exp %779 : vector<8x32xf32>
    %cst_269 = arith.constant 1.000000e+00 : f32
    %781 = vector.broadcast %cst_269 : f32 to vector<8x32xf32>
    %782 = arith.addf %781, %780 : vector<8x32xf32>
    %783 = arith.divf %781, %782 : vector<8x32xf32>
    %784 = vector.extract_strided_slice %777 {offsets = [0, 128], sizes = [8, 32], strides = [1, 1]} : vector<8x512xf32> to vector<8x32xf32>
    %785 = arith.negf %784 : vector<8x32xf32>
    %786 = math.exp %785 : vector<8x32xf32>
    %cst_270 = arith.constant 1.000000e+00 : f32
    %787 = vector.broadcast %cst_270 : f32 to vector<8x32xf32>
    %788 = arith.addf %787, %786 : vector<8x32xf32>
    %789 = arith.divf %787, %788 : vector<8x32xf32>
    %790 = vector.extract_strided_slice %777 {offsets = [0, 256], sizes = [8, 32], strides = [1, 1]} : vector<8x512xf32> to vector<8x32xf32>
    %791 = arith.negf %790 : vector<8x32xf32>
    %792 = math.exp %791 : vector<8x32xf32>
    %cst_271 = arith.constant 1.000000e+00 : f32
    %793 = vector.broadcast %cst_271 : f32 to vector<8x32xf32>
    %794 = arith.addf %793, %792 : vector<8x32xf32>
    %795 = arith.divf %793, %794 : vector<8x32xf32>
    %796 = vector.extract_strided_slice %777 {offsets = [0, 384], sizes = [8, 32], strides = [1, 1]} : vector<8x512xf32> to vector<8x32xf32>
    %797 = math.tanh %796 : vector<8x32xf32>
    %798 = arith.mulf %789, %766 : vector<8x32xf32>
    %799 = arith.mulf %783, %797 : vector<8x32xf32>
    %800 = arith.addf %798, %799 : vector<8x32xf32>
    %801 = math.tanh %800 : vector<8x32xf32>
    %802 = arith.mulf %795, %801 : vector<8x32xf32>
    %c0_272 = arith.constant 0 : index
    %c0_273 = arith.constant 0 : index
    %803 = vector.load %arg10[%c0_272, %c0_273] : memref<32x16xf32, #tpu.memory_space<vmem>>, vector<32x16xf32>
    %cst_274 = arith.constant dense<0.000000e+00> : vector<8x16xf32>
    %804 = tpu.matmul %802, %803, %cst_274 {dimension_numbers = #tpu.dot_dimension_numbers<[1], [0], [0], [1], [0, 0, 1, 1], [], []>} : vector<8x32xf32>, vector<32x16xf32>, vector<8x16xf32> -> vector<8x16xf32>
    %c0_275 = arith.constant 0 : index
    %c0_276 = arith.constant 0 : index
    %805 = vector.load %arg11[%c0_275, %c0_276] : memref<1x16xf32, #tpu.memory_space<vmem>>, vector<1x16xf32>
    %806 = vector.broadcast %805 : vector<1x16xf32> to vector<8x16xf32>
    %807 = arith.addf %804, %806 : vector<8x16xf32>
    %cst_277 = arith.constant 0.000000e+00 : f32
    %808 = vector.broadcast %cst_277 : f32 to vector<8x16xf32>
    %809 = arith.maximumf %807, %808 : vector<8x16xf32>
    %810 = arith.mulf %809, %809 : vector<8x16xf32>
    %cst_278 = arith.constant dense<0.000000e+00> : vector<8xf32>
    %811 = vector.multi_reduction <add>, %810, %cst_278 [1] : vector<8x16xf32> to vector<8xf32>
    %812 = vector.shape_cast %811 : vector<8xf32> to vector<8x1xf32>
    %cst_279 = arith.constant 9.99999996E-13 : f32
    %813 = vector.broadcast %cst_279 : f32 to vector<8x1xf32>
    %814 = arith.addf %812, %813 : vector<8x1xf32>
    %815 = math.rsqrt %814 : vector<8x1xf32>
    %816 = vector.broadcast %815 : vector<8x1xf32> to vector<8x16xf32>
    %817 = arith.mulf %809, %816 : vector<8x16xf32>
    %c0_280 = arith.constant 0 : index
    %c0_281 = arith.constant 0 : index
    %818 = vector.load %arg12[%c0_280, %c0_281] : memref<8x16xf32, #tpu.memory_space<vmem>>, vector<8x16xf32>
    tpu.vector_store %arg12[%c0_280, %c0_281], %817 {strides = array<i32>} : memref<8x16xf32, #tpu.memory_space<vmem>>, vector<8x16xf32>,
    return
  }
}

</mosaic_0001>

<llo_original>
// kernel: voice_encoder_forward.1
$region0: #{voice_encoder_forward.1}
  #allocation0 [shape = 'u32[]', space=smem, size = 0x4, offset = 0x4, fixed_abs, tag = 'smem constant byte address 0x4 - core index']
  #allocation1 [shape = 'u32[144,128]{1,0:T(1,128)}', space=vmem, size = 0x12000, scoped, tag = 'internal scratch']
  %s0 = inlined_call_operand.vmem [shape: bf16[64,32], index: 0, kind: input, shape index: {}]
  %s1 = inlined_call_operand.vmem [shape: bf16[32,512], index: 1, kind: input, shape index: {}]
  %s2 = inlined_call_operand.vmem [shape: bf16[32,512], index: 2, kind: input, shape index: {}]
  %s3 = inlined_call_operand.vmem [shape: f32[8,512], index: 3, kind: input, shape index: {}]
  %s4 = inlined_call_operand.vmem [shape: bf16[32,512], index: 4, kind: input, shape index: {}]
  %s5 = inlined_call_operand.vmem [shape: bf16[32,512], index: 5, kind: input, shape index: {}]
  %s6 = inlined_call_operand.vmem [shape: f32[8,512], index: 6, kind: input, shape index: {}]
  %s7 = inlined_call_operand.vmem [shape: bf16[32,512], index: 7, kind: input, shape index: {}]
  %s8 = inlined_call_operand.vmem [shape: bf16[32,512], index: 8, kind: input, shape index: {}]
  %s9 = inlined_call_operand.vmem [shape: f32[8,512], index: 9, kind: input, shape index: {}]
  %s10 = inlined_call_operand.vmem [shape: f32[32,16], index: 10, kind: input, shape index: {}]
  %s11 = inlined_call_operand.vmem [shape: f32[1,16], index: 11, kind: input, shape index: {}]
  %s12 = inlined_call_operand.vmem [shape: f32[8,16], index: 12, kind: output, shape index: {}]
  %s13 = sld [smem:[#allocation0]]
  $region58: #{voice_encoder_forward.1} parent=0
    _
  %s15 = ssub.s32 1, %s13
  %s16 = scalar_select 0, %s15, %s13
  // Predicated region
  $region2: #{voice_encoder_forward.1} parent=0 // pred_check
    _
  $region3: #{voice_encoder_forward.1} parent=0 // pred_check_branch
    %18 = sbr.rel (0) target = $region5
  $region4: #{voice_encoder_forward.1} parent=0 // pred_region
    _
  $region5: #{voice_encoder_forward.1} parent=0 // pred_fallthru
    _
  // Predicated region
  $region6: #{voice_encoder_forward.1} parent=0 // pred_check
    _
  $region7: #{voice_encoder_forward.1} parent=0 // pred_check_branch
    %20 = sbr.rel (0) target = $region9
  $region8: #{voice_encoder_forward.1} parent=0 // pred_region
    _
  $region9: #{voice_encoder_forward.1} parent=0 // pred_fallthru
    _
  // Predicated region
  $region10: #{voice_encoder_forward.1} parent=0 // pred_check
    _
  $region11: #{voice_encoder_forward.1} parent=0 // pred_check_branch
    %22 = sbr.rel (0) target = $region13
  $region12: #{voice_encoder_forward.1} parent=0 // pred_region
    _
  $region13: #{voice_encoder_forward.1} parent=0 // pred_fallthru
    _
  // Predicated region
  $region14: #{voice_encoder_forward.1} parent=0 // pred_check
    _
  $region15: #{voice_encoder_forward.1} parent=0 // pred_check_branch
    %24 = sbr.rel (0) target = $region17
  $region16: #{voice_encoder_forward.1} parent=0 // pred_region
    _
  $region17: #{voice_encoder_forward.1} parent=0 // pred_fallthru
    _
  // Predicated region
  $region18: #{voice_encoder_forward.1} parent=0 // pred_check
    _
  $region19: #{voice_encoder_forward.1} parent=0 // pred_check_branch
    %26 = sbr.rel (0) target = $region21
  $region20: #{voice_encoder_forward.1} parent=0 // pred_region
    _
  $region21: #{voice_encoder_forward.1} parent=0 // pred_fallthru
    _
  // Predicated region
  $region22: #{voice_encoder_forward.1} parent=0 // pred_check
    _
  $region23: #{voice_encoder_forward.1} parent=0 // pred_check_branch
    %28 = sbr.rel (0) target = $region25
  $region24: #{voice_encoder_forward.1} parent=0 // pred_region
    _
  $region25: #{voice_encoder_forward.1} parent=0 // pred_fallthru
    _
  // Predicated region
  $region26: #{voice_encoder_forward.1} parent=0 // pred_check
    _
  $region27: #{voice_encoder_forward.1} parent=0 // pred_check_branch
    %30 = sbr.rel (0) target = $region29
  $region28: #{voice_encoder_forward.1} parent=0 // pred_region
    _
  $region29: #{voice_encoder_forward.1} parent=0 // pred_fallthru
    _
  // Predicated region
  $region30: #{voice_encoder_forward.1} parent=0 // pred_check
    _
  $region31: #{voice_encoder_forward.1} parent=0 // pred_check_branch
    %32 = sbr.rel (0) target = $region33
  $region32: #{voice_encoder_forward.1} parent=0 // pred_region
    _
  $region33: #{voice_encoder_forward.1} parent=0 // pred_fallthru
    _
  // Predicated region
  $region34: #{voice_encoder_forward.1} parent=0 // pred_check
    _
  $region35: #{voice_encoder_forward.1} parent=0 // pred_check_branch
    %34 = sbr.rel (0) target = $region37
  $region36: #{voice_encoder_forward.1} parent=0 // pred_region
    _
  $region37: #{voice_encoder_forward.1} parent=0 // pred_fallthru
    _
  // Predicated region
  $region38: #{voice_encoder_forward.1} parent=0 // pred_check
    _
  $region39: #{voice_encoder_forward.1} parent=0 // pred_check_branch
    %36 = sbr.rel (0) target = $region41
  $region40: #{voice_encoder_forward.1} parent=0 // pred_region
    _
  $region41: #{voice_encoder_forward.1} parent=0 // pred_fallthru
    _
  // Predicated region
  $region42: #{voice_encoder_forward.1} parent=0 // pred_check
    _
  $region43: #{voice_encoder_forward.1} parent=0 // pred_check_branch
    %38 = sbr.rel (0) target = $region45
  $region44: #{voice_encoder_forward.1} parent=0 // pred_region
    _
  $region45: #{voice_encoder_forward.1} parent=0 // pred_fallthru
    _
  // Predicated region
  $region46: #{voice_encoder_forward.1} parent=0 // pred_check
    _
  $region47: #{voice_encoder_forward.1} parent=0 // pred_check_branch
    %40 = sbr.rel (0) target = $region49
  $region48: #{voice_encoder_forward.1} parent=0 // pred_region
    _
  $region49: #{voice_encoder_forward.1} parent=0 // pred_fallthru
    _
  %v42 = vld [vmem:[%s0] sm:$0xf]
  %v43 = vld [vmem:[%s1] sm:$0xff]
  %v44 = vld [vmem:[%s1 + $0x8] sm:$0xff]
  %v45 = vld [vmem:[%s1 + $0x10] sm:$0xff]
  %v46 = vld [vmem:[%s1 + $0x18] sm:$0xff]
  %v47 = vld [vmem:[%s1 + $0x20] sm:$0xff]
  %v48 = vld [vmem:[%s1 + $0x28] sm:$0xff]
  %v49 = vld [vmem:[%s1 + $0x30] sm:$0xff]
  %v50 = vld [vmem:[%s1 + $0x38] sm:$0xff]
  %v51 = vld [vmem:[%s2] sm:$0xff]
  %v52 = vld [vmem:[%s2 + $0x8] sm:$0xff]
  %v53 = vld [vmem:[%s2 + $0x10] sm:$0xff]
  %v54 = vld [vmem:[%s2 + $0x18] sm:$0xff]
  %v55 = vld [vmem:[%s2 + $0x20] sm:$0xff]
  %v56 = vld [vmem:[%s2 + $0x28] sm:$0xff]
  %v57 = vld [vmem:[%s2 + $0x30] sm:$0xff]
  %v58 = vld [vmem:[%s2 + $0x38] sm:$0xff]
  %v67 = vunpack.c.l.b16 %v51
  %v68 = vunpack.c.h.b16 %v51
  %v69 = vunpack.c.l.b16 %v52
  %v70 = vunpack.c.h.b16 %v52
  %v71 = vunpack.c.l.b16 %v53
  %v72 = vunpack.c.h.b16 %v53
  %v73 = vunpack.c.l.b16 %v54
  %v74 = vunpack.c.h.b16 %v54
  %v75 = vunpack.c.l.b16 %v55
  %v76 = vunpack.c.h.b16 %v55
  %v77 = vunpack.c.l.b16 %v56
  %v78 = vunpack.c.h.b16 %v56
  %v79 = vunpack.c.l.b16 %v57
  %v80 = vunpack.c.h.b16 %v57
  %v81 = vunpack.c.l.b16 %v58
  %v82 = vunpack.c.h.b16 %v58
  %v83 = vpack.c.b16 %v71, %v67
  %v84 = vpack.c.b16 %v72, %v68
  %v85 = vpack.c.b16 %v73, %v69
  %v86 = vpack.c.b16 %v74, %v70
  %v87 = vpack.c.b16 %v79, %v75
  %v88 = vpack.c.b16 %v80, %v76
  %v89 = vpack.c.b16 %v81, %v77
  %v90 = vpack.c.b16 %v82, %v78
  %vm99 = vcmask 261120
  %v101 = vsel %vm99, 0, 0
  %103 = vmatprep.subr.bf16.mxu0 %v84
  %104 = vmatpush1.bf16.msra.mxu0 %v83
  %105 = vmatprep.subr.bf16.mxu0 %v88
  %106 = vmatpush1.bf16.msra.mxu0 %v87
  %107 = vmatprep.subr.bf16.mxu0 0
  %108 = vmatpush1.bf16.msra.mxu0 0
  %109 = vmatprep.subr.bf16.mxu0 0
  %110 = vmatpush1.bf16.msra.mxu0 0
  %111 = vmatprep.subr.bf16.mxu0 0
  %112 = vmatpush1.bf16.msra.mxu0 0
  %113 = vmatprep.subr.bf16.mxu0 0
  %114 = vmatpush1.bf16.msra.mxu0 0
  %115 = vmatprep.subr.bf16.mxu0 0
  %116 = vmatpush1.bf16.msra.mxu0 0
  %117 = vmatprep.subr.bf16.mxu0 0
  %118 = vmatpush1.bf16.msra.mxu0 0
  %119 = vmatprep.subr.bf16.mxu0 0
  %120 = vmatpush1.bf16.msra.mxu0 0
  %121 = vmatprep.subr.bf16.mxu0 0
  %122 = vmatpush1.bf16.msra.mxu0 0
  %123 = vmatprep.subr.bf16.mxu0 0
  %124 = vmatpush1.bf16.msra.mxu0 0
  %125 = vmatprep.subr.bf16.mxu0 0
  %126 = vmatpush1.bf16.msra.mxu0 0
  %127 = vmatprep.subr.bf16.mxu0 0
  %128 = vmatpush1.bf16.msra.mxu0 0
  %129 = vmatprep.subr.bf16.mxu0 0
  %130 = vmatpush1.bf16.msra.mxu0 0
  %131 = vmatprep.subr.bf16.mxu0 0
  %132 = vmatpush1.bf16.msra.mxu0 0
  %133 = vmatprep.subr.bf16.mxu0 0
  %134 = vmatpush1.bf16.msra.mxu0 0
  %135 = vmatprep.mubr.bf16.mxu0 0
  %136 = vmatmul.mubr.bf16.gmra.mrb[0].mxu0 %v101
  %v137 = vpop.f32.mrb[0].mxu0
  %v138 = vadd.f32 0.0, %v137
  %v139 = vpop.f32.mrb[0].mxu0
  %v140 = vadd.f32 0.0, %v139
  %v141 = vpop.f32.mrb[0].mxu0
  %v142 = vpop.f32.mrb[0].mxu0
  %143 = vdwg.mxu0
  %144 = vmatprep.subr.bf16.mxu0 %v86
  %145 = vmatpush1.bf16.msra.mxu0 %v85
  %146 = vmatprep.subr.bf16.mxu0 %v90
  %147 = vmatpush1.bf16.msra.mxu0 %v89
  %148 = vmatprep.subr.bf16.mxu0 0
  %149 = vmatpush1.bf16.msra.mxu0 0
  %150 = vmatprep.subr.bf16.mxu0 0
  %151 = vmatpush1.bf16.msra.mxu0 0
  %152 = vmatprep.subr.bf16.mxu0 0
  %153 = vmatpush1.bf16.msra.mxu0 0
  %154 = vmatprep.subr.bf16.mxu0 0
  %155 = vmatpush1.bf16.msra.mxu0 0
  %156 = vmatprep.subr.bf16.mxu0 0
  %157 = vmatpush1.bf16.msra.mxu0 0
  %158 = vmatprep.subr.bf16.mxu0 0
  %159 = vmatpush1.bf16.msra.mxu0 0
  %160 = vmatprep.subr.bf16.mxu0 0
  %161 = vmatpush1.bf16.msra.mxu0 0
  %162 = vmatprep.subr.bf16.mxu0 0
  %163 = vmatpush1.bf16.msra.mxu0 0
  %164 = vmatprep.subr.bf16.mxu0 0
  %165 = vmatpush1.bf16.msra.mxu0 0
  %166 = vmatprep.subr.bf16.mxu0 0
  %167 = vmatpush1.bf16.msra.mxu0 0
  %168 = vmatprep.subr.bf16.mxu0 0
  %169 = vmatpush1.bf16.msra.mxu0 0
  %170 = vmatprep.subr.bf16.mxu0 0
  %171 = vmatpush1.bf16.msra.mxu0 0
  %172 = vmatprep.subr.bf16.mxu0 0
  %173 = vmatpush1.bf16.msra.mxu0 0
  %174 = vmatprep.subr.bf16.mxu0 0
  %175 = vmatpush1.bf16.msra.mxu0 0
  %176 = vmatprep.mubr.bf16.mxu0 0
  %177 = vmatmul.mubr.bf16.gmra.mrb[0].mxu0 %v101
  %v178 = vpop.f32.mrb[0].mxu0
  %v179 = vadd.f32 0.0, %v178
  %v180 = vpop.f32.mrb[0].mxu0
  %v181 = vadd.f32 0.0, %v180
  %v182 = vpop.f32.mrb[0].mxu0
  %v183 = vpop.f32.mrb[0].mxu0
  %184 = vdwg.mxu0
  %v193 = vunpack.c.l.b16 %v43
  %v194 = vunpack.c.h.b16 %v43
  %v195 = vunpack.c.l.b16 %v44
  %v196 = vunpack.c.h.b16 %v44
  %v197 = vunpack.c.l.b16 %v45
  %v198 = vunpack.c.h.b16 %v45
  %v199 = vunpack.c.l.b16 %v46
  %v200 = vunpack.c.h.b16 %v46
  %v201 = vunpack.c.l.b16 %v47
  %v202 = vunpack.c.h.b16 %v47
  %v203 = vunpack.c.l.b16 %v48
  %v204 = vunpack.c.h.b16 %v48
  %v205 = vunpack.c.l.b16 %v49
  %v206 = vunpack.c.h.b16 %v49
  %v207 = vunpack.c.l.b16 %v50
  %v208 = vunpack.c.h.b16 %v50
  %v209 = vpack.c.b16 %v197, %v193
  %v210 = vpack.c.b16 %v198, %v194
  %v211 = vpack.c.b16 %v199, %v195
  %v212 = vpack.c.b16 %v200, %v196
  %v213 = vpack.c.b16 %v205, %v201
  %v214 = vpack.c.b16 %v206, %v202
  %v215 = vpack.c.b16 %v207, %v203
  %v216 = vpack.c.b16 %v208, %v204
  %v226 = vsel %vm99, %v42, 0
  %228 = vmatprep.subr.bf16.mxu0 %v210
  %229 = vmatpush1.bf16.msra.mxu0 %v209
  %230 = vmatprep.subr.bf16.mxu0 %v214
  %231 = vmatpush1.bf16.msra.mxu0 %v213
  %232 = vmatprep.subr.bf16.mxu0 0
  %233 = vmatpush1.bf16.msra.mxu0 0
  %234 = vmatprep.subr.bf16.mxu0 0
  %235 = vmatpush1.bf16.msra.mxu0 0
  %236 = vmatprep.subr.bf16.mxu0 0
  %237 = vmatpush1.bf16.msra.mxu0 0
  %238 = vmatprep.subr.bf16.mxu0 0
  %239 = vmatpush1.bf16.msra.mxu0 0
  %240 = vmatprep.subr.bf16.mxu0 0
  %241 = vmatpush1.bf16.msra.mxu0 0
  %242 = vmatprep.subr.bf16.mxu0 0
  %243 = vmatpush1.bf16.msra.mxu0 0
  %244 = vmatprep.subr.bf16.mxu0 0
  %245 = vmatpush1.bf16.msra.mxu0 0
  %246 = vmatprep.subr.bf16.mxu0 0
  %247 = vmatpush1.bf16.msra.mxu0 0
  %248 = vmatprep.subr.bf16.mxu0 0
  %249 = vmatpush1.bf16.msra.mxu0 0
  %250 = vmatprep.subr.bf16.mxu0 0
  %251 = vmatpush1.bf16.msra.mxu0 0
  %252 = vmatprep.subr.bf16.mxu0 0
  %253 = vmatpush1.bf16.msra.mxu0 0
  %254 = vmatprep.subr.bf16.mxu0 0
  %255 = vmatpush1.bf16.msra.mxu0 0
  %256 = vmatprep.subr.bf16.mxu0 0
  %257 = vmatpush1.bf16.msra.mxu0 0
  %258 = vmatprep.subr.bf16.mxu0 0
  %259 = vmatpush1.bf16.msra.mxu0 0
  %260 = vmatprep.mubr.bf16.mxu0 0
  %261 = vmatmul.mubr.bf16.gmra.mrb[0].mxu0 %v226
  %v262 = vpop.f32.mrb[0].mxu0
  %v263 = vadd.f32 %v138, %v262
  %v264 = vpop.f32.mrb[0].mxu0
  %v265 = vadd.f32 %v140, %v264
  %v266 = vpop.f32.mrb[0].mxu0
  %v267 = vpop.f32.mrb[0].mxu0
  %268 = vdwg.mxu0
  %269 = vmatprep.subr.bf16.mxu0 %v212
  %270 = vmatpush1.bf16.msra.mxu0 %v211
  %271 = vmatprep.subr.bf16.mxu0 %v216
  %272 = vmatpush1.bf16.msra.mxu0 %v215
  %273 = vmatprep.subr.bf16.mxu0 0
  %274 = vmatpush1.bf16.msra.mxu0 0
  %275 = vmatprep.subr.bf16.mxu0 0
  %276 = vmatpush1.bf16.msra.mxu0 0
  %277 = vmatprep.subr.bf16.mxu0 0
  %278 = vmatpush1.bf16.msra.mxu0 0
  %279 = vmatprep.subr.bf16.mxu0 0
  %280 = vmatpush1.bf16.msra.mxu0 0
  %281 = vmatprep.subr.bf16.mxu0 0
  %282 = vmatpush1.bf16.msra.mxu0 0
  %283 = vmatprep.subr.bf16.mxu0 0
  %284 = vmatpush1.bf16.msra.mxu0 0
  %285 = vmatprep.subr.bf16.mxu0 0
  %286 = vmatpush1.bf16.msra.mxu0 0
  %287 = vmatprep.subr.bf16.mxu0 0
  %288 = vmatpush1.bf16.msra.mxu0 0
  %289 = vmatprep.subr.bf16.mxu0 0
  %290 = vmatpush1.bf16.msra.mxu0 0
  %291 = vmatprep.subr.bf16.mxu0 0
  %292 = vmatpush1.bf16.msra.mxu0 0
  %293 = vmatprep.subr.bf16.mxu0 0
  %294 = vmatpush1.bf16.msra.mxu0 0
  %295 = vmatprep.subr.bf16.mxu0 0
  %296 = vmatpush1.bf16.msra.mxu0 0
  %297 = vmatprep.subr.bf16.mxu0 0
  %298 = vmatpush1.bf16.msra.mxu0 0
  %299 = vmatprep.subr.bf16.mxu0 0
  %300 = vmatpush1.bf16.msra.mxu0 0
  %301 = vmatprep.mubr.bf16.mxu0 0
  %302 = vmatmul.mubr.bf16.gmra.mrb[0].mxu0 %v226
  %v303 = vpop.f32.mrb[0].mxu0
  %v304 = vadd.f32 %v179, %v303
  %v305 = vpop.f32.mrb[0].mxu0
  %v306 = vadd.f32 %v181, %v305
  %v307 = vpop.f32.mrb[0].mxu0
  %v308 = vpop.f32.mrb[0].mxu0
  %309 = vdwg.mxu0
  %v310 = vld [vmem:[%s3] sm:$0xff]
  %v311 = vld [vmem:[%s3 + $0x8] sm:$0xff]
  %v312 = vld [vmem:[%s3 + $0x10] sm:$0xff]
  %v313 = vld [vmem:[%s3 + $0x18] sm:$0xff]
  %v314 = vadd.f32 %v263, %v310
  %v315 = vadd.f32 %v265, %v311
  %v316 = vadd.f32 %v304, %v312
  %v317 = vadd.f32 %v306, %v313
  %v318 = vxor.u32 %v314, 2147483648
  %v319 = vmul.f32 %v318, 1.442695
  %v320 = vpow.pop %v319
  %v321 = vadd.f32 %v320, 1.0
  %v322 = vrcp.pop %v321
  %v323 = vmul.f32 1.0, %v322
  %v324 = vxor.u32 %v315, 2147483648
  %v325 = vmul.f32 %v324, 1.442695
  %v326 = vpow.pop %v325
  %v327 = vadd.f32 %v326, 1.0
  %v328 = vrcp.pop %v327
  %v329 = vmul.f32 1.0, %v328
  %v330 = vxor.u32 %v316, 2147483648
  %v331 = vmul.f32 %v330, 1.442695
  %v332 = vpow.pop %v331
  %v333 = vadd.f32 %v332, 1.0
  %v334 = vrcp.pop %v333
  %v335 = vmul.f32 1.0, %v334
  %v336 = vtanh.pop %v317
  %v337 = vmul.f32 %v329, 0.0
  %v338 = vmul.f32 %v323, %v336
  %v339 = vadd.f32 %v337, %v338
  %v340 = vtanh.pop %v339
  %v341 = vmul.f32 %v335, %v340
  %v342 = vpack.c.bf16 %v341, %v341
  %v343 = vld [vmem:[%s0 + $0x4] sm:$0xf]
  %v345 = vsel %vm99, %v342, 0
  %347 = vmatprep.subr.bf16.mxu0 %v84
  %348 = vmatpush1.bf16.msra.mxu0 %v83
  %349 = vmatprep.subr.bf16.mxu0 %v88
  %350 = vmatpush1.bf16.msra.mxu0 %v87
  %351 = vmatprep.subr.bf16.mxu0 0
  %352 = vmatpush1.bf16.msra.mxu0 0
  %353 = vmatprep.subr.bf16.mxu0 0
  %354 = vmatpush1.bf16.msra.mxu0 0
  %355 = vmatprep.subr.bf16.mxu0 0
  %356 = vmatpush1.bf16.msra.mxu0 0
  %357 = vmatprep.subr.bf16.mxu0 0
  %358 = vmatpush1.bf16.msra.mxu0 0
  %359 = vmatprep.subr.bf16.mxu0 0
  %360 = vmatpush1.bf16.msra.mxu0 0
  %361 = vmatprep.subr.bf16.mxu0 0
  %362 = vmatpush1.bf16.msra.mxu0 0
  %363 = vmatprep.subr.bf16.mxu0 0
  %364 = vmatpush1.bf16.msra.mxu0 0
  %365 = vmatprep.subr.bf16.mxu0 0
  %366 = vmatpush1.bf16.msra.mxu0 0
  %367 = vmatprep.subr.bf16.mxu0 0
  %368 = vmatpush1.bf16.msra.mxu0 0
  %369 = vmatprep.subr.bf16.mxu0 0
  %370 = vmatpush1.bf16.msra.mxu0 0
  %371 = vmatprep.subr.bf16.mxu0 0
  %372 = vmatpush1.bf16.msra.mxu0 0
  %373 = vmatprep.subr.bf16.mxu0 0
  %374 = vmatpush1.bf16.msra.mxu0 0
  %375 = vmatprep.subr.bf16.mxu0 0
  %376 = vmatpush1.bf16.msra.mxu0 0
  %377 = vmatprep.subr.bf16.mxu0 0
  %378 = vmatpush1.bf16.msra.mxu0 0
  %379 = vmatprep.mubr.bf16.mxu0 0
  %380 = vmatmul.mubr.bf16.gmra.mrb[0].mxu0 %v345
  %v381 = vpop.f32.mrb[0].mxu0
  %v382 = vadd.f32 0.0, %v381
  %v383 = vpop.f32.mrb[0].mxu0
  %v384 = vadd.f32 0.0, %v383
  %v385 = vpop.f32.mrb[0].mxu0
  %v386 = vpop.f32.mrb[0].mxu0
  %387 = vdwg.mxu0
  %388 = vmatprep.subr.bf16.mxu0 %v86
  %389 = vmatpush1.bf16.msra.mxu0 %v85
  %390 = vmatprep.subr.bf16.mxu0 %v90
  %391 = vmatpush1.bf16.msra.mxu0 %v89
  %392 = vmatprep.subr.bf16.mxu0 0
  %393 = vmatpush1.bf16.msra.mxu0 0
  %394 = vmatprep.subr.bf16.mxu0 0
  %395 = vmatpush1.bf16.msra.mxu0 0
  %396 = vmatprep.subr.bf16.mxu0 0
  %397 = vmatpush1.bf16.msra.mxu0 0
  %398 = vmatprep.subr.bf16.mxu0 0
  %399 = vmatpush1.bf16.msra.mxu0 0
  %400 = vmatprep.subr.bf16.mxu0 0
  %401 = vmatpush1.bf16.msra.mxu0 0
  %402 = vmatprep.subr.bf16.mxu0 0
  %403 = vmatpush1.bf16.msra.mxu0 0
  %404 = vmatprep.subr.bf16.mxu0 0
  %405 = vmatpush1.bf16.msra.mxu0 0
  %406 = vmatprep.subr.bf16.mxu0 0
  %407 = vmatpush1.bf16.msra.mxu0 0
  %408 = vmatprep.subr.bf16.mxu0 0
  %409 = vmatpush1.bf16.msra.mxu0 0
  %410 = vmatprep.subr.bf16.mxu0 0
  %411 = vmatpush1.bf16.msra.mxu0 0
  %412 = vmatprep.subr.bf16.mxu0 0
  %413 = vmatpush1.bf16.msra.mxu0 0
  %414 = vmatprep.subr.bf16.mxu0 0
  %415 = vmatpush1.bf16.msra.mxu0 0
  %416 = vmatprep.subr.bf16.mxu0 0
  %417 = vmatpush1.bf16.msra.mxu0 0
  %418 = vmatprep.subr.bf16.mxu0 0
  %419 = vmatpush1.bf16.msra.mxu0 0
  %420 = vmatprep.mubr.bf16.mxu0 0
  %421 = vmatmul.mubr.bf16.gmra.mrb[0].mxu0 %v345
  %v422 = vpop.f32.mrb[0].mxu0
  %v423 = vadd.f32 0.0, %v422
  %v424 = vpop.f32.mrb[0].mxu0
  %v425 = vadd.f32 0.0, %v424
  %v426 = vpop.f32.mrb[0].mxu0
  %v427 = vpop.f32.mrb[0].mxu0
  %428 = vdwg.mxu0
  %v430 = vsel %vm99, %v343, 0
  %432 = vmatprep.subr.bf16.mxu0 %v210
  %433 = vmatpush1.bf16.msra.mxu0 %v209
  %434 = vmatprep.subr.bf16.mxu0 %v214
  %435 = vmatpush1.bf16.msra.mxu0 %v213
  %436 = vmatprep.subr.bf16.mxu0 0
  %437 = vmatpush1.bf16.msra.mxu0 0
  %438 = vmatprep.subr.bf16.mxu0 0
  %439 = vmatpush1.bf16.msra.mxu0 0
  %440 = vmatprep.subr.bf16.mxu0 0
  %441 = vmatpush1.bf16.msra.mxu0 0
  %442 = vmatprep.subr.bf16.mxu0 0
  %443 = vmatpush1.bf16.msra.mxu0 0
  %444 = vmatprep.subr.bf16.mxu0 0
  %445 = vmatpush1.bf16.msra.mxu0 0
  %446 = vmatprep.subr.bf16.mxu0 0
  %447 = vmatpush1.bf16.msra.mxu0 0
  %448 = vmatprep.subr.bf16.mxu0 0
  %449 = vmatpush1.bf16.msra.mxu0 0
  %450 = vmatprep.subr.bf16.mxu0 0
  %451 = vmatpush1.bf16.msra.mxu0 0
  %452 = vmatprep.subr.bf16.mxu0 0
  %453 = vmatpush1.bf16.msra.mxu0 0
  %454 = vmatprep.subr.bf16.mxu0 0
  %455 = vmatpush1.bf16.msra.mxu0 0
  %456 = vmatprep.subr.bf16.mxu0 0
  %457 = vmatpush1.bf16.msra.mxu0 0
  %458 = vmatprep.subr.bf16.mxu0 0
  %459 = vmatpush1.bf16.msra.mxu0 0
  %460 = vmatprep.subr.bf16.mxu0 0
  %461 = vmatpush1.bf16.msra.mxu0 0
  %462 = vmatprep.subr.bf16.mxu0 0
  %463 = vmatpush1.bf16.msra.mxu0 0
  %464 = vmatprep.mubr.bf16.mxu0 0
  %465 = vmatmul.mubr.bf16.gmra.mrb[0].mxu0 %v430
  %v466 = vpop.f32.mrb[0].mxu0
  %v467 = vadd.f32 %v382, %v466
  %v468 = vpop.f32.mrb[0].mxu0
  %v469 = vadd.f32 %v384, %v468
  %v470 = vpop.f32.mrb[0].mxu0
  %v471 = vpop.f32.mrb[0].mxu0
  %472 = vdwg.mxu0
  %473 = vmatprep.subr.bf16.mxu0 %v212
  %474 = vmatpush1.bf16.msra.mxu0 %v211
  %475 = vmatprep.subr.bf16.mxu0 %v216
  %476 = vmatpush1.bf16.msra.mxu0 %v215
  %477 = vmatprep.subr.bf16.mxu0 0
  %478 = vmatpush1.bf16.msra.mxu0 0
  %479 = vmatprep.subr.bf16.mxu0 0
  %480 = vmatpush1.bf16.msra.mxu0 0
  %481 = vmatprep.subr.bf16.mxu0 0
  %482 = vmatpush1.bf16.msra.mxu0 0
  %483 = vmatprep.subr.bf16.mxu0 0
  %484 = vmatpush1.bf16.msra.mxu0 0
  %485 = vmatprep.subr.bf16.mxu0 0
  %486 = vmatpush1.bf16.msra.mxu0 0
  %487 = vmatprep.subr.bf16.mxu0 0
  %488 = vmatpush1.bf16.msra.mxu0 0
  %489 = vmatprep.subr.bf16.mxu0 0
  %490 = vmatpush1.bf16.msra.mxu0 0
  %491 = vmatprep.subr.bf16.mxu0 0
  %492 = vmatpush1.bf16.msra.mxu0 0
  %493 = vmatprep.subr.bf16.mxu0 0
  %494 = vmatpush1.bf16.msra.mxu0 0
  %495 = vmatprep.subr.bf16.mxu0 0
  %496 = vmatpush1.bf16.msra.mxu0 0
  %497 = vmatprep.subr.bf16.mxu0 0
  %498 = vmatpush1.bf16.msra.mxu0 0
  %499 = vmatprep.subr.bf16.mxu0 0
  %500 = vmatpush1.bf16.msra.mxu0 0
  %501 = vmatprep.subr.bf16.mxu0 0
  %502 = vmatpush1.bf16.msra.mxu0 0
  %503 = vmatprep.subr.bf16.mxu0 0
  %504 = vmatpush1.bf16.msra.mxu0 0
  %505 = vmatprep.mubr.bf16.mxu0 0
  %506 = vmatmul.mubr.bf16.gmra.mrb[0].mxu0 %v430
  %v507 = vpop.f32.mrb[0].mxu0
  %v508 = vadd.f32 %v423, %v507
  %v509 = vpop.f32.mrb[0].mxu0
  %v510 = vadd.f32 %v425, %v509
  %v511 = vpop.f32.mrb[0].mxu0
  %v512 = vpop.f32.mrb[0].mxu0
  %513 = vdwg.mxu0
  %v514 = vadd.f32 %v467, %v310
  %v515 = vadd.f32 %v469, %v311
  %v516 = vadd.f32 %v508, %v312
  %v517 = vadd.f32 %v510, %v313
  %v518 = vxor.u32 %v514, 2147483648
  %v519 = vmul.f32 %v518, 1.442695
  %v520 = vpow.pop %v519
  %v521 = vadd.f32 %v520, 1.0
  %v522 = vrcp.pop %v521
  %v523 = vmul.f32 1.0, %v522
  %v524 = vxor.u32 %v515, 2147483648
  %v525 = vmul.f32 %v524, 1.442695
  %v526 = vpow.pop %v525
  %v527 = vadd.f32 %v526, 1.0
  %v528 = vrcp.pop %v527
  %v529 = vmul.f32 1.0, %v528
  %v530 = vxor.u32 %v516, 2147483648
  %v531 = vmul.f32 %v530, 1.442695
  %v532 = vpow.pop %v531
  %v533 = vadd.f32 %v532, 1.0
  %v534 = vrcp.pop %v533
  %v535 = vmul.f32 1.0, %v534
  %v536 = vtanh.pop %v517
  %v537 = vmul.f32 %v529, %v339
  %v538 = vmul.f32 %v523, %v536
  %v539 = vadd.f32 %v537, %v538
  %v540 = vtanh.pop %v539
  %v541 = vmul.f32 %v535, %v540
  %v542 = vld [vmem:[%s4] sm:$0xff]
  %v543 = vld [vmem:[%s4 + $0x8] sm:$0xff]
  %v544 = vld [vmem:[%s4 + $0x10] sm:$0xff]
  %v545 = vld [vmem:[%s4 + $0x18] sm:$0xff]
  %v546 = vld [vmem:[%s4 + $0x20] sm:$0xff]
  %v547 = vld [vmem:[%s4 + $0x28] sm:$0xff]
  %v548 = vld [vmem:[%s4 + $0x30] sm:$0xff]
  %v549 = vld [vmem:[%s4 + $0x38] sm:$0xff]
  %v550 = vld [vmem:[%s5] sm:$0xff]
  %v551 = vld [vmem:[%s5 + $0x8] sm:$0xff]
  %v552 = vld [vmem:[%s5 + $0x10] sm:$0xff]
  %v553 = vld [vmem:[%s5 + $0x18] sm:$0xff]
  %v554 = vld [vmem:[%s5 + $0x20] sm:$0xff]
  %v555 = vld [vmem:[%s5 + $0x28] sm:$0xff]
  %v556 = vld [vmem:[%s5 + $0x30] sm:$0xff]
  %v557 = vld [vmem:[%s5 + $0x38] sm:$0xff]
  %v566 = vunpack.c.l.b16 %v550
  %v567 = vunpack.c.h.b16 %v550
  %v568 = vunpack.c.l.b16 %v551
  %v569 = vunpack.c.h.b16 %v551
  %v570 = vunpack.c.l.b16 %v552
  %v571 = vunpack.c.h.b16 %v552
  %v572 = vunpack.c.l.b16 %v553
  %v573 = vunpack.c.h.b16 %v553
  %v574 = vunpack.c.l.b16 %v554
  %v575 = vunpack.c.h.b16 %v554
  %v576 = vunpack.c.l.b16 %v555
  %v577 = vunpack.c.h.b16 %v555
  %v578 = vunpack.c.l.b16 %v556
  %v579 = vunpack.c.h.b16 %v556
  %v580 = vunpack.c.l.b16 %v557
  %v581 = vunpack.c.h.b16 %v557
  %v582 = vpack.c.b16 %v570, %v566
  %v583 = vpack.c.b16 %v571, %v567
  %v584 = vpack.c.b16 %v572, %v568
  %v585 = vpack.c.b16 %v573, %v569
  %v586 = vpack.c.b16 %v578, %v574
  %v587 = vpack.c.b16 %v579, %v575
  %v588 = vpack.c.b16 %v580, %v576
  %v589 = vpack.c.b16 %v581, %v577
  %598 = vmatprep.subr.bf16.mxu0 %v583
  %599 = vmatpush1.bf16.msra.mxu0 %v582
  %600 = vmatprep.subr.bf16.mxu0 %v587
  %601 = vmatpush1.bf16.msra.mxu0 %v586
  %602 = vmatprep.subr.bf16.mxu0 0
  %603 = vmatpush1.bf16.msra.mxu0 0
  %604 = vmatprep.subr.bf16.mxu0 0
  %605 = vmatpush1.bf16.msra.mxu0 0
  %606 = vmatprep.subr.bf16.mxu0 0
  %607 = vmatpush1.bf16.msra.mxu0 0
  %608 = vmatprep.subr.bf16.mxu0 0
  %609 = vmatpush1.bf16.msra.mxu0 0
  %610 = vmatprep.subr.bf16.mxu0 0
  %611 = vmatpush1.bf16.msra.mxu0 0
  %612 = vmatprep.subr.bf16.mxu0 0
  %613 = vmatpush1.bf16.msra.mxu0 0
  %614 = vmatprep.subr.bf16.mxu0 0
  %615 = vmatpush1.bf16.msra.mxu0 0
  %616 = vmatprep.subr.bf16.mxu0 0
  %617 = vmatpush1.bf16.msra.mxu0 0
  %618 = vmatprep.subr.bf16.mxu0 0
  %619 = vmatpush1.bf16.msra.mxu0 0
  %620 = vmatprep.subr.bf16.mxu0 0
  %621 = vmatpush1.bf16.msra.mxu0 0
  %622 = vmatprep.subr.bf16.mxu0 0
  %623 = vmatpush1.bf16.msra.mxu0 0
  %624 = vmatprep.subr.bf16.mxu0 0
  %625 = vmatpush1.bf16.msra.mxu0 0
  %626 = vmatprep.subr.bf16.mxu0 0
  %627 = vmatpush1.bf16.msra.mxu0 0
  %628 = vmatprep.subr.bf16.mxu0 0
  %629 = vmatpush1.bf16.msra.mxu0 0
  %630 = vmatprep.mubr.bf16.mxu0 0
  %631 = vmatmul.mubr.bf16.gmra.mrb[0].mxu0 %v101
  %v632 = vpop.f32.mrb[0].mxu0
  %v633 = vadd.f32 0.0, %v632
  %v634 = vpop.f32.mrb[0].mxu0
  %v635 = vadd.f32 0.0, %v634
  %v636 = vpop.f32.mrb[0].mxu0
  %v637 = vpop.f32.mrb[0].mxu0
  %638 = vdwg.mxu0
  %639 = vmatprep.subr.bf16.mxu0 %v585
  %640 = vmatpush1.bf16.msra.mxu0 %v584
  %641 = vmatprep.subr.bf16.mxu0 %v589
  %642 = vmatpush1.bf16.msra.mxu0 %v588
  %643 = vmatprep.subr.bf16.mxu0 0
  %644 = vmatpush1.bf16.msra.mxu0 0
  %645 = vmatprep.subr.bf16.mxu0 0
  %646 = vmatpush1.bf16.msra.mxu0 0
  %647 = vmatprep.subr.bf16.mxu0 0
  %648 = vmatpush1.bf16.msra.mxu0 0
  %649 = vmatprep.subr.bf16.mxu0 0
  %650 = vmatpush1.bf16.msra.mxu0 0
  %651 = vmatprep.subr.bf16.mxu0 0
  %652 = vmatpush1.bf16.msra.mxu0 0
  %653 = vmatprep.subr.bf16.mxu0 0
  %654 = vmatpush1.bf16.msra.mxu0 0
  %655 = vmatprep.subr.bf16.mxu0 0
  %656 = vmatpush1.bf16.msra.mxu0 0
  %657 = vmatprep.subr.bf16.mxu0 0
  %658 = vmatpush1.bf16.msra.mxu0 0
  %659 = vmatprep.subr.bf16.mxu0 0
  %660 = vmatpush1.bf16.msra.mxu0 0
  %661 = vmatprep.subr.bf16.mxu0 0
  %662 = vmatpush1.bf16.msra.mxu0 0
  %663 = vmatprep.subr.bf16.mxu0 0
  %664 = vmatpush1.bf16.msra.mxu0 0
  %665 = vmatprep.subr.bf16.mxu0 0
  %666 = vmatpush1.bf16.msra.mxu0 0
  %667 = vmatprep.subr.bf16.mxu0 0
  %668 = vmatpush1.bf16.msra.mxu0 0
  %669 = vmatprep.subr.bf16.mxu0 0
  %670 = vmatpush1.bf16.msra.mxu0 0
  %671 = vmatprep.mubr.bf16.mxu0 0
  %672 = vmatmul.mubr.bf16.gmra.mrb[0].mxu0 %v101
  %v673 = vpop.f32.mrb[0].mxu0
  %v674 = vadd.f32 0.0, %v673
  %v675 = vpop.f32.mrb[0].mxu0
  %v676 = vadd.f32 0.0, %v675
  %v677 = vpop.f32.mrb[0].mxu0
  %v678 = vpop.f32.mrb[0].mxu0
  %679 = vdwg.mxu0
  %v688 = vunpack.c.l.b16 %v542
  %v689 = vunpack.c.h.b16 %v542
  %v690 = vunpack.c.l.b16 %v543
  %v691 = vunpack.c.h.b16 %v543
  %v692 = vunpack.c.l.b16 %v544
  %v693 = vunpack.c.h.b16 %v544
  %v694 = vunpack.c.l.b16 %v545
  %v695 = vunpack.c.h.b16 %v545
  %v696 = vunpack.c.l.b16 %v546
  %v697 = vunpack.c.h.b16 %v546
  %v698 = vunpack.c.l.b16 %v547
  %v699 = vunpack.c.h.b16 %v547
  %v700 = vunpack.c.l.b16 %v548
  %v701 = vunpack.c.h.b16 %v548
  %v702 = vunpack.c.l.b16 %v549
  %v703 = vunpack.c.h.b16 %v549
  %v704 = vpack.c.b16 %v692, %v688
  %v705 = vpack.c.b16 %v693, %v689
  %v706 = vpack.c.b16 %v694, %v690
  %v707 = vpack.c.b16 %v695, %v691
  %v708 = vpack.c.b16 %v700, %v696
  %v709 = vpack.c.b16 %v701, %v697
  %v710 = vpack.c.b16 %v702, %v698
  %v711 = vpack.c.b16 %v703, %v699
  %720 = vmatprep.subr.bf16.mxu0 %v705
  %721 = vmatpush1.bf16.msra.mxu0 %v704
  %722 = vmatprep.subr.bf16.mxu0 %v709
  %723 = vmatpush1.bf16.msra.mxu0 %v708
  %724 = vmatprep.subr.bf16.mxu0 0
  %725 = vmatpush1.bf16.msra.mxu0 0
  %726 = vmatprep.subr.bf16.mxu0 0
  %727 = vmatpush1.bf16.msra.mxu0 0
  %728 = vmatprep.subr.bf16.mxu0 0
  %729 = vmatpush1.bf16.msra.mxu0 0
  %730 = vmatprep.subr.bf16.mxu0 0
  %731 = vmatpush1.bf16.msra.mxu0 0
  %732 = vmatprep.subr.bf16.mxu0 0
  %733 = vmatpush1.bf16.msra.mxu0 0
  %734 = vmatprep.subr.bf16.mxu0 0
  %735 = vmatpush1.bf16.msra.mxu0 0
  %736 = vmatprep.subr.bf16.mxu0 0
  %737 = vmatpush1.bf16.msra.mxu0 0
  %738 = vmatprep.subr.bf16.mxu0 0
  %739 = vmatpush1.bf16.msra.mxu0 0
  %740 = vmatprep.subr.bf16.mxu0 0
  %741 = vmatpush1.bf16.msra.mxu0 0
  %742 = vmatprep.subr.bf16.mxu0 0
  %743 = vmatpush1.bf16.msra.mxu0 0
  %744 = vmatprep.subr.bf16.mxu0 0
  %745 = vmatpush1.bf16.msra.mxu0 0
  %746 = vmatprep.subr.bf16.mxu0 0
  %747 = vmatpush1.bf16.msra.mxu0 0
  %748 = vmatprep.subr.bf16.mxu0 0
  %749 = vmatpush1.bf16.msra.mxu0 0
  %750 = vmatprep.subr.bf16.mxu0 0
  %751 = vmatpush1.bf16.msra.mxu0 0
  %752 = vmatprep.mubr.bf16.mxu0 0
  %753 = vmatmul.mubr.bf16.gmra.mrb[0].mxu0 %v345
  %v754 = vpop.f32.mrb[0].mxu0
  %v755 = vadd.f32 %v633, %v754
  %v756 = vpop.f32.mrb[0].mxu0
  %v757 = vadd.f32 %v635, %v756
  %v758 = vpop.f32.mrb[0].mxu0
  %v759 = vpop.f32.mrb[0].mxu0
  %760 = vdwg.mxu0
  %761 = vmatprep.subr.bf16.mxu0 %v707
  %762 = vmatpush1.bf16.msra.mxu0 %v706
  %763 = vmatprep.subr.bf16.mxu0 %v711
  %764 = vmatpush1.bf16.msra.mxu0 %v710
  %765 = vmatprep.subr.bf16.mxu0 0
  %766 = vmatpush1.bf16.msra.mxu0 0
  %767 = vmatprep.subr.bf16.mxu0 0
  %768 = vmatpush1.bf16.msra.mxu0 0
  %769 = vmatprep.subr.bf16.mxu0 0
  %770 = vmatpush1.bf16.msra.mxu0 0
  %771 = vmatprep.subr.bf16.mxu0 0
  %772 = vmatpush1.bf16.msra.mxu0 0
  %773 = vmatprep.subr.bf16.mxu0 0
  %774 = vmatpush1.bf16.msra.mxu0 0
  %775 = vmatprep.subr.bf16.mxu0 0
  %776 = vmatpush1.bf16.msra.mxu0 0
  %777 = vmatprep.subr.bf16.mxu0 0
  %778 = vmatpush1.bf16.msra.mxu0 0
  %779 = vmatprep.subr.bf16.mxu0 0
  %780 = vmatpush1.bf16.msra.mxu0 0
  %781 = vmatprep.subr.bf16.mxu0 0
  %782 = vmatpush1.bf16.msra.mxu0 0
  %783 = vmatprep.subr.bf16.mxu0 0
  %784 = vmatpush1.bf16.msra.mxu0 0
  %785 = vmatprep.subr.bf16.mxu0 0
  %786 = vmatpush1.bf16.msra.mxu0 0
  %787 = vmatprep.subr.bf16.mxu0 0
  %788 = vmatpush1.bf16.msra.mxu0 0
  %789 = vmatprep.subr.bf16.mxu0 0
  %790 = vmatpush1.bf16.msra.mxu0 0
  %791 = vmatprep.subr.bf16.mxu0 0
  %792 = vmatpush1.bf16.msra.mxu0 0
  %793 = vmatprep.mubr.bf16.mxu0 0
  %794 = vmatmul.mubr.bf16.gmra.mrb[0].mxu0 %v345
  %v795 = vpop.f32.mrb[0].mxu0
  %v796 = vadd.f32 %v674, %v795
  %v797 = vpop.f32.mrb[0].mxu0
  %v798 = vadd.f32 %v676, %v797
  %v799 = vpop.f32.mrb[0].mxu0
  %v800 = vpop.f32.mrb[0].mxu0
  %801 = vdwg.mxu0
  %v802 = vld [vmem:[%s6] sm:$0xff]
  %v803 = vld [vmem:[%s6 + $0x8] sm:$0xff]
  %v804 = vld [vmem:[%s6 + $0x10] sm:$0xff]
  %v805 = vld [vmem:[%s6 + $0x18] sm:$0xff]
  %v806 = vadd.f32 %v755, %v802
  %v807 = vadd.f32 %v757, %v803
  %v808 = vadd.f32 %v796, %v804
  %v809 = vadd.f32 %v798, %v805
  %v810 = vxor.u32 %v806, 2147483648
  %v811 = vmul.f32 %v810, 1.442695
  %v812 = vpow.pop %v811
  %v813 = vadd.f32 %v812, 1.0
  %v814 = vrcp.pop %v813
  %v815 = vmul.f32 1.0, %v814
  %v816 = vxor.u32 %v807, 2147483648
  %v817 = vmul.f32 %v816, 1.442695
  %v818 = vpow.pop %v817
  %v819 = vadd.f32 %v818, 1.0
  %v820 = vrcp.pop %v819
  %v821 = vmul.f32 1.0, %v820
  %v822 = vxor.u32 %v808, 2147483648
  %v823 = vmul.f32 %v822, 1.442695
  %v824 = vpow.pop %v823
  %v825 = vadd.f32 %v824, 1.0
  %v826 = vrcp.pop %v825
  %v827 = vmul.f32 1.0, %v826
  %v828 = vtanh.pop %v809
  %v829 = vmul.f32 %v821, 0.0
  %v830 = vmul.f32 %v815, %v828
  %v831 = vadd.f32 %v829, %v830
  %v832 = vtanh.pop %v831
  %v833 = vmul.f32 %v827, %v832
  %v834 = vpack.c.bf16 %v541, %v541
  %v835 = vpack.c.bf16 %v833, %v833
  %v836 = vld [vmem:[%s0 + $0x8] sm:$0xf]
  %v838 = vsel %vm99, %v834, 0
  %840 = vmatprep.subr.bf16.mxu0 %v84
  %841 = vmatpush1.bf16.msra.mxu0 %v83
  %842 = vmatprep.subr.bf16.mxu0 %v88
  %843 = vmatpush1.bf16.msra.mxu0 %v87
  %844 = vmatprep.subr.bf16.mxu0 0
  %845 = vmatpush1.bf16.msra.mxu0 0
  %846 = vmatprep.subr.bf16.mxu0 0
  %847 = vmatpush1.bf16.msra.mxu0 0
  %848 = vmatprep.subr.bf16.mxu0 0
  %849 = vmatpush1.bf16.msra.mxu0 0
  %850 = vmatprep.subr.bf16.mxu0 0
  %851 = vmatpush1.bf16.msra.mxu0 0
  %852 = vmatprep.subr.bf16.mxu0 0
  %853 = vmatpush1.bf16.msra.mxu0 0
  %854 = vmatprep.subr.bf16.mxu0 0
  %855 = vmatpush1.bf16.msra.mxu0 0
  %856 = vmatprep.subr.bf16.mxu0 0
  %857 = vmatpush1.bf16.msra.mxu0 0
  %858 = vmatprep.subr.bf16.mxu0 0
  %859 = vmatpush1.bf16.msra.mxu0 0
  %860 = vmatprep.subr.bf16.mxu0 0
  %861 = vmatpush1.bf16.msra.mxu0 0
  %862 = vmatprep.subr.bf16.mxu0 0
  %863 = vmatpush1.bf16.msra.mxu0 0
  %864 = vmatprep.subr.bf16.mxu0 0
  %865 = vmatpush1.bf16.msra.mxu0 0
  %866 = vmatprep.subr.bf16.mxu0 0
  %867 = vmatpush1.bf16.msra.mxu0 0
  %868 = vmatprep.subr.bf16.mxu0 0
  %869 = vmatpush1.bf16.msra.mxu0 0
  %870 = vmatprep.subr.bf16.mxu0 0
  %871 = vmatpush1.bf16.msra.mxu0 0
  %872 = vmatprep.mubr.bf16.mxu0 0
  %873 = vmatmul.mubr.bf16.gmra.mrb[0].mxu0 %v838
  %v874 = vpop.f32.mrb[0].mxu0
  %v875 = vadd.f32 0.0, %v874
  %v876 = vpop.f32.mrb[0].mxu0
  %v877 = vadd.f32 0.0, %v876
  %v878 = vpop.f32.mrb[0].mxu0
  %v879 = vpop.f32.mrb[0].mxu0
  %880 = vdwg.mxu0
  %881 = vmatprep.subr.bf16.mxu0 %v86
  %882 = vmatpush1.bf16.msra.mxu0 %v85
  %883 = vmatprep.subr.bf16.mxu0 %v90
  %884 = vmatpush1.bf16.msra.mxu0 %v89
  %885 = vmatprep.subr.bf16.mxu0 0
  %886 = vmatpush1.bf16.msra.mxu0 0
  %887 = vmatprep.subr.bf16.mxu0 0
  %888 = vmatpush1.bf16.msra.mxu0 0
  %889 = vmatprep.subr.bf16.mxu0 0
  %890 = vmatpush1.bf16.msra.mxu0 0
  %891 = vmatprep.subr.bf16.mxu0 0
  %892 = vmatpush1.bf16.msra.mxu0 0
  %893 = vmatprep.subr.bf16.mxu0 0
  %894 = vmatpush1.bf16.msra.mxu0 0
  %895 = vmatprep.subr.bf16.mxu0 0
  %896 = vmatpush1.bf16.msra.mxu0 0
  %897 = vmatprep.subr.bf16.mxu0 0
  %898 = vmatpush1.bf16.msra.mxu0 0
  %899 = vmatprep.subr.bf16.mxu0 0
  %900 = vmatpush1.bf16.msra.mxu0 0
  %901 = vmatprep.subr.bf16.mxu0 0
  %902 = vmatpush1.bf16.msra.mxu0 0
  %903 = vmatprep.subr.bf16.mxu0 0
  %904 = vmatpush1.bf16.msra.mxu0 0
  %905 = vmatprep.subr.bf16.mxu0 0
  %906 = vmatpush1.bf16.msra.mxu0 0
  %907 = vmatprep.subr.bf16.mxu0 0
  %908 = vmatpush1.bf16.msra.mxu0 0
  %909 = vmatprep.subr.bf16.mxu0 0
  %910 = vmatpush1.bf16.msra.mxu0 0
  %911 = vmatprep.subr.bf16.mxu0 0
  %912 = vmatpush1.bf16.msra.mxu0 0
  %913 = vmatprep.mubr.bf16.mxu0 0
  %914 = vmatmul.mubr.bf16.gmra.mrb[0].mxu0 %v838
  %v915 = vpop.f32.mrb[0].mxu0
  %v916 = vadd.f32 0.0, %v915
  %v917 = vpop.f32.mrb[0].mxu0
  %v918 = vadd.f32 0.0, %v917
  %v919 = vpop.f32.mrb[0].mxu0
  %v920 = vpop.f32.mrb[0].mxu0
  %921 = vdwg.mxu0
  %v923 = vsel %vm99, %v836, 0
  %925 = vmatprep.subr.bf16.mxu0 %v210
  %926 = vmatpush1.bf16.msra.mxu0 %v209
  %927 = vmatprep.subr.bf16.mxu0 %v214
  %928 = vmatpush1.bf16.msra.mxu0 %v213
  %929 = vmatprep.subr.bf16.mxu0 0
  %930 = vmatpush1.bf16.msra.mxu0 0
  %931 = vmatprep.subr.bf16.mxu0 0
  %932 = vmatpush1.bf16.msra.mxu0 0
  %933 = vmatprep.subr.bf16.mxu0 0
  %934 = vmatpush1.bf16.msra.mxu0 0
  %935 = vmatprep.subr.bf16.mxu0 0
  %936 = vmatpush1.bf16.msra.mxu0 0
  %937 = vmatprep.subr.bf16.mxu0 0
  %938 = vmatpush1.bf16.msra.mxu0 0
  %939 = vmatprep.subr.bf16.mxu0 0
  %940 = vmatpush1.bf16.msra.mxu0 0
  %941 = vmatprep.subr.bf16.mxu0 0
  %942 = vmatpush1.bf16.msra.mxu0 0
  %943 = vmatprep.subr.bf16.mxu0 0
  %944 = vmatpush1.bf16.msra.mxu0 0
  %945 = vmatprep.subr.bf16.mxu0 0
  %946 = vmatpush1.bf16.msra.mxu0 0
  %947 = vmatprep.subr.bf16.mxu0 0
  %948 = vmatpush1.bf16.msra.mxu0 0
  %949 = vmatprep.subr.bf16.mxu0 0
  %950 = vmatpush1.bf16.msra.mxu0 0
  %951 = vmatprep.subr.bf16.mxu0 0
  %952 = vmatpush1.bf16.msra.mxu0 0
  %953 = vmatprep.subr.bf16.mxu0 0
  %954 = vmatpush1.bf16.msra.mxu0 0
  %955 = vmatprep.subr.bf16.mxu0 0
  %956 = vmatpush1.bf16.msra.mxu0 0
  %957 = vmatprep.mubr.bf16.mxu0 0
  %958 = vmatmul.mubr.bf16.gmra.mrb[0].mxu0 %v923
  %v959 = vpop.f32.mrb[0].mxu0
  %v960 = vadd.f32 %v875, %v959
  %v961 = vpop.f32.mrb[0].mxu0
  %v962 = vadd.f32 %v877, %v961
  %v963 = vpop.f32.mrb[0].mxu0
  %v964 = vpop.f32.mrb[0].mxu0
  %965 = vdwg.mxu0
  %966 = vmatprep.subr.bf16.mxu0 %v212
  %967 = vmatpush1.bf16.msra.mxu0 %v211
  %968 = vmatprep.subr.bf16.mxu0 %v216
  %969 = vmatpush1.bf16.msra.mxu0 %v215
  %970 = vmatprep.subr.bf16.mxu0 0
  %971 = vmatpush1.bf16.msra.mxu0 0
  %972 = vmatprep.subr.bf16.mxu0 0
  %973 = vmatpush1.bf16.msra.mxu0 0
  %974 = vmatprep.subr.bf16.mxu0 0
  %975 = vmatpush1.bf16.msra.mxu0 0
  %976 = vmatprep.subr.bf16.mxu0 0
  %977 = vmatpush1.bf16.msra.mxu0 0
  %978 = vmatprep.subr.bf16.mxu0 0
  %979 = vmatpush1.bf16.msra.mxu0 0
  %980 = vmatprep.subr.bf16.mxu0 0
  %981 = vmatpush1.bf16.msra.mxu0 0
  %982 = vmatprep.subr.bf16.mxu0 0
  %983 = vmatpush1.bf16.msra.mxu0 0
  %984 = vmatprep.subr.bf16.mxu0 0
  %985 = vmatpush1.bf16.msra.mxu0 0
  %986 = vmatprep.subr.bf16.mxu0 0
  %987 = vmatpush1.bf16.msra.mxu0 0
  %988 = vmatprep.subr.bf16.mxu0 0
  %989 = vmatpush1.bf16.msra.mxu0 0
  %990 = vmatprep.subr.bf16.mxu0 0
  %991 = vmatpush1.bf16.msra.mxu0 0
  %992 = vmatprep.subr.bf16.mxu0 0
  %993 = vmatpush1.bf16.msra.mxu0 0
  %994 = vmatprep.subr.bf16.mxu0 0
  %995 = vmatpush1.bf16.msra.mxu0 0
  %996 = vmatprep.subr.bf16.mxu0 0
  %997 = vmatpush1.bf16.msra.mxu0 0
  %998 = vmatprep.mubr.bf16.mxu0 0
  %999 = vmatmul.mubr.bf16.gmra.mrb[0].mxu0 %v923
  %v1000 = vpop.f32.mrb[0].mxu0
  %v1001 = vadd.f32 %v916, %v1000
  %v1002 = vpop.f32.mrb[0].mxu0
  %v1003 = vadd.f32 %v918, %v1002
  %v1004 = vpop.f32.mrb[0].mxu0
  %v1005 = vpop.f32.mrb[0].mxu0
  %1006 = vdwg.mxu0
  %v1007 = vadd.f32 %v960, %v310
  %v1008 = vadd.f32 %v962, %v311
  %v1009 = vadd.f32 %v1001, %v312
  %v1010 = vadd.f32 %v1003, %v313
  %v1011 = vxor.u32 %v1007, 2147483648
  %v1012 = vmul.f32 %v1011, 1.442695
  %v1013 = vpow.pop %v1012
  %v1014 = vadd.f32 %v1013, 1.0
  %v1015 = vrcp.pop %v1014
  %v1016 = vmul.f32 1.0, %v1015
  %v1017 = vxor.u32 %v1008, 2147483648
  %v1018 = vmul.f32 %v1017, 1.442695
  %v1019 = vpow.pop %v1018
  %v1020 = vadd.f32 %v1019, 1.0
  %v1021 = vrcp.pop %v1020
  %v1022 = vmul.f32 1.0, %v1021
  %v1023 = vxor.u32 %v1009, 2147483648
  %v1024 = vmul.f32 %v1023, 1.442695
  %v1025 = vpow.pop %v1024
  %v1026 = vadd.f32 %v1025, 1.0
  %v1027 = vrcp.pop %v1026
  %v1028 = vmul.f32 1.0, %v1027
  %v1029 = vtanh.pop %v1010
  %v1030 = vmul.f32 %v1022, %v539
  %v1031 = vmul.f32 %v1016, %v1029
  %v1032 = vadd.f32 %v1030, %v1031
  %v1033 = vtanh.pop %v1032
  %v1034 = vmul.f32 %v1028, %v1033
  %v1036 = vsel %vm99, %v835, 0
  %1038 = vmatprep.subr.bf16.mxu0 %v583
  %1039 = vmatpush1.bf16.msra.mxu0 %v582
  %1040 = vmatprep.subr.bf16.mxu0 %v587
  %1041 = vmatpush1.bf16.msra.mxu0 %v586
  %1042 = vmatprep.subr.bf16.mxu0 0
  %1043 = vmatpush1.bf16.msra.mxu0 0
  %1044 = vmatprep.subr.bf16.mxu0 0
  %1045 = vmatpush1.bf16.msra.mxu0 0
  %1046 = vmatprep.subr.bf16.mxu0 0
  %1047 = vmatpush1.bf16.msra.mxu0 0
  %1048 = vmatprep.subr.bf16.mxu0 0
  %1049 = vmatpush1.bf16.msra.mxu0 0
  %1050 = vmatprep.subr.bf16.mxu0 0
  %1051 = vmatpush1.bf16.msra.mxu0 0
  %1052 = vmatprep.subr.bf16.mxu0 0
  %1053 = vmatpush1.bf16.msra.mxu0 0
  %1054 = vmatprep.subr.bf16.mxu0 0
  %1055 = vmatpush1.bf16.msra.mxu0 0
  %1056 = vmatprep.subr.bf16.mxu0 0
  %1057 = vmatpush1.bf16.msra.mxu0 0
  %1058 = vmatprep.subr.bf16.mxu0 0
  %1059 = vmatpush1.bf16.msra.mxu0 0
  %1060 = vmatprep.subr.bf16.mxu0 0
  %1061 = vmatpush1.bf16.msra.mxu0 0
  %1062 = vmatprep.subr.bf16.mxu0 0
  %1063 = vmatpush1.bf16.msra.mxu0 0
  %1064 = vmatprep.subr.bf16.mxu0 0
  %1065 = vmatpush1.bf16.msra.mxu0 0
  %1066 = vmatprep.subr.bf16.mxu0 0
  %1067 = vmatpush1.bf16.msra.mxu0 0
  %1068 = vmatprep.subr.bf16.mxu0 0
  %1069 = vmatpush1.bf16.msra.mxu0 0
  %1070 = vmatprep.mubr.bf16.mxu0 0
  %1071 = vmatmul.mubr.bf16.gmra.mrb[0].mxu0 %v1036
  %v1072 = vpop.f32.mrb[0].mxu0
  %v1073 = vadd.f32 0.0, %v1072
  %v1074 = vpop.f32.mrb[0].mxu0
  %v1075 = vadd.f32 0.0, %v1074
  %v1076 = vpop.f32.mrb[0].mxu0
  %v1077 = vpop.f32.mrb[0].mxu0
  %1078 = vdwg.mxu0
  %1079 = vmatprep.subr.bf16.mxu0 %v585
  %1080 = vmatpush1.bf16.msra.mxu0 %v584
  %1081 = vmatprep.subr.bf16.mxu0 %v589
  %1082 = vmatpush1.bf16.msra.mxu0 %v588
  %1083 = vmatprep.subr.bf16.mxu0 0
  %1084 = vmatpush1.bf16.msra.mxu0 0
  %1085 = vmatprep.subr.bf16.mxu0 0
  %1086 = vmatpush1.bf16.msra.mxu0 0
  %1087 = vmatprep.subr.bf16.mxu0 0
  %1088 = vmatpush1.bf16.msra.mxu0 0
  %1089 = vmatprep.subr.bf16.mxu0 0
  %1090 = vmatpush1.bf16.msra.mxu0 0
  %1091 = vmatprep.subr.bf16.mxu0 0
  %1092 = vmatpush1.bf16.msra.mxu0 0
  %1093 = vmatprep.subr.bf16.mxu0 0
  %1094 = vmatpush1.bf16.msra.mxu0 0
  %1095 = vmatprep.subr.bf16.mxu0 0
  %1096 = vmatpush1.bf16.msra.mxu0 0
  %1097 = vmatprep.subr.bf16.mxu0 0
  %1098 = vmatpush1.bf16.msra.mxu0 0
  %1099 = vmatprep.subr.bf16.mxu0 0
  %1100 = vmatpush1.bf16.msra.mxu0 0
  %1101 = vmatprep.subr.bf16.mxu0 0
  %1102 = vmatpush1.bf16.msra.mxu0 0
  %1103 = vmatprep.subr.bf16.mxu0 0
  %1104 = vmatpush1.bf16.msra.mxu0 0
  %1105 = vmatprep.subr.bf16.mxu0 0
  %1106 = vmatpush1.bf16.msra.mxu0 0
  %1107 = vmatprep.subr.bf16.mxu0 0
  %1108 = vmatpush1.bf16.msra.mxu0 0
  %1109 = vmatprep.subr.bf16.mxu0 0
  %1110 = vmatpush1.bf16.msra.mxu0 0
  %1111 = vmatprep.mubr.bf16.mxu0 0
  %1112 = vmatmul.mubr.bf16.gmra.mrb[0].mxu0 %v1036
  %v1113 = vpop.f32.mrb[0].mxu0
  %v1114 = vadd.f32 0.0, %v1113
  %v1115 = vpop.f32.mrb[0].mxu0
  %v1116 = vadd.f32 0.0, %v1115
  %v1117 = vpop.f32.mrb[0].mxu0
  %v1118 = vpop.f32.mrb[0].mxu0
  %1119 = vdwg.mxu0
  %1120 = vmatprep.subr.bf16.mxu0 %v705
  %1121 = vmatpush1.bf16.msra.mxu0 %v704
  %1122 = vmatprep.subr.bf16.mxu0 %v709
  %1123 = vmatpush1.bf16.msra.mxu0 %v708
  %1124 = vmatprep.subr.bf16.mxu0 0
  %1125 = vmatpush1.bf16.msra.mxu0 0
  %1126 = vmatprep.subr.bf16.mxu0 0
  %1127 = vmatpush1.bf16.msra.mxu0 0
  %1128 = vmatprep.subr.bf16.mxu0 0
  %1129 = vmatpush1.bf16.msra.mxu0 0
  %1130 = vmatprep.subr.bf16.mxu0 0
  %1131 = vmatpush1.bf16.msra.mxu0 0
  %1132 = vmatprep.subr.bf16.mxu0 0
  %1133 = vmatpush1.bf16.msra.mxu0 0
  %1134 = vmatprep.subr.bf16.mxu0 0
  %1135 = vmatpush1.bf16.msra.mxu0 0
  %1136 = vmatprep.subr.bf16.mxu0 0
  %1137 = vmatpush1.bf16.msra.mxu0 0
  %1138 = vmatprep.subr.bf16.mxu0 0
  %1139 = vmatpush1.bf16.msra.mxu0 0
  %1140 = vmatprep.subr.bf16.mxu0 0
  %1141 = vmatpush1.bf16.msra.mxu0 0
  %1142 = vmatprep.subr.bf16.mxu0 0
  %1143 = vmatpush1.bf16.msra.mxu0 0
  %1144 = vmatprep.subr.bf16.mxu0 0
  %1145 = vmatpush1.bf16.msra.mxu0 0
  %1146 = vmatprep.subr.bf16.mxu0 0
  %1147 = vmatpush1.bf16.msra.mxu0 0
  %1148 = vmatprep.subr.bf16.mxu0 0
  %1149 = vmatpush1.bf16.msra.mxu0 0
  %1150 = vmatprep.subr.bf16.mxu0 0
  %1151 = vmatpush1.bf16.msra.mxu0 0
  %1152 = vmatprep.mubr.bf16.mxu0 0
  %1153 = vmatmul.mubr.bf16.gmra.mrb[0].mxu0 %v838
  %v1154 = vpop.f32.mrb[0].mxu0
  %v1155 = vadd.f32 %v1073, %v1154
  %v1156 = vpop.f32.mrb[0].mxu0
  %v1157 = vadd.f32 %v1075, %v1156
  %v1158 = vpop.f32.mrb[0].mxu0
  %v1159 = vpop.f32.mrb[0].mxu0
  %1160 = vdwg.mxu0
  %1161 = vmatprep.subr.bf16.mxu0 %v707
  %1162 = vmatpush1.bf16.msra.mxu0 %v706
  %1163 = vmatprep.subr.bf16.mxu0 %v711
  %1164 = vmatpush1.bf16.msra.mxu0 %v710
  %1165 = vmatprep.subr.bf16.mxu0 0
  %1166 = vmatpush1.bf16.msra.mxu0 0
  %1167 = vmatprep.subr.bf16.mxu0 0
  %1168 = vmatpush1.bf16.msra.mxu0 0
  %1169 = vmatprep.subr.bf16.mxu0 0
  %1170 = vmatpush1.bf16.msra.mxu0 0
  %1171 = vmatprep.subr.bf16.mxu0 0
  %1172 = vmatpush1.bf16.msra.mxu0 0
  %1173 = vmatprep.subr.bf16.mxu0 0
  %1174 = vmatpush1.bf16.msra.mxu0 0
  %1175 = vmatprep.subr.bf16.mxu0 0
  %1176 = vmatpush1.bf16.msra.mxu0 0
  %1177 = vmatprep.subr.bf16.mxu0 0
  %1178 = vmatpush1.bf16.msra.mxu0 0
  %1179 = vmatprep.subr.bf16.mxu0 0
  %1180 = vmatpush1.bf16.msra.mxu0 0
  %1181 = vmatprep.subr.bf16.mxu0 0
  %1182 = vmatpush1.bf16.msra.mxu0 0
  %1183 = vmatprep.subr.bf16.mxu0 0
  %1184 = vmatpush1.bf16.msra.mxu0 0
  %1185 = vmatprep.subr.bf16.mxu0 0
  %1186 = vmatpush1.bf16.msra.mxu0 0
  %1187 = vmatprep.subr.bf16.mxu0 0
  %1188 = vmatpush1.bf16.msra.mxu0 0
  %1189 = vmatprep.subr.bf16.mxu0 0
  %1190 = vmatpush1.bf16.msra.mxu0 0
  %1191 = vmatprep.subr.bf16.mxu0 0
  %1192 = vmatpush1.bf16.msra.mxu0 0
  %1193 = vmatprep.mubr.bf16.mxu0 0
  %1194 = vmatmul.mubr.bf16.gmra.mrb[0].mxu0 %v838
  %v1195 = vpop.f32.mrb[0].mxu0
  %v1196 = vadd.f32 %v1114, %v1195
  %v1197 = vpop.f32.mrb[0].mxu0
  %v1198 = vadd.f32 %v1116, %v1197
  %v1199 = vpop.f32.mrb[0].mxu0
  %v1200 = vpop.f32.mrb[0].mxu0
  %1201 = vdwg.mxu0
  %v1202 = vadd.f32 %v1155, %v802
  %v1203 = vadd.f32 %v1157, %v803
  %v1204 = vadd.f32 %v1196, %v804
  %v1205 = vadd.f32 %v1198, %v805
  %v1206 = vxor.u32 %v1202, 2147483648
  %v1207 = vmul.f32 %v1206, 1.442695
  %v1208 = vpow.pop %v1207
  %v1209 = vadd.f32 %v1208, 1.0
  %v1210 = vrcp.pop %v1209
  %v1211 = vmul.f32 1.0, %v1210
  %v1212 = vxor.u32 %v1203, 2147483648
  %v1213 = vmul.f32 %v1212, 1.442695
  %v1214 = vpow.pop %v1213
  %v1215 = vadd.f32 %v1214, 1.0
  %v1216 = vrcp.pop %v1215
  %v1217 = vmul.f32 1.0, %v1216
  %v1218 = vxor.u32 %v1204, 2147483648
  %v1219 = vmul.f32 %v1218, 1.442695
  %v1220 = vpow.pop %v1219
  %v1221 = vadd.f32 %v1220, 1.0
  %v1222 = vrcp.pop %v1221
  %v1223 = vmul.f32 1.0, %v1222
  %v1224 = vtanh.pop %v1205
  %v1225 = vmul.f32 %v1217, %v831
  %v1226 = vmul.f32 %v1211, %v1224
  %v1227 = vadd.f32 %v1225, %v1226
  %v1228 = vtanh.pop %v1227
  %v1229 = vmul.f32 %v1223, %v1228
  %v1230 = vld [vmem:[%s7] sm:$0xff]
  %v1231 = vld [vmem:[%s7 + $0x8] sm:$0xff]
  %v1232 = vld [vmem:[%s7 + $0x10] sm:$0xff]
  %v1233 = vld [vmem:[%s7 + $0x18] sm:$0xff]
  %v1234 = vld [vmem:[%s7 + $0x20] sm:$0xff]
  %v1235 = vld [vmem:[%s7 + $0x28] sm:$0xff]
  %v1236 = vld [vmem:[%s7 + $0x30] sm:$0xff]
  %v1237 = vld [vmem:[%s7 + $0x38] sm:$0xff]
  %v1238 = vld [vmem:[%s8] sm:$0xff]
  %v1239 = vld [vmem:[%s8 + $0x8] sm:$0xff]
  %v1240 = vld [vmem:[%s8 + $0x10] sm:$0xff]
  %v1241 = vld [vmem:[%s8 + $0x18] sm:$0xff]
  %v1242 = vld [vmem:[%s8 + $0x20] sm:$0xff]
  %v1243 = vld [vmem:[%s8 + $0x28] sm:$0xff]
  %v1244 = vld [vmem:[%s8 + $0x30] sm:$0xff]
  %v1245 = vld [vmem:[%s8 + $0x38] sm:$0xff]
  %v1254 = vunpack.c.l.b16 %v1238
  %v1255 = vunpack.c.h.b16 %v1238
  %v1256 = vunpack.c.l.b16 %v1239
  %v1257 = vunpack.c.h.b16 %v1239
  %v1258 = vunpack.c.l.b16 %v1240
  %v1259 = vunpack.c.h.b16 %v1240
  %v1260 = vunpack.c.l.b16 %v1241
  %v1261 = vunpack.c.h.b16 %v1241
  %v1262 = vunpack.c.l.b16 %v1242
  %v1263 = vunpack.c.h.b16 %v1242
  %v1264 = vunpack.c.l.b16 %v1243
  %v1265 = vunpack.c.h.b16 %v1243
  %v1266 = vunpack.c.l.b16 %v1244
  %v1267 = vunpack.c.h.b16 %v1244
  %v1268 = vunpack.c.l.b16 %v1245
  %v1269 = vunpack.c.h.b16 %v1245
  %v1270 = vpack.c.b16 %v1258, %v1254
  %v1271 = vpack.c.b16 %v1259, %v1255
  %v1272 = vpack.c.b16 %v1260, %v1256
  %v1273 = vpack.c.b16 %v1261, %v1257
  %v1274 = vpack.c.b16 %v1266, %v1262
  %v1275 = vpack.c.b16 %v1267, %v1263
  %v1276 = vpack.c.b16 %v1268, %v1264
  %v1277 = vpack.c.b16 %v1269, %v1265
  %1286 = vmatprep.subr.bf16.mxu0 %v1271
  %1287 = vmatpush1.bf16.msra.mxu0 %v1270
  %1288 = vmatprep.subr.bf16.mxu0 %v1275
  %1289 = vmatpush1.bf16.msra.mxu0 %v1274
  %1290 = vmatprep.subr.bf16.mxu0 0
  %1291 = vmatpush1.bf16.msra.mxu0 0
  %1292 = vmatprep.subr.bf16.mxu0 0
  %1293 = vmatpush1.bf16.msra.mxu0 0
  %1294 = vmatprep.subr.bf16.mxu0 0
  %1295 = vmatpush1.bf16.msra.mxu0 0
  %1296 = vmatprep.subr.bf16.mxu0 0
  %1297 = vmatpush1.bf16.msra.mxu0 0
  %1298 = vmatprep.subr.bf16.mxu0 0
  %1299 = vmatpush1.bf16.msra.mxu0 0
  %1300 = vmatprep.subr.bf16.mxu0 0
  %1301 = vmatpush1.bf16.msra.mxu0 0
  %1302 = vmatprep.subr.bf16.mxu0 0
  %1303 = vmatpush1.bf16.msra.mxu0 0
  %1304 = vmatprep.subr.bf16.mxu0 0
  %1305 = vmatpush1.bf16.msra.mxu0 0
  %1306 = vmatprep.subr.bf16.mxu0 0
  %1307 = vmatpush1.bf16.msra.mxu0 0
  %1308 = vmatprep.subr.bf16.mxu0 0
  %1309 = vmatpush1.bf16.msra.mxu0 0
  %1310 = vmatprep.subr.bf16.mxu0 0
  %1311 = vmatpush1.bf16.msra.mxu0 0
  %1312 = vmatprep.subr.bf16.mxu0 0
  %1313 = vmatpush1.bf16.msra.mxu0 0
  %1314 = vmatprep.subr.bf16.mxu0 0
  %1315 = vmatpush1.bf16.msra.mxu0 0
  %1316 = vmatprep.subr.bf16.mxu0 0
  %1317 = vmatpush1.bf16.msra.mxu0 0
  %1318 = vmatprep.mubr.bf16.mxu0 0
  %1319 = vmatmul.mubr.bf16.gmra.mrb[0].mxu0 %v101
  %v1320 = vpop.f32.mrb[0].mxu0
  %v1321 = vadd.f32 0.0, %v1320
  %v1322 = vpop.f32.mrb[0].mxu0
  %v1323 = vadd.f32 0.0, %v1322
  %v1324 = vpop.f32.mrb[0].mxu0
  %v1325 = vpop.f32.mrb[0].mxu0
  %1326 = vdwg.mxu0
  %1327 = vmatprep.subr.bf16.mxu0 %v1273
  %1328 = vmatpush1.bf16.msra.mxu0 %v1272
  %1329 = vmatprep.subr.bf16.mxu0 %v1277
  %1330 = vmatpush1.bf16.msra.mxu0 %v1276
  %1331 = vmatprep.subr.bf16.mxu0 0
  %1332 = vmatpush1.bf16.msra.mxu0 0
  %1333 = vmatprep.subr.bf16.mxu0 0
  %1334 = vmatpush1.bf16.msra.mxu0 0
  %1335 = vmatprep.subr.bf16.mxu0 0
  %1336 = vmatpush1.bf16.msra.mxu0 0
  %1337 = vmatprep.subr.bf16.mxu0 0
  %1338 = vmatpush1.bf16.msra.mxu0 0
  %1339 = vmatprep.subr.bf16.mxu0 0
  %1340 = vmatpush1.bf16.msra.mxu0 0
  %1341 = vmatprep.subr.bf16.mxu0 0
  %1342 = vmatpush1.bf16.msra.mxu0 0
  %1343 = vmatprep.subr.bf16.mxu0 0
  %1344 = vmatpush1.bf16.msra.mxu0 0
  %1345 = vmatprep.subr.bf16.mxu0 0
  %1346 = vmatpush1.bf16.msra.mxu0 0
  %1347 = vmatprep.subr.bf16.mxu0 0
  %1348 = vmatpush1.bf16.msra.mxu0 0
  %1349 = vmatprep.subr.bf16.mxu0 0
  %1350 = vmatpush1.bf16.msra.mxu0 0
  %1351 = vmatprep.subr.bf16.mxu0 0
  %1352 = vmatpush1.bf16.msra.mxu0 0
  %1353 = vmatprep.subr.bf16.mxu0 0
  %1354 = vmatpush1.bf16.msra.mxu0 0
  %1355 = vmatprep.subr.bf16.mxu0 0
  %1356 = vmatpush1.bf16.msra.mxu0 0
  %1357 = vmatprep.subr.bf16.mxu0 0
  %1358 = vmatpush1.bf16.msra.mxu0 0
  %1359 = vmatprep.mubr.bf16.mxu0 0
  %1360 = vmatmul.mubr.bf16.gmra.mrb[0].mxu0 %v101
  %v1361 = vpop.f32.mrb[0].mxu0
  %v1362 = vadd.f32 0.0, %v1361
  %v1363 = vpop.f32.mrb[0].mxu0
  %v1364 = vadd.f32 0.0, %v1363
  %v1365 = vpop.f32.mrb[0].mxu0
  %v1366 = vpop.f32.mrb[0].mxu0
  %1367 = vdwg.mxu0
  %v1376 = vunpack.c.l.b16 %v1230
  %v1377 = vunpack.c.h.b16 %v1230
  %v1378 = vunpack.c.l.b16 %v1231
  %v1379 = vunpack.c.h.b16 %v1231
  %v1380 = vunpack.c.l.b16 %v1232
  %v1381 = vunpack.c.h.b16 %v1232
  %v1382 = vunpack.c.l.b16 %v1233
  %v1383 = vunpack.c.h.b16 %v1233
  %v1384 = vunpack.c.l.b16 %v1234
  %v1385 = vunpack.c.h.b16 %v1234
  %v1386 = vunpack.c.l.b16 %v1235
  %v1387 = vunpack.c.h.b16 %v1235
  %v1388 = vunpack.c.l.b16 %v1236
  %v1389 = vunpack.c.h.b16 %v1236
  %v1390 = vunpack.c.l.b16 %v1237
  %v1391 = vunpack.c.h.b16 %v1237
  %v1392 = vpack.c.b16 %v1380, %v1376
  %v1393 = vpack.c.b16 %v1381, %v1377
  %v1394 = vpack.c.b16 %v1382, %v1378
  %v1395 = vpack.c.b16 %v1383, %v1379
  %v1396 = vpack.c.b16 %v1388, %v1384
  %v1397 = vpack.c.b16 %v1389, %v1385
  %v1398 = vpack.c.b16 %v1390, %v1386
  %v1399 = vpack.c.b16 %v1391, %v1387
  %1408 = vmatprep.subr.bf16.mxu0 %v1393
  %1409 = vmatpush1.bf16.msra.mxu0 %v1392
  %1410 = vmatprep.subr.bf16.mxu0 %v1397
  %1411 = vmatpush1.bf16.msra.mxu0 %v1396
  %1412 = vmatprep.subr.bf16.mxu0 0
  %1413 = vmatpush1.bf16.msra.mxu0 0
  %1414 = vmatprep.subr.bf16.mxu0 0
  %1415 = vmatpush1.bf16.msra.mxu0 0
  %1416 = vmatprep.subr.bf16.mxu0 0
  %1417 = vmatpush1.bf16.msra.mxu0 0
  %1418 = vmatprep.subr.bf16.mxu0 0
  %1419 = vmatpush1.bf16.msra.mxu0 0
  %1420 = vmatprep.subr.bf16.mxu0 0
  %1421 = vmatpush1.bf16.msra.mxu0 0
  %1422 = vmatprep.subr.bf16.mxu0 0
  %1423 = vmatpush1.bf16.msra.mxu0 0
  %1424 = vmatprep.subr.bf16.mxu0 0
  %1425 = vmatpush1.bf16.msra.mxu0 0
  %1426 = vmatprep.subr.bf16.mxu0 0
  %1427 = vmatpush1.bf16.msra.mxu0 0
  %1428 = vmatprep.subr.bf16.mxu0 0
  %1429 = vmatpush1.bf16.msra.mxu0 0
  %1430 = vmatprep.subr.bf16.mxu0 0
  %1431 = vmatpush1.bf16.msra.mxu0 0
  %1432 = vmatprep.subr.bf16.mxu0 0
  %1433 = vmatpush1.bf16.msra.mxu0 0
  %1434 = vmatprep.subr.bf16.mxu0 0
  %1435 = vmatpush1.bf16.msra.mxu0 0
  %1436 = vmatprep.subr.bf16.mxu0 0
  %1437 = vmatpush1.bf16.msra.mxu0 0
  %1438 = vmatprep.subr.bf16.mxu0 0
  %1439 = vmatpush1.bf16.msra.mxu0 0
  %1440 = vmatprep.mubr.bf16.mxu0 0
  %1441 = vmatmul.mubr.bf16.gmra.mrb[0].mxu0 %v1036
  %v1442 = vpop.f32.mrb[0].mxu0
  %v1443 = vadd.f32 %v1321, %v1442
  %v1444 = vpop.f32.mrb[0].mxu0
  %v1445 = vadd.f32 %v1323, %v1444
  %v1446 = vpop.f32.mrb[0].mxu0
  %v1447 = vpop.f32.mrb[0].mxu0
  %1448 = vdwg.mxu0
  %1449 = vmatprep.subr.bf16.mxu0 %v1395
  %1450 = vmatpush1.bf16.msra.mxu0 %v1394
  %1451 = vmatprep.subr.bf16.mxu0 %v1399
  %1452 = vmatpush1.bf16.msra.mxu0 %v1398
  %1453 = vmatprep.subr.bf16.mxu0 0
  %1454 = vmatpush1.bf16.msra.mxu0 0
  %1455 = vmatprep.subr.bf16.mxu0 0
  %1456 = vmatpush1.bf16.msra.mxu0 0
  %1457 = vmatprep.subr.bf16.mxu0 0
  %1458 = vmatpush1.bf16.msra.mxu0 0
  %1459 = vmatprep.subr.bf16.mxu0 0
  %1460 = vmatpush1.bf16.msra.mxu0 0
  %1461 = vmatprep.subr.bf16.mxu0 0
  %1462 = vmatpush1.bf16.msra.mxu0 0
  %1463 = vmatprep.subr.bf16.mxu0 0
  %1464 = vmatpush1.bf16.msra.mxu0 0
  %1465 = vmatprep.subr.bf16.mxu0 0
  %1466 = vmatpush1.bf16.msra.mxu0 0
  %1467 = vmatprep.subr.bf16.mxu0 0
  %1468 = vmatpush1.bf16.msra.mxu0 0
  %1469 = vmatprep.subr.bf16.mxu0 0
  %1470 = vmatpush1.bf16.msra.mxu0 0
  %1471 = vmatprep.subr.bf16.mxu0 0
  %1472 = vmatpush1.bf16.msra.mxu0 0
  %1473 = vmatprep.subr.bf16.mxu0 0
  %1474 = vmatpush1.bf16.msra.mxu0 0
  %1475 = vmatprep.subr.bf16.mxu0 0
  %1476 = vmatpush1.bf16.msra.mxu0 0
  %1477 = vmatprep.subr.bf16.mxu0 0
  %1478 = vmatpush1.bf16.msra.mxu0 0
  %1479 = vmatprep.subr.bf16.mxu0 0
  %1480 = vmatpush1.bf16.msra.mxu0 0
  %1481 = vmatprep.mubr.bf16.mxu0 0
  %1482 = vmatmul.mubr.bf16.gmra.mrb[0].mxu0 %v1036
  %v1483 = vpop.f32.mrb[0].mxu0
  %v1484 = vadd.f32 %v1362, %v1483
  %v1485 = vpop.f32.mrb[0].mxu0
  %v1486 = vadd.f32 %v1364, %v1485
  %v1487 = vpop.f32.mrb[0].mxu0
  %v1488 = vpop.f32.mrb[0].mxu0
  %1489 = vdwg.mxu0
  %v1490 = vld [vmem:[%s9] sm:$0xff]
  %v1491 = vld [vmem:[%s9 + $0x8] sm:$0xff]
  %v1492 = vld [vmem:[%s9 + $0x10] sm:$0xff]
  %v1493 = vld [vmem:[%s9 + $0x18] sm:$0xff]
  %v1494 = vadd.f32 %v1443, %v1490
  %v1495 = vadd.f32 %v1445, %v1491
  %v1496 = vadd.f32 %v1484, %v1492
  %v1497 = vadd.f32 %v1486, %v1493
  %v1498 = vxor.u32 %v1494, 2147483648
  %v1499 = vmul.f32 %v1498, 1.442695
  %v1500 = vpow.pop %v1499
  %v1501 = vadd.f32 %v1500, 1.0
  %v1502 = vrcp.pop %v1501
  %v1503 = vmul.f32 1.0, %v1502
  %v1504 = vxor.u32 %v1495, 2147483648
  %v1505 = vmul.f32 %v1504, 1.442695
  %v1506 = vpow.pop %v1505
  %v1507 = vadd.f32 %v1506, 1.0
  %v1508 = vrcp.pop %v1507
  %v1509 = vmul.f32 1.0, %v1508
  %v1510 = vxor.u32 %v1496, 2147483648
  %v1511 = vmul.f32 %v1510, 1.442695
  %v1512 = vpow.pop %v1511
  %v1513 = vadd.f32 %v1512, 1.0
  %v1514 = vrcp.pop %v1513
  %v1515 = vmul.f32 1.0, %v1514
  %v1516 = vtanh.pop %v1497
  %v1517 = vmul.f32 %v1509, 0.0
  %v1518 = vmul.f32 %v1503, %v1516
  %v1519 = vadd.f32 %v1517, %v1518
  %v1520 = vtanh.pop %v1519
  %v1521 = vmul.f32 %v1515, %v1520
  %v1522 = vpack.c.bf16 %v1034, %v1034
  %v1523 = vpack.c.bf16 %v1229, %v1229
  %v1524 = vpack.c.bf16 %v1521, %v1521
  %v1525 = vld [vmem:[%s0 + $0xc] sm:$0xf]
  %v1527 = vsel %vm99, %v1522, 0
  %1529 = vmatprep.subr.bf16.mxu0 %v84
  %1530 = vmatpush1.bf16.msra.mxu0 %v83
  %1531 = vmatprep.subr.bf16.mxu0 %v88
  %1532 = vmatpush1.bf16.msra.mxu0 %v87
  %1533 = vmatprep.subr.bf16.mxu0 0
  %1534 = vmatpush1.bf16.msra.mxu0 0
  %1535 = vmatprep.subr.bf16.mxu0 0
  %1536 = vmatpush1.bf16.msra.mxu0 0
  %1537 = vmatprep.subr.bf16.mxu0 0
  %1538 = vmatpush1.bf16.msra.mxu0 0
  %1539 = vmatprep.subr.bf16.mxu0 0
  %1540 = vmatpush1.bf16.msra.mxu0 0
  %1541 = vmatprep.subr.bf16.mxu0 0
  %1542 = vmatpush1.bf16.msra.mxu0 0
  %1543 = vmatprep.subr.bf16.mxu0 0
  %1544 = vmatpush1.bf16.msra.mxu0 0
  %1545 = vmatprep.subr.bf16.mxu0 0
  %1546 = vmatpush1.bf16.msra.mxu0 0
  %1547 = vmatprep.subr.bf16.mxu0 0
  %1548 = vmatpush1.bf16.msra.mxu0 0
  %1549 = vmatprep.subr.bf16.mxu0 0
  %1550 = vmatpush1.bf16.msra.mxu0 0
  %1551 = vmatprep.subr.bf16.mxu0 0
  %1552 = vmatpush1.bf16.msra.mxu0 0
  %1553 = vmatprep.subr.bf16.mxu0 0
  %1554 = vmatpush1.bf16.msra.mxu0 0
  %1555 = vmatprep.subr.bf16.mxu0 0
  %1556 = vmatpush1.bf16.msra.mxu0 0
  %1557 = vmatprep.subr.bf16.mxu0 0
  %1558 = vmatpush1.bf16.msra.mxu0 0
  %1559 = vmatprep.subr.bf16.mxu0 0
  %1560 = vmatpush1.bf16.msra.mxu0 0
  %1561 = vmatprep.mubr.bf16.mxu0 0
  %1562 = vmatmul.mubr.bf16.gmra.mrb[0].mxu0 %v1527
  %v1563 = vpop.f32.mrb[0].mxu0
  %v1564 = vadd.f32 0.0, %v1563
  %v1565 = vpop.f32.mrb[0].mxu0
  %v1566 = vadd.f32 0.0, %v1565
  %v1567 = vpop.f32.mrb[0].mxu0
  %v1568 = vpop.f32.mrb[0].mxu0
  %1569 = vdwg.mxu0
  %1570 = vmatprep.subr.bf16.mxu0 %v86
  %1571 = vmatpush1.bf16.msra.mxu0 %v85
  %1572 = vmatprep.subr.bf16.mxu0 %v90
  %1573 = vmatpush1.bf16.msra.mxu0 %v89
  %1574 = vmatprep.subr.bf16.mxu0 0
  %1575 = vmatpush1.bf16.msra.mxu0 0
  %1576 = vmatprep.subr.bf16.mxu0 0
  %1577 = vmatpush1.bf16.msra.mxu0 0
  %1578 = vmatprep.subr.bf16.mxu0 0
  %1579 = vmatpush1.bf16.msra.mxu0 0
  %1580 = vmatprep.subr.bf16.mxu0 0
  %1581 = vmatpush1.bf16.msra.mxu0 0
  %1582 = vmatprep.subr.bf16.mxu0 0
  %1583 = vmatpush1.bf16.msra.mxu0 0
  %1584 = vmatprep.subr.bf16.mxu0 0
  %1585 = vmatpush1.bf16.msra.mxu0 0
  %1586 = vmatprep.subr.bf16.mxu0 0
  %1587 = vmatpush1.bf16.msra.mxu0 0
  %1588 = vmatprep.subr.bf16.mxu0 0
  %1589 = vmatpush1.bf16.msra.mxu0 0
  %1590 = vmatprep.subr.bf16.mxu0 0
  %1591 = vmatpush1.bf16.msra.mxu0 0
  %1592 = vmatprep.subr.bf16.mxu0 0
  %1593 = vmatpush1.bf16.msra.mxu0 0
  %1594 = vmatprep.subr.bf16.mxu0 0
  %1595 = vmatpush1.bf16.msra.mxu0 0
  %1596 = vmatprep.subr.bf16.mxu0 0
  %1597 = vmatpush1.bf16.msra.mxu0 0
  %1598 = vmatprep.subr.bf16.mxu0 0
  %1599 = vmatpush1.bf16.msra.mxu0 0
  %1600 = vmatprep.subr.bf16.mxu0 0
  %1601 = vmatpush1.bf16.msra.mxu0 0
  %1602 = vmatprep.mubr.bf16.mxu0 0
  %1603 = vmatmul.mubr.bf16.gmra.mrb[0].mxu0 %v1527
  %v1604 = vpop.f32.mrb[0].mxu0
  %v1605 = vadd.f32 0.0, %v1604
  %v1606 = vpop.f32.mrb[0].mxu0
  %v1607 = vadd.f32 0.0, %v1606
  %v1608 = vpop.f32.mrb[0].mxu0
  %v1609 = vpop.f32.mrb[0].mxu0
  %1610 = vdwg.mxu0
  %v1612 = vsel %vm99, %v1525, 0
  %1614 = vmatprep.subr.bf16.mxu0 %v210
  %1615 = vmatpush1.bf16.msra.mxu0 %v209
  %1616 = vmatprep.subr.bf16.mxu0 %v214
  %1617 = vmatpush1.bf16.msra.mxu0 %v213
  %1618 = vmatprep.subr.bf16.mxu0 0
  %1619 = vmatpush1.bf16.msra.mxu0 0
  %1620 = vmatprep.subr.bf16.mxu0 0
  %1621 = vmatpush1.bf16.msra.mxu0 0
  %1622 = vmatprep.subr.bf16.mxu0 0
  %1623 = vmatpush1.bf16.msra.mxu0 0
  %1624 = vmatprep.subr.bf16.mxu0 0
  %1625 = vmatpush1.bf16.msra.mxu0 0
  %1626 = vmatprep.subr.bf16.mxu0 0
  %1627 = vmatpush1.bf16.msra.mxu0 0
  %1628 = vmatprep.subr.bf16.mxu0 0
  %1629 = vmatpush1.bf16.msra.mxu0 0
  %1630 = vmatprep.subr.bf16.mxu0 0
  %1631 = vmatpush1.bf16.msra.mxu0 0
  %1632 = vmatprep.subr.bf16.mxu0 0
  %1633 = vmatpush1.bf16.msra.mxu0 0
  %1634 = vmatprep.subr.bf16.mxu0 0
  %1635 = vmatpush1.bf16.msra.mxu0 0
  %1636 = vmatprep.subr.bf16.mxu0 0
  %1637 = vmatpush1.bf16.msra.mxu0 0
  %1638 = vmatprep.subr.bf16.mxu0 0
  %1639 = vmatpush1.bf16.msra.mxu0 0
  %1640 = vmatprep.subr.bf16.mxu0 0
  %1641 = vmatpush1.bf16.msra.mxu0 0
  %1642 = vmatprep.subr.bf16.mxu0 0
  %1643 = vmatpush1.bf16.msra.mxu0 0
  %1644 = vmatprep.subr.bf16.mxu0 0
  %1645 = vmatpush1.bf16.msra.mxu0 0
  %1646 = vmatprep.mubr.bf16.mxu0 0
  %1647 = vmatmul.mubr.bf16.gmra.mrb[0].mxu0 %v1612
  %v1648 = vpop.f32.mrb[0].mxu0
  %v1649 = vadd.f32 %v1564, %v1648
  %v1650 = vpop.f32.mrb[0].mxu0
  %v1651 = vadd.f32 %v1566, %v1650
  %v1652 = vpop.f32.mrb[0].mxu0
  %v1653 = vpop.f32.mrb[0].mxu0
  %1654 = vdwg.mxu0
  %1655 = vmatprep.subr.bf16.mxu0 %v212
  %1656 = vmatpush1.bf16.msra.mxu0 %v211
  %1657 = vmatprep.subr.bf16.mxu0 %v216
  %1658 = vmatpush1.bf16.msra.mxu0 %v215
  %1659 = vmatprep.subr.bf16.mxu0 0
  %1660 = vmatpush1.bf16.msra.mxu0 0
  %1661 = vmatprep.subr.bf16.mxu0 0
  %1662 = vmatpush1.bf16.msra.mxu0 0
  %1663 = vmatprep.subr.bf16.mxu0 0
  %1664 = vmatpush1.bf16.msra.mxu0 0
  %1665 = vmatprep.subr.bf16.mxu0 0
  %1666 = vmatpush1.bf16.msra.mxu0 0
  %1667 = vmatprep.subr.bf16.mxu0 0
  %1668 = vmatpush1.bf16.msra.mxu0 0
  %1669 = vmatprep.subr.bf16.mxu0 0
  %1670 = vmatpush1.bf16.msra.mxu0 0
  %1671 = vmatprep.subr.bf16.mxu0 0
  %1672 = vmatpush1.bf16.msra.mxu0 0
  %1673 = vmatprep.subr.bf16.mxu0 0
  %1674 = vmatpush1.bf16.msra.mxu0 0
  %1675 = vmatprep.subr.bf16.mxu0 0
  %1676 = vmatpush1.bf16.msra.mxu0 0
  %1677 = vmatprep.subr.bf16.mxu0 0
  %1678 = vmatpush1.bf16.msra.mxu0 0
  %1679 = vmatprep.subr.bf16.mxu0 0
  %1680 = vmatpush1.bf16.msra.mxu0 0
  %1681 = vmatprep.subr.bf16.mxu0 0
  %1682 = vmatpush1.bf16.msra.mxu0 0
  %1683 = vmatprep.subr.bf16.mxu0 0
  %1684 = vmatpush1.bf16.msra.mxu0 0
  %1685 = vmatprep.subr.bf16.mxu0 0
  %1686 = vmatpush1.bf16.msra.mxu0 0
  %1687 = vmatprep.mubr.bf16.mxu0 0
  %1688 = vmatmul.mubr.bf16.gmra.mrb[0].mxu0 %v1612
  %v1689 = vpop.f32.mrb[0].mxu0
  %v1690 = vadd.f32 %v1605, %v1689
  %v1691 = vpop.f32.mrb[0].mxu0
  %v1692 = vadd.f32 %v1607, %v1691
  %v1693 = vpop.f32.mrb[0].mxu0
  %v1694 = vpop.f32.mrb[0].mxu0
  %1695 = vdwg.mxu0
  %v1696 = vadd.f32 %v1649, %v310
  %v1697 = vadd.f32 %v1651, %v311
  %v1698 = vadd.f32 %v1690, %v312
  %v1699 = vadd.f32 %v1692, %v313
  %v1700 = vxor.u32 %v1696, 2147483648
  %v1701 = vmul.f32 %v1700, 1.442695
  %v1702 = vpow.pop %v1701
  %v1703 = vadd.f32 %v1702, 1.0
  %v1704 = vrcp.pop %v1703
  %v1705 = vmul.f32 1.0, %v1704
  %v1706 = vxor.u32 %v1697, 2147483648
  %v1707 = vmul.f32 %v1706, 1.442695
  %v1708 = vpow.pop %v1707
  %v1709 = vadd.f32 %v1708, 1.0
  %v1710 = vrcp.pop %v1709
  %v1711 = vmul.f32 1.0, %v1710
  %v1712 = vxor.u32 %v1698, 2147483648
  %v1713 = vmul.f32 %v1712, 1.442695
  %v1714 = vpow.pop %v1713
  %v1715 = vadd.f32 %v1714, 1.0
  %v1716 = vrcp.pop %v1715
  %v1717 = vmul.f32 1.0, %v1716
  %v1718 = vtanh.pop %v1699
  %v1719 = vmul.f32 %v1711, %v1032
  %v1720 = vmul.f32 %v1705, %v1718
  %v1721 = vadd.f32 %v1719, %v1720
  %v1722 = vtanh.pop %v1721
  %v1723 = vmul.f32 %v1717, %v1722
  %v1725 = vsel %vm99, %v1523, 0
  %1727 = vmatprep.subr.bf16.mxu0 %v583
  %1728 = vmatpush1.bf16.msra.mxu0 %v582
  %1729 = vmatprep.subr.bf16.mxu0 %v587
  %1730 = vmatpush1.bf16.msra.mxu0 %v586
  %1731 = vmatprep.subr.bf16.mxu0 0
  %1732 = vmatpush1.bf16.msra.mxu0 0
  %1733 = vmatprep.subr.bf16.mxu0 0
  %1734 = vmatpush1.bf16.msra.mxu0 0
  %1735 = vmatprep.subr.bf16.mxu0 0
  %1736 = vmatpush1.bf16.msra.mxu0 0
  %1737 = vmatprep.subr.bf16.mxu0 0
  %1738 = vmatpush1.bf16.msra.mxu0 0
  %1739 = vmatprep.subr.bf16.mxu0 0
  %1740 = vmatpush1.bf16.msra.mxu0 0
  %1741 = vmatprep.subr.bf16.mxu0 0
  %1742 = vmatpush1.bf16.msra.mxu0 0
  %1743 = vmatprep.subr.bf16.mxu0 0
  %1744 = vmatpush1.bf16.msra.mxu0 0
  %1745 = vmatprep.subr.bf16.mxu0 0
  %1746 = vmatpush1.bf16.msra.mxu0 0
  %1747 = vmatprep.subr.bf16.mxu0 0
  %1748 = vmatpush1.bf16.msra.mxu0 0
  %1749 = vmatprep.subr.bf16.mxu0 0
  %1750 = vmatpush1.bf16.msra.mxu0 0
  %1751 = vmatprep.subr.bf16.mxu0 0
  %1752 = vmatpush1.bf16.msra.mxu0 0
  %1753 = vmatprep.subr.bf16.mxu0 0
  %1754 = vmatpush1.bf16.msra.mxu0 0
  %1755 = vmatprep.subr.bf16.mxu0 0
  %1756 = vmatpush1.bf16.msra.mxu0 0
  %1757 = vmatprep.subr.bf16.mxu0 0
  %1758 = vmatpush1.bf16.msra.mxu0 0
  %1759 = vmatprep.mubr.bf16.mxu0 0
  %1760 = vmatmul.mubr.bf16.gmra.mrb[0].mxu0 %v1725
  %v1761 = vpop.f32.mrb[0].mxu0
  %v1762 = vadd.f32 0.0, %v1761
  %v1763 = vpop.f32.mrb[0].mxu0
  %v1764 = vadd.f32 0.0, %v1763
  %v1765 = vpop.f32.mrb[0].mxu0
  %v1766 = vpop.f32.mrb[0].mxu0
  %1767 = vdwg.mxu0
  %1768 = vmatprep.subr.bf16.mxu0 %v585
  %1769 = vmatpush1.bf16.msra.mxu0 %v584
  %1770 = vmatprep.subr.bf16.mxu0 %v589
  %1771 = vmatpush1.bf16.msra.mxu0 %v588
  %1772 = vmatprep.subr.bf16.mxu0 0
  %1773 = vmatpush1.bf16.msra.mxu0 0
  %1774 = vmatprep.subr.bf16.mxu0 0
  %1775 = vmatpush1.bf16.msra.mxu0 0
  %1776 = vmatprep.subr.bf16.mxu0 0
  %1777 = vmatpush1.bf16.msra.mxu0 0
  %1778 = vmatprep.subr.bf16.mxu0 0
  %1779 = vmatpush1.bf16.msra.mxu0 0
  %1780 = vmatprep.subr.bf16.mxu0 0
  %1781 = vmatpush1.bf16.msra.mxu0 0
  %1782 = vmatprep.subr.bf16.mxu0 0
  %1783 = vmatpush1.bf16.msra.mxu0 0
  %1784 = vmatprep.subr.bf16.mxu0 0
  %1785 = vmatpush1.bf16.msra.mxu0 0
  %1786 = vmatprep.subr.bf16.mxu0 0
  %1787 = vmatpush1.bf16.msra.mxu0 0
  %1788 = vmatprep.subr.bf16.mxu0 0
  %1789 = vmatpush1.bf16.msra.mxu0 0
  %1790 = vmatprep.subr.bf16.mxu0 0
  %1791 = vmatpush1.bf16.msra.mxu0 0
  %1792 = vmatprep.subr.bf16.mxu0 0
  %1793 = vmatpush1.bf16.msra.mxu0 0
  %1794 = vmatprep.subr.bf16.mxu0 0
  %1795 = vmatpush1.bf16.msra.mxu0 0
  %1796 = vmatprep.subr.bf16.mxu0 0
  %1797 = vmatpush1.bf16.msra.mxu0 0
  %1798 = vmatprep.subr.bf16.mxu0 0
  %1799 = vmatpush1.bf16.msra.mxu0 0
  %1800 = vmatprep.mubr.bf16.mxu0 0
  %1801 = vmatmul.mubr.bf16.gmra.mrb[0].mxu0 %v1725
  %v1802 = vpop.f32.mrb[0].mxu0
  %v1803 = vadd.f32 0.0, %v1802
  %v1804 = vpop.f32.mrb[0].mxu0
  %v1805 = vadd.f32 0.0, %v1804
  %v1806 = vpop.f32.mrb[0].mxu0
  %v1807 = vpop.f32.mrb[0].mxu0
  %1808 = vdwg.mxu0
  %1809 = vmatprep.subr.bf16.mxu0 %v705
  %1810 = vmatpush1.bf16.msra.mxu0 %v704
  %1811 = vmatprep.subr.bf16.mxu0 %v709
  %1812 = vmatpush1.bf16.msra.mxu0 %v708
  %1813 = vmatprep.subr.bf16.mxu0 0
  %1814 = vmatpush1.bf16.msra.mxu0 0
  %1815 = vmatprep.subr.bf16.mxu0 0
  %1816 = vmatpush1.bf16.msra.mxu0 0
  %1817 = vmatprep.subr.bf16.mxu0 0
  %1818 = vmatpush1.bf16.msra.mxu0 0
  %1819 = vmatprep.subr.bf16.mxu0 0
  %1820 = vmatpush1.bf16.msra.mxu0 0
  %1821 = vmatprep.subr.bf16.mxu0 0
  %1822 = vmatpush1.bf16.msra.mxu0 0
  %1823 = vmatprep.subr.bf16.mxu0 0
  %1824 = vmatpush1.bf16.msra.mxu0 0
  %1825 = vmatprep.subr.bf16.mxu0 0
  %1826 = vmatpush1.bf16.msra.mxu0 0
  %1827 = vmatprep.subr.bf16.mxu0 0
  %1828 = vmatpush1.bf16.msra.mxu0 0
  %1829 = vmatprep.subr.bf16.mxu0 0
  %1830 = vmatpush1.bf16.msra.mxu0 0
  %1831 = vmatprep.subr.bf16.mxu0 0
  %1832 = vmatpush1.bf16.msra.mxu0 0
  %1833 = vmatprep.subr.bf16.mxu0 0
  %1834 = vmatpush1.bf16.msra.mxu0 0
  %1835 = vmatprep.subr.bf16.mxu0 0
  %1836 = vmatpush1.bf16.msra.mxu0 0
  %1837 = vmatprep.subr.bf16.mxu0 0
  %1838 = vmatpush1.bf16.msra.mxu0 0
  %1839 = vmatprep.subr.bf16.mxu0 0
  %1840 = vmatpush1.bf16.msra.mxu0 0
  %1841 = vmatprep.mubr.bf16.mxu0 0
  %1842 = vmatmul.mubr.bf16.gmra.mrb[0].mxu0 %v1527
  %v1843 = vpop.f32.mrb[0].mxu0
  %v1844 = vadd.f32 %v1762, %v1843
  %v1845 = vpop.f32.mrb[0].mxu0
  %v1846 = vadd.f32 %v1764, %v1845
  %v1847 = vpop.f32.mrb[0].mxu0
  %v1848 = vpop.f32.mrb[0].mxu0
  %1849 = vdwg.mxu0
  %1850 = vmatprep.subr.bf16.mxu0 %v707
  %1851 = vmatpush1.bf16.msra.mxu0 %v706
  %1852 = vmatprep.subr.bf16.mxu0 %v711
  %1853 = vmatpush1.bf16.msra.mxu0 %v710
  %1854 = vmatprep.subr.bf16.mxu0 0
  %1855 = vmatpush1.bf16.msra.mxu0 0
  %1856 = vmatprep.subr.bf16.mxu0 0
  %1857 = vmatpush1.bf16.msra.mxu0 0
  %1858 = vmatprep.subr.bf16.mxu0 0
  %1859 = vmatpush1.bf16.msra.mxu0 0
  %1860 = vmatprep.subr.bf16.mxu0 0
  %1861 = vmatpush1.bf16.msra.mxu0 0
  %1862 = vmatprep.subr.bf16.mxu0 0
  %1863 = vmatpush1.bf16.msra.mxu0 0
  %1864 = vmatprep.subr.bf16.mxu0 0
  %1865 = vmatpush1.bf16.msra.mxu0 0
  %1866 = vmatprep.subr.bf16.mxu0 0
  %1867 = vmatpush1.bf16.msra.mxu0 0
  %1868 = vmatprep.subr.bf16.mxu0 0
  %1869 = vmatpush1.bf16.msra.mxu0 0
  %1870 = vmatprep.subr.bf16.mxu0 0
  %1871 = vmatpush1.bf16.msra.mxu0 0
  %1872 = vmatprep.subr.bf16.mxu0 0
  %1873 = vmatpush1.bf16.msra.mxu0 0
  %1874 = vmatprep.subr.bf16.mxu0 0
  %1875 = vmatpush1.bf16.msra.mxu0 0
  %1876 = vmatprep.subr.bf16.mxu0 0
  %1877 = vmatpush1.bf16.msra.mxu0 0
  %1878 = vmatprep.subr.bf16.mxu0 0
  %1879 = vmatpush1.bf16.msra.mxu0 0
  %1880 = vmatprep.subr.bf16.mxu0 0
  %1881 = vmatpush1.bf16.msra.mxu0 0
  %1882 = vmatprep.mubr.bf16.mxu0 0
  %1883 = vmatmul.mubr.bf16.gmra.mrb[0].mxu0 %v1527
  %v1884 = vpop.f32.mrb[0].mxu0
  %v1885 = vadd.f32 %v1803, %v1884
  %v1886 = vpop.f32.mrb[0].mxu0
  %v1887 = vadd.f32 %v1805, %v1886
  %v1888 = vpop.f32.mrb[0].mxu0
  %v1889 = vpop.f32.mrb[0].mxu0
  %1890 = vdwg.mxu0
  %v1891 = vadd.f32 %v1844, %v802
  %v1892 = vadd.f32 %v1846, %v803
  %v1893 = vadd.f32 %v1885, %v804
  %v1894 = vadd.f32 %v1887, %v805
  %v1895 = vxor.u32 %v1891, 2147483648
  %v1896 = vmul.f32 %v1895, 1.442695
  %v1897 = vpow.pop %v1896
  %v1898 = vadd.f32 %v1897, 1.0
  %v1899 = vrcp.pop %v1898
  %v1900 = vmul.f32 1.0, %v1899
  %v1901 = vxor.u32 %v1892, 2147483648
  %v1902 = vmul.f32 %v1901, 1.442695
  %v1903 = vpow.pop %v1902
  %v1904 = vadd.f32 %v1903, 1.0
  %v1905 = vrcp.pop %v1904
  %v1906 = vmul.f32 1.0, %v1905
  %v1907 = vxor.u32 %v1893, 2147483648
  %v1908 = vmul.f32 %v1907, 1.442695
  %v1909 = vpow.pop %v1908
  %v1910 = vadd.f32 %v1909, 1.0
  %v1911 = vrcp.pop %v1910
  %v1912 = vmul.f32 1.0, %v1911
  %v1913 = vtanh.pop %v1894
  %v1914 = vmul.f32 %v1906, %v1227
  %v1915 = vmul.f32 %v1900, %v1913
  %v1916 = vadd.f32 %v1914, %v1915
  %v1917 = vtanh.pop %v1916
  %v1918 = vmul.f32 %v1912, %v1917
  %v1920 = vsel %vm99, %v1524, 0
  %1922 = vmatprep.subr.bf16.mxu0 %v1271
  %1923 = vmatpush1.bf16.msra.mxu0 %v1270
  %1924 = vmatprep.subr.bf16.mxu0 %v1275
  %1925 = vmatpush1.bf16.msra.mxu0 %v1274
  %1926 = vmatprep.subr.bf16.mxu0 0
  %1927 = vmatpush1.bf16.msra.mxu0 0
  %1928 = vmatprep.subr.bf16.mxu0 0
  %1929 = vmatpush1.bf16.msra.mxu0 0
  %1930 = vmatprep.subr.bf16.mxu0 0
  %1931 = vmatpush1.bf16.msra.mxu0 0
  %1932 = vmatprep.subr.bf16.mxu0 0
  %1933 = vmatpush1.bf16.msra.mxu0 0
  %1934 = vmatprep.subr.bf16.mxu0 0
  %1935 = vmatpush1.bf16.msra.mxu0 0
  %1936 = vmatprep.subr.bf16.mxu0 0
  %1937 = vmatpush1.bf16.msra.mxu0 0
  %1938 = vmatprep.subr.bf16.mxu0 0
  %1939 = vmatpush1.bf16.msra.mxu0 0
  %1940 = vmatprep.subr.bf16.mxu0 0
  %1941 = vmatpush1.bf16.msra.mxu0 0
  %1942 = vmatprep.subr.bf16.mxu0 0
  %1943 = vmatpush1.bf16.msra.mxu0 0
  %1944 = vmatprep.subr.bf16.mxu0 0
  %1945 = vmatpush1.bf16.msra.mxu0 0
  %1946 = vmatprep.subr.bf16.mxu0 0
  %1947 = vmatpush1.bf16.msra.mxu0 0
  %1948 = vmatprep.subr.bf16.mxu0 0
  %1949 = vmatpush1.bf16.msra.mxu0 0
  %1950 = vmatprep.subr.bf16.mxu0 0
  %1951 = vmatpush1.bf16.msra.mxu0 0
  %1952 = vmatprep.subr.bf16.mxu0 0
  %1953 = vmatpush1.bf16.msra.mxu0 0
  %1954 = vmatprep.mubr.bf16.mxu0 0
  %1955 = vmatmul.mubr.bf16.gmra.mrb[0].mxu0 %v1920
  %v1956 = vpop.f32.mrb[0].mxu0
  %v1957 = vadd.f32 0.0, %v1956
  %v1958 = vpop.f32.mrb[0].mxu0
  %v1959 = vadd.f32 0.0, %v1958
  %v1960 = vpop.f32.mrb[0].mxu0
  %v1961 = vpop.f32.mrb[0].mxu0
  %1962 = vdwg.mxu0
  %1963 = vmatprep.subr.bf16.mxu0 %v1273
  %1964 = vmatpush1.bf16.msra.mxu0 %v1272
  %1965 = vmatprep.subr.bf16.mxu0 %v1277
  %1966 = vmatpush1.bf16.msra.mxu0 %v1276
  %1967 = vmatprep.subr.bf16.mxu0 0
  %1968 = vmatpush1.bf16.msra.mxu0 0
  %1969 = vmatprep.subr.bf16.mxu0 0
  %1970 = vmatpush1.bf16.msra.mxu0 0
  %1971 = vmatprep.subr.bf16.mxu0 0
  %1972 = vmatpush1.bf16.msra.mxu0 0
  %1973 = vmatprep.subr.bf16.mxu0 0
  %1974 = vmatpush1.bf16.msra.mxu0 0
  %1975 = vmatprep.subr.bf16.mxu0 0
  %1976 = vmatpush1.bf16.msra.mxu0 0
  %1977 = vmatprep.subr.bf16.mxu0 0
  %1978 = vmatpush1.bf16.msra.mxu0 0
  %1979 = vmatprep.subr.bf16.mxu0 0
  %1980 = vmatpush1.bf16.msra.mxu0 0
  %1981 = vmatprep.subr.bf16.mxu0 0
  %1982 = vmatpush1.bf16.msra.mxu0 0
  %1983 = vmatprep.subr.bf16.mxu0 0
  %1984 = vmatpush1.bf16.msra.mxu0 0
  %1985 = vmatprep.subr.bf16.mxu0 0
  %1986 = vmatpush1.bf16.msra.mxu0 0
  %1987 = vmatprep.subr.bf16.mxu0 0
  %1988 = vmatpush1.bf16.msra.mxu0 0
  %1989 = vmatprep.subr.bf16.mxu0 0
  %1990 = vmatpush1.bf16.msra.mxu0 0
  %1991 = vmatprep.subr.bf16.mxu0 0
  %1992 = vmatpush1.bf16.msra.mxu0 0
  %1993 = vmatprep.subr.bf16.mxu0 0
  %1994 = vmatpush1.bf16.msra.mxu0 0
  %1995 = vmatprep.mubr.bf16.mxu0 0
  %1996 = vmatmul.mubr.bf16.gmra.mrb[0].mxu0 %v1920
  %v1997 = vpop.f32.mrb[0].mxu0
  %v1998 = vadd.f32 0.0, %v1997
  %v1999 = vpop.f32.mrb[0].mxu0
  %v2000 = vadd.f32 0.0, %v1999
  %v2001 = vpop.f32.mrb[0].mxu0
  %v2002 = vpop.f32.mrb[0].mxu0
  %2003 = vdwg.mxu0
  %2004 = vmatprep.subr.bf16.mxu0 %v1393
  %2005 = vmatpush1.bf16.msra.mxu0 %v1392
  %2006 = vmatprep.subr.bf16.mxu0 %v1397
  %2007 = vmatpush1.bf16.msra.mxu0 %v1396
  %2008 = vmatprep.subr.bf16.mxu0 0
  %2009 = vmatpush1.bf16.msra.mxu0 0
  %2010 = vmatprep.subr.bf16.mxu0 0
  %2011 = vmatpush1.bf16.msra.mxu0 0
  %2012 = vmatprep.subr.bf16.mxu0 0
  %2013 = vmatpush1.bf16.msra.mxu0 0
  %2014 = vmatprep.subr.bf16.mxu0 0
  %2015 = vmatpush1.bf16.msra.mxu0 0
  %2016 = vmatprep.subr.bf16.mxu0 0
  %2017 = vmatpush1.bf16.msra.mxu0 0
  %2018 = vmatprep.subr.bf16.mxu0 0
  %2019 = vmatpush1.bf16.msra.mxu0 0
  %2020 = vmatprep.subr.bf16.mxu0 0
  %2021 = vmatpush1.bf16.msra.mxu0 0
  %2022 = vmatprep.subr.bf16.mxu0 0
  %2023 = vmatpush1.bf16.msra.mxu0 0
  %2024 = vmatprep.subr.bf16.mxu0 0
  %2025 = vmatpush1.bf16.msra.mxu0 0
  %2026 = vmatprep.subr.bf16.mxu0 0
  %2027 = vmatpush1.bf16.msra.mxu0 0
  %2028 = vmatprep.subr.bf16.mxu0 0
  %2029 = vmatpush1.bf16.msra.mxu0 0
  %2030 = vmatprep.subr.bf16.mxu0 0
  %2031 = vmatpush1.bf16.msra.mxu0 0
  %2032 = vmatprep.subr.bf16.mxu0 0
  %2033 = vmatpush1.bf16.msra.mxu0 0
  %2034 = vmatprep.subr.bf16.mxu0 0
  %2035 = vmatpush1.bf16.msra.mxu0 0
  %2036 = vmatprep.mubr.bf16.mxu0 0
  %2037 = vmatmul.mubr.bf16.gmra.mrb[0].mxu0 %v1725
  %v2038 = vpop.f32.mrb[0].mxu0
  %v2039 = vadd.f32 %v1957, %v2038
  %v2040 = vpop.f32.mrb[0].mxu0
  %v2041 = vadd.f32 %v1959, %v2040
  %v2042 = vpop.f32.mrb[0].mxu0
  %v2043 = vpop.f32.mrb[0].mxu0
  %2044 = vdwg.mxu0
  %2045 = vmatprep.subr.bf16.mxu0 %v1395
  %2046 = vmatpush1.bf16.msra.mxu0 %v1394
  %2047 = vmatprep.subr.bf16.mxu0 %v1399
  %2048 = vmatpush1.bf16.msra.mxu0 %v1398
  %2049 = vmatprep.subr.bf16.mxu0 0
  %2050 = vmatpush1.bf16.msra.mxu0 0
  %2051 = vmatprep.subr.bf16.mxu0 0
  %2052 = vmatpush1.bf16.msra.mxu0 0
  %2053 = vmatprep.subr.bf16.mxu0 0
  %2054 = vmatpush1.bf16.msra.mxu0 0
  %2055 = vmatprep.subr.bf16.mxu0 0
  %2056 = vmatpush1.bf16.msra.mxu0 0
  %2057 = vmatprep.subr.bf16.mxu0 0
  %2058 = vmatpush1.bf16.msra.mxu0 0
  %2059 = vmatprep.subr.bf16.mxu0 0
  %2060 = vmatpush1.bf16.msra.mxu0 0
  %2061 = vmatprep.subr.bf16.mxu0 0
  %2062 = vmatpush1.bf16.msra.mxu0 0
  %2063 = vmatprep.subr.bf16.mxu0 0
  %2064 = vmatpush1.bf16.msra.mxu0 0
  %2065 = vmatprep.subr.bf16.mxu0 0
  %2066 = vmatpush1.bf16.msra.mxu0 0
  %2067 = vmatprep.subr.bf16.mxu0 0
  %2068 = vmatpush1.bf16.msra.mxu0 0
  %2069 = vmatprep.subr.bf16.mxu0 0
  %2070 = vmatpush1.bf16.msra.mxu0 0
  %2071 = vmatprep.subr.bf16.mxu0 0
  %2072 = vmatpush1.bf16.msra.mxu0 0
  %2073 = vmatprep.subr.bf16.mxu0 0
  %2074 = vmatpush1.bf16.msra.mxu0 0
  %2075 = vmatprep.subr.bf16.mxu0 0
  %2076 = vmatpush1.bf16.msra.mxu0 0
  %2077 = vmatprep.mubr.bf16.mxu0 0
  %2078 = vmatmul.mubr.bf16.gmra.mrb[0].mxu0 %v1725
  %v2079 = vpop.f32.mrb[0].mxu0
  %v2080 = vadd.f32 %v1998, %v2079
  %v2081 = vpop.f32.mrb[0].mxu0
  %v2082 = vadd.f32 %v2000, %v2081
  %v2083 = vpop.f32.mrb[0].mxu0
  %v2084 = vpop.f32.mrb[0].mxu0
  %2085 = vdwg.mxu0
  %v2086 = vadd.f32 %v2039, %v1490
  %v2087 = vadd.f32 %v2041, %v1491
  %v2088 = vadd.f32 %v2080, %v1492
  %v2089 = vadd.f32 %v2082, %v1493
  %v2090 = vxor.u32 %v2086, 2147483648
  %v2091 = vmul.f32 %v2090, 1.442695
  %v2092 = vpow.pop %v2091
  %v2093 = vadd.f32 %v2092, 1.0
  %v2094 = vrcp.pop %v2093
  %v2095 = vmul.f32 1.0, %v2094
  %v2096 = vxor.u32 %v2087, 2147483648
  %v2097 = vmul.f32 %v2096, 1.442695
  %v2098 = vpow.pop %v2097
  %v2099 = vadd.f32 %v2098, 1.0
  %v2100 = vrcp.pop %v2099
  %v2101 = vmul.f32 1.0, %v2100
  %v2102 = vxor.u32 %v2088, 2147483648
  %v2103 = vmul.f32 %v2102, 1.442695
  %v2104 = vpow.pop %v2103
  %v2105 = vadd.f32 %v2104, 1.0
  %v2106 = vrcp.pop %v2105
  %v2107 = vmul.f32 1.0, %v2106
  %v2108 = vtanh.pop %v2089
  %v2109 = vmul.f32 %v2101, %v1519
  %v2110 = vmul.f32 %v2095, %v2108
  %v2111 = vadd.f32 %v2109, %v2110
  %v2112 = vtanh.pop %v2111
  %v2113 = vmul.f32 %v2107, %v2112
  %v2114 = vpack.c.bf16 %v1723, %v1723
  %v2115 = vpack.c.bf16 %v1918, %v1918
  %v2116 = vpack.c.bf16 %v2113, %v2113
  %v2117 = vld [vmem:[%s0 + $0x10] sm:$0xf]
  %v2119 = vsel %vm99, %v2114, 0
  %2121 = vmatprep.subr.bf16.mxu0 %v84
  %2122 = vmatpush1.bf16.msra.mxu0 %v83
  %2123 = vmatprep.subr.bf16.mxu0 %v88
  %2124 = vmatpush1.bf16.msra.mxu0 %v87
  %2125 = vmatprep.subr.bf16.mxu0 0
  %2126 = vmatpush1.bf16.msra.mxu0 0
  %2127 = vmatprep.subr.bf16.mxu0 0
  %2128 = vmatpush1.bf16.msra.mxu0 0
  %2129 = vmatprep.subr.bf16.mxu0 0
  %2130 = vmatpush1.bf16.msra.mxu0 0
  %2131 = vmatprep.subr.bf16.mxu0 0
  %2132 = vmatpush1.bf16.msra.mxu0 0
  %2133 = vmatprep.subr.bf16.mxu0 0
  %2134 = vmatpush1.bf16.msra.mxu0 0
  %2135 = vmatprep.subr.bf16.mxu0 0
  %2136 = vmatpush1.bf16.msra.mxu0 0
  %2137 = vmatprep.subr.bf16.mxu0 0
  %2138 = vmatpush1.bf16.msra.mxu0 0
  %2139 = vmatprep.subr.bf16.mxu0 0
  %2140 = vmatpush1.bf16.msra.mxu0 0
  %2141 = vmatprep.subr.bf16.mxu0 0
  %2142 = vmatpush1.bf16.msra.mxu0 0
  %2143 = vmatprep.subr.bf16.mxu0 0
  %2144 = vmatpush1.bf16.msra.mxu0 0
  %2145 = vmatprep.subr.bf16.mxu0 0
  %2146 = vmatpush1.bf16.msra.mxu0 0
  %2147 = vmatprep.subr.bf16.mxu0 0
  %2148 = vmatpush1.bf16.msra.mxu0 0
  %2149 = vmatprep.subr.bf16.mxu0 0
  %2150 = vmatpush1.bf16.msra.mxu0 0
  %2151 = vmatprep.subr.bf16.mxu0 0
  %2152 = vmatpush1.bf16.msra.mxu0 0
  %2153 = vmatprep.mubr.bf16.mxu0 0
  %2154 = vmatmul.mubr.bf16.gmra.mrb[0].mxu0 %v2119
  %v2155 = vpop.f32.mrb[0].mxu0
  %v2156 = vadd.f32 0.0, %v2155
  %v2157 = vpop.f32.mrb[0].mxu0
  %v2158 = vadd.f32 0.0, %v2157
  %v2159 = vpop.f32.mrb[0].mxu0
  %v2160 = vpop.f32.mrb[0].mxu0
  %2161 = vdwg.mxu0
  %2162 = vmatprep.subr.bf16.mxu0 %v86
  %2163 = vmatpush1.bf16.msra.mxu0 %v85
  %2164 = vmatprep.subr.bf16.mxu0 %v90
  %2165 = vmatpush1.bf16.msra.mxu0 %v89
  %2166 = vmatprep.subr.bf16.mxu0 0
  %2167 = vmatpush1.bf16.msra.mxu0 0
  %2168 = vmatprep.subr.bf16.mxu0 0
  %2169 = vmatpush1.bf16.msra.mxu0 0
  %2170 = vmatprep.subr.bf16.mxu0 0
  %2171 = vmatpush1.bf16.msra.mxu0 0
  %2172 = vmatprep.subr.bf16.mxu0 0
  %2173 = vmatpush1.bf16.msra.mxu0 0
  %2174 = vmatprep.subr.bf16.mxu0 0
  %2175 = vmatpush1.bf16.msra.mxu0 0
  %2176 = vmatprep.subr.bf16.mxu0 0
  %2177 = vmatpush1.bf16.msra.mxu0 0
  %2178 = vmatprep.subr.bf16.mxu0 0
  %2179 = vmatpush1.bf16.msra.mxu0 0
  %2180 = vmatprep.subr.bf16.mxu0 0
  %2181 = vmatpush1.bf16.msra.mxu0 0
  %2182 = vmatprep.subr.bf16.mxu0 0
  %2183 = vmatpush1.bf16.msra.mxu0 0
  %2184 = vmatprep.subr.bf16.mxu0 0
  %2185 = vmatpush1.bf16.msra.mxu0 0
  %2186 = vmatprep.subr.bf16.mxu0 0
  %2187 = vmatpush1.bf16.msra.mxu0 0
  %2188 = vmatprep.subr.bf16.mxu0 0
  %2189 = vmatpush1.bf16.msra.mxu0 0
  %2190 = vmatprep.subr.bf16.mxu0 0
  %2191 = vmatpush1.bf16.msra.mxu0 0
  %2192 = vmatprep.subr.bf16.mxu0 0
  %2193 = vmatpush1.bf16.msra.mxu0 0
  %2194 = vmatprep.mubr.bf16.mxu0 0
  %2195 = vmatmul.mubr.bf16.gmra.mrb[0].mxu0 %v2119
  %v2196 = vpop.f32.mrb[0].mxu0
  %v2197 = vadd.f32 0.0, %v2196
  %v2198 = vpop.f32.mrb[0].mxu0
  %v2199 = vadd.f32 0.0, %v2198
  %v2200 = vpop.f32.mrb[0].mxu0
  %v2201 = vpop.f32.mrb[0].mxu0
  %2202 = vdwg.mxu0
  %v2204 = vsel %vm99, %v2117, 0
  %2206 = vmatprep.subr.bf16.mxu0 %v210
  %2207 = vmatpush1.bf16.msra.mxu0 %v209
  %2208 = vmatprep.subr.bf16.mxu0 %v214
  %2209 = vmatpush1.bf16.msra.mxu0 %v213
  %2210 = vmatprep.subr.bf16.mxu0 0
  %2211 = vmatpush1.bf16.msra.mxu0 0
  %2212 = vmatprep.subr.bf16.mxu0 0
  %2213 = vmatpush1.bf16.msra.mxu0 0
  %2214 = vmatprep.subr.bf16.mxu0 0
  %2215 = vmatpush1.bf16.msra.mxu0 0
  %2216 = vmatprep.subr.bf16.mxu0 0
  %2217 = vmatpush1.bf16.msra.mxu0 0
  %2218 = vmatprep.subr.bf16.mxu0 0
  %2219 = vmatpush1.bf16.msra.mxu0 0
  %2220 = vmatprep.subr.bf16.mxu0 0
  %2221 = vmatpush1.bf16.msra.mxu0 0
  %2222 = vmatprep.subr.bf16.mxu0 0
  %2223 = vmatpush1.bf16.msra.mxu0 0
  %2224 = vmatprep.subr.bf16.mxu0 0
  %2225 = vmatpush1.bf16.msra.mxu0 0
  %2226 = vmatprep.subr.bf16.mxu0 0
  %2227 = vmatpush1.bf16.msra.mxu0 0
  %2228 = vmatprep.subr.bf16.mxu0 0
  %2229 = vmatpush1.bf16.msra.mxu0 0
  %2230 = vmatprep.subr.bf16.mxu0 0
  %2231 = vmatpush1.bf16.msra.mxu0 0
  %2232 = vmatprep.subr.bf16.mxu0 0
  %2233 = vmatpush1.bf16.msra.mxu0 0
  %2234 = vmatprep.subr.bf16.mxu0 0
  %2235 = vmatpush1.bf16.msra.mxu0 0
  %2236 = vmatprep.subr.bf16.mxu0 0
  %2237 = vmatpush1.bf16.msra.mxu0 0
  %2238 = vmatprep.mubr.bf16.mxu0 0
  %2239 = vmatmul.mubr.bf16.gmra.mrb[0].mxu0 %v2204
  %v2240 = vpop.f32.mrb[0].mxu0
  %v2241 = vadd.f32 %v2156, %v2240
  %v2242 = vpop.f32.mrb[0].mxu0
  %v2243 = vadd.f32 %v2158, %v2242
  %v2244 = vpop.f32.mrb[0].mxu0
  %v2245 = vpop.f32.mrb[0].mxu0
  %2246 = vdwg.mxu0
  %2247 = vmatprep.subr.bf16.mxu0 %v212
  %2248 = vmatpush1.bf16.msra.mxu0 %v211
  %2249 = vmatprep.subr.bf16.mxu0 %v216
  %2250 = vmatpush1.bf16.msra.mxu0 %v215
  %2251 = vmatprep.subr.bf16.mxu0 0
  %2252 = vmatpush1.bf16.msra.mxu0 0
  %2253 = vmatprep.subr.bf16.mxu0 0
  %2254 = vmatpush1.bf16.msra.mxu0 0
  %2255 = vmatprep.subr.bf16.mxu0 0
  %2256 = vmatpush1.bf16.msra.mxu0 0
  %2257 = vmatprep.subr.bf16.mxu0 0
  %2258 = vmatpush1.bf16.msra.mxu0 0
  %2259 = vmatprep.subr.bf16.mxu0 0
  %2260 = vmatpush1.bf16.msra.mxu0 0
  %2261 = vmatprep.subr.bf16.mxu0 0
  %2262 = vmatpush1.bf16.msra.mxu0 0
  %2263 = vmatprep.subr.bf16.mxu0 0
  %2264 = vmatpush1.bf16.msra.mxu0 0
  %2265 = vmatprep.subr.bf16.mxu0 0
  %2266 = vmatpush1.bf16.msra.mxu0 0
  %2267 = vmatprep.subr.bf16.mxu0 0
  %2268 = vmatpush1.bf16.msra.mxu0 0
  %2269 = vmatprep.subr.bf16.mxu0 0
  %2270 = vmatpush1.bf16.msra.mxu0 0
  %2271 = vmatprep.subr.bf16.mxu0 0
  %2272 = vmatpush1.bf16.msra.mxu0 0
  %2273 = vmatprep.subr.bf16.mxu0 0
  %2274 = vmatpush1.bf16.msra.mxu0 0
  %2275 = vmatprep.subr.bf16.mxu0 0
  %2276 = vmatpush1.bf16.msra.mxu0 0
  %2277 = vmatprep.subr.bf16.mxu0 0
  %2278 = vmatpush1.bf16.msra.mxu0 0
  %2279 = vmatprep.mubr.bf16.mxu0 0
  %2280 = vmatmul.mubr.bf16.gmra.mrb[0].mxu0 %v2204
  %v2281 = vpop.f32.mrb[0].mxu0
  %v2282 = vadd.f32 %v2197, %v2281
  %v2283 = vpop.f32.mrb[0].mxu0
  %v2284 = vadd.f32 %v2199, %v2283
  %v2285 = vpop.f32.mrb[0].mxu0
  %v2286 = vpop.f32.mrb[0].mxu0
  %2287 = vdwg.mxu0
  %v2288 = vadd.f32 %v2241, %v310
  %v2289 = vadd.f32 %v2243, %v311
  %v2290 = vadd.f32 %v2282, %v312
  %v2291 = vadd.f32 %v2284, %v313
  %v2292 = vxor.u32 %v2288, 2147483648
  %v2293 = vmul.f32 %v2292, 1.442695
  %v2294 = vpow.pop %v2293
  %v2295 = vadd.f32 %v2294, 1.0
  %v2296 = vrcp.pop %v2295
  %v2297 = vmul.f32 1.0, %v2296
  %v2298 = vxor.u32 %v2289, 2147483648
  %v2299 = vmul.f32 %v2298, 1.442695
  %v2300 = vpow.pop %v2299
  %v2301 = vadd.f32 %v2300, 1.0
  %v2302 = vrcp.pop %v2301
  %v2303 = vmul.f32 1.0, %v2302
  %v2304 = vxor.u32 %v2290, 2147483648
  %v2305 = vmul.f32 %v2304, 1.442695
  %v2306 = vpow.pop %v2305
  %v2307 = vadd.f32 %v2306, 1.0
  %v2308 = vrcp.pop %v2307
  %v2309 = vmul.f32 1.0, %v2308
  %v2310 = vtanh.pop %v2291
  %v2311 = vmul.f32 %v2303, %v1721
  %v2312 = vmul.f32 %v2297, %v2310
  %v2313 = vadd.f32 %v2311, %v2312
  %v2314 = vtanh.pop %v2313
  %v2315 = vmul.f32 %v2309, %v2314
  %v2317 = vsel %vm99, %v2115, 0
  %2319 = vmatprep.subr.bf16.mxu0 %v583
  %2320 = vmatpush1.bf16.msra.mxu0 %v582
  %2321 = vmatprep.subr.bf16.mxu0 %v587
  %2322 = vmatpush1.bf16.msra.mxu0 %v586
  %2323 = vmatprep.subr.bf16.mxu0 0
  %2324 = vmatpush1.bf16.msra.mxu0 0
  %2325 = vmatprep.subr.bf16.mxu0 0
  %2326 = vmatpush1.bf16.msra.mxu0 0
  %2327 = vmatprep.subr.bf16.mxu0 0
  %2328 = vmatpush1.bf16.msra.mxu0 0
  %2329 = vmatprep.subr.bf16.mxu0 0
  %2330 = vmatpush1.bf16.msra.mxu0 0
  %2331 = vmatprep.subr.bf16.mxu0 0
  %2332 = vmatpush1.bf16.msra.mxu0 0
  %2333 = vmatprep.subr.bf16.mxu0 0
  %2334 = vmatpush1.bf16.msra.mxu0 0
  %2335 = vmatprep.subr.bf16.mxu0 0
  %2336 = vmatpush1.bf16.msra.mxu0 0
  %2337 = vmatprep.subr.bf16.mxu0 0
  %2338 = vmatpush1.bf16.msra.mxu0 0
  %2339 = vmatprep.subr.bf16.mxu0 0
  %2340 = vmatpush1.bf16.msra.mxu0 0
  %2341 = vmatprep.subr.bf16.mxu0 0
  %2342 = vmatpush1.bf16.msra.mxu0 0
  %2343 = vmatprep.subr.bf16.mxu0 0
  %2344 = vmatpush1.bf16.msra.mxu0 0
  %2345 = vmatprep.subr.bf16.mxu0 0
  %2346 = vmatpush1.bf16.msra.mxu0 0
  %2347 = vmatprep.subr.bf16.mxu0 0
  %2348 = vmatpush1.bf16.msra.mxu0 0
  %2349 = vmatprep.subr.bf16.mxu0 0
  %2350 = vmatpush1.bf16.msra.mxu0 0
  %2351 = vmatprep.mubr.bf16.mxu0 0
  %2352 = vmatmul.mubr.bf16.gmra.mrb[0].mxu0 %v2317
  %v2353 = vpop.f32.mrb[0].mxu0
  %v2354 = vadd.f32 0.0, %v2353
  %v2355 = vpop.f32.mrb[0].mxu0
  %v2356 = vadd.f32 0.0, %v2355
  %v2357 = vpop.f32.mrb[0].mxu0
  %v2358 = vpop.f32.mrb[0].mxu0
  %2359 = vdwg.mxu0
  %2360 = vmatprep.subr.bf16.mxu0 %v585
  %2361 = vmatpush1.bf16.msra.mxu0 %v584
  %2362 = vmatprep.subr.bf16.mxu0 %v589
  %2363 = vmatpush1.bf16.msra.mxu0 %v588
  %2364 = vmatprep.subr.bf16.mxu0 0
  %2365 = vmatpush1.bf16.msra.mxu0 0
  %2366 = vmatprep.subr.bf16.mxu0 0
  %2367 = vmatpush1.bf16.msra.mxu0 0
  %2368 = vmatprep.subr.bf16.mxu0 0
  %2369 = vmatpush1.bf16.msra.mxu0 0
  %2370 = vmatprep.subr.bf16.mxu0 0
  %2371 = vmatpush1.bf16.msra.mxu0 0
  %2372 = vmatprep.subr.bf16.mxu0 0
  %2373 = vmatpush1.bf16.msra.mxu0 0
  %2374 = vmatprep.subr.bf16.mxu0 0
  %2375 = vmatpush1.bf16.msra.mxu0 0
  %2376 = vmatprep.subr.bf16.mxu0 0
  %2377 = vmatpush1.bf16.msra.mxu0 0
  %2378 = vmatprep.subr.bf16.mxu0 0
  %2379 = vmatpush1.bf16.msra.mxu0 0
  %2380 = vmatprep.subr.bf16.mxu0 0
  %2381 = vmatpush1.bf16.msra.mxu0 0
  %2382 = vmatprep.subr.bf16.mxu0 0
  %2383 = vmatpush1.bf16.msra.mxu0 0
  %2384 = vmatprep.subr.bf16.mxu0 0
  %2385 = vmatpush1.bf16.msra.mxu0 0
  %2386 = vmatprep.subr.bf16.mxu0 0
  %2387 = vmatpush1.bf16.msra.mxu0 0
  %2388 = vmatprep.subr.bf16.mxu0 0
  %2389 = vmatpush1.bf16.msra.mxu0 0
  %2390 = vmatprep.subr.bf16.mxu0 0
  %2391 = vmatpush1.bf16.msra.mxu0 0
  %2392 = vmatprep.mubr.bf16.mxu0 0
  %2393 = vmatmul.mubr.bf16.gmra.mrb[0].mxu0 %v2317
  %v2394 = vpop.f32.mrb[0].mxu0
  %v2395 = vadd.f32 0.0, %v2394
  %v2396 = vpop.f32.mrb[0].mxu0
  %v2397 = vadd.f32 0.0, %v2396
  %v2398 = vpop.f32.mrb[0].mxu0
  %v2399 = vpop.f32.mrb[0].mxu0
  %2400 = vdwg.mxu0
  %2401 = vmatprep.subr.bf16.mxu0 %v705
  %2402 = vmatpush1.bf16.msra.mxu0 %v704
  %2403 = vmatprep.subr.bf16.mxu0 %v709
  %2404 = vmatpush1.bf16.msra.mxu0 %v708
  %2405 = vmatprep.subr.bf16.mxu0 0
  %2406 = vmatpush1.bf16.msra.mxu0 0
  %2407 = vmatprep.subr.bf16.mxu0 0
  %2408 = vmatpush1.bf16.msra.mxu0 0
  %2409 = vmatprep.subr.bf16.mxu0 0
  %2410 = vmatpush1.bf16.msra.mxu0 0
  %2411 = vmatprep.subr.bf16.mxu0 0
  %2412 = vmatpush1.bf16.msra.mxu0 0
  %2413 = vmatprep.subr.bf16.mxu0 0
  %2414 = vmatpush1.bf16.msra.mxu0 0
  %2415 = vmatprep.subr.bf16.mxu0 0
  %2416 = vmatpush1.bf16.msra.mxu0 0
  %2417 = vmatprep.subr.bf16.mxu0 0
  %2418 = vmatpush1.bf16.msra.mxu0 0
  %2419 = vmatprep.subr.bf16.mxu0 0
  %2420 = vmatpush1.bf16.msra.mxu0 0
  %2421 = vmatprep.subr.bf16.mxu0 0
  %2422 = vmatpush1.bf16.msra.mxu0 0
  %2423 = vmatprep.subr.bf16.mxu0 0
  %2424 = vmatpush1.bf16.msra.mxu0 0
  %2425 = vmatprep.subr.bf16.mxu0 0
  %2426 = vmatpush1.bf16.msra.mxu0 0
  %2427 = vmatprep.subr.bf16.mxu0 0
  %2428 = vmatpush1.bf16.msra.mxu0 0
  %2429 = vmatprep.subr.bf16.mxu0 0
  %2430 = vmatpush1.bf16.msra.mxu0 0
  %2431 = vmatprep.subr.bf16.mxu0 0
  %2432 = vmatpush1.bf16.msra.mxu0 0
  %2433 = vmatprep.mubr.bf16.mxu0 0
  %2434 = vmatmul.mubr.bf16.gmra.mrb[0].mxu0 %v2119
  %v2435 = vpop.f32.mrb[0].mxu0
  %v2436 = vadd.f32 %v2354, %v2435
  %v2437 = vpop.f32.mrb[0].mxu0
  %v2438 = vadd.f32 %v2356, %v2437
  %v2439 = vpop.f32.mrb[0].mxu0
  %v2440 = vpop.f32.mrb[0].mxu0
  %2441 = vdwg.mxu0
  %2442 = vmatprep.subr.bf16.mxu0 %v707
  %2443 = vmatpush1.bf16.msra.mxu0 %v706
  %2444 = vmatprep.subr.bf16.mxu0 %v711
  %2445 = vmatpush1.bf16.msra.mxu0 %v710
  %2446 = vmatprep.subr.bf16.mxu0 0
  %2447 = vmatpush1.bf16.msra.mxu0 0
  %2448 = vmatprep.subr.bf16.mxu0 0
  %2449 = vmatpush1.bf16.msra.mxu0 0
  %2450 = vmatprep.subr.bf16.mxu0 0
  %2451 = vmatpush1.bf16.msra.mxu0 0
  %2452 = vmatprep.subr.bf16.mxu0 0
  %2453 = vmatpush1.bf16.msra.mxu0 0
  %2454 = vmatprep.subr.bf16.mxu0 0
  %2455 = vmatpush1.bf16.msra.mxu0 0
  %2456 = vmatprep.subr.bf16.mxu0 0
  %2457 = vmatpush1.bf16.msra.mxu0 0
  %2458 = vmatprep.subr.bf16.mxu0 0
  %2459 = vmatpush1.bf16.msra.mxu0 0
  %2460 = vmatprep.subr.bf16.mxu0 0
  %2461 = vmatpush1.bf16.msra.mxu0 0
  %2462 = vmatprep.subr.bf16.mxu0 0
  %2463 = vmatpush1.bf16.msra.mxu0 0
  %2464 = vmatprep.subr.bf16.mxu0 0
  %2465 = vmatpush1.bf16.msra.mxu0 0
  %2466 = vmatprep.subr.bf16.mxu0 0
  %2467 = vmatpush1.bf16.msra.mxu0 0
  %2468 = vmatprep.subr.bf16.mxu0 0
  %2469 = vmatpush1.bf16.msra.mxu0 0
  %2470 = vmatprep.subr.bf16.mxu0 0
  %2471 = vmatpush1.bf16.msra.mxu0 0
  %2472 = vmatprep.subr.bf16.mxu0 0
  %2473 = vmatpush1.bf16.msra.mxu0 0
  %2474 = vmatprep.mubr.bf16.mxu0 0
  %2475 = vmatmul.mubr.bf16.gmra.mrb[0].mxu0 %v2119
  %v2476 = vpop.f32.mrb[0].mxu0
  %v2477 = vadd.f32 %v2395, %v2476
  %v2478 = vpop.f32.mrb[0].mxu0
  %v2479 = vadd.f32 %v2397, %v2478
  %v2480 = vpop.f32.mrb[0].mxu0
  %v2481 = vpop.f32.mrb[0].mxu0
  %2482 = vdwg.mxu0
  %v2483 = vadd.f32 %v2436, %v802
  %v2484 = vadd.f32 %v2438, %v803
  %v2485 = vadd.f32 %v2477, %v804
  %v2486 = vadd.f32 %v2479, %v805
  %v2487 = vxor.u32 %v2483, 2147483648
  %v2488 = vmul.f32 %v2487, 1.442695
  %v2489 = vpow.pop %v2488
  %v2490 = vadd.f32 %v2489, 1.0
  %v2491 = vrcp.pop %v2490
  %v2492 = vmul.f32 1.0, %v2491
  %v2493 = vxor.u32 %v2484, 2147483648
  %v2494 = vmul.f32 %v2493, 1.442695
  %v2495 = vpow.pop %v2494
  %v2496 = vadd.f32 %v2495, 1.0
  %v2497 = vrcp.pop %v2496
  %v2498 = vmul.f32 1.0, %v2497
  %v2499 = vxor.u32 %v2485, 2147483648
  %v2500 = vmul.f32 %v2499, 1.442695
  %v2501 = vpow.pop %v2500
  %v2502 = vadd.f32 %v2501, 1.0
  %v2503 = vrcp.pop %v2502
  %v2504 = vmul.f32 1.0, %v2503
  %v2505 = vtanh.pop %v2486
  %v2506 = vmul.f32 %v2498, %v1916
  %v2507 = vmul.f32 %v2492, %v2505
  %v2508 = vadd.f32 %v2506, %v2507
  %v2509 = vtanh.pop %v2508
  %v2510 = vmul.f32 %v2504, %v2509
  %v2512 = vsel %vm99, %v2116, 0
  %2514 = vmatprep.subr.bf16.mxu0 %v1271
  %2515 = vmatpush1.bf16.msra.mxu0 %v1270
  %2516 = vmatprep.subr.bf16.mxu0 %v1275
  %2517 = vmatpush1.bf16.msra.mxu0 %v1274
  %2518 = vmatprep.subr.bf16.mxu0 0
  %2519 = vmatpush1.bf16.msra.mxu0 0
  %2520 = vmatprep.subr.bf16.mxu0 0
  %2521 = vmatpush1.bf16.msra.mxu0 0
  %2522 = vmatprep.subr.bf16.mxu0 0
  %2523 = vmatpush1.bf16.msra.mxu0 0
  %2524 = vmatprep.subr.bf16.mxu0 0
  %2525 = vmatpush1.bf16.msra.mxu0 0
  %2526 = vmatprep.subr.bf16.mxu0 0
  %2527 = vmatpush1.bf16.msra.mxu0 0
  %2528 = vmatprep.subr.bf16.mxu0 0
  %2529 = vmatpush1.bf16.msra.mxu0 0
  %2530 = vmatprep.subr.bf16.mxu0 0
  %2531 = vmatpush1.bf16.msra.mxu0 0
  %2532 = vmatprep.subr.bf16.mxu0 0
  %2533 = vmatpush1.bf16.msra.mxu0 0
  %2534 = vmatprep.subr.bf16.mxu0 0
  %2535 = vmatpush1.bf16.msra.mxu0 0
  %2536 = vmatprep.subr.bf16.mxu0 0
  %2537 = vmatpush1.bf16.msra.mxu0 0
  %2538 = vmatprep.subr.bf16.mxu0 0
  %2539 = vmatpush1.bf16.msra.mxu0 0
  %2540 = vmatprep.subr.bf16.mxu0 0
  %2541 = vmatpush1.bf16.msra.mxu0 0
  %2542 = vmatprep.subr.bf16.mxu0 0
  %2543 = vmatpush1.bf16.msra.mxu0 0
  %2544 = vmatprep.subr.bf16.mxu0 0
  %2545 = vmatpush1.bf16.msra.mxu0 0
  %2546 = vmatprep.mubr.bf16.mxu0 0
  %2547 = vmatmul.mubr.bf16.gmra.mrb[0].mxu0 %v2512
  %v2548 = vpop.f32.mrb[0].mxu0
  %v2549 = vadd.f32 0.0, %v2548
  %v2550 = vpop.f32.mrb[0].mxu0
  %v2551 = vadd.f32 0.0, %v2550
  %v2552 = vpop.f32.mrb[0].mxu0
  %v2553 = vpop.f32.mrb[0].mxu0
  %2554 = vdwg.mxu0
  %2555 = vmatprep.subr.bf16.mxu0 %v1273
  %2556 = vmatpush1.bf16.msra.mxu0 %v1272
  %2557 = vmatprep.subr.bf16.mxu0 %v1277
  %2558 = vmatpush1.bf16.msra.mxu0 %v1276
  %2559 = vmatprep.subr.bf16.mxu0 0
  %2560 = vmatpush1.bf16.msra.mxu0 0
  %2561 = vmatprep.subr.bf16.mxu0 0
  %2562 = vmatpush1.bf16.msra.mxu0 0
  %2563 = vmatprep.subr.bf16.mxu0 0
  %2564 = vmatpush1.bf16.msra.mxu0 0
  %2565 = vmatprep.subr.bf16.mxu0 0
  %2566 = vmatpush1.bf16.msra.mxu0 0
  %2567 = vmatprep.subr.bf16.mxu0 0
  %2568 = vmatpush1.bf16.msra.mxu0 0
  %2569 = vmatprep.subr.bf16.mxu0 0
  %2570 = vmatpush1.bf16.msra.mxu0 0
  %2571 = vmatprep.subr.bf16.mxu0 0
  %2572 = vmatpush1.bf16.msra.mxu0 0
  %2573 = vmatprep.subr.bf16.mxu0 0
  %2574 = vmatpush1.bf16.msra.mxu0 0
  %2575 = vmatprep.subr.bf16.mxu0 0
  %2576 = vmatpush1.bf16.msra.mxu0 0
  %2577 = vmatprep.subr.bf16.mxu0 0
  %2578 = vmatpush1.bf16.msra.mxu0 0
  %2579 = vmatprep.subr.bf16.mxu0 0
  %2580 = vmatpush1.bf16.msra.mxu0 0
  %2581 = vmatprep.subr.bf16.mxu0 0
  %2582 = vmatpush1.bf16.msra.mxu0 0
  %2583 = vmatprep.subr.bf16.mxu0 0
  %2584 = vmatpush1.bf16.msra.mxu0 0
  %2585 = vmatprep.subr.bf16.mxu0 0
  %2586 = vmatpush1.bf16.msra.mxu0 0
  %2587 = vmatprep.mubr.bf16.mxu0 0
  %2588 = vmatmul.mubr.bf16.gmra.mrb[0].mxu0 %v2512
  %v2589 = vpop.f32.mrb[0].mxu0
  %v2590 = vadd.f32 0.0, %v2589
  %v2591 = vpop.f32.mrb[0].mxu0
  %v2592 = vadd.f32 0.0, %v2591
  %v2593 = vpop.f32.mrb[0].mxu0
  %v2594 = vpop.f32.mrb[0].mxu0
  %2595 = vdwg.mxu0
  %2596 = vmatprep.subr.bf16.mxu0 %v1393
  %2597 = vmatpush1.bf16.msra.mxu0 %v1392
  %2598 = vmatprep.subr.bf16.mxu0 %v1397
  %2599 = vmatpush1.bf16.msra.mxu0 %v1396
  %2600 = vmatprep.subr.bf16.mxu0 0
  %2601 = vmatpush1.bf16.msra.mxu0 0
  %2602 = vmatprep.subr.bf16.mxu0 0
  %2603 = vmatpush1.bf16.msra.mxu0 0
  %2604 = vmatprep.subr.bf16.mxu0 0
  %2605 = vmatpush1.bf16.msra.mxu0 0
  %2606 = vmatprep.subr.bf16.mxu0 0
  %2607 = vmatpush1.bf16.msra.mxu0 0
  %2608 = vmatprep.subr.bf16.mxu0 0
  %2609 = vmatpush1.bf16.msra.mxu0 0
  %2610 = vmatprep.subr.bf16.mxu0 0
  %2611 = vmatpush1.bf16.msra.mxu0 0
  %2612 = vmatprep.subr.bf16.mxu0 0
  %2613 = vmatpush1.bf16.msra.mxu0 0
  %2614 = vmatprep.subr.bf16.mxu0 0
  %2615 = vmatpush1.bf16.msra.mxu0 0
  %2616 = vmatprep.subr.bf16.mxu0 0
  %2617 = vmatpush1.bf16.msra.mxu0 0
  %2618 = vmatprep.subr.bf16.mxu0 0
  %2619 = vmatpush1.bf16.msra.mxu0 0
  %2620 = vmatprep.subr.bf16.mxu0 0
  %2621 = vmatpush1.bf16.msra.mxu0 0
  %2622 = vmatprep.subr.bf16.mxu0 0
  %2623 = vmatpush1.bf16.msra.mxu0 0
  %2624 = vmatprep.subr.bf16.mxu0 0
  %2625 = vmatpush1.bf16.msra.mxu0 0
  %2626 = vmatprep.subr.bf16.mxu0 0
  %2627 = vmatpush1.bf16.msra.mxu0 0
  %2628 = vmatprep.mubr.bf16.mxu0 0
  %2629 = vmatmul.mubr.bf16.gmra.mrb[0].mxu0 %v2317
  %v2630 = vpop.f32.mrb[0].mxu0
  %v2631 = vadd.f32 %v2549, %v2630
  %v2632 = vpop.f32.mrb[0].mxu0
  %v2633 = vadd.f32 %v2551, %v2632
  %v2634 = vpop.f32.mrb[0].mxu0
  %v2635 = vpop.f32.mrb[0].mxu0
  %2636 = vdwg.mxu0
  %2637 = vmatprep.subr.bf16.mxu0 %v1395
  %2638 = vmatpush1.bf16.msra.mxu0 %v1394
  %2639 = vmatprep.subr.bf16.mxu0 %v1399
  %2640 = vmatpush1.bf16.msra.mxu0 %v1398
  %2641 = vmatprep.subr.bf16.mxu0 0
  %2642 = vmatpush1.bf16.msra.mxu0 0
  %2643 = vmatprep.subr.bf16.mxu0 0
  %2644 = vmatpush1.bf16.msra.mxu0 0
  %2645 = vmatprep.subr.bf16.mxu0 0
  %2646 = vmatpush1.bf16.msra.mxu0 0
  %2647 = vmatprep.subr.bf16.mxu0 0
  %2648 = vmatpush1.bf16.msra.mxu0 0
  %2649 = vmatprep.subr.bf16.mxu0 0
  %2650 = vmatpush1.bf16.msra.mxu0 0
  %2651 = vmatprep.subr.bf16.mxu0 0
  %2652 = vmatpush1.bf16.msra.mxu0 0
  %2653 = vmatprep.subr.bf16.mxu0 0
  %2654 = vmatpush1.bf16.msra.mxu0 0
  %2655 = vmatprep.subr.bf16.mxu0 0
  %2656 = vmatpush1.bf16.msra.mxu0 0
  %2657 = vmatprep.subr.bf16.mxu0 0
  %2658 = vmatpush1.bf16.msra.mxu0 0
  %2659 = vmatprep.subr.bf16.mxu0 0
  %2660 = vmatpush1.bf16.msra.mxu0 0
  %2661 = vmatprep.subr.bf16.mxu0 0
  %2662 = vmatpush1.bf16.msra.mxu0 0
  %2663 = vmatprep.subr.bf16.mxu0 0
  %2664 = vmatpush1.bf16.msra.mxu0 0
  %2665 = vmatprep.subr.bf16.mxu0 0
  %2666 = vmatpush1.bf16.msra.mxu0 0
  %2667 = vmatprep.subr.bf16.mxu0 0
  %2668 = vmatpush1.bf16.msra.mxu0 0
  %2669 = vmatprep.mubr.bf16.mxu0 0
  %2670 = vmatmul.mubr.bf16.gmra.mrb[0].mxu0 %v2317
  %v2671 = vpop.f32.mrb[0].mxu0
  %v2672 = vadd.f32 %v2590, %v2671
  %v2673 = vpop.f32.mrb[0].mxu0
  %v2674 = vadd.f32 %v2592, %v2673
  %v2675 = vpop.f32.mrb[0].mxu0
  %v2676 = vpop.f32.mrb[0].mxu0
  %2677 = vdwg.mxu0
  %v2678 = vadd.f32 %v2631, %v1490
  %v2679 = vadd.f32 %v2633, %v1491
  %v2680 = vadd.f32 %v2672, %v1492
  %v2681 = vadd.f32 %v2674, %v1493
  %v2682 = vxor.u32 %v2678, 2147483648
  %v2683 = vmul.f32 %v2682, 1.442695
  %v2684 = vpow.pop %v2683
  %v2685 = vadd.f32 %v2684, 1.0
  %v2686 = vrcp.pop %v2685
  %v2687 = vmul.f32 1.0, %v2686
  %v2688 = vxor.u32 %v2679, 2147483648
  %v2689 = vmul.f32 %v2688, 1.442695
  %v2690 = vpow.pop %v2689
  %v2691 = vadd.f32 %v2690, 1.0
  %v2692 = vrcp.pop %v2691
  %v2693 = vmul.f32 1.0, %v2692
  %v2694 = vxor.u32 %v2680, 2147483648
  %v2695 = vmul.f32 %v2694, 1.442695
  %v2696 = vpow.pop %v2695
  %v2697 = vadd.f32 %v2696, 1.0
  %v2698 = vrcp.pop %v2697
  %v2699 = vmul.f32 1.0, %v2698
  %v2700 = vtanh.pop %v2681
  %v2701 = vmul.f32 %v2693, %v2111
  %v2702 = vmul.f32 %v2687, %v2700
  %v2703 = vadd.f32 %v2701, %v2702
  %v2704 = vtanh.pop %v2703
  %v2705 = vmul.f32 %v2699, %v2704
  %v2706 = vpack.c.bf16 %v2315, %v2315
  %v2707 = vpack.c.bf16 %v2510, %v2510
  %v2708 = vpack.c.bf16 %v2705, %v2705
  %v2709 = vld [vmem:[%s0 + $0x14] sm:$0xf]
  %v2711 = vsel %vm99, %v2706, 0
  %2713 = vmatprep.subr.bf16.mxu0 %v84
  %2714 = vmatpush1.bf16.msra.mxu0 %v83
  %2715 = vmatprep.subr.bf16.mxu0 %v88
  %2716 = vmatpush1.bf16.msra.mxu0 %v87
  %2717 = vmatprep.subr.bf16.mxu0 0
  %2718 = vmatpush1.bf16.msra.mxu0 0
  %2719 = vmatprep.subr.bf16.mxu0 0
  %2720 = vmatpush1.bf16.msra.mxu0 0
  %2721 = vmatprep.subr.bf16.mxu0 0
  %2722 = vmatpush1.bf16.msra.mxu0 0
  %2723 = vmatprep.subr.bf16.mxu0 0
  %2724 = vmatpush1.bf16.msra.mxu0 0
  %2725 = vmatprep.subr.bf16.mxu0 0
  %2726 = vmatpush1.bf16.msra.mxu0 0
  %2727 = vmatprep.subr.bf16.mxu0 0
  %2728 = vmatpush1.bf16.msra.mxu0 0
  %2729 = vmatprep.subr.bf16.mxu0 0
  %2730 = vmatpush1.bf16.msra.mxu0 0
  %2731 = vmatprep.subr.bf16.mxu0 0
  %2732 = vmatpush1.bf16.msra.mxu0 0
  %2733 = vmatprep.subr.bf16.mxu0 0
  %2734 = vmatpush1.bf16.msra.mxu0 0
  %2735 = vmatprep.subr.bf16.mxu0 0
  %2736 = vmatpush1.bf16.msra.mxu0 0
  %2737 = vmatprep.subr.bf16.mxu0 0
  %2738 = vmatpush1.bf16.msra.mxu0 0
  %2739 = vmatprep.subr.bf16.mxu0 0
  %2740 = vmatpush1.bf16.msra.mxu0 0
  %2741 = vmatprep.subr.bf16.mxu0 0
  %2742 = vmatpush1.bf16.msra.mxu0 0
  %2743 = vmatprep.subr.bf16.mxu0 0
  %2744 = vmatpush1.bf16.msra.mxu0 0
  %2745 = vmatprep.mubr.bf16.mxu0 0
  %2746 = vmatmul.mubr.bf16.gmra.mrb[0].mxu0 %v2711
  %v2747 = vpop.f32.mrb[0].mxu0
  %v2748 = vadd.f32 0.0, %v2747
  %v2749 = vpop.f32.mrb[0].mxu0
  %v2750 = vadd.f32 0.0, %v2749
  %v2751 = vpop.f32.mrb[0].mxu0
  %v2752 = vpop.f32.mrb[0].mxu0
  %2753 = vdwg.mxu0
  %2754 = vmatprep.subr.bf16.mxu0 %v86
  %2755 = vmatpush1.bf16.msra.mxu0 %v85
  %2756 = vmatprep.subr.bf16.mxu0 %v90
  %2757 = vmatpush1.bf16.msra.mxu0 %v89
  %2758 = vmatprep.subr.bf16.mxu0 0
  %2759 = vmatpush1.bf16.msra.mxu0 0
  %2760 = vmatprep.subr.bf16.mxu0 0
  %2761 = vmatpush1.bf16.msra.mxu0 0
  %2762 = vmatprep.subr.bf16.mxu0 0
  %2763 = vmatpush1.bf16.msra.mxu0 0
  %2764 = vmatprep.subr.bf16.mxu0 0
  %2765 = vmatpush1.bf16.msra.mxu0 0
  %2766 = vmatprep.subr.bf16.mxu0 0
  %2767 = vmatpush1.bf16.msra.mxu0 0
  %2768 = vmatprep.subr.bf16.mxu0 0
  %2769 = vmatpush1.bf16.msra.mxu0 0
  %2770 = vmatprep.subr.bf16.mxu0 0
  %2771 = vmatpush1.bf16.msra.mxu0 0
  %2772 = vmatprep.subr.bf16.mxu0 0
  %2773 = vmatpush1.bf16.msra.mxu0 0
  %2774 = vmatprep.subr.bf16.mxu0 0
  %2775 = vmatpush1.bf16.msra.mxu0 0
  %2776 = vmatprep.subr.bf16.mxu0 0
  %2777 = vmatpush1.bf16.msra.mxu0 0
  %2778 = vmatprep.subr.bf16.mxu0 0
  %2779 = vmatpush1.bf16.msra.mxu0 0
  %2780 = vmatprep.subr.bf16.mxu0 0
  %2781 = vmatpush1.bf16.msra.mxu0 0
  %2782 = vmatprep.subr.bf16.mxu0 0
  %2783 = vmatpush1.bf16.msra.mxu0 0
  %2784 = vmatprep.subr.bf16.mxu0 0
  %2785 = vmatpush1.bf16.msra.mxu0 0
  %2786 = vmatprep.mubr.bf16.mxu0 0
  %2787 = vmatmul.mubr.bf16.gmra.mrb[0].mxu0 %v2711
  %v2788 = vpop.f32.mrb[0].mxu0
  %v2789 = vadd.f32 0.0, %v2788
  %v2790 = vpop.f32.mrb[0].mxu0
  %v2791 = vadd.f32 0.0, %v2790
  %v2792 = vpop.f32.mrb[0].mxu0
  %v2793 = vpop.f32.mrb[0].mxu0
  %2794 = vdwg.mxu0
  %v2796 = vsel %vm99, %v2709, 0
  %2798 = vmatprep.subr.bf16.mxu0 %v210
  %2799 = vmatpush1.bf16.msra.mxu0 %v209
  %2800 = vmatprep.subr.bf16.mxu0 %v214
  %2801 = vmatpush1.bf16.msra.mxu0 %v213
  %2802 = vmatprep.subr.bf16.mxu0 0
  %2803 = vmatpush1.bf16.msra.mxu0 0
  %2804 = vmatprep.subr.bf16.mxu0 0
  %2805 = vmatpush1.bf16.msra.mxu0 0
  %2806 = vmatprep.subr.bf16.mxu0 0
  %2807 = vmatpush1.bf16.msra.mxu0 0
  %2808 = vmatprep.subr.bf16.mxu0 0
  %2809 = vmatpush1.bf16.msra.mxu0 0
  %2810 = vmatprep.subr.bf16.mxu0 0
  %2811 = vmatpush1.bf16.msra.mxu0 0
  %2812 = vmatprep.subr.bf16.mxu0 0
  %2813 = vmatpush1.bf16.msra.mxu0 0
  %2814 = vmatprep.subr.bf16.mxu0 0
  %2815 = vmatpush1.bf16.msra.mxu0 0
  %2816 = vmatprep.subr.bf16.mxu0 0
  %2817 = vmatpush1.bf16.msra.mxu0 0
  %2818 = vmatprep.subr.bf16.mxu0 0
  %2819 = vmatpush1.bf16.msra.mxu0 0
  %2820 = vmatprep.subr.bf16.mxu0 0
  %2821 = vmatpush1.bf16.msra.mxu0 0
  %2822 = vmatprep.subr.bf16.mxu0 0
  %2823 = vmatpush1.bf16.msra.mxu0 0
  %2824 = vmatprep.subr.bf16.mxu0 0
  %2825 = vmatpush1.bf16.msra.mxu0 0
  %2826 = vmatprep.subr.bf16.mxu0 0
  %2827 = vmatpush1.bf16.msra.mxu0 0
  %2828 = vmatprep.subr.bf16.mxu0 0
  %2829 = vmatpush1.bf16.msra.mxu0 0
  %2830 = vmatprep.mubr.bf16.mxu0 0
  %2831 = vmatmul.mubr.bf16.gmra.mrb[0].mxu0 %v2796
  %v2832 = vpop.f32.mrb[0].mxu0
  %v2833 = vadd.f32 %v2748, %v2832
  %v2834 = vpop.f32.mrb[0].mxu0
  %v2835 = vadd.f32 %v2750, %v2834
  %v2836 = vpop.f32.mrb[0].mxu0
  %v2837 = vpop.f32.mrb[0].mxu0
  %2838 = vdwg.mxu0
  %2839 = vmatprep.subr.bf16.mxu0 %v212
  %2840 = vmatpush1.bf16.msra.mxu0 %v211
  %2841 = vmatprep.subr.bf16.mxu0 %v216
  %2842 = vmatpush1.bf16.msra.mxu0 %v215
  %2843 = vmatprep.subr.bf16.mxu0 0
  %2844 = vmatpush1.bf16.msra.mxu0 0
  %2845 = vmatprep.subr.bf16.mxu0 0
  %2846 = vmatpush1.bf16.msra.mxu0 0
  %2847 = vmatprep.subr.bf16.mxu0 0
  %2848 = vmatpush1.bf16.msra.mxu0 0
  %2849 = vmatprep.subr.bf16.mxu0 0
  %2850 = vmatpush1.bf16.msra.mxu0 0
  %2851 = vmatprep.subr.bf16.mxu0 0
  %2852 = vmatpush1.bf16.msra.mxu0 0
  %2853 = vmatprep.subr.bf16.mxu0 0
  %2854 = vmatpush1.bf16.msra.mxu0 0
  %2855 = vmatprep.subr.bf16.mxu0 0
  %2856 = vmatpush1.bf16.msra.mxu0 0
  %2857 = vmatprep.subr.bf16.mxu0 0
  %2858 = vmatpush1.bf16.msra.mxu0 0
  %2859 = vmatprep.subr.bf16.mxu0 0
  %2860 = vmatpush1.bf16.msra.mxu0 0
  %2861 = vmatprep.subr.bf16.mxu0 0
  %2862 = vmatpush1.bf16.msra.mxu0 0
  %2863 = vmatprep.subr.bf16.mxu0 0
  %2864 = vmatpush1.bf16.msra.mxu0 0
  %2865 = vmatprep.subr.bf16.mxu0 0
  %2866 = vmatpush1.bf16.msra.mxu0 0
  %2867 = vmatprep.subr.bf16.mxu0 0
  %2868 = vmatpush1.bf16.msra.mxu0 0
  %2869 = vmatprep.subr.bf16.mxu0 0
  %2870 = vmatpush1.bf16.msra.mxu0 0
  %2871 = vmatprep.mubr.bf16.mxu0 0
  %2872 = vmatmul.mubr.bf16.gmra.mrb[0].mxu0 %v2796
  %v2873 = vpop.f32.mrb[0].mxu0
  %v2874 = vadd.f32 %v2789, %v2873
  %v2875 = vpop.f32.mrb[0].mxu0
  %v2876 = vadd.f32 %v2791, %v2875
  %v2877 = vpop.f32.mrb[0].mxu0
  %v2878 = vpop.f32.mrb[0].mxu0
  %2879 = vdwg.mxu0
  %v2880 = vadd.f32 %v2833, %v310
  %v2881 = vadd.f32 %v2835, %v311
  %v2882 = vadd.f32 %v2874, %v312
  %v2883 = vadd.f32 %v2876, %v313
  %v2884 = vxor.u32 %v2880, 2147483648
  %v2885 = vmul.f32 %v2884, 1.442695
  %v2886 = vpow.pop %v2885
  %v2887 = vadd.f32 %v2886, 1.0
  %v2888 = vrcp.pop %v2887
  %v2889 = vmul.f32 1.0, %v2888
  %v2890 = vxor.u32 %v2881, 2147483648
  %v2891 = vmul.f32 %v2890, 1.442695
  %v2892 = vpow.pop %v2891
  %v2893 = vadd.f32 %v2892, 1.0
  %v2894 = vrcp.pop %v2893
  %v2895 = vmul.f32 1.0, %v2894
  %v2896 = vxor.u32 %v2882, 2147483648
  %v2897 = vmul.f32 %v2896, 1.442695
  %v2898 = vpow.pop %v2897
  %v2899 = vadd.f32 %v2898, 1.0
  %v2900 = vrcp.pop %v2899
  %v2901 = vmul.f32 1.0, %v2900
  %v2902 = vtanh.pop %v2883
  %v2903 = vmul.f32 %v2895, %v2313
  %v2904 = vmul.f32 %v2889, %v2902
  %v2905 = vadd.f32 %v2903, %v2904
  %v2906 = vtanh.pop %v2905
  %v2907 = vmul.f32 %v2901, %v2906
  %v2909 = vsel %vm99, %v2707, 0
  %2911 = vmatprep.subr.bf16.mxu0 %v583
  %2912 = vmatpush1.bf16.msra.mxu0 %v582
  %2913 = vmatprep.subr.bf16.mxu0 %v587
  %2914 = vmatpush1.bf16.msra.mxu0 %v586
  %2915 = vmatprep.subr.bf16.mxu0 0
  %2916 = vmatpush1.bf16.msra.mxu0 0
  %2917 = vmatprep.subr.bf16.mxu0 0
  %2918 = vmatpush1.bf16.msra.mxu0 0
  %2919 = vmatprep.subr.bf16.mxu0 0
  %2920 = vmatpush1.bf16.msra.mxu0 0
  %2921 = vmatprep.subr.bf16.mxu0 0
  %2922 = vmatpush1.bf16.msra.mxu0 0
  %2923 = vmatprep.subr.bf16.mxu0 0
  %2924 = vmatpush1.bf16.msra.mxu0 0
  %2925 = vmatprep.subr.bf16.mxu0 0
  %2926 = vmatpush1.bf16.msra.mxu0 0
  %2927 = vmatprep.subr.bf16.mxu0 0
  %2928 = vmatpush1.bf16.msra.mxu0 0
  %2929 = vmatprep.subr.bf16.mxu0 0
  %2930 = vmatpush1.bf16.msra.mxu0 0
  %2931 = vmatprep.subr.bf16.mxu0 0
  %2932 = vmatpush1.bf16.msra.mxu0 0
  %2933 = vmatprep.subr.bf16.mxu0 0
  %2934 = vmatpush1.bf16.msra.mxu0 0
  %2935 = vmatprep.subr.bf16.mxu0 0
  %2936 = vmatpush1.bf16.msra.mxu0 0
  %2937 = vmatprep.subr.bf16.mxu0 0
  %2938 = vmatpush1.bf16.msra.mxu0 0
  %2939 = vmatprep.subr.bf16.mxu0 0
  %2940 = vmatpush1.bf16.msra.mxu0 0
  %2941 = vmatprep.subr.bf16.mxu0 0
  %2942 = vmatpush1.bf16.msra.mxu0 0
  %2943 = vmatprep.mubr.bf16.mxu0 0
  %2944 = vmatmul.mubr.bf16.gmra.mrb[0].mxu0 %v2909
  %v2945 = vpop.f32.mrb[0].mxu0
  %v2946 = vadd.f32 0.0, %v2945
  %v2947 = vpop.f32.mrb[0].mxu0
  %v2948 = vadd.f32 0.0, %v2947
  %v2949 = vpop.f32.mrb[0].mxu0
  %v2950 = vpop.f32.mrb[0].mxu0
  %2951 = vdwg.mxu0
  %2952 = vmatprep.subr.bf16.mxu0 %v585
  %2953 = vmatpush1.bf16.msra.mxu0 %v584
  %2954 = vmatprep.subr.bf16.mxu0 %v589
  %2955 = vmatpush1.bf16.msra.mxu0 %v588
  %2956 = vmatprep.subr.bf16.mxu0 0
  %2957 = vmatpush1.bf16.msra.mxu0 0
  %2958 = vmatprep.subr.bf16.mxu0 0
  %2959 = vmatpush1.bf16.msra.mxu0 0
  %2960 = vmatprep.subr.bf16.mxu0 0
  %2961 = vmatpush1.bf16.msra.mxu0 0
  %2962 = vmatprep.subr.bf16.mxu0 0
  %2963 = vmatpush1.bf16.msra.mxu0 0
  %2964 = vmatprep.subr.bf16.mxu0 0
  %2965 = vmatpush1.bf16.msra.mxu0 0
  %2966 = vmatprep.subr.bf16.mxu0 0
  %2967 = vmatpush1.bf16.msra.mxu0 0
  %2968 = vmatprep.subr.bf16.mxu0 0
  %2969 = vmatpush1.bf16.msra.mxu0 0
  %2970 = vmatprep.subr.bf16.mxu0 0
  %2971 = vmatpush1.bf16.msra.mxu0 0
  %2972 = vmatprep.subr.bf16.mxu0 0
  %2973 = vmatpush1.bf16.msra.mxu0 0
  %2974 = vmatprep.subr.bf16.mxu0 0
  %2975 = vmatpush1.bf16.msra.mxu0 0
  %2976 = vmatprep.subr.bf16.mxu0 0
  %2977 = vmatpush1.bf16.msra.mxu0 0
  %2978 = vmatprep.subr.bf16.mxu0 0
  %2979 = vmatpush1.bf16.msra.mxu0 0
  %2980 = vmatprep.subr.bf16.mxu0 0
  %2981 = vmatpush1.bf16.msra.mxu0 0
  %2982 = vmatprep.subr.bf16.mxu0 0
  %2983 = vmatpush1.bf16.msra.mxu0 0
  %2984 = vmatprep.mubr.bf16.mxu0 0
  %2985 = vmatmul.mubr.bf16.gmra.mrb[0].mxu0 %v2909
  %v2986 = vpop.f32.mrb[0].mxu0
  %v2987 = vadd.f32 0.0, %v2986
  %v2988 = vpop.f32.mrb[0].mxu0
  %v2989 = vadd.f32 0.0, %v2988
  %v2990 = vpop.f32.mrb[0].mxu0
  %v2991 = vpop.f32.mrb[0].mxu0
  %2992 = vdwg.mxu0
  %2993 = vmatprep.subr.bf16.mxu0 %v705
  %2994 = vmatpush1.bf16.msra.mxu0 %v704
  %2995 = vmatprep.subr.bf16.mxu0 %v709
  %2996 = vmatpush1.bf16.msra.mxu0 %v708
  %2997 = vmatprep.subr.bf16.mxu0 0
  %2998 = vmatpush1.bf16.msra.mxu0 0
  %2999 = vmatprep.subr.bf16.mxu0 0
  %3000 = vmatpush1.bf16.msra.mxu0 0
  %3001 = vmatprep.subr.bf16.mxu0 0
  %3002 = vmatpush1.bf16.msra.mxu0 0
  %3003 = vmatprep.subr.bf16.mxu0 0
  %3004 = vmatpush1.bf16.msra.mxu0 0
  %3005 = vmatprep.subr.bf16.mxu0 0
  %3006 = vmatpush1.bf16.msra.mxu0 0
  %3007 = vmatprep.subr.bf16.mxu0 0
  %3008 = vmatpush1.bf16.msra.mxu0 0
  %3009 = vmatprep.subr.bf16.mxu0 0
  %3010 = vmatpush1.bf16.msra.mxu0 0
  %3011 = vmatprep.subr.bf16.mxu0 0
  %3012 = vmatpush1.bf16.msra.mxu0 0
  %3013 = vmatprep.subr.bf16.mxu0 0
  %3014 = vmatpush1.bf16.msra.mxu0 0
  %3015 = vmatprep.subr.bf16.mxu0 0
  %3016 = vmatpush1.bf16.msra.mxu0 0
  %3017 = vmatprep.subr.bf16.mxu0 0
  %3018 = vmatpush1.bf16.msra.mxu0 0
  %3019 = vmatprep.subr.bf16.mxu0 0
  %3020 = vmatpush1.bf16.msra.mxu0 0
  %3021 = vmatprep.subr.bf16.mxu0 0
  %3022 = vmatpush1.bf16.msra.mxu0 0
  %3023 = vmatprep.subr.bf16.mxu0 0
  %3024 = vmatpush1.bf16.msra.mxu0 0
  %3025 = vmatprep.mubr.bf16.mxu0 0
  %3026 = vmatmul.mubr.bf16.gmra.mrb[0].mxu0 %v2711
  %v3027 = vpop.f32.mrb[0].mxu0
  %v3028 = vadd.f32 %v2946, %v3027
  %v3029 = vpop.f32.mrb[0].mxu0
  %v3030 = vadd.f32 %v2948, %v3029
  %v3031 = vpop.f32.mrb[0].mxu0
  %v3032 = vpop.f32.mrb[0].mxu0
  %3033 = vdwg.mxu0
  %3034 = vmatprep.subr.bf16.mxu0 %v707
  %3035 = vmatpush1.bf16.msra.mxu0 %v706
  %3036 = vmatprep.subr.bf16.mxu0 %v711
  %3037 = vmatpush1.bf16.msra.mxu0 %v710
  %3038 = vmatprep.subr.bf16.mxu0 0
  %3039 = vmatpush1.bf16.msra.mxu0 0
  %3040 = vmatprep.subr.bf16.mxu0 0
  %3041 = vmatpush1.bf16.msra.mxu0 0
  %3042 = vmatprep.subr.bf16.mxu0 0
  %3043 = vmatpush1.bf16.msra.mxu0 0
  %3044 = vmatprep.subr.bf16.mxu0 0
  %3045 = vmatpush1.bf16.msra.mxu0 0
  %3046 = vmatprep.subr.bf16.mxu0 0
  %3047 = vmatpush1.bf16.msra.mxu0 0
  %3048 = vmatprep.subr.bf16.mxu0 0
  %3049 = vmatpush1.bf16.msra.mxu0 0
  %3050 = vmatprep.subr.bf16.mxu0 0
  %3051 = vmatpush1.bf16.msra.mxu0 0
  %3052 = vmatprep.subr.bf16.mxu0 0
  %3053 = vmatpush1.bf16.msra.mxu0 0
  %3054 = vmatprep.subr.bf16.mxu0 0
  %3055 = vmatpush1.bf16.msra.mxu0 0
  %3056 = vmatprep.subr.bf16.mxu0 0
  %3057 = vmatpush1.bf16.msra.mxu0 0
  %3058 = vmatprep.subr.bf16.mxu0 0
  %3059 = vmatpush1.bf16.msra.mxu0 0
  %3060 = vmatprep.subr.bf16.mxu0 0
  %3061 = vmatpush1.bf16.msra.mxu0 0
  %3062 = vmatprep.subr.bf16.mxu0 0
  %3063 = vmatpush1.bf16.msra.mxu0 0
  %3064 = vmatprep.subr.bf16.mxu0 0
  %3065 = vmatpush1.bf16.msra.mxu0 0
  %3066 = vmatprep.mubr.bf16.mxu0 0
  %3067 = vmatmul.mubr.bf16.gmra.mrb[0].mxu0 %v2711
  %v3068 = vpop.f32.mrb[0].mxu0
  %v3069 = vadd.f32 %v2987, %v3068
  %v3070 = vpop.f32.mrb[0].mxu0
  %v3071 = vadd.f32 %v2989, %v3070
  %v3072 = vpop.f32.mrb[0].mxu0
  %v3073 = vpop.f32.mrb[0].mxu0
  %3074 = vdwg.mxu0
  %v3075 = vadd.f32 %v3028, %v802
  %v3076 = vadd.f32 %v3030, %v803
  %v3077 = vadd.f32 %v3069, %v804
  %v3078 = vadd.f32 %v3071, %v805
  %v3079 = vxor.u32 %v3075, 2147483648
  %v3080 = vmul.f32 %v3079, 1.442695
  %v3081 = vpow.pop %v3080
  %v3082 = vadd.f32 %v3081, 1.0
  %v3083 = vrcp.pop %v3082
  %v3084 = vmul.f32 1.0, %v3083
  %v3085 = vxor.u32 %v3076, 2147483648
  %v3086 = vmul.f32 %v3085, 1.442695
  %v3087 = vpow.pop %v3086
  %v3088 = vadd.f32 %v3087, 1.0
  %v3089 = vrcp.pop %v3088
  %v3090 = vmul.f32 1.0, %v3089
  %v3091 = vxor.u32 %v3077, 2147483648
  %v3092 = vmul.f32 %v3091, 1.442695
  %v3093 = vpow.pop %v3092
  %v3094 = vadd.f32 %v3093, 1.0
  %v3095 = vrcp.pop %v3094
  %v3096 = vmul.f32 1.0, %v3095
  %v3097 = vtanh.pop %v3078
  %v3098 = vmul.f32 %v3090, %v2508
  %v3099 = vmul.f32 %v3084, %v3097
  %v3100 = vadd.f32 %v3098, %v3099
  %v3101 = vtanh.pop %v3100
  %v3102 = vmul.f32 %v3096, %v3101
  %v3104 = vsel %vm99, %v2708, 0
  %3106 = vmatprep.subr.bf16.mxu0 %v1271
  %3107 = vmatpush1.bf16.msra.mxu0 %v1270
  %3108 = vmatprep.subr.bf16.mxu0 %v1275
  %3109 = vmatpush1.bf16.msra.mxu0 %v1274
  %3110 = vmatprep.subr.bf16.mxu0 0
  %3111 = vmatpush1.bf16.msra.mxu0 0
  %3112 = vmatprep.subr.bf16.mxu0 0
  %3113 = vmatpush1.bf16.msra.mxu0 0
  %3114 = vmatprep.subr.bf16.mxu0 0
  %3115 = vmatpush1.bf16.msra.mxu0 0
  %3116 = vmatprep.subr.bf16.mxu0 0
  %3117 = vmatpush1.bf16.msra.mxu0 0
  %3118 = vmatprep.subr.bf16.mxu0 0
  %3119 = vmatpush1.bf16.msra.mxu0 0
  %3120 = vmatprep.subr.bf16.mxu0 0
  %3121 = vmatpush1.bf16.msra.mxu0 0
  %3122 = vmatprep.subr.bf16.mxu0 0
  %3123 = vmatpush1.bf16.msra.mxu0 0
  %3124 = vmatprep.subr.bf16.mxu0 0
  %3125 = vmatpush1.bf16.msra.mxu0 0
  %3126 = vmatprep.subr.bf16.mxu0 0
  %3127 = vmatpush1.bf16.msra.mxu0 0
  %3128 = vmatprep.subr.bf16.mxu0 0
  %3129 = vmatpush1.bf16.msra.mxu0 0
  %3130 = vmatprep.subr.bf16.mxu0 0
  %3131 = vmatpush1.bf16.msra.mxu0 0
  %3132 = vmatprep.subr.bf16.mxu0 0
  %3133 = vmatpush1.bf16.msra.mxu0 0
  %3134 = vmatprep.subr.bf16.mxu0 0
  %3135 = vmatpush1.bf16.msra.mxu0 0
  %3136 = vmatprep.subr.bf16.mxu0 0
  %3137 = vmatpush1.bf16.msra.mxu0 0
  %3138 = vmatprep.mubr.bf16.mxu0 0
  %3139 = vmatmul.mubr.bf16.gmra.mrb[0].mxu0 %v3104
  %v3140 = vpop.f32.mrb[0].mxu0
  %v3141 = vadd.f32 0.0, %v3140
  %v3142 = vpop.f32.mrb[0].mxu0
  %v3143 = vadd.f32 0.0, %v3142
  %v3144 = vpop.f32.mrb[0].mxu0
  %v3145 = vpop.f32.mrb[0].mxu0
  %3146 = vdwg.mxu0
  %3147 = vmatprep.subr.bf16.mxu0 %v1273
  %3148 = vmatpush1.bf16.msra.mxu0 %v1272
  %3149 = vmatprep.subr.bf16.mxu0 %v1277
  %3150 = vmatpush1.bf16.msra.mxu0 %v1276
  %3151 = vmatprep.subr.bf16.mxu0 0
  %3152 = vmatpush1.bf16.msra.mxu0 0
  %3153 = vmatprep.subr.bf16.mxu0 0
  %3154 = vmatpush1.bf16.msra.mxu0 0
  %3155 = vmatprep.subr.bf16.mxu0 0
  %3156 = vmatpush1.bf16.msra.mxu0 0
  %3157 = vmatprep.subr.bf16.mxu0 0
  %3158 = vmatpush1.bf16.msra.mxu0 0
  %3159 = vmatprep.subr.bf16.mxu0 0
  %3160 = vmatpush1.bf16.msra.mxu0 0
  %3161 = vmatprep.subr.bf16.mxu0 0
  %3162 = vmatpush1.bf16.msra.mxu0 0
  %3163 = vmatprep.subr.bf16.mxu0 0
  %3164 = vmatpush1.bf16.msra.mxu0 0
  %3165 = vmatprep.subr.bf16.mxu0 0
  %3166 = vmatpush1.bf16.msra.mxu0 0
  %3167 = vmatprep.subr.bf16.mxu0 0
  %3168 = vmatpush1.bf16.msra.mxu0 0
  %3169 = vmatprep.subr.bf16.mxu0 0
  %3170 = vmatpush1.bf16.msra.mxu0 0
  %3171 = vmatprep.subr.bf16.mxu0 0
  %3172 = vmatpush1.bf16.msra.mxu0 0
  %3173 = vmatprep.subr.bf16.mxu0 0
  %3174 = vmatpush1.bf16.msra.mxu0 0
  %3175 = vmatprep.subr.bf16.mxu0 0
  %3176 = vmatpush1.bf16.msra.mxu0 0
  %3177 = vmatprep.subr.bf16.mxu0 0
  %3178 = vmatpush1.bf16.msra.mxu0 0
  %3179 = vmatprep.mubr.bf16.mxu0 0
  %3180 = vmatmul.mubr.bf16.gmra.mrb[0].mxu0 %v3104
  %v3181 = vpop.f32.mrb[0].mxu0
  %v3182 = vadd.f32 0.0, %v3181
  %v3183 = vpop.f32.mrb[0].mxu0
  %v3184 = vadd.f32 0.0, %v3183
  %v3185 = vpop.f32.mrb[0].mxu0
  %v3186 = vpop.f32.mrb[0].mxu0
  %3187 = vdwg.mxu0
  %3188 = vmatprep.subr.bf16.mxu0 %v1393
  %3189 = vmatpush1.bf16.msra.mxu0 %v1392
  %3190 = vmatprep.subr.bf16.mxu0 %v1397
  %3191 = vmatpush1.bf16.msra.mxu0 %v1396
  %3192 = vmatprep.subr.bf16.mxu0 0
  %3193 = vmatpush1.bf16.msra.mxu0 0
  %3194 = vmatprep.subr.bf16.mxu0 0
  %3195 = vmatpush1.bf16.msra.mxu0 0
  %3196 = vmatprep.subr.bf16.mxu0 0
  %3197 = vmatpush1.bf16.msra.mxu0 0
  %3198 = vmatprep.subr.bf16.mxu0 0
  %3199 = vmatpush1.bf16.msra.mxu0 0
  %3200 = vmatprep.subr.bf16.mxu0 0
  %3201 = vmatpush1.bf16.msra.mxu0 0
  %3202 = vmatprep.subr.bf16.mxu0 0
  %3203 = vmatpush1.bf16.msra.mxu0 0
  %3204 = vmatprep.subr.bf16.mxu0 0
  %3205 = vmatpush1.bf16.msra.mxu0 0
  %3206 = vmatprep.subr.bf16.mxu0 0
  %3207 = vmatpush1.bf16.msra.mxu0 0
  %3208 = vmatprep.subr.bf16.mxu0 0
  %3209 = vmatpush1.bf16.msra.mxu0 0
  %3210 = vmatprep.subr.bf16.mxu0 0
  %3211 = vmatpush1.bf16.msra.mxu0 0
  %3212 = vmatprep.subr.bf16.mxu0 0
  %3213 = vmatpush1.bf16.msra.mxu0 0
  %3214 = vmatprep.subr.bf16.mxu0 0
  %3215 = vmatpush1.bf16.msra.mxu0 0
  %3216 = vmatprep.subr.bf16.mxu0 0
  %3217 = vmatpush1.bf16.msra.mxu0 0
  %3218 = vmatprep.subr.bf16.mxu0 0
  %3219 = vmatpush1.bf16.msra.mxu0 0
  %3220 = vmatprep.mubr.bf16.mxu0 0
  %3221 = vmatmul.mubr.bf16.gmra.mrb[0].mxu0 %v2909
  %v3222 = vpop.f32.mrb[0].mxu0
  %v3223 = vadd.f32 %v3141, %v3222
  %v3224 = vpop.f32.mrb[0].mxu0
  %v3225 = vadd.f32 %v3143, %v3224
  %v3226 = vpop.f32.mrb[0].mxu0
  %v3227 = vpop.f32.mrb[0].mxu0
  %3228 = vdwg.mxu0
  %3229 = vmatprep.subr.bf16.mxu0 %v1395
  %3230 = vmatpush1.bf16.msra.mxu0 %v1394
  %3231 = vmatprep.subr.bf16.mxu0 %v1399
  %3232 = vmatpush1.bf16.msra.mxu0 %v1398
  %3233 = vmatprep.subr.bf16.mxu0 0
  %3234 = vmatpush1.bf16.msra.mxu0 0
  %3235 = vmatprep.subr.bf16.mxu0 0
  %3236 = vmatpush1.bf16.msra.mxu0 0
  %3237 = vmatprep.subr.bf16.mxu0 0
  %3238 = vmatpush1.bf16.msra.mxu0 0
  %3239 = vmatprep.subr.bf16.mxu0 0
  %3240 = vmatpush1.bf16.msra.mxu0 0
  %3241 = vmatprep.subr.bf16.mxu0 0
  %3242 = vmatpush1.bf16.msra.mxu0 0
  %3243 = vmatprep.subr.bf16.mxu0 0
  %3244 = vmatpush1.bf16.msra.mxu0 0
  %3245 = vmatprep.subr.bf16.mxu0 0
  %3246 = vmatpush1.bf16.msra.mxu0 0
  %3247 = vmatprep.subr.bf16.mxu0 0
  %3248 = vmatpush1.bf16.msra.mxu0 0
  %3249 = vmatprep.subr.bf16.mxu0 0
  %3250 = vmatpush1.bf16.msra.mxu0 0
  %3251 = vmatprep.subr.bf16.mxu0 0
  %3252 = vmatpush1.bf16.msra.mxu0 0
  %3253 = vmatprep.subr.bf16.mxu0 0
  %3254 = vmatpush1.bf16.msra.mxu0 0
  %3255 = vmatprep.subr.bf16.mxu0 0
  %3256 = vmatpush1.bf16.msra.mxu0 0
  %3257 = vmatprep.subr.bf16.mxu0 0
  %3258 = vmatpush1.bf16.msra.mxu0 0
  %3259 = vmatprep.subr.bf16.mxu0 0
  %3260 = vmatpush1.bf16.msra.mxu0 0
  %3261 = vmatprep.mubr.bf16.mxu0 0
  %3262 = vmatmul.mubr.bf16.gmra.mrb[0].mxu0 %v2909
  %v3263 = vpop.f32.mrb[0].mxu0
  %v3264 = vadd.f32 %v3182, %v3263
  %v3265 = vpop.f32.mrb[0].mxu0
  %v3266 = vadd.f32 %v3184, %v3265
  %v3267 = vpop.f32.mrb[0].mxu0
  %v3268 = vpop.f32.mrb[0].mxu0
  %3269 = vdwg.mxu0
  %v3270 = vadd.f32 %v3223, %v1490
  %v3271 = vadd.f32 %v3225, %v1491
  %v3272 = vadd.f32 %v3264, %v1492
  %v3273 = vadd.f32 %v3266, %v1493
  %v3274 = vxor.u32 %v3270, 2147483648
  %v3275 = vmul.f32 %v3274, 1.442695
  %v3276 = vpow.pop %v3275
  %v3277 = vadd.f32 %v3276, 1.0
  %v3278 = vrcp.pop %v3277
  %v3279 = vmul.f32 1.0, %v3278
  %v3280 = vxor.u32 %v3271, 2147483648
  %v3281 = vmul.f32 %v3280, 1.442695
  %v3282 = vpow.pop %v3281
  %v3283 = vadd.f32 %v3282, 1.0
  %v3284 = vrcp.pop %v3283
  %v3285 = vmul.f32 1.0, %v3284
  %v3286 = vxor.u32 %v3272, 2147483648
  %v3287 = vmul.f32 %v3286, 1.442695
  %v3288 = vpow.pop %v3287
  %v3289 = vadd.f32 %v3288, 1.0
  %v3290 = vrcp.pop %v3289
  %v3291 = vmul.f32 1.0, %v3290
  %v3292 = vtanh.pop %v3273
  %v3293 = vmul.f32 %v3285, %v2703
  %v3294 = vmul.f32 %v3279, %v3292
  %v3295 = vadd.f32 %v3293, %v3294
  %v3296 = vtanh.pop %v3295
  %v3297 = vmul.f32 %v3291, %v3296
  %v3298 = vpack.c.bf16 %v2907, %v2907
  %v3299 = vpack.c.bf16 %v3102, %v3102
  %v3300 = vpack.c.bf16 %v3297, %v3297
  %v3301 = vld [vmem:[%s0 + $0x18] sm:$0xf]
  %v3303 = vsel %vm99, %v3298, 0
  %3305 = vmatprep.subr.bf16.mxu0 %v84
  %3306 = vmatpush1.bf16.msra.mxu0 %v83
  %3307 = vmatprep.subr.bf16.mxu0 %v88
  %3308 = vmatpush1.bf16.msra.mxu0 %v87
  %3309 = vmatprep.subr.bf16.mxu0 0
  %3310 = vmatpush1.bf16.msra.mxu0 0
  %3311 = vmatprep.subr.bf16.mxu0 0
  %3312 = vmatpush1.bf16.msra.mxu0 0
  %3313 = vmatprep.subr.bf16.mxu0 0
  %3314 = vmatpush1.bf16.msra.mxu0 0
  %3315 = vmatprep.subr.bf16.mxu0 0
  %3316 = vmatpush1.bf16.msra.mxu0 0
  %3317 = vmatprep.subr.bf16.mxu0 0
  %3318 = vmatpush1.bf16.msra.mxu0 0
  %3319 = vmatprep.subr.bf16.mxu0 0
  %3320 = vmatpush1.bf16.msra.mxu0 0
  %3321 = vmatprep.subr.bf16.mxu0 0
  %3322 = vmatpush1.bf16.msra.mxu0 0
  %3323 = vmatprep.subr.bf16.mxu0 0
  %3324 = vmatpush1.bf16.msra.mxu0 0
  %3325 = vmatprep.subr.bf16.mxu0 0
  %3326 = vmatpush1.bf16.msra.mxu0 0
  %3327 = vmatprep.subr.bf16.mxu0 0
  %3328 = vmatpush1.bf16.msra.mxu0 0
  %3329 = vmatprep.subr.bf16.mxu0 0
  %3330 = vmatpush1.bf16.msra.mxu0 0
  %3331 = vmatprep.subr.bf16.mxu0 0
  %3332 = vmatpush1.bf16.msra.mxu0 0
  %3333 = vmatprep.subr.bf16.mxu0 0
  %3334 = vmatpush1.bf16.msra.mxu0 0
  %3335 = vmatprep.subr.bf16.mxu0 0
  %3336 = vmatpush1.bf16.msra.mxu0 0
  %3337 = vmatprep.mubr.bf16.mxu0 0
  %3338 = vmatmul.mubr.bf16.gmra.mrb[0].mxu0 %v3303
  %v3339 = vpop.f32.mrb[0].mxu0
  %v3340 = vadd.f32 0.0, %v3339
  %v3341 = vpop.f32.mrb[0].mxu0
  %v3342 = vadd.f32 0.0, %v3341
  %v3343 = vpop.f32.mrb[0].mxu0
  %v3344 = vpop.f32.mrb[0].mxu0
  %3345 = vdwg.mxu0
  %3346 = vmatprep.subr.bf16.mxu0 %v86
  %3347 = vmatpush1.bf16.msra.mxu0 %v85
  %3348 = vmatprep.subr.bf16.mxu0 %v90
  %3349 = vmatpush1.bf16.msra.mxu0 %v89
  %3350 = vmatprep.subr.bf16.mxu0 0
  %3351 = vmatpush1.bf16.msra.mxu0 0
  %3352 = vmatprep.subr.bf16.mxu0 0
  %3353 = vmatpush1.bf16.msra.mxu0 0
  %3354 = vmatprep.subr.bf16.mxu0 0
  %3355 = vmatpush1.bf16.msra.mxu0 0
  %3356 = vmatprep.subr.bf16.mxu0 0
  %3357 = vmatpush1.bf16.msra.mxu0 0
  %3358 = vmatprep.subr.bf16.mxu0 0
  %3359 = vmatpush1.bf16.msra.mxu0 0
  %3360 = vmatprep.subr.bf16.mxu0 0
  %3361 = vmatpush1.bf16.msra.mxu0 0
  %3362 = vmatprep.subr.bf16.mxu0 0
  %3363 = vmatpush1.bf16.msra.mxu0 0
  %3364 = vmatprep.subr.bf16.mxu0 0
  %3365 = vmatpush1.bf16.msra.mxu0 0
  %3366 = vmatprep.subr.bf16.mxu0 0
  %3367 = vmatpush1.bf16.msra.mxu0 0
  %3368 = vmatprep.subr.bf16.mxu0 0
  %3369 = vmatpush1.bf16.msra.mxu0 0
  %3370 = vmatprep.subr.bf16.mxu0 0
  %3371 = vmatpush1.bf16.msra.mxu0 0
  %3372 = vmatprep.subr.bf16.mxu0 0
  %3373 = vmatpush1.bf16.msra.mxu0 0
  %3374 = vmatprep.subr.bf16.mxu0 0
  %3375 = vmatpush1.bf16.msra.mxu0 0
  %3376 = vmatprep.subr.bf16.mxu0 0
  %3377 = vmatpush1.bf16.msra.mxu0 0
  %3378 = vmatprep.mubr.bf16.mxu0 0
  %3379 = vmatmul.mubr.bf16.gmra.mrb[0].mxu0 %v3303
  %v3380 = vpop.f32.mrb[0].mxu0
  %v3381 = vadd.f32 0.0, %v3380
  %v3382 = vpop.f32.mrb[0].mxu0
  %v3383 = vadd.f32 0.0, %v3382
  %v3384 = vpop.f32.mrb[0].mxu0
  %v3385 = vpop.f32.mrb[0].mxu0
  %3386 = vdwg.mxu0
  %v3388 = vsel %vm99, %v3301, 0
  %3390 = vmatprep.subr.bf16.mxu0 %v210
  %3391 = vmatpush1.bf16.msra.mxu0 %v209
  %3392 = vmatprep.subr.bf16.mxu0 %v214
  %3393 = vmatpush1.bf16.msra.mxu0 %v213
  %3394 = vmatprep.subr.bf16.mxu0 0
  %3395 = vmatpush1.bf16.msra.mxu0 0
  %3396 = vmatprep.subr.bf16.mxu0 0
  %3397 = vmatpush1.bf16.msra.mxu0 0
  %3398 = vmatprep.subr.bf16.mxu0 0
  %3399 = vmatpush1.bf16.msra.mxu0 0
  %3400 = vmatprep.subr.bf16.mxu0 0
  %3401 = vmatpush1.bf16.msra.mxu0 0
  %3402 = vmatprep.subr.bf16.mxu0 0
  %3403 = vmatpush1.bf16.msra.mxu0 0
  %3404 = vmatprep.subr.bf16.mxu0 0
  %3405 = vmatpush1.bf16.msra.mxu0 0
  %3406 = vmatprep.subr.bf16.mxu0 0
  %3407 = vmatpush1.bf16.msra.mxu0 0
  %3408 = vmatprep.subr.bf16.mxu0 0
  %3409 = vmatpush1.bf16.msra.mxu0 0
  %3410 = vmatprep.subr.bf16.mxu0 0
  %3411 = vmatpush1.bf16.msra.mxu0 0
  %3412 = vmatprep.subr.bf16.mxu0 0
  %3413 = vmatpush1.bf16.msra.mxu0 0
  %3414 = vmatprep.subr.bf16.mxu0 0
  %3415 = vmatpush1.bf16.msra.mxu0 0
  %3416 = vmatprep.subr.bf16.mxu0 0
  %3417 = vmatpush1.bf16.msra.mxu0 0
  %3418 = vmatprep.subr.bf16.mxu0 0
  %3419 = vmatpush1.bf16.msra.mxu0 0
  %3420 = vmatprep.subr.bf16.mxu0 0
  %3421 = vmatpush1.bf16.msra.mxu0 0
  %3422 = vmatprep.mubr.bf16.mxu0 0
  %3423 = vmatmul.mubr.bf16.gmra.mrb[0].mxu0 %v3388
  %v3424 = vpop.f32.mrb[0].mxu0
  %v3425 = vadd.f32 %v3340, %v3424
  %v3426 = vpop.f32.mrb[0].mxu0
  %v3427 = vadd.f32 %v3342, %v3426
  %v3428 = vpop.f32.mrb[0].mxu0
  %v3429 = vpop.f32.mrb[0].mxu0
  %3430 = vdwg.mxu0
  %3431 = vmatprep.subr.bf16.mxu0 %v212
  %3432 = vmatpush1.bf16.msra.mxu0 %v211
  %3433 = vmatprep.subr.bf16.mxu0 %v216
  %3434 = vmatpush1.bf16.msra.mxu0 %v215
  %3435 = vmatprep.subr.bf16.mxu0 0
  %3436 = vmatpush1.bf16.msra.mxu0 0
  %3437 = vmatprep.subr.bf16.mxu0 0
  %3438 = vmatpush1.bf16.msra.mxu0 0
  %3439 = vmatprep.subr.bf16.mxu0 0
  %3440 = vmatpush1.bf16.msra.mxu0 0
  %3441 = vmatprep.subr.bf16.mxu0 0
  %3442 = vmatpush1.bf16.msra.mxu0 0
  %3443 = vmatprep.subr.bf16.mxu0 0
  %3444 = vmatpush1.bf16.msra.mxu0 0
  %3445 = vmatprep.subr.bf16.mxu0 0
  %3446 = vmatpush1.bf16.msra.mxu0 0
  %3447 = vmatprep.subr.bf16.mxu0 0
  %3448 = vmatpush1.bf16.msra.mxu0 0
  %3449 = vmatprep.subr.bf16.mxu0 0
  %3450 = vmatpush1.bf16.msra.mxu0 0
  %3451 = vmatprep.subr.bf16.mxu0 0
  %3452 = vmatpush1.bf16.msra.mxu0 0
  %3453 = vmatprep.subr.bf16.mxu0 0
  %3454 = vmatpush1.bf16.msra.mxu0 0
  %3455 = vmatprep.subr.bf16.mxu0 0
  %3456 = vmatpush1.bf16.msra.mxu0 0
  %3457 = vmatprep.subr.bf16.mxu0 0
  %3458 = vmatpush1.bf16.msra.mxu0 0
  %3459 = vmatprep.subr.bf16.mxu0 0
  %3460 = vmatpush1.bf16.msra.mxu0 0
  %3461 = vmatprep.subr.bf16.mxu0 0
  %3462 = vmatpush1.bf16.msra.mxu0 0
  %3463 = vmatprep.mubr.bf16.mxu0 0
  %3464 = vmatmul.mubr.bf16.gmra.mrb[0].mxu0 %v3388
  %v3465 = vpop.f32.mrb[0].mxu0
  %v3466 = vadd.f32 %v3381, %v3465
  %v3467 = vpop.f32.mrb[0].mxu0
  %v3468 = vadd.f32 %v3383, %v3467
  %v3469 = vpop.f32.mrb[0].mxu0
  %v3470 = vpop.f32.mrb[0].mxu0
  %3471 = vdwg.mxu0
  %v3472 = vadd.f32 %v3425, %v310
  %v3473 = vadd.f32 %v3427, %v311
  %v3474 = vadd.f32 %v3466, %v312
  %v3475 = vadd.f32 %v3468, %v313
  %v3476 = vxor.u32 %v3472, 2147483648
  %v3477 = vmul.f32 %v3476, 1.442695
  %v3478 = vpow.pop %v3477
  %v3479 = vadd.f32 %v3478, 1.0
  %v3480 = vrcp.pop %v3479
  %v3481 = vmul.f32 1.0, %v3480
  %v3482 = vxor.u32 %v3473, 2147483648
  %v3483 = vmul.f32 %v3482, 1.442695
  %v3484 = vpow.pop %v3483
  %v3485 = vadd.f32 %v3484, 1.0
  %v3486 = vrcp.pop %v3485
  %v3487 = vmul.f32 1.0, %v3486
  %v3488 = vxor.u32 %v3474, 2147483648
  %v3489 = vmul.f32 %v3488, 1.442695
  %v3490 = vpow.pop %v3489
  %v3491 = vadd.f32 %v3490, 1.0
  %v3492 = vrcp.pop %v3491
  %v3493 = vmul.f32 1.0, %v3492
  %v3494 = vtanh.pop %v3475
  %v3495 = vmul.f32 %v3487, %v2905
  %v3496 = vmul.f32 %v3481, %v3494
  %v3497 = vadd.f32 %v3495, %v3496
  %v3498 = vtanh.pop %v3497
  %v3499 = vmul.f32 %v3493, %v3498
  %v3501 = vsel %vm99, %v3299, 0
  %3503 = vmatprep.subr.bf16.mxu0 %v583
  %3504 = vmatpush1.bf16.msra.mxu0 %v582
  %3505 = vmatprep.subr.bf16.mxu0 %v587
  %3506 = vmatpush1.bf16.msra.mxu0 %v586
  %3507 = vmatprep.subr.bf16.mxu0 0
  %3508 = vmatpush1.bf16.msra.mxu0 0
  %3509 = vmatprep.subr.bf16.mxu0 0
  %3510 = vmatpush1.bf16.msra.mxu0 0
  %3511 = vmatprep.subr.bf16.mxu0 0
  %3512 = vmatpush1.bf16.msra.mxu0 0
  %3513 = vmatprep.subr.bf16.mxu0 0
  %3514 = vmatpush1.bf16.msra.mxu0 0
  %3515 = vmatprep.subr.bf16.mxu0 0
  %3516 = vmatpush1.bf16.msra.mxu0 0
  %3517 = vmatprep.subr.bf16.mxu0 0
  %3518 = vmatpush1.bf16.msra.mxu0 0
  %3519 = vmatprep.subr.bf16.mxu0 0
  %3520 = vmatpush1.bf16.msra.mxu0 0
  %3521 = vmatprep.subr.bf16.mxu0 0
  %3522 = vmatpush1.bf16.msra.mxu0 0
  %3523 = vmatprep.subr.bf16.mxu0 0
  %3524 = vmatpush1.bf16.msra.mxu0 0
  %3525 = vmatprep.subr.bf16.mxu0 0
  %3526 = vmatpush1.bf16.msra.mxu0 0
  %3527 = vmatprep.subr.bf16.mxu0 0
  %3528 = vmatpush1.bf16.msra.mxu0 0
  %3529 = vmatprep.subr.bf16.mxu0 0
  %3530 = vmatpush1.bf16.msra.mxu0 0
  %3531 = vmatprep.subr.bf16.mxu0 0
  %3532 = vmatpush1.bf16.msra.mxu0 0
  %3533 = vmatprep.subr.bf16.mxu0 0
  %3534 = vmatpush1.bf16.msra.mxu0 0
  %3535 = vmatprep.mubr.bf16.mxu0 0
  %3536 = vmatmul.mubr.bf16.gmra.mrb[0].mxu0 %v3501
  %v3537 = vpop.f32.mrb[0].mxu0
  %v3538 = vadd.f32 0.0, %v3537
  %v3539 = vpop.f32.mrb[0].mxu0
  %v3540 = vadd.f32 0.0, %v3539
  %v3541 = vpop.f32.mrb[0].mxu0
  %v3542 = vpop.f32.mrb[0].mxu0
  %3543 = vdwg.mxu0
  %3544 = vmatprep.subr.bf16.mxu0 %v585
  %3545 = vmatpush1.bf16.msra.mxu0 %v584
  %3546 = vmatprep.subr.bf16.mxu0 %v589
  %3547 = vmatpush1.bf16.msra.mxu0 %v588
  %3548 = vmatprep.subr.bf16.mxu0 0
  %3549 = vmatpush1.bf16.msra.mxu0 0
  %3550 = vmatprep.subr.bf16.mxu0 0
  %3551 = vmatpush1.bf16.msra.mxu0 0
  %3552 = vmatprep.subr.bf16.mxu0 0
  %3553 = vmatpush1.bf16.msra.mxu0 0
  %3554 = vmatprep.subr.bf16.mxu0 0
  %3555 = vmatpush1.bf16.msra.mxu0 0
  %3556 = vmatprep.subr.bf16.mxu0 0
  %3557 = vmatpush1.bf16.msra.mxu0 0
  %3558 = vmatprep.subr.bf16.mxu0 0
  %3559 = vmatpush1.bf16.msra.mxu0 0
  %3560 = vmatprep.subr.bf16.mxu0 0
  %3561 = vmatpush1.bf16.msra.mxu0 0
  %3562 = vmatprep.subr.bf16.mxu0 0
  %3563 = vmatpush1.bf16.msra.mxu0 0
  %3564 = vmatprep.subr.bf16.mxu0 0
  %3565 = vmatpush1.bf16.msra.mxu0 0
  %3566 = vmatprep.subr.bf16.mxu0 0
  %3567 = vmatpush1.bf16.msra.mxu0 0
  %3568 = vmatprep.subr.bf16.mxu0 0
  %3569 = vmatpush1.bf16.msra.mxu0 0
  %3570 = vmatprep.subr.bf16.mxu0 0
  %3571 = vmatpush1.bf16.msra.mxu0 0
  %3572 = vmatprep.subr.bf16.mxu0 0
  %3573 = vmatpush1.bf16.msra.mxu0 0
  %3574 = vmatprep.subr.bf16.mxu0 0
  %3575 = vmatpush1.bf16.msra.mxu0 0
  %3576 = vmatprep.mubr.bf16.mxu0 0
  %3577 = vmatmul.mubr.bf16.gmra.mrb[0].mxu0 %v3501
  %v3578 = vpop.f32.mrb[0].mxu0
  %v3579 = vadd.f32 0.0, %v3578
  %v3580 = vpop.f32.mrb[0].mxu0
  %v3581 = vadd.f32 0.0, %v3580
  %v3582 = vpop.f32.mrb[0].mxu0
  %v3583 = vpop.f32.mrb[0].mxu0
  %3584 = vdwg.mxu0
  %3585 = vmatprep.subr.bf16.mxu0 %v705
  %3586 = vmatpush1.bf16.msra.mxu0 %v704
  %3587 = vmatprep.subr.bf16.mxu0 %v709
  %3588 = vmatpush1.bf16.msra.mxu0 %v708
  %3589 = vmatprep.subr.bf16.mxu0 0
  %3590 = vmatpush1.bf16.msra.mxu0 0
  %3591 = vmatprep.subr.bf16.mxu0 0
  %3592 = vmatpush1.bf16.msra.mxu0 0
  %3593 = vmatprep.subr.bf16.mxu0 0
  %3594 = vmatpush1.bf16.msra.mxu0 0
  %3595 = vmatprep.subr.bf16.mxu0 0
  %3596 = vmatpush1.bf16.msra.mxu0 0
  %3597 = vmatprep.subr.bf16.mxu0 0
  %3598 = vmatpush1.bf16.msra.mxu0 0
  %3599 = vmatprep.subr.bf16.mxu0 0
  %3600 = vmatpush1.bf16.msra.mxu0 0
  %3601 = vmatprep.subr.bf16.mxu0 0
  %3602 = vmatpush1.bf16.msra.mxu0 0
  %3603 = vmatprep.subr.bf16.mxu0 0
  %3604 = vmatpush1.bf16.msra.mxu0 0
  %3605 = vmatprep.subr.bf16.mxu0 0
  %3606 = vmatpush1.bf16.msra.mxu0 0
  %3607 = vmatprep.subr.bf16.mxu0 0
  %3608 = vmatpush1.bf16.msra.mxu0 0
  %3609 = vmatprep.subr.bf16.mxu0 0
  %3610 = vmatpush1.bf16.msra.mxu0 0
  %3611 = vmatprep.subr.bf16.mxu0 0
  %3612 = vmatpush1.bf16.msra.mxu0 0
  %3613 = vmatprep.subr.bf16.mxu0 0
  %3614 = vmatpush1.bf16.msra.mxu0 0
  %3615 = vmatprep.subr.bf16.mxu0 0
  %3616 = vmatpush1.bf16.msra.mxu0 0
  %3617 = vmatprep.mubr.bf16.mxu0 0
  %3618 = vmatmul.mubr.bf16.gmra.mrb[0].mxu0 %v3303
  %v3619 = vpop.f32.mrb[0].mxu0
  %v3620 = vadd.f32 %v3538, %v3619
  %v3621 = vpop.f32.mrb[0].mxu0
  %v3622 = vadd.f32 %v3540, %v3621
  %v3623 = vpop.f32.mrb[0].mxu0
  %v3624 = vpop.f32.mrb[0].mxu0
  %3625 = vdwg.mxu0
  %3626 = vmatprep.subr.bf16.mxu0 %v707
  %3627 = vmatpush1.bf16.msra.mxu0 %v706
  %3628 = vmatprep.subr.bf16.mxu0 %v711
  %3629 = vmatpush1.bf16.msra.mxu0 %v710
  %3630 = vmatprep.subr.bf16.mxu0 0
  %3631 = vmatpush1.bf16.msra.mxu0 0
  %3632 = vmatprep.subr.bf16.mxu0 0
  %3633 = vmatpush1.bf16.msra.mxu0 0
  %3634 = vmatprep.subr.bf16.mxu0 0
  %3635 = vmatpush1.bf16.msra.mxu0 0
  %3636 = vmatprep.subr.bf16.mxu0 0
  %3637 = vmatpush1.bf16.msra.mxu0 0
  %3638 = vmatprep.subr.bf16.mxu0 0
  %3639 = vmatpush1.bf16.msra.mxu0 0
  %3640 = vmatprep.subr.bf16.mxu0 0
  %3641 = vmatpush1.bf16.msra.mxu0 0
  %3642 = vmatprep.subr.bf16.mxu0 0
  %3643 = vmatpush1.bf16.msra.mxu0 0
  %3644 = vmatprep.subr.bf16.mxu0 0
  %3645 = vmatpush1.bf16.msra.mxu0 0
  %3646 = vmatprep.subr.bf16.mxu0 0
  %3647 = vmatpush1.bf16.msra.mxu0 0
  %3648 = vmatprep.subr.bf16.mxu0 0
  %3649 = vmatpush1.bf16.msra.mxu0 0
  %3650 = vmatprep.subr.bf16.mxu0 0
  %3651 = vmatpush1.bf16.msra.mxu0 0
  %3652 = vmatprep.subr.bf16.mxu0 0
  %3653 = vmatpush1.bf16.msra.mxu0 0
  %3654 = vmatprep.subr.bf16.mxu0 0
  %3655 = vmatpush1.bf16.msra.mxu0 0
  %3656 = vmatprep.subr.bf16.mxu0 0
  %3657 = vmatpush1.bf16.msra.mxu0 0
  %3658 = vmatprep.mubr.bf16.mxu0 0
  %3659 = vmatmul.mubr.bf16.gmra.mrb[0].mxu0 %v3303
  %v3660 = vpop.f32.mrb[0].mxu0
  %v3661 = vadd.f32 %v3579, %v3660
  %v3662 = vpop.f32.mrb[0].mxu0
  %v3663 = vadd.f32 %v3581, %v3662
  %v3664 = vpop.f32.mrb[0].mxu0
  %v3665 = vpop.f32.mrb[0].mxu0
  %3666 = vdwg.mxu0
  %v3667 = vadd.f32 %v3620, %v802
  %v3668 = vadd.f32 %v3622, %v803
  %v3669 = vadd.f32 %v3661, %v804
  %v3670 = vadd.f32 %v3663, %v805
  %v3671 = vxor.u32 %v3667, 2147483648
  %v3672 = vmul.f32 %v3671, 1.442695
  %v3673 = vpow.pop %v3672
  %v3674 = vadd.f32 %v3673, 1.0
  %v3675 = vrcp.pop %v3674
  %v3676 = vmul.f32 1.0, %v3675
  %v3677 = vxor.u32 %v3668, 2147483648
  %v3678 = vmul.f32 %v3677, 1.442695
  %v3679 = vpow.pop %v3678
  %v3680 = vadd.f32 %v3679, 1.0
  %v3681 = vrcp.pop %v3680
  %v3682 = vmul.f32 1.0, %v3681
  %v3683 = vxor.u32 %v3669, 2147483648
  %v3684 = vmul.f32 %v3683, 1.442695
  %v3685 = vpow.pop %v3684
  %v3686 = vadd.f32 %v3685, 1.0
  %v3687 = vrcp.pop %v3686
  %v3688 = vmul.f32 1.0, %v3687
  %v3689 = vtanh.pop %v3670
  %v3690 = vmul.f32 %v3682, %v3100
  %v3691 = vmul.f32 %v3676, %v3689
  %v3692 = vadd.f32 %v3690, %v3691
  %v3693 = vtanh.pop %v3692
  %v3694 = vmul.f32 %v3688, %v3693
  %v3696 = vsel %vm99, %v3300, 0
  %3698 = vmatprep.subr.bf16.mxu0 %v1271
  %3699 = vmatpush1.bf16.msra.mxu0 %v1270
  %3700 = vmatprep.subr.bf16.mxu0 %v1275
  %3701 = vmatpush1.bf16.msra.mxu0 %v1274
  %3702 = vmatprep.subr.bf16.mxu0 0
  %3703 = vmatpush1.bf16.msra.mxu0 0
  %3704 = vmatprep.subr.bf16.mxu0 0
  %3705 = vmatpush1.bf16.msra.mxu0 0
  %3706 = vmatprep.subr.bf16.mxu0 0
  %3707 = vmatpush1.bf16.msra.mxu0 0
  %3708 = vmatprep.subr.bf16.mxu0 0
  %3709 = vmatpush1.bf16.msra.mxu0 0
  %3710 = vmatprep.subr.bf16.mxu0 0
  %3711 = vmatpush1.bf16.msra.mxu0 0
  %3712 = vmatprep.subr.bf16.mxu0 0
  %3713 = vmatpush1.bf16.msra.mxu0 0
  %3714 = vmatprep.subr.bf16.mxu0 0
  %3715 = vmatpush1.bf16.msra.mxu0 0
  %3716 = vmatprep.subr.bf16.mxu0 0
  %3717 = vmatpush1.bf16.msra.mxu0 0
  %3718 = vmatprep.subr.bf16.mxu0 0
  %3719 = vmatpush1.bf16.msra.mxu0 0
  %3720 = vmatprep.subr.bf16.mxu0 0
  %3721 = vmatpush1.bf16.msra.mxu0 0
  %3722 = vmatprep.subr.bf16.mxu0 0
  %3723 = vmatpush1.bf16.msra.mxu0 0
  %3724 = vmatprep.subr.bf16.mxu0 0
  %3725 = vmatpush1.bf16.msra.mxu0 0
  %3726 = vmatprep.subr.bf16.mxu0 0
  %3727 = vmatpush1.bf16.msra.mxu0 0
  %3728 = vmatprep.subr.bf16.mxu0 0
  %3729 = vmatpush1.bf16.msra.mxu0 0
  %3730 = vmatprep.mubr.bf16.mxu0 0
  %3731 = vmatmul.mubr.bf16.gmra.mrb[0].mxu0 %v3696
  %v3732 = vpop.f32.mrb[0].mxu0
  %v3733 = vadd.f32 0.0, %v3732
  %v3734 = vpop.f32.mrb[0].mxu0
  %v3735 = vadd.f32 0.0, %v3734
  %v3736 = vpop.f32.mrb[0].mxu0
  %v3737 = vpop.f32.mrb[0].mxu0
  %3738 = vdwg.mxu0
  %3739 = vmatprep.subr.bf16.mxu0 %v1273
  %3740 = vmatpush1.bf16.msra.mxu0 %v1272
  %3741 = vmatprep.subr.bf16.mxu0 %v1277
  %3742 = vmatpush1.bf16.msra.mxu0 %v1276
  %3743 = vmatprep.subr.bf16.mxu0 0
  %3744 = vmatpush1.bf16.msra.mxu0 0
  %3745 = vmatprep.subr.bf16.mxu0 0
  %3746 = vmatpush1.bf16.msra.mxu0 0
  %3747 = vmatprep.subr.bf16.mxu0 0
  %3748 = vmatpush1.bf16.msra.mxu0 0
  %3749 = vmatprep.subr.bf16.mxu0 0
  %3750 = vmatpush1.bf16.msra.mxu0 0
  %3751 = vmatprep.subr.bf16.mxu0 0
  %3752 = vmatpush1.bf16.msra.mxu0 0
  %3753 = vmatprep.subr.bf16.mxu0 0
  %3754 = vmatpush1.bf16.msra.mxu0 0
  %3755 = vmatprep.subr.bf16.mxu0 0
  %3756 = vmatpush1.bf16.msra.mxu0 0
  %3757 = vmatprep.subr.bf16.mxu0 0
  %3758 = vmatpush1.bf16.msra.mxu0 0
  %3759 = vmatprep.subr.bf16.mxu0 0
  %3760 = vmatpush1.bf16.msra.mxu0 0
  %3761 = vmatprep.subr.bf16.mxu0 0
  %3762 = vmatpush1.bf16.msra.mxu0 0
  %3763 = vmatprep.subr.bf16.mxu0 0
  %3764 = vmatpush1.bf16.msra.mxu0 0
  %3765 = vmatprep.subr.bf16.mxu0 0
  %3766 = vmatpush1.bf16.msra.mxu0 0
  %3767 = vmatprep.subr.bf16.mxu0 0
  %3768 = vmatpush1.bf16.msra.mxu0 0
  %3769 = vmatprep.subr.bf16.mxu0 0
  %3770 = vmatpush1.bf16.msra.mxu0 0
  %3771 = vmatprep.mubr.bf16.mxu0 0
  %3772 = vmatmul.mubr.bf16.gmra.mrb[0].mxu0 %v3696
  %v3773 = vpop.f32.mrb[0].mxu0
  %v3774 = vadd.f32 0.0, %v3773
  %v3775 = vpop.f32.mrb[0].mxu0
  %v3776 = vadd.f32 0.0, %v3775
  %v3777 = vpop.f32.mrb[0].mxu0
  %v3778 = vpop.f32.mrb[0].mxu0
  %3779 = vdwg.mxu0
  %3780 = vmatprep.subr.bf16.mxu0 %v1393
  %3781 = vmatpush1.bf16.msra.mxu0 %v1392
  %3782 = vmatprep.subr.bf16.mxu0 %v1397
  %3783 = vmatpush1.bf16.msra.mxu0 %v1396
  %3784 = vmatprep.subr.bf16.mxu0 0
  %3785 = vmatpush1.bf16.msra.mxu0 0
  %3786 = vmatprep.subr.bf16.mxu0 0
  %3787 = vmatpush1.bf16.msra.mxu0 0
  %3788 = vmatprep.subr.bf16.mxu0 0
  %3789 = vmatpush1.bf16.msra.mxu0 0
  %3790 = vmatprep.subr.bf16.mxu0 0
  %3791 = vmatpush1.bf16.msra.mxu0 0
  %3792 = vmatprep.subr.bf16.mxu0 0
  %3793 = vmatpush1.bf16.msra.mxu0 0
  %3794 = vmatprep.subr.bf16.mxu0 0
  %3795 = vmatpush1.bf16.msra.mxu0 0
  %3796 = vmatprep.subr.bf16.mxu0 0
  %3797 = vmatpush1.bf16.msra.mxu0 0
  %3798 = vmatprep.subr.bf16.mxu0 0
  %3799 = vmatpush1.bf16.msra.mxu0 0
  %3800 = vmatprep.subr.bf16.mxu0 0
  %3801 = vmatpush1.bf16.msra.mxu0 0
  %3802 = vmatprep.subr.bf16.mxu0 0
  %3803 = vmatpush1.bf16.msra.mxu0 0
  %3804 = vmatprep.subr.bf16.mxu0 0
  %3805 = vmatpush1.bf16.msra.mxu0 0
  %3806 = vmatprep.subr.bf16.mxu0 0
  %3807 = vmatpush1.bf16.msra.mxu0 0
  %3808 = vmatprep.subr.bf16.mxu0 0
  %3809 = vmatpush1.bf16.msra.mxu0 0
  %3810 = vmatprep.subr.bf16.mxu0 0
  %3811 = vmatpush1.bf16.msra.mxu0 0
  %3812 = vmatprep.mubr.bf16.mxu0 0
  %3813 = vmatmul.mubr.bf16.gmra.mrb[0].mxu0 %v3501
  %v3814 = vpop.f32.mrb[0].mxu0
  %v3815 = vadd.f32 %v3733, %v3814
  %v3816 = vpop.f32.mrb[0].mxu0
  %v3817 = vadd.f32 %v3735, %v3816
  %v3818 = vpop.f32.mrb[0].mxu0
  %v3819 = vpop.f32.mrb[0].mxu0
  %3820 = vdwg.mxu0
  %3821 = vmatprep.subr.bf16.mxu0 %v1395
  %3822 = vmatpush1.bf16.msra.mxu0 %v1394
  %3823 = vmatprep.subr.bf16.mxu0 %v1399
  %3824 = vmatpush1.bf16.msra.mxu0 %v1398
  %3825 = vmatprep.subr.bf16.mxu0 0
  %3826 = vmatpush1.bf16.msra.mxu0 0
  %3827 = vmatprep.subr.bf16.mxu0 0
  %3828 = vmatpush1.bf16.msra.mxu0 0
  %3829 = vmatprep.subr.bf16.mxu0 0
  %3830 = vmatpush1.bf16.msra.mxu0 0
  %3831 = vmatprep.subr.bf16.mxu0 0
  %3832 = vmatpush1.bf16.msra.mxu0 0
  %3833 = vmatprep.subr.bf16.mxu0 0
  %3834 = vmatpush1.bf16.msra.mxu0 0
  %3835 = vmatprep.subr.bf16.mxu0 0
  %3836 = vmatpush1.bf16.msra.mxu0 0
  %3837 = vmatprep.subr.bf16.mxu0 0
  %3838 = vmatpush1.bf16.msra.mxu0 0
  %3839 = vmatprep.subr.bf16.mxu0 0
  %3840 = vmatpush1.bf16.msra.mxu0 0
  %3841 = vmatprep.subr.bf16.mxu0 0
  %3842 = vmatpush1.bf16.msra.mxu0 0
  %3843 = vmatprep.subr.bf16.mxu0 0
  %3844 = vmatpush1.bf16.msra.mxu0 0
  %3845 = vmatprep.subr.bf16.mxu0 0
  %3846 = vmatpush1.bf16.msra.mxu0 0
  %3847 = vmatprep.subr.bf16.mxu0 0
  %3848 = vmatpush1.bf16.msra.mxu0 0
  %3849 = vmatprep.subr.bf16.mxu0 0
  %3850 = vmatpush1.bf16.msra.mxu0 0
  %3851 = vmatprep.subr.bf16.mxu0 0
  %3852 = vmatpush1.bf16.msra.mxu0 0
  %3853 = vmatprep.mubr.bf16.mxu0 0
  %3854 = vmatmul.mubr.bf16.gmra.mrb[0].mxu0 %v3501
  %v3855 = vpop.f32.mrb[0].mxu0
  %v3856 = vadd.f32 %v3774, %v3855
  %v3857 = vpop.f32.mrb[0].mxu0
  %v3858 = vadd.f32 %v3776, %v3857
  %v3859 = vpop.f32.mrb[0].mxu0
  %v3860 = vpop.f32.mrb[0].mxu0
  %3861 = vdwg.mxu0
  %v3862 = vadd.f32 %v3815, %v1490
  %v3863 = vadd.f32 %v3817, %v1491
  %v3864 = vadd.f32 %v3856, %v1492
  %v3865 = vadd.f32 %v3858, %v1493
  %v3866 = vxor.u32 %v3862, 2147483648
  %v3867 = vmul.f32 %v3866, 1.442695
  %v3868 = vpow.pop %v3867
  %v3869 = vadd.f32 %v3868, 1.0
  %v3870 = vrcp.pop %v3869
  %v3871 = vmul.f32 1.0, %v3870
  %v3872 = vxor.u32 %v3863, 2147483648
  %v3873 = vmul.f32 %v3872, 1.442695
  %v3874 = vpow.pop %v3873
  %v3875 = vadd.f32 %v3874, 1.0
  %v3876 = vrcp.pop %v3875
  %v3877 = vmul.f32 1.0, %v3876
  %v3878 = vxor.u32 %v3864, 2147483648
  %v3879 = vmul.f32 %v3878, 1.442695
  %v3880 = vpow.pop %v3879
  %v3881 = vadd.f32 %v3880, 1.0
  %v3882 = vrcp.pop %v3881
  %v3883 = vmul.f32 1.0, %v3882
  %v3884 = vtanh.pop %v3865
  %v3885 = vmul.f32 %v3877, %v3295
  %v3886 = vmul.f32 %v3871, %v3884
  %v3887 = vadd.f32 %v3885, %v3886
  %v3888 = vtanh.pop %v3887
  %v3889 = vmul.f32 %v3883, %v3888
  %v3890 = vpack.c.bf16 %v3499, %v3499
  %v3891 = vpack.c.bf16 %v3694, %v3694
  %v3892 = vpack.c.bf16 %v3889, %v3889
  %v3893 = vld [vmem:[%s0 + $0x1c] sm:$0xf]
  %v3895 = vsel %vm99, %v3890, 0
  %3897 = vmatprep.subr.bf16.mxu0 %v84
  %3898 = vmatpush1.bf16.msra.mxu0 %v83
  %3899 = vmatprep.subr.bf16.mxu0 %v88
  %3900 = vmatpush1.bf16.msra.mxu0 %v87
  %3901 = vmatprep.subr.bf16.mxu0 0
  %3902 = vmatpush1.bf16.msra.mxu0 0
  %3903 = vmatprep.subr.bf16.mxu0 0
  %3904 = vmatpush1.bf16.msra.mxu0 0
  %3905 = vmatprep.subr.bf16.mxu0 0
  %3906 = vmatpush1.bf16.msra.mxu0 0
  %3907 = vmatprep.subr.bf16.mxu0 0
  %3908 = vmatpush1.bf16.msra.mxu0 0
  %3909 = vmatprep.subr.bf16.mxu0 0
  %3910 = vmatpush1.bf16.msra.mxu0 0
  %3911 = vmatprep.subr.bf16.mxu0 0
  %3912 = vmatpush1.bf16.msra.mxu0 0
  %3913 = vmatprep.subr.bf16.mxu0 0
  %3914 = vmatpush1.bf16.msra.mxu0 0
  %3915 = vmatprep.subr.bf16.mxu0 0
  %3916 = vmatpush1.bf16.msra.mxu0 0
  %3917 = vmatprep.subr.bf16.mxu0 0
  %3918 = vmatpush1.bf16.msra.mxu0 0
  %3919 = vmatprep.subr.bf16.mxu0 0
  %3920 = vmatpush1.bf16.msra.mxu0 0
  %3921 = vmatprep.subr.bf16.mxu0 0
  %3922 = vmatpush1.bf16.msra.mxu0 0
  %3923 = vmatprep.subr.bf16.mxu0 0
  %3924 = vmatpush1.bf16.msra.mxu0 0
  %3925 = vmatprep.subr.bf16.mxu0 0
  %3926 = vmatpush1.bf16.msra.mxu0 0
  %3927 = vmatprep.subr.bf16.mxu0 0
  %3928 = vmatpush1.bf16.msra.mxu0 0
  %3929 = vmatprep.mubr.bf16.mxu0 0
  %3930 = vmatmul.mubr.bf16.gmra.mrb[0].mxu0 %v3895
  %v3931 = vpop.f32.mrb[0].mxu0
  %v3932 = vadd.f32 0.0, %v3931
  %v3933 = vpop.f32.mrb[0].mxu0
  %v3934 = vadd.f32 0.0, %v3933
  %v3935 = vpop.f32.mrb[0].mxu0
  %v3936 = vpop.f32.mrb[0].mxu0
  %3937 = vdwg.mxu0
  %3938 = vmatprep.subr.bf16.mxu0 %v86
  %3939 = vmatpush1.bf16.msra.mxu0 %v85
  %3940 = vmatprep.subr.bf16.mxu0 %v90
  %3941 = vmatpush1.bf16.msra.mxu0 %v89
  %3942 = vmatprep.subr.bf16.mxu0 0
  %3943 = vmatpush1.bf16.msra.mxu0 0
  %3944 = vmatprep.subr.bf16.mxu0 0
  %3945 = vmatpush1.bf16.msra.mxu0 0
  %3946 = vmatprep.subr.bf16.mxu0 0
  %3947 = vmatpush1.bf16.msra.mxu0 0
  %3948 = vmatprep.subr.bf16.mxu0 0
  %3949 = vmatpush1.bf16.msra.mxu0 0
  %3950 = vmatprep.subr.bf16.mxu0 0
  %3951 = vmatpush1.bf16.msra.mxu0 0
  %3952 = vmatprep.subr.bf16.mxu0 0
  %3953 = vmatpush1.bf16.msra.mxu0 0
  %3954 = vmatprep.subr.bf16.mxu0 0
  %3955 = vmatpush1.bf16.msra.mxu0 0
  %3956 = vmatprep.subr.bf16.mxu0 0
  %3957 = vmatpush1.bf16.msra.mxu0 0
  %3958 = vmatprep.subr.bf16.mxu0 0
  %3959 = vmatpush1.bf16.msra.mxu0 0
  %3960 = vmatprep.subr.bf16.mxu0 0
  %3961 = vmatpush1.bf16.msra.mxu0 0
  %3962 = vmatprep.subr.bf16.mxu0 0
  %3963 = vmatpush1.bf16.msra.mxu0 0
  %3964 = vmatprep.subr.bf16.mxu0 0
  %3965 = vmatpush1.bf16.msra.mxu0 0
  %3966 = vmatprep.subr.bf16.mxu0 0
  %3967 = vmatpush1.bf16.msra.mxu0 0
  %3968 = vmatprep.subr.bf16.mxu0 0
  %3969 = vmatpush1.bf16.msra.mxu0 0
  %3970 = vmatprep.mubr.bf16.mxu0 0
  %3971 = vmatmul.mubr.bf16.gmra.mrb[0].mxu0 %v3895
  %v3972 = vpop.f32.mrb[0].mxu0
  %v3973 = vadd.f32 0.0, %v3972
  %v3974 = vpop.f32.mrb[0].mxu0
  %v3975 = vadd.f32 0.0, %v3974
  %v3976 = vpop.f32.mrb[0].mxu0
  %v3977 = vpop.f32.mrb[0].mxu0
  %3978 = vdwg.mxu0
  %v3980 = vsel %vm99, %v3893, 0
  %3982 = vmatprep.subr.bf16.mxu0 %v210
  %3983 = vmatpush1.bf16.msra.mxu0 %v209
  %3984 = vmatprep.subr.bf16.mxu0 %v214
  %3985 = vmatpush1.bf16.msra.mxu0 %v213
  %3986 = vmatprep.subr.bf16.mxu0 0
  %3987 = vmatpush1.bf16.msra.mxu0 0
  %3988 = vmatprep.subr.bf16.mxu0 0
  %3989 = vmatpush1.bf16.msra.mxu0 0
  %3990 = vmatprep.subr.bf16.mxu0 0
  %3991 = vmatpush1.bf16.msra.mxu0 0
  %3992 = vmatprep.subr.bf16.mxu0 0
  %3993 = vmatpush1.bf16.msra.mxu0 0
  %3994 = vmatprep.subr.bf16.mxu0 0
  %3995 = vmatpush1.bf16.msra.mxu0 0
  %3996 = vmatprep.subr.bf16.mxu0 0
  %3997 = vmatpush1.bf16.msra.mxu0 0
  %3998 = vmatprep.subr.bf16.mxu0 0
  %3999 = vmatpush1.bf16.msra.mxu0 0
  %4000 = vmatprep.subr.bf16.mxu0 0
  %4001 = vmatpush1.bf16.msra.mxu0 0
  %4002 = vmatprep.subr.bf16.mxu0 0
  %4003 = vmatpush1.bf16.msra.mxu0 0
  %4004 = vmatprep.subr.bf16.mxu0 0
  %4005 = vmatpush1.bf16.msra.mxu0 0
  %4006 = vmatprep.subr.bf16.mxu0 0
  %4007 = vmatpush1.bf16.msra.mxu0 0
  %4008 = vmatprep.subr.bf16.mxu0 0
  %4009 = vmatpush1.bf16.msra.mxu0 0
  %4010 = vmatprep.subr.bf16.mxu0 0
  %4011 = vmatpush1.bf16.msra.mxu0 0
  %4012 = vmatprep.subr.bf16.mxu0 0
  %4013 = vmatpush1.bf16.msra.mxu0 0
  %4014 = vmatprep.mubr.bf16.mxu0 0
  %4015 = vmatmul.mubr.bf16.gmra.mrb[0].mxu0 %v3980
  %v4016 = vpop.f32.mrb[0].mxu0
  %v4017 = vadd.f32 %v3932, %v4016
  %v4018 = vpop.f32.mrb[0].mxu0
  %v4019 = vadd.f32 %v3934, %v4018
  %v4020 = vpop.f32.mrb[0].mxu0
  %v4021 = vpop.f32.mrb[0].mxu0
  %4022 = vdwg.mxu0
  %4023 = vmatprep.subr.bf16.mxu0 %v212
  %4024 = vmatpush1.bf16.msra.mxu0 %v211
  %4025 = vmatprep.subr.bf16.mxu0 %v216
  %4026 = vmatpush1.bf16.msra.mxu0 %v215
  %4027 = vmatprep.subr.bf16.mxu0 0
  %4028 = vmatpush1.bf16.msra.mxu0 0
  %4029 = vmatprep.subr.bf16.mxu0 0
  %4030 = vmatpush1.bf16.msra.mxu0 0
  %4031 = vmatprep.subr.bf16.mxu0 0
  %4032 = vmatpush1.bf16.msra.mxu0 0
  %4033 = vmatprep.subr.bf16.mxu0 0
  %4034 = vmatpush1.bf16.msra.mxu0 0
  %4035 = vmatprep.subr.bf16.mxu0 0
  %4036 = vmatpush1.bf16.msra.mxu0 0
  %4037 = vmatprep.subr.bf16.mxu0 0
  %4038 = vmatpush1.bf16.msra.mxu0 0
  %4039 = vmatprep.subr.bf16.mxu0 0
  %4040 = vmatpush1.bf16.msra.mxu0 0
  %4041 = vmatprep.subr.bf16.mxu0 0
  %4042 = vmatpush1.bf16.msra.mxu0 0
  %4043 = vmatprep.subr.bf16.mxu0 0
  %4044 = vmatpush1.bf16.msra.mxu0 0
  %4045 = vmatprep.subr.bf16.mxu0 0
  %4046 = vmatpush1.bf16.msra.mxu0 0
  %4047 = vmatprep.subr.bf16.mxu0 0
  %4048 = vmatpush1.bf16.msra.mxu0 0
  %4049 = vmatprep.subr.bf16.mxu0 0
  %4050 = vmatpush1.bf16.msra.mxu0 0
  %4051 = vmatprep.subr.bf16.mxu0 0
  %4052 = vmatpush1.bf16.msra.mxu0 0
  %4053 = vmatprep.subr.bf16.mxu0 0
  %4054 = vmatpush1.bf16.msra.mxu0 0
  %4055 = vmatprep.mubr.bf16.mxu0 0
  %4056 = vmatmul.mubr.bf16.gmra.mrb[0].mxu0 %v3980
  %v4057 = vpop.f32.mrb[0].mxu0
  %v4058 = vadd.f32 %v3973, %v4057
  %v4059 = vpop.f32.mrb[0].mxu0
  %v4060 = vadd.f32 %v3975, %v4059
  %v4061 = vpop.f32.mrb[0].mxu0
  %v4062 = vpop.f32.mrb[0].mxu0
  %4063 = vdwg.mxu0
  %v4064 = vadd.f32 %v4017, %v310
  %v4065 = vadd.f32 %v4019, %v311
  %v4066 = vadd.f32 %v4058, %v312
  %v4067 = vadd.f32 %v4060, %v313
  %v4068 = vxor.u32 %v4064, 2147483648
  %v4069 = vmul.f32 %v4068, 1.442695
  %v4070 = vpow.pop %v4069
  %v4071 = vadd.f32 %v4070, 1.0
  %v4072 = vrcp.pop %v4071
  %v4073 = vmul.f32 1.0, %v4072
  %v4074 = vxor.u32 %v4065, 2147483648
  %v4075 = vmul.f32 %v4074, 1.442695
  %v4076 = vpow.pop %v4075
  %v4077 = vadd.f32 %v4076, 1.0
  %v4078 = vrcp.pop %v4077
  %v4079 = vmul.f32 1.0, %v4078
  %v4080 = vxor.u32 %v4066, 2147483648
  %v4081 = vmul.f32 %v4080, 1.442695
  %v4082 = vpow.pop %v4081
  %v4083 = vadd.f32 %v4082, 1.0
  %v4084 = vrcp.pop %v4083
  %v4085 = vmul.f32 1.0, %v4084
  %v4086 = vtanh.pop %v4067
  %v4087 = vmul.f32 %v4079, %v3497
  %v4088 = vmul.f32 %v4073, %v4086
  %v4089 = vadd.f32 %v4087, %v4088
  %v4090 = vtanh.pop %v4089
  %v4091 = vmul.f32 %v4085, %v4090
  %v4093 = vsel %vm99, %v3891, 0
  %4095 = vmatprep.subr.bf16.mxu0 %v583
  %4096 = vmatpush1.bf16.msra.mxu0 %v582
  %4097 = vmatprep.subr.bf16.mxu0 %v587
  %4098 = vmatpush1.bf16.msra.mxu0 %v586
  %4099 = vmatprep.subr.bf16.mxu0 0
  %4100 = vmatpush1.bf16.msra.mxu0 0
  %4101 = vmatprep.subr.bf16.mxu0 0
  %4102 = vmatpush1.bf16.msra.mxu0 0
  %4103 = vmatprep.subr.bf16.mxu0 0
  %4104 = vmatpush1.bf16.msra.mxu0 0
  %4105 = vmatprep.subr.bf16.mxu0 0
  %4106 = vmatpush1.bf16.msra.mxu0 0
  %4107 = vmatprep.subr.bf16.mxu0 0
  %4108 = vmatpush1.bf16.msra.mxu0 0
  %4109 = vmatprep.subr.bf16.mxu0 0
  %4110 = vmatpush1.bf16.msra.mxu0 0
  %4111 = vmatprep.subr.bf16.mxu0 0
  %4112 = vmatpush1.bf16.msra.mxu0 0
  %4113 = vmatprep.subr.bf16.mxu0 0
  %4114 = vmatpush1.bf16.msra.mxu0 0
  %4115 = vmatprep.subr.bf16.mxu0 0
  %4116 = vmatpush1.bf16.msra.mxu0 0
  %4117 = vmatprep.subr.bf16.mxu0 0
  %4118 = vmatpush1.bf16.msra.mxu0 0
  %4119 = vmatprep.subr.bf16.mxu0 0
  %4120 = vmatpush1.bf16.msra.mxu0 0
  %4121 = vmatprep.subr.bf16.mxu0 0
  %4122 = vmatpush1.bf16.msra.mxu0 0
  %4123 = vmatprep.subr.bf16.mxu0 0
  %4124 = vmatpush1.bf16.msra.mxu0 0
  %4125 = vmatprep.subr.bf16.mxu0 0
  %4126 = vmatpush1.bf16.msra.mxu0 0
  %4127 = vmatprep.mubr.bf16.mxu0 0
  %4128 = vmatmul.mubr.bf16.gmra.mrb[0].mxu0 %v4093
  %v4129 = vpop.f32.mrb[0].mxu0
  %v4130 = vadd.f32 0.0, %v4129
  %v4131 = vpop.f32.mrb[0].mxu0
  %v4132 = vadd.f32 0.0, %v4131
  %v4133 = vpop.f32.mrb[0].mxu0
  %v4134 = vpop.f32.mrb[0].mxu0
  %4135 = vdwg.mxu0
  %4136 = vmatprep.subr.bf16.mxu0 %v585
  %4137 = vmatpush1.bf16.msra.mxu0 %v584
  %4138 = vmatprep.subr.bf16.mxu0 %v589
  %4139 = vmatpush1.bf16.msra.mxu0 %v588
  %4140 = vmatprep.subr.bf16.mxu0 0
  %4141 = vmatpush1.bf16.msra.mxu0 0
  %4142 = vmatprep.subr.bf16.mxu0 0
  %4143 = vmatpush1.bf16.msra.mxu0 0
  %4144 = vmatprep.subr.bf16.mxu0 0
  %4145 = vmatpush1.bf16.msra.mxu0 0
  %4146 = vmatprep.subr.bf16.mxu0 0
  %4147 = vmatpush1.bf16.msra.mxu0 0
  %4148 = vmatprep.subr.bf16.mxu0 0
  %4149 = vmatpush1.bf16.msra.mxu0 0
  %4150 = vmatprep.subr.bf16.mxu0 0
  %4151 = vmatpush1.bf16.msra.mxu0 0
  %4152 = vmatprep.subr.bf16.mxu0 0
  %4153 = vmatpush1.bf16.msra.mxu0 0
  %4154 = vmatprep.subr.bf16.mxu0 0
  %4155 = vmatpush1.bf16.msra.mxu0 0
  %4156 = vmatprep.subr.bf16.mxu0 0
  %4157 = vmatpush1.bf16.msra.mxu0 0
  %4158 = vmatprep.subr.bf16.mxu0 0
  %4159 = vmatpush1.bf16.msra.mxu0 0
  %4160 = vmatprep.subr.bf16.mxu0 0
  %4161 = vmatpush1.bf16.msra.mxu0 0
  %4162 = vmatprep.subr.bf16.mxu0 0
  %4163 = vmatpush1.bf16.msra.mxu0 0
  %4164 = vmatprep.subr.bf16.mxu0 0
  %4165 = vmatpush1.bf16.msra.mxu0 0
  %4166 = vmatprep.subr.bf16.mxu0 0
  %4167 = vmatpush1.bf16.msra.mxu0 0
  %4168 = vmatprep.mubr.bf16.mxu0 0
  %4169 = vmatmul.mubr.bf16.gmra.mrb[0].mxu0 %v4093
  %v4170 = vpop.f32.mrb[0].mxu0
  %v4171 = vadd.f32 0.0, %v4170
  %v4172 = vpop.f32.mrb[0].mxu0
  %v4173 = vadd.f32 0.0, %v4172
  %v4174 = vpop.f32.mrb[0].mxu0
  %v4175 = vpop.f32.mrb[0].mxu0
  %4176 = vdwg.mxu0
  %4177 = vmatprep.subr.bf16.mxu0 %v705
  %4178 = vmatpush1.bf16.msra.mxu0 %v704
  %4179 = vmatprep.subr.bf16.mxu0 %v709
  %4180 = vmatpush1.bf16.msra.mxu0 %v708
  %4181 = vmatprep.subr.bf16.mxu0 0
  %4182 = vmatpush1.bf16.msra.mxu0 0
  %4183 = vmatprep.subr.bf16.mxu0 0
  %4184 = vmatpush1.bf16.msra.mxu0 0
  %4185 = vmatprep.subr.bf16.mxu0 0
  %4186 = vmatpush1.bf16.msra.mxu0 0
  %4187 = vmatprep.subr.bf16.mxu0 0
  %4188 = vmatpush1.bf16.msra.mxu0 0
  %4189 = vmatprep.subr.bf16.mxu0 0
  %4190 = vmatpush1.bf16.msra.mxu0 0
  %4191 = vmatprep.subr.bf16.mxu0 0
  %4192 = vmatpush1.bf16.msra.mxu0 0
  %4193 = vmatprep.subr.bf16.mxu0 0
  %4194 = vmatpush1.bf16.msra.mxu0 0
  %4195 = vmatprep.subr.bf16.mxu0 0
  %4196 = vmatpush1.bf16.msra.mxu0 0
  %4197 = vmatprep.subr.bf16.mxu0 0
  %4198 = vmatpush1.bf16.msra.mxu0 0
  %4199 = vmatprep.subr.bf16.mxu0 0
  %4200 = vmatpush1.bf16.msra.mxu0 0
  %4201 = vmatprep.subr.bf16.mxu0 0
  %4202 = vmatpush1.bf16.msra.mxu0 0
  %4203 = vmatprep.subr.bf16.mxu0 0
  %4204 = vmatpush1.bf16.msra.mxu0 0
  %4205 = vmatprep.subr.bf16.mxu0 0
  %4206 = vmatpush1.bf16.msra.mxu0 0
  %4207 = vmatprep.subr.bf16.mxu0 0
  %4208 = vmatpush1.bf16.msra.mxu0 0
  %4209 = vmatprep.mubr.bf16.mxu0 0
  %4210 = vmatmul.mubr.bf16.gmra.mrb[0].mxu0 %v3895
  %v4211 = vpop.f32.mrb[0].mxu0
  %v4212 = vadd.f32 %v4130, %v4211
  %v4213 = vpop.f32.mrb[0].mxu0
  %v4214 = vadd.f32 %v4132, %v4213
  %v4215 = vpop.f32.mrb[0].mxu0
  %v4216 = vpop.f32.mrb[0].mxu0
  %4217 = vdwg.mxu0
  %4218 = vmatprep.subr.bf16.mxu0 %v707
  %4219 = vmatpush1.bf16.msra.mxu0 %v706
  %4220 = vmatprep.subr.bf16.mxu0 %v711
  %4221 = vmatpush1.bf16.msra.mxu0 %v710
  %4222 = vmatprep.subr.bf16.mxu0 0
  %4223 = vmatpush1.bf16.msra.mxu0 0
  %4224 = vmatprep.subr.bf16.mxu0 0
  %4225 = vmatpush1.bf16.msra.mxu0 0
  %4226 = vmatprep.subr.bf16.mxu0 0
  %4227 = vmatpush1.bf16.msra.mxu0 0
  %4228 = vmatprep.subr.bf16.mxu0 0
  %4229 = vmatpush1.bf16.msra.mxu0 0
  %4230 = vmatprep.subr.bf16.mxu0 0
  %4231 = vmatpush1.bf16.msra.mxu0 0
  %4232 = vmatprep.subr.bf16.mxu0 0
  %4233 = vmatpush1.bf16.msra.mxu0 0
  %4234 = vmatprep.subr.bf16.mxu0 0
  %4235 = vmatpush1.bf16.msra.mxu0 0
  %4236 = vmatprep.subr.bf16.mxu0 0
  %4237 = vmatpush1.bf16.msra.mxu0 0
  %4238 = vmatprep.subr.bf16.mxu0 0
  %4239 = vmatpush1.bf16.msra.mxu0 0
  %4240 = vmatprep.subr.bf16.mxu0 0
  %4241 = vmatpush1.bf16.msra.mxu0 0
  %4242 = vmatprep.subr.bf16.mxu0 0
  %4243 = vmatpush1.bf16.msra.mxu0 0
  %4244 = vmatprep.subr.bf16.mxu0 0
  %4245 = vmatpush1.bf16.msra.mxu0 0
  %4246 = vmatprep.subr.bf16.mxu0 0
  %4247 = vmatpush1.bf16.msra.mxu0 0
  %4248 = vmatprep.subr.bf16.mxu0 0
  %4249 = vmatpush1.bf16.msra.mxu0 0
  %4250 = vmatprep.mubr.bf16.mxu0 0
  %4251 = vmatmul.mubr.bf16.gmra.mrb[0].mxu0 %v3895
  %v4252 = vpop.f32.mrb[0].mxu0
  %v4253 = vadd.f32 %v4171, %v4252
  %v4254 = vpop.f32.mrb[0].mxu0
  %v4255 = vadd.f32 %v4173, %v4254
  %v4256 = vpop.f32.mrb[0].mxu0
  %v4257 = vpop.f32.mrb[0].mxu0
  %4258 = vdwg.mxu0
  %v4259 = vadd.f32 %v4212, %v802
  %v4260 = vadd.f32 %v4214, %v803
  %v4261 = vadd.f32 %v4253, %v804
  %v4262 = vadd.f32 %v4255, %v805
  %v4263 = vxor.u32 %v4259, 2147483648
  %v4264 = vmul.f32 %v4263, 1.442695
  %v4265 = vpow.pop %v4264
  %v4266 = vadd.f32 %v4265, 1.0
  %v4267 = vrcp.pop %v4266
  %v4268 = vmul.f32 1.0, %v4267
  %v4269 = vxor.u32 %v4260, 2147483648
  %v4270 = vmul.f32 %v4269, 1.442695
  %v4271 = vpow.pop %v4270
  %v4272 = vadd.f32 %v4271, 1.0
  %v4273 = vrcp.pop %v4272
  %v4274 = vmul.f32 1.0, %v4273
  %v4275 = vxor.u32 %v4261, 2147483648
  %v4276 = vmul.f32 %v4275, 1.442695
  %v4277 = vpow.pop %v4276
  %v4278 = vadd.f32 %v4277, 1.0
  %v4279 = vrcp.pop %v4278
  %v4280 = vmul.f32 1.0, %v4279
  %v4281 = vtanh.pop %v4262
  %v4282 = vmul.f32 %v4274, %v3692
  %v4283 = vmul.f32 %v4268, %v4281
  %v4284 = vadd.f32 %v4282, %v4283
  %v4285 = vtanh.pop %v4284
  %v4286 = vmul.f32 %v4280, %v4285
  %v4288 = vsel %vm99, %v3892, 0
  %4290 = vmatprep.subr.bf16.mxu0 %v1271
  %4291 = vmatpush1.bf16.msra.mxu0 %v1270
  %4292 = vmatprep.subr.bf16.mxu0 %v1275
  %4293 = vmatpush1.bf16.msra.mxu0 %v1274
  %4294 = vmatprep.subr.bf16.mxu0 0
  %4295 = vmatpush1.bf16.msra.mxu0 0
  %4296 = vmatprep.subr.bf16.mxu0 0
  %4297 = vmatpush1.bf16.msra.mxu0 0
  %4298 = vmatprep.subr.bf16.mxu0 0
  %4299 = vmatpush1.bf16.msra.mxu0 0
  %4300 = vmatprep.subr.bf16.mxu0 0
  %4301 = vmatpush1.bf16.msra.mxu0 0
  %4302 = vmatprep.subr.bf16.mxu0 0
  %4303 = vmatpush1.bf16.msra.mxu0 0
  %4304 = vmatprep.subr.bf16.mxu0 0
  %4305 = vmatpush1.bf16.msra.mxu0 0
  %4306 = vmatprep.subr.bf16.mxu0 0
  %4307 = vmatpush1.bf16.msra.mxu0 0
  %4308 = vmatprep.subr.bf16.mxu0 0
  %4309 = vmatpush1.bf16.msra.mxu0 0
  %4310 = vmatprep.subr.bf16.mxu0 0
  %4311 = vmatpush1.bf16.msra.mxu0 0
  %4312 = vmatprep.subr.bf16.mxu0 0
  %4313 = vmatpush1.bf16.msra.mxu0 0
  %4314 = vmatprep.subr.bf16.mxu0 0
  %4315 = vmatpush1.bf16.msra.mxu0 0
  %4316 = vmatprep.subr.bf16.mxu0 0
  %4317 = vmatpush1.bf16.msra.mxu0 0
  %4318 = vmatprep.subr.bf16.mxu0 0
  %4319 = vmatpush1.bf16.msra.mxu0 0
  %4320 = vmatprep.subr.bf16.mxu0 0
  %4321 = vmatpush1.bf16.msra.mxu0 0
  %4322 = vmatprep.mubr.bf16.mxu0 0
  %4323 = vmatmul.mubr.bf16.gmra.mrb[0].mxu0 %v4288
  %v4324 = vpop.f32.mrb[0].mxu0
  %v4325 = vadd.f32 0.0, %v4324
  %v4326 = vpop.f32.mrb[0].mxu0
  %v4327 = vadd.f32 0.0, %v4326
  %v4328 = vpop.f32.mrb[0].mxu0
  %v4329 = vpop.f32.mrb[0].mxu0
  %4330 = vdwg.mxu0
  %4331 = vmatprep.subr.bf16.mxu0 %v1273
  %4332 = vmatpush1.bf16.msra.mxu0 %v1272
  %4333 = vmatprep.subr.bf16.mxu0 %v1277
  %4334 = vmatpush1.bf16.msra.mxu0 %v1276
  %4335 = vmatprep.subr.bf16.mxu0 0
  %4336 = vmatpush1.bf16.msra.mxu0 0
  %4337 = vmatprep.subr.bf16.mxu0 0
  %4338 = vmatpush1.bf16.msra.mxu0 0
  %4339 = vmatprep.subr.bf16.mxu0 0
  %4340 = vmatpush1.bf16.msra.mxu0 0
  %4341 = vmatprep.subr.bf16.mxu0 0
  %4342 = vmatpush1.bf16.msra.mxu0 0
  %4343 = vmatprep.subr.bf16.mxu0 0
  %4344 = vmatpush1.bf16.msra.mxu0 0
  %4345 = vmatprep.subr.bf16.mxu0 0
  %4346 = vmatpush1.bf16.msra.mxu0 0
  %4347 = vmatprep.subr.bf16.mxu0 0
  %4348 = vmatpush1.bf16.msra.mxu0 0
  %4349 = vmatprep.subr.bf16.mxu0 0
  %4350 = vmatpush1.bf16.msra.mxu0 0
  %4351 = vmatprep.subr.bf16.mxu0 0
  %4352 = vmatpush1.bf16.msra.mxu0 0
  %4353 = vmatprep.subr.bf16.mxu0 0
  %4354 = vmatpush1.bf16.msra.mxu0 0
  %4355 = vmatprep.subr.bf16.mxu0 0
  %4356 = vmatpush1.bf16.msra.mxu0 0
  %4357 = vmatprep.subr.bf16.mxu0 0
  %4358 = vmatpush1.bf16.msra.mxu0 0
  %4359 = vmatprep.subr.bf16.mxu0 0
  %4360 = vmatpush1.bf16.msra.mxu0 0
  %4361 = vmatprep.subr.bf16.mxu0 0
  %4362 = vmatpush1.bf16.msra.mxu0 0
  %4363 = vmatprep.mubr.bf16.mxu0 0
  %4364 = vmatmul.mubr.bf16.gmra.mrb[0].mxu0 %v4288
  %v4365 = vpop.f32.mrb[0].mxu0
  %v4366 = vadd.f32 0.0, %v4365
  %v4367 = vpop.f32.mrb[0].mxu0
  %v4368 = vadd.f32 0.0, %v4367
  %v4369 = vpop.f32.mrb[0].mxu0
  %v4370 = vpop.f32.mrb[0].mxu0
  %4371 = vdwg.mxu0
  %4372 = vmatprep.subr.bf16.mxu0 %v1393
  %4373 = vmatpush1.bf16.msra.mxu0 %v1392
  %4374 = vmatprep.subr.bf16.mxu0 %v1397
  %4375 = vmatpush1.bf16.msra.mxu0 %v1396
  %4376 = vmatprep.subr.bf16.mxu0 0
  %4377 = vmatpush1.bf16.msra.mxu0 0
  %4378 = vmatprep.subr.bf16.mxu0 0
  %4379 = vmatpush1.bf16.msra.mxu0 0
  %4380 = vmatprep.subr.bf16.mxu0 0
  %4381 = vmatpush1.bf16.msra.mxu0 0
  %4382 = vmatprep.subr.bf16.mxu0 0
  %4383 = vmatpush1.bf16.msra.mxu0 0
  %4384 = vmatprep.subr.bf16.mxu0 0
  %4385 = vmatpush1.bf16.msra.mxu0 0
  %4386 = vmatprep.subr.bf16.mxu0 0
  %4387 = vmatpush1.bf16.msra.mxu0 0
  %4388 = vmatprep.subr.bf16.mxu0 0
  %4389 = vmatpush1.bf16.msra.mxu0 0
  %4390 = vmatprep.subr.bf16.mxu0 0
  %4391 = vmatpush1.bf16.msra.mxu0 0
  %4392 = vmatprep.subr.bf16.mxu0 0
  %4393 = vmatpush1.bf16.msra.mxu0 0
  %4394 = vmatprep.subr.bf16.mxu0 0
  %4395 = vmatpush1.bf16.msra.mxu0 0
  %4396 = vmatprep.subr.bf16.mxu0 0
  %4397 = vmatpush1.bf16.msra.mxu0 0
  %4398 = vmatprep.subr.bf16.mxu0 0
  %4399 = vmatpush1.bf16.msra.mxu0 0
  %4400 = vmatprep.subr.bf16.mxu0 0
  %4401 = vmatpush1.bf16.msra.mxu0 0
  %4402 = vmatprep.subr.bf16.mxu0 0
  %4403 = vmatpush1.bf16.msra.mxu0 0
  %4404 = vmatprep.mubr.bf16.mxu0 0
  %4405 = vmatmul.mubr.bf16.gmra.mrb[0].mxu0 %v4093
  %v4406 = vpop.f32.mrb[0].mxu0
  %v4407 = vadd.f32 %v4325, %v4406
  %v4408 = vpop.f32.mrb[0].mxu0
  %v4409 = vadd.f32 %v4327, %v4408
  %v4410 = vpop.f32.mrb[0].mxu0
  %v4411 = vpop.f32.mrb[0].mxu0
  %4412 = vdwg.mxu0
  %4413 = vmatprep.subr.bf16.mxu0 %v1395
  %4414 = vmatpush1.bf16.msra.mxu0 %v1394
  %4415 = vmatprep.subr.bf16.mxu0 %v1399
  %4416 = vmatpush1.bf16.msra.mxu0 %v1398
  %4417 = vmatprep.subr.bf16.mxu0 0
  %4418 = vmatpush1.bf16.msra.mxu0 0
  %4419 = vmatprep.subr.bf16.mxu0 0
  %4420 = vmatpush1.bf16.msra.mxu0 0
  %4421 = vmatprep.subr.bf16.mxu0 0
  %4422 = vmatpush1.bf16.msra.mxu0 0
  %4423 = vmatprep.subr.bf16.mxu0 0
  %4424 = vmatpush1.bf16.msra.mxu0 0
  %4425 = vmatprep.subr.bf16.mxu0 0
  %4426 = vmatpush1.bf16.msra.mxu0 0
  %4427 = vmatprep.subr.bf16.mxu0 0
  %4428 = vmatpush1.bf16.msra.mxu0 0
  %4429 = vmatprep.subr.bf16.mxu0 0
  %4430 = vmatpush1.bf16.msra.mxu0 0
  %4431 = vmatprep.subr.bf16.mxu0 0
  %4432 = vmatpush1.bf16.msra.mxu0 0
  %4433 = vmatprep.subr.bf16.mxu0 0
  %4434 = vmatpush1.bf16.msra.mxu0 0
  %4435 = vmatprep.subr.bf16.mxu0 0
  %4436 = vmatpush1.bf16.msra.mxu0 0
  %4437 = vmatprep.subr.bf16.mxu0 0
  %4438 = vmatpush1.bf16.msra.mxu0 0
  %4439 = vmatprep.subr.bf16.mxu0 0
  %4440 = vmatpush1.bf16.msra.mxu0 0
  %4441 = vmatprep.subr.bf16.mxu0 0
  %4442 = vmatpush1.bf16.msra.mxu0 0
  %4443 = vmatprep.subr.bf16.mxu0 0
  %4444 = vmatpush1.bf16.msra.mxu0 0
  %4445 = vmatprep.mubr.bf16.mxu0 0
  %4446 = vmatmul.mubr.bf16.gmra.mrb[0].mxu0 %v4093
  %v4447 = vpop.f32.mrb[0].mxu0
  %v4448 = vadd.f32 %v4366, %v4447
  %v4449 = vpop.f32.mrb[0].mxu0
  %v4450 = vadd.f32 %v4368, %v4449
  %v4451 = vpop.f32.mrb[0].mxu0
  %v4452 = vpop.f32.mrb[0].mxu0
  %4453 = vdwg.mxu0
  %v4454 = vadd.f32 %v4407, %v1490
  %v4455 = vadd.f32 %v4409, %v1491
  %v4456 = vadd.f32 %v4448, %v1492
  %v4457 = vadd.f32 %v4450, %v1493
  %v4458 = vxor.u32 %v4454, 2147483648
  %v4459 = vmul.f32 %v4458, 1.442695
  %v4460 = vpow.pop %v4459
  %v4461 = vadd.f32 %v4460, 1.0
  %v4462 = vrcp.pop %v4461
  %v4463 = vmul.f32 1.0, %v4462
  %v4464 = vxor.u32 %v4455, 2147483648
  %v4465 = vmul.f32 %v4464, 1.442695
  %v4466 = vpow.pop %v4465
  %v4467 = vadd.f32 %v4466, 1.0
  %v4468 = vrcp.pop %v4467
  %v4469 = vmul.f32 1.0, %v4468
  %v4470 = vxor.u32 %v4456, 2147483648
  %v4471 = vmul.f32 %v4470, 1.442695
  %v4472 = vpow.pop %v4471
  %v4473 = vadd.f32 %v4472, 1.0
  %v4474 = vrcp.pop %v4473
  %v4475 = vmul.f32 1.0, %v4474
  %v4476 = vtanh.pop %v4457
  %v4477 = vmul.f32 %v4469, %v3887
  %v4478 = vmul.f32 %v4463, %v4476
  %v4479 = vadd.f32 %v4477, %v4478
  %v4480 = vtanh.pop %v4479
  %v4481 = vmul.f32 %v4475, %v4480
  %v4482 = vpack.c.bf16 %v4091, %v4091
  %v4483 = vpack.c.bf16 %v4286, %v4286
  %v4484 = vpack.c.bf16 %v4481, %v4481
  %v4486 = vsel %vm99, %v4483, 0
  %4488 = vmatprep.subr.bf16.mxu0 %v583
  %4489 = vmatpush1.bf16.msra.mxu0 %v582
  %4490 = vmatprep.subr.bf16.mxu0 %v587
  %4491 = vmatpush1.bf16.msra.mxu0 %v586
  %4492 = vmatprep.subr.bf16.mxu0 0
  %4493 = vmatpush1.bf16.msra.mxu0 0
  %4494 = vmatprep.subr.bf16.mxu0 0
  %4495 = vmatpush1.bf16.msra.mxu0 0
  %4496 = vmatprep.subr.bf16.mxu0 0
  %4497 = vmatpush1.bf16.msra.mxu0 0
  %4498 = vmatprep.subr.bf16.mxu0 0
  %4499 = vmatpush1.bf16.msra.mxu0 0
  %4500 = vmatprep.subr.bf16.mxu0 0
  %4501 = vmatpush1.bf16.msra.mxu0 0
  %4502 = vmatprep.subr.bf16.mxu0 0
  %4503 = vmatpush1.bf16.msra.mxu0 0
  %4504 = vmatprep.subr.bf16.mxu0 0
  %4505 = vmatpush1.bf16.msra.mxu0 0
  %4506 = vmatprep.subr.bf16.mxu0 0
  %4507 = vmatpush1.bf16.msra.mxu0 0
  %4508 = vmatprep.subr.bf16.mxu0 0
  %4509 = vmatpush1.bf16.msra.mxu0 0
  %4510 = vmatprep.subr.bf16.mxu0 0
  %4511 = vmatpush1.bf16.msra.mxu0 0
  %4512 = vmatprep.subr.bf16.mxu0 0
  %4513 = vmatpush1.bf16.msra.mxu0 0
  %4514 = vmatprep.subr.bf16.mxu0 0
  %4515 = vmatpush1.bf16.msra.mxu0 0
  %4516 = vmatprep.subr.bf16.mxu0 0
  %4517 = vmatpush1.bf16.msra.mxu0 0
  %4518 = vmatprep.subr.bf16.mxu0 0
  %4519 = vmatpush1.bf16.msra.mxu0 0
  %4520 = vmatprep.mubr.bf16.mxu0 0
  %4521 = vmatmul.mubr.bf16.gmra.mrb[0].mxu0 %v4486
  %v4522 = vpop.f32.mrb[0].mxu0
  %v4523 = vadd.f32 0.0, %v4522
  %v4524 = vpop.f32.mrb[0].mxu0
  %v4525 = vadd.f32 0.0, %v4524
  %v4526 = vpop.f32.mrb[0].mxu0
  %v4527 = vpop.f32.mrb[0].mxu0
  %4528 = vdwg.mxu0
  %4529 = vmatprep.subr.bf16.mxu0 %v585
  %4530 = vmatpush1.bf16.msra.mxu0 %v584
  %4531 = vmatprep.subr.bf16.mxu0 %v589
  %4532 = vmatpush1.bf16.msra.mxu0 %v588
  %4533 = vmatprep.subr.bf16.mxu0 0
  %4534 = vmatpush1.bf16.msra.mxu0 0
  %4535 = vmatprep.subr.bf16.mxu0 0
  %4536 = vmatpush1.bf16.msra.mxu0 0
  %4537 = vmatprep.subr.bf16.mxu0 0
  %4538 = vmatpush1.bf16.msra.mxu0 0
  %4539 = vmatprep.subr.bf16.mxu0 0
  %4540 = vmatpush1.bf16.msra.mxu0 0
  %4541 = vmatprep.subr.bf16.mxu0 0
  %4542 = vmatpush1.bf16.msra.mxu0 0
  %4543 = vmatprep.subr.bf16.mxu0 0
  %4544 = vmatpush1.bf16.msra.mxu0 0
  %4545 = vmatprep.subr.bf16.mxu0 0
  %4546 = vmatpush1.bf16.msra.mxu0 0
  %4547 = vmatprep.subr.bf16.mxu0 0
  %4548 = vmatpush1.bf16.msra.mxu0 0
  %4549 = vmatprep.subr.bf16.mxu0 0
  %4550 = vmatpush1.bf16.msra.mxu0 0
  %4551 = vmatprep.subr.bf16.mxu0 0
  %4552 = vmatpush1.bf16.msra.mxu0 0
  %4553 = vmatprep.subr.bf16.mxu0 0
  %4554 = vmatpush1.bf16.msra.mxu0 0
  %4555 = vmatprep.subr.bf16.mxu0 0
  %4556 = vmatpush1.bf16.msra.mxu0 0
  %4557 = vmatprep.subr.bf16.mxu0 0
  %4558 = vmatpush1.bf16.msra.mxu0 0
  %4559 = vmatprep.subr.bf16.mxu0 0
  %4560 = vmatpush1.bf16.msra.mxu0 0
  %4561 = vmatprep.mubr.bf16.mxu0 0
  %4562 = vmatmul.mubr.bf16.gmra.mrb[0].mxu0 %v4486
  %v4563 = vpop.f32.mrb[0].mxu0
  %v4564 = vadd.f32 0.0, %v4563
  %v4565 = vpop.f32.mrb[0].mxu0
  %v4566 = vadd.f32 0.0, %v4565
  %v4567 = vpop.f32.mrb[0].mxu0
  %v4568 = vpop.f32.mrb[0].mxu0
  %4569 = vdwg.mxu0
  %v4571 = vsel %vm99, %v4482, 0
  %4573 = vmatprep.subr.bf16.mxu0 %v705
  %4574 = vmatpush1.bf16.msra.mxu0 %v704
  %4575 = vmatprep.subr.bf16.mxu0 %v709
  %4576 = vmatpush1.bf16.msra.mxu0 %v708
  %4577 = vmatprep.subr.bf16.mxu0 0
  %4578 = vmatpush1.bf16.msra.mxu0 0
  %4579 = vmatprep.subr.bf16.mxu0 0
  %4580 = vmatpush1.bf16.msra.mxu0 0
  %4581 = vmatprep.subr.bf16.mxu0 0
  %4582 = vmatpush1.bf16.msra.mxu0 0
  %4583 = vmatprep.subr.bf16.mxu0 0
  %4584 = vmatpush1.bf16.msra.mxu0 0
  %4585 = vmatprep.subr.bf16.mxu0 0
  %4586 = vmatpush1.bf16.msra.mxu0 0
  %4587 = vmatprep.subr.bf16.mxu0 0
  %4588 = vmatpush1.bf16.msra.mxu0 0
  %4589 = vmatprep.subr.bf16.mxu0 0
  %4590 = vmatpush1.bf16.msra.mxu0 0
  %4591 = vmatprep.subr.bf16.mxu0 0
  %4592 = vmatpush1.bf16.msra.mxu0 0
  %4593 = vmatprep.subr.bf16.mxu0 0
  %4594 = vmatpush1.bf16.msra.mxu0 0
  %4595 = vmatprep.subr.bf16.mxu0 0
  %4596 = vmatpush1.bf16.msra.mxu0 0
  %4597 = vmatprep.subr.bf16.mxu0 0
  %4598 = vmatpush1.bf16.msra.mxu0 0
  %4599 = vmatprep.subr.bf16.mxu0 0
  %4600 = vmatpush1.bf16.msra.mxu0 0
  %4601 = vmatprep.subr.bf16.mxu0 0
  %4602 = vmatpush1.bf16.msra.mxu0 0
  %4603 = vmatprep.subr.bf16.mxu0 0
  %4604 = vmatpush1.bf16.msra.mxu0 0
  %4605 = vmatprep.mubr.bf16.mxu0 0
  %4606 = vmatmul.mubr.bf16.gmra.mrb[0].mxu0 %v4571
  %v4607 = vpop.f32.mrb[0].mxu0
  %v4608 = vadd.f32 %v4523, %v4607
  %v4609 = vpop.f32.mrb[0].mxu0
  %v4610 = vadd.f32 %v4525, %v4609
  %v4611 = vpop.f32.mrb[0].mxu0
  %v4612 = vpop.f32.mrb[0].mxu0
  %4613 = vdwg.mxu0
  %4614 = vmatprep.subr.bf16.mxu0 %v707
  %4615 = vmatpush1.bf16.msra.mxu0 %v706
  %4616 = vmatprep.subr.bf16.mxu0 %v711
  %4617 = vmatpush1.bf16.msra.mxu0 %v710
  %4618 = vmatprep.subr.bf16.mxu0 0
  %4619 = vmatpush1.bf16.msra.mxu0 0
  %4620 = vmatprep.subr.bf16.mxu0 0
  %4621 = vmatpush1.bf16.msra.mxu0 0
  %4622 = vmatprep.subr.bf16.mxu0 0
  %4623 = vmatpush1.bf16.msra.mxu0 0
  %4624 = vmatprep.subr.bf16.mxu0 0
  %4625 = vmatpush1.bf16.msra.mxu0 0
  %4626 = vmatprep.subr.bf16.mxu0 0
  %4627 = vmatpush1.bf16.msra.mxu0 0
  %4628 = vmatprep.subr.bf16.mxu0 0
  %4629 = vmatpush1.bf16.msra.mxu0 0
  %4630 = vmatprep.subr.bf16.mxu0 0
  %4631 = vmatpush1.bf16.msra.mxu0 0
  %4632 = vmatprep.subr.bf16.mxu0 0
  %4633 = vmatpush1.bf16.msra.mxu0 0
  %4634 = vmatprep.subr.bf16.mxu0 0
  %4635 = vmatpush1.bf16.msra.mxu0 0
  %4636 = vmatprep.subr.bf16.mxu0 0
  %4637 = vmatpush1.bf16.msra.mxu0 0
  %4638 = vmatprep.subr.bf16.mxu0 0
  %4639 = vmatpush1.bf16.msra.mxu0 0
  %4640 = vmatprep.subr.bf16.mxu0 0
  %4641 = vmatpush1.bf16.msra.mxu0 0
  %4642 = vmatprep.subr.bf16.mxu0 0
  %4643 = vmatpush1.bf16.msra.mxu0 0
  %4644 = vmatprep.subr.bf16.mxu0 0
  %4645 = vmatpush1.bf16.msra.mxu0 0
  %4646 = vmatprep.mubr.bf16.mxu0 0
  %4647 = vmatmul.mubr.bf16.gmra.mrb[0].mxu0 %v4571
  %v4648 = vpop.f32.mrb[0].mxu0
  %v4649 = vadd.f32 %v4564, %v4648
  %v4650 = vpop.f32.mrb[0].mxu0
  %v4651 = vadd.f32 %v4566, %v4650
  %v4652 = vpop.f32.mrb[0].mxu0
  %v4653 = vpop.f32.mrb[0].mxu0
  %4654 = vdwg.mxu0
  %v4655 = vadd.f32 %v4608, %v802
  %v4656 = vadd.f32 %v4610, %v803
  %v4657 = vadd.f32 %v4649, %v804
  %v4658 = vadd.f32 %v4651, %v805
  %v4659 = vxor.u32 %v4655, 2147483648
  %v4660 = vmul.f32 %v4659, 1.442695
  %v4661 = vpow.pop %v4660
  %v4662 = vadd.f32 %v4661, 1.0
  %v4663 = vrcp.pop %v4662
  %v4664 = vmul.f32 1.0, %v4663
  %v4665 = vxor.u32 %v4656, 2147483648
  %v4666 = vmul.f32 %v4665, 1.442695
  %v4667 = vpow.pop %v4666
  %v4668 = vadd.f32 %v4667, 1.0
  %v4669 = vrcp.pop %v4668
  %v4670 = vmul.f32 1.0, %v4669
  %v4671 = vxor.u32 %v4657, 2147483648
  %v4672 = vmul.f32 %v4671, 1.442695
  %v4673 = vpow.pop %v4672
  %v4674 = vadd.f32 %v4673, 1.0
  %v4675 = vrcp.pop %v4674
  %v4676 = vmul.f32 1.0, %v4675
  %v4677 = vtanh.pop %v4658
  %v4678 = vmul.f32 %v4670, %v4284
  %v4679 = vmul.f32 %v4664, %v4677
  %v4680 = vadd.f32 %v4678, %v4679
  %v4681 = vtanh.pop %v4680
  %v4682 = vmul.f32 %v4676, %v4681
  %v4684 = vsel %vm99, %v4484, 0
  %4686 = vmatprep.subr.bf16.mxu0 %v1271
  %4687 = vmatpush1.bf16.msra.mxu0 %v1270
  %4688 = vmatprep.subr.bf16.mxu0 %v1275
  %4689 = vmatpush1.bf16.msra.mxu0 %v1274
  %4690 = vmatprep.subr.bf16.mxu0 0
  %4691 = vmatpush1.bf16.msra.mxu0 0
  %4692 = vmatprep.subr.bf16.mxu0 0
  %4693 = vmatpush1.bf16.msra.mxu0 0
  %4694 = vmatprep.subr.bf16.mxu0 0
  %4695 = vmatpush1.bf16.msra.mxu0 0
  %4696 = vmatprep.subr.bf16.mxu0 0
  %4697 = vmatpush1.bf16.msra.mxu0 0
  %4698 = vmatprep.subr.bf16.mxu0 0
  %4699 = vmatpush1.bf16.msra.mxu0 0
  %4700 = vmatprep.subr.bf16.mxu0 0
  %4701 = vmatpush1.bf16.msra.mxu0 0
  %4702 = vmatprep.subr.bf16.mxu0 0
  %4703 = vmatpush1.bf16.msra.mxu0 0
  %4704 = vmatprep.subr.bf16.mxu0 0
  %4705 = vmatpush1.bf16.msra.mxu0 0
  %4706 = vmatprep.subr.bf16.mxu0 0
  %4707 = vmatpush1.bf16.msra.mxu0 0
  %4708 = vmatprep.subr.bf16.mxu0 0
  %4709 = vmatpush1.bf16.msra.mxu0 0
  %4710 = vmatprep.subr.bf16.mxu0 0
  %4711 = vmatpush1.bf16.msra.mxu0 0
  %4712 = vmatprep.subr.bf16.mxu0 0
  %4713 = vmatpush1.bf16.msra.mxu0 0
  %4714 = vmatprep.subr.bf16.mxu0 0
  %4715 = vmatpush1.bf16.msra.mxu0 0
  %4716 = vmatprep.subr.bf16.mxu0 0
  %4717 = vmatpush1.bf16.msra.mxu0 0
  %4718 = vmatprep.mubr.bf16.mxu0 0
  %4719 = vmatmul.mubr.bf16.gmra.mrb[0].mxu0 %v4684
  %v4720 = vpop.f32.mrb[0].mxu0
  %v4721 = vadd.f32 0.0, %v4720
  %v4722 = vpop.f32.mrb[0].mxu0
  %v4723 = vadd.f32 0.0, %v4722
  %v4724 = vpop.f32.mrb[0].mxu0
  %v4725 = vpop.f32.mrb[0].mxu0
  %4726 = vdwg.mxu0
  %4727 = vmatprep.subr.bf16.mxu0 %v1273
  %4728 = vmatpush1.bf16.msra.mxu0 %v1272
  %4729 = vmatprep.subr.bf16.mxu0 %v1277
  %4730 = vmatpush1.bf16.msra.mxu0 %v1276
  %4731 = vmatprep.subr.bf16.mxu0 0
  %4732 = vmatpush1.bf16.msra.mxu0 0
  %4733 = vmatprep.subr.bf16.mxu0 0
  %4734 = vmatpush1.bf16.msra.mxu0 0
  %4735 = vmatprep.subr.bf16.mxu0 0
  %4736 = vmatpush1.bf16.msra.mxu0 0
  %4737 = vmatprep.subr.bf16.mxu0 0
  %4738 = vmatpush1.bf16.msra.mxu0 0
  %4739 = vmatprep.subr.bf16.mxu0 0
  %4740 = vmatpush1.bf16.msra.mxu0 0
  %4741 = vmatprep.subr.bf16.mxu0 0
  %4742 = vmatpush1.bf16.msra.mxu0 0
  %4743 = vmatprep.subr.bf16.mxu0 0
  %4744 = vmatpush1.bf16.msra.mxu0 0
  %4745 = vmatprep.subr.bf16.mxu0 0
  %4746 = vmatpush1.bf16.msra.mxu0 0
  %4747 = vmatprep.subr.bf16.mxu0 0
  %4748 = vmatpush1.bf16.msra.mxu0 0
  %4749 = vmatprep.subr.bf16.mxu0 0
  %4750 = vmatpush1.bf16.msra.mxu0 0
  %4751 = vmatprep.subr.bf16.mxu0 0
  %4752 = vmatpush1.bf16.msra.mxu0 0
  %4753 = vmatprep.subr.bf16.mxu0 0
  %4754 = vmatpush1.bf16.msra.mxu0 0
  %4755 = vmatprep.subr.bf16.mxu0 0
  %4756 = vmatpush1.bf16.msra.mxu0 0
  %4757 = vmatprep.subr.bf16.mxu0 0
  %4758 = vmatpush1.bf16.msra.mxu0 0
  %4759 = vmatprep.mubr.bf16.mxu0 0
  %4760 = vmatmul.mubr.bf16.gmra.mrb[0].mxu0 %v4684
  %v4761 = vpop.f32.mrb[0].mxu0
  %v4762 = vadd.f32 0.0, %v4761
  %v4763 = vpop.f32.mrb[0].mxu0
  %v4764 = vadd.f32 0.0, %v4763
  %v4765 = vpop.f32.mrb[0].mxu0
  %v4766 = vpop.f32.mrb[0].mxu0
  %4767 = vdwg.mxu0
  %4768 = vmatprep.subr.bf16.mxu0 %v1393
  %4769 = vmatpush1.bf16.msra.mxu0 %v1392
  %4770 = vmatprep.subr.bf16.mxu0 %v1397
  %4771 = vmatpush1.bf16.msra.mxu0 %v1396
  %4772 = vmatprep.subr.bf16.mxu0 0
  %4773 = vmatpush1.bf16.msra.mxu0 0
  %4774 = vmatprep.subr.bf16.mxu0 0
  %4775 = vmatpush1.bf16.msra.mxu0 0
  %4776 = vmatprep.subr.bf16.mxu0 0
  %4777 = vmatpush1.bf16.msra.mxu0 0
  %4778 = vmatprep.subr.bf16.mxu0 0
  %4779 = vmatpush1.bf16.msra.mxu0 0
  %4780 = vmatprep.subr.bf16.mxu0 0
  %4781 = vmatpush1.bf16.msra.mxu0 0
  %4782 = vmatprep.subr.bf16.mxu0 0
  %4783 = vmatpush1.bf16.msra.mxu0 0
  %4784 = vmatprep.subr.bf16.mxu0 0
  %4785 = vmatpush1.bf16.msra.mxu0 0
  %4786 = vmatprep.subr.bf16.mxu0 0
  %4787 = vmatpush1.bf16.msra.mxu0 0
  %4788 = vmatprep.subr.bf16.mxu0 0
  %4789 = vmatpush1.bf16.msra.mxu0 0
  %4790 = vmatprep.subr.bf16.mxu0 0
  %4791 = vmatpush1.bf16.msra.mxu0 0
  %4792 = vmatprep.subr.bf16.mxu0 0
  %4793 = vmatpush1.bf16.msra.mxu0 0
  %4794 = vmatprep.subr.bf16.mxu0 0
  %4795 = vmatpush1.bf16.msra.mxu0 0
  %4796 = vmatprep.subr.bf16.mxu0 0
  %4797 = vmatpush1.bf16.msra.mxu0 0
  %4798 = vmatprep.subr.bf16.mxu0 0
  %4799 = vmatpush1.bf16.msra.mxu0 0
  %4800 = vmatprep.mubr.bf16.mxu0 0
  %4801 = vmatmul.mubr.bf16.gmra.mrb[0].mxu0 %v4486
  %v4802 = vpop.f32.mrb[0].mxu0
  %v4803 = vadd.f32 %v4721, %v4802
  %v4804 = vpop.f32.mrb[0].mxu0
  %v4805 = vadd.f32 %v4723, %v4804
  %v4806 = vpop.f32.mrb[0].mxu0
  %v4807 = vpop.f32.mrb[0].mxu0
  %4808 = vdwg.mxu0
  %4809 = vmatprep.subr.bf16.mxu0 %v1395
  %4810 = vmatpush1.bf16.msra.mxu0 %v1394
  %4811 = vmatprep.subr.bf16.mxu0 %v1399
  %4812 = vmatpush1.bf16.msra.mxu0 %v1398
  %4813 = vmatprep.subr.bf16.mxu0 0
  %4814 = vmatpush1.bf16.msra.mxu0 0
  %4815 = vmatprep.subr.bf16.mxu0 0
  %4816 = vmatpush1.bf16.msra.mxu0 0
  %4817 = vmatprep.subr.bf16.mxu0 0
  %4818 = vmatpush1.bf16.msra.mxu0 0
  %4819 = vmatprep.subr.bf16.mxu0 0
  %4820 = vmatpush1.bf16.msra.mxu0 0
  %4821 = vmatprep.subr.bf16.mxu0 0
  %4822 = vmatpush1.bf16.msra.mxu0 0
  %4823 = vmatprep.subr.bf16.mxu0 0
  %4824 = vmatpush1.bf16.msra.mxu0 0
  %4825 = vmatprep.subr.bf16.mxu0 0
  %4826 = vmatpush1.bf16.msra.mxu0 0
  %4827 = vmatprep.subr.bf16.mxu0 0
  %4828 = vmatpush1.bf16.msra.mxu0 0
  %4829 = vmatprep.subr.bf16.mxu0 0
  %4830 = vmatpush1.bf16.msra.mxu0 0
  %4831 = vmatprep.subr.bf16.mxu0 0
  %4832 = vmatpush1.bf16.msra.mxu0 0
  %4833 = vmatprep.subr.bf16.mxu0 0
  %4834 = vmatpush1.bf16.msra.mxu0 0
  %4835 = vmatprep.subr.bf16.mxu0 0
  %4836 = vmatpush1.bf16.msra.mxu0 0
  %4837 = vmatprep.subr.bf16.mxu0 0
  %4838 = vmatpush1.bf16.msra.mxu0 0
  %4839 = vmatprep.subr.bf16.mxu0 0
  %4840 = vmatpush1.bf16.msra.mxu0 0
  %4841 = vmatprep.mubr.bf16.mxu0 0
  %4842 = vmatmul.mubr.bf16.gmra.mrb[0].mxu0 %v4486
  %v4843 = vpop.f32.mrb[0].mxu0
  %v4844 = vadd.f32 %v4762, %v4843
  %v4845 = vpop.f32.mrb[0].mxu0
  %v4846 = vadd.f32 %v4764, %v4845
  %v4847 = vpop.f32.mrb[0].mxu0
  %v4848 = vpop.f32.mrb[0].mxu0
  %4849 = vdwg.mxu0
  %v4850 = vadd.f32 %v4803, %v1490
  %v4851 = vadd.f32 %v4805, %v1491
  %v4852 = vadd.f32 %v4844, %v1492
  %v4853 = vadd.f32 %v4846, %v1493
  %v4854 = vxor.u32 %v4850, 2147483648
  %v4855 = vmul.f32 %v4854, 1.442695
  %v4856 = vpow.pop %v4855
  %v4857 = vadd.f32 %v4856, 1.0
  %v4858 = vrcp.pop %v4857
  %v4859 = vmul.f32 1.0, %v4858
  %v4860 = vxor.u32 %v4851, 2147483648
  %v4861 = vmul.f32 %v4860, 1.442695
  %v4862 = vpow.pop %v4861
  %v4863 = vadd.f32 %v4862, 1.0
  %v4864 = vrcp.pop %v4863
  %v4865 = vmul.f32 1.0, %v4864
  %v4866 = vxor.u32 %v4852, 2147483648
  %v4867 = vmul.f32 %v4866, 1.442695
  %v4868 = vpow.pop %v4867
  %v4869 = vadd.f32 %v4868, 1.0
  %v4870 = vrcp.pop %v4869
  %v4871 = vmul.f32 1.0, %v4870
  %v4872 = vtanh.pop %v4853
  %v4873 = vmul.f32 %v4865, %v4479
  %v4874 = vmul.f32 %v4859, %v4872
  %v4875 = vadd.f32 %v4873, %v4874
  %v4876 = vtanh.pop %v4875
  %v4877 = vmul.f32 %v4871, %v4876
  %v4878 = vpack.c.bf16 %v4682, %v4682
  %v4879 = vpack.c.bf16 %v4877, %v4877
  %v4881 = vsel %vm99, %v4879, 0
  %4883 = vmatprep.subr.bf16.mxu0 %v1271
  %4884 = vmatpush1.bf16.msra.mxu0 %v1270
  %4885 = vmatprep.subr.bf16.mxu0 %v1275
  %4886 = vmatpush1.bf16.msra.mxu0 %v1274
  %4887 = vmatprep.subr.bf16.mxu0 0
  %4888 = vmatpush1.bf16.msra.mxu0 0
  %4889 = vmatprep.subr.bf16.mxu0 0
  %4890 = vmatpush1.bf16.msra.mxu0 0
  %4891 = vmatprep.subr.bf16.mxu0 0
  %4892 = vmatpush1.bf16.msra.mxu0 0
  %4893 = vmatprep.subr.bf16.mxu0 0
  %4894 = vmatpush1.bf16.msra.mxu0 0
  %4895 = vmatprep.subr.bf16.mxu0 0
  %4896 = vmatpush1.bf16.msra.mxu0 0
  %4897 = vmatprep.subr.bf16.mxu0 0
  %4898 = vmatpush1.bf16.msra.mxu0 0
  %4899 = vmatprep.subr.bf16.mxu0 0
  %4900 = vmatpush1.bf16.msra.mxu0 0
  %4901 = vmatprep.subr.bf16.mxu0 0
  %4902 = vmatpush1.bf16.msra.mxu0 0
  %4903 = vmatprep.subr.bf16.mxu0 0
  %4904 = vmatpush1.bf16.msra.mxu0 0
  %4905 = vmatprep.subr.bf16.mxu0 0
  %4906 = vmatpush1.bf16.msra.mxu0 0
  %4907 = vmatprep.subr.bf16.mxu0 0
  %4908 = vmatpush1.bf16.msra.mxu0 0
  %4909 = vmatprep.subr.bf16.mxu0 0
  %4910 = vmatpush1.bf16.msra.mxu0 0
  %4911 = vmatprep.subr.bf16.mxu0 0
  %4912 = vmatpush1.bf16.msra.mxu0 0
  %4913 = vmatprep.subr.bf16.mxu0 0
  %4914 = vmatpush1.bf16.msra.mxu0 0
  %4915 = vmatprep.mubr.bf16.mxu0 0
  %4916 = vmatmul.mubr.bf16.gmra.mrb[0].mxu0 %v4881
  %v4917 = vpop.f32.mrb[0].mxu0
  %v4918 = vadd.f32 0.0, %v4917
  %v4919 = vpop.f32.mrb[0].mxu0
  %v4920 = vadd.f32 0.0, %v4919
  %v4921 = vpop.f32.mrb[0].mxu0
  %v4922 = vpop.f32.mrb[0].mxu0
  %4923 = vdwg.mxu0
  %4924 = vmatprep.subr.bf16.mxu0 %v1273
  %4925 = vmatpush1.bf16.msra.mxu0 %v1272
  %4926 = vmatprep.subr.bf16.mxu0 %v1277
  %4927 = vmatpush1.bf16.msra.mxu0 %v1276
  %4928 = vmatprep.subr.bf16.mxu0 0
  %4929 = vmatpush1.bf16.msra.mxu0 0
  %4930 = vmatprep.subr.bf16.mxu0 0
  %4931 = vmatpush1.bf16.msra.mxu0 0
  %4932 = vmatprep.subr.bf16.mxu0 0
  %4933 = vmatpush1.bf16.msra.mxu0 0
  %4934 = vmatprep.subr.bf16.mxu0 0
  %4935 = vmatpush1.bf16.msra.mxu0 0
  %4936 = vmatprep.subr.bf16.mxu0 0
  %4937 = vmatpush1.bf16.msra.mxu0 0
  %4938 = vmatprep.subr.bf16.mxu0 0
  %4939 = vmatpush1.bf16.msra.mxu0 0
  %4940 = vmatprep.subr.bf16.mxu0 0
  %4941 = vmatpush1.bf16.msra.mxu0 0
  %4942 = vmatprep.subr.bf16.mxu0 0
  %4943 = vmatpush1.bf16.msra.mxu0 0
  %4944 = vmatprep.subr.bf16.mxu0 0
  %4945 = vmatpush1.bf16.msra.mxu0 0
  %4946 = vmatprep.subr.bf16.mxu0 0
  %4947 = vmatpush1.bf16.msra.mxu0 0
  %4948 = vmatprep.subr.bf16.mxu0 0
  %4949 = vmatpush1.bf16.msra.mxu0 0
  %4950 = vmatprep.subr.bf16.mxu0 0
  %4951 = vmatpush1.bf16.msra.mxu0 0
  %4952 = vmatprep.subr.bf16.mxu0 0
  %4953 = vmatpush1.bf16.msra.mxu0 0
  %4954 = vmatprep.subr.bf16.mxu0 0
  %4955 = vmatpush1.bf16.msra.mxu0 0
  %4956 = vmatprep.mubr.bf16.mxu0 0
  %4957 = vmatmul.mubr.bf16.gmra.mrb[0].mxu0 %v4881
  %v4958 = vpop.f32.mrb[0].mxu0
  %v4959 = vadd.f32 0.0, %v4958
  %v4960 = vpop.f32.mrb[0].mxu0
  %v4961 = vadd.f32 0.0, %v4960
  %v4962 = vpop.f32.mrb[0].mxu0
  %v4963 = vpop.f32.mrb[0].mxu0
  %4964 = vdwg.mxu0
  %v4966 = vsel %vm99, %v4878, 0
  %4968 = vmatprep.subr.bf16.mxu0 %v1393
  %4969 = vmatpush1.bf16.msra.mxu0 %v1392
  %4970 = vmatprep.subr.bf16.mxu0 %v1397
  %4971 = vmatpush1.bf16.msra.mxu0 %v1396
  %4972 = vmatprep.subr.bf16.mxu0 0
  %4973 = vmatpush1.bf16.msra.mxu0 0
  %4974 = vmatprep.subr.bf16.mxu0 0
  %4975 = vmatpush1.bf16.msra.mxu0 0
  %4976 = vmatprep.subr.bf16.mxu0 0
  %4977 = vmatpush1.bf16.msra.mxu0 0
  %4978 = vmatprep.subr.bf16.mxu0 0
  %4979 = vmatpush1.bf16.msra.mxu0 0
  %4980 = vmatprep.subr.bf16.mxu0 0
  %4981 = vmatpush1.bf16.msra.mxu0 0
  %4982 = vmatprep.subr.bf16.mxu0 0
  %4983 = vmatpush1.bf16.msra.mxu0 0
  %4984 = vmatprep.subr.bf16.mxu0 0
  %4985 = vmatpush1.bf16.msra.mxu0 0
  %4986 = vmatprep.subr.bf16.mxu0 0
  %4987 = vmatpush1.bf16.msra.mxu0 0
  %4988 = vmatprep.subr.bf16.mxu0 0
  %4989 = vmatpush1.bf16.msra.mxu0 0
  %4990 = vmatprep.subr.bf16.mxu0 0
  %4991 = vmatpush1.bf16.msra.mxu0 0
  %4992 = vmatprep.subr.bf16.mxu0 0
  %4993 = vmatpush1.bf16.msra.mxu0 0
  %4994 = vmatprep.subr.bf16.mxu0 0
  %4995 = vmatpush1.bf16.msra.mxu0 0
  %4996 = vmatprep.subr.bf16.mxu0 0
  %4997 = vmatpush1.bf16.msra.mxu0 0
  %4998 = vmatprep.subr.bf16.mxu0 0
  %4999 = vmatpush1.bf16.msra.mxu0 0
  %5000 = vmatprep.mubr.bf16.mxu0 0
  %5001 = vmatmul.mubr.bf16.gmra.mrb[0].mxu0 %v4966
  %v5002 = vpop.f32.mrb[0].mxu0
  %v5003 = vadd.f32 %v4918, %v5002
  %v5004 = vpop.f32.mrb[0].mxu0
  %v5005 = vadd.f32 %v4920, %v5004
  %v5006 = vpop.f32.mrb[0].mxu0
  %v5007 = vpop.f32.mrb[0].mxu0
  %5008 = vdwg.mxu0
  %5009 = vmatprep.subr.bf16.mxu0 %v1395
  %5010 = vmatpush1.bf16.msra.mxu0 %v1394
  %5011 = vmatprep.subr.bf16.mxu0 %v1399
  %5012 = vmatpush1.bf16.msra.mxu0 %v1398
  %5013 = vmatprep.subr.bf16.mxu0 0
  %5014 = vmatpush1.bf16.msra.mxu0 0
  %5015 = vmatprep.subr.bf16.mxu0 0
  %5016 = vmatpush1.bf16.msra.mxu0 0
  %5017 = vmatprep.subr.bf16.mxu0 0
  %5018 = vmatpush1.bf16.msra.mxu0 0
  %5019 = vmatprep.subr.bf16.mxu0 0
  %5020 = vmatpush1.bf16.msra.mxu0 0
  %5021 = vmatprep.subr.bf16.mxu0 0
  %5022 = vmatpush1.bf16.msra.mxu0 0
  %5023 = vmatprep.subr.bf16.mxu0 0
  %5024 = vmatpush1.bf16.msra.mxu0 0
  %5025 = vmatprep.subr.bf16.mxu0 0
  %5026 = vmatpush1.bf16.msra.mxu0 0
  %5027 = vmatprep.subr.bf16.mxu0 0
  %5028 = vmatpush1.bf16.msra.mxu0 0
  %5029 = vmatprep.subr.bf16.mxu0 0
  %5030 = vmatpush1.bf16.msra.mxu0 0
  %5031 = vmatprep.subr.bf16.mxu0 0
  %5032 = vmatpush1.bf16.msra.mxu0 0
  %5033 = vmatprep.subr.bf16.mxu0 0
  %5034 = vmatpush1.bf16.msra.mxu0 0
  %5035 = vmatprep.subr.bf16.mxu0 0
  %5036 = vmatpush1.bf16.msra.mxu0 0
  %5037 = vmatprep.subr.bf16.mxu0 0
  %5038 = vmatpush1.bf16.msra.mxu0 0
  %5039 = vmatprep.subr.bf16.mxu0 0
  %5040 = vmatpush1.bf16.msra.mxu0 0
  %5041 = vmatprep.mubr.bf16.mxu0 0
  %5042 = vmatmul.mubr.bf16.gmra.mrb[0].mxu0 %v4966
  %v5043 = vpop.f32.mrb[0].mxu0
  %v5044 = vadd.f32 %v4959, %v5043
  %v5045 = vpop.f32.mrb[0].mxu0
  %v5046 = vadd.f32 %v4961, %v5045
  %v5047 = vpop.f32.mrb[0].mxu0
  %v5048 = vpop.f32.mrb[0].mxu0
  %5049 = vdwg.mxu0
  %v5050 = vadd.f32 %v5003, %v1490
  %v5051 = vadd.f32 %v5005, %v1491
  %v5052 = vadd.f32 %v5044, %v1492
  %v5053 = vadd.f32 %v5046, %v1493
  %v5054 = vxor.u32 %v5050, 2147483648
  %v5055 = vmul.f32 %v5054, 1.442695
  %v5056 = vpow.pop %v5055
  %v5057 = vadd.f32 %v5056, 1.0
  %v5058 = vrcp.pop %v5057
  %v5059 = vmul.f32 1.0, %v5058
  %v5060 = vxor.u32 %v5051, 2147483648
  %v5061 = vmul.f32 %v5060, 1.442695
  %v5062 = vpow.pop %v5061
  %v5063 = vadd.f32 %v5062, 1.0
  %v5064 = vrcp.pop %v5063
  %v5065 = vmul.f32 1.0, %v5064
  %v5066 = vxor.u32 %v5052, 2147483648
  %v5067 = vmul.f32 %v5066, 1.442695
  %v5068 = vpow.pop %v5067
  %v5069 = vadd.f32 %v5068, 1.0
  %v5070 = vrcp.pop %v5069
  %v5071 = vmul.f32 1.0, %v5070
  %v5072 = vtanh.pop %v5053
  %v5073 = vmul.f32 %v5065, %v4875
  %v5074 = vmul.f32 %v5059, %v5072
  %v5075 = vadd.f32 %v5073, %v5074
  %v5076 = vtanh.pop %v5075
  %v5077 = vmul.f32 %v5071, %v5076
  %v5078 = vld [vmem:[%s10] sm:$0xff]
  %v5079 = vld [vmem:[%s10 + $0x8] sm:$0xff]
  %v5080 = vld [vmem:[%s10 + $0x10] sm:$0xff]
  %v5081 = vld [vmem:[%s10 + $0x18] sm:$0xff]
  %v5082 = vld [vmem:[%s11] sm:$0x1]
  %v5084 = vlaneseq
  %v5085 = vshrl.u32 %v5084, 7
  %v5086 = vsub.s32 0, %v5085
  %v5087 = vrot.slane %v5082, %v5086
  %v5090 = vsel %vm99, %v5077, 0
  %5092 = vmatprep.subr.mxu0 0.0
  %5093 = vmatpush1.msra.mxu0 %v5078
  %5094 = vmatprep.subr.mxu0 0.0
  %5095 = vmatpush1.msra.mxu0 %v5079
  %5096 = vmatprep.subr.mxu0 0.0
  %5097 = vmatpush1.msra.mxu0 %v5080
  %5098 = vmatprep.subr.mxu0 0.0
  %5099 = vmatpush1.msra.mxu0 %v5081
  %5100 = vmatprep.subr.mxu0 0.0
  %5101 = vmatpush1.msra.mxu0 0.0
  %5102 = vmatprep.subr.mxu0 0.0
  %5103 = vmatpush1.msra.mxu0 0.0
  %5104 = vmatprep.subr.mxu0 0.0
  %5105 = vmatpush1.msra.mxu0 0.0
  %5106 = vmatprep.subr.mxu0 0.0
  %5107 = vmatpush1.msra.mxu0 0.0
  %5108 = vmatprep.subr.mxu0 0.0
  %5109 = vmatpush1.msra.mxu0 0.0
  %5110 = vmatprep.subr.mxu0 0.0
  %5111 = vmatpush1.msra.mxu0 0.0
  %5112 = vmatprep.subr.mxu0 0.0
  %5113 = vmatpush1.msra.mxu0 0.0
  %5114 = vmatprep.subr.mxu0 0.0
  %5115 = vmatpush1.msra.mxu0 0.0
  %5116 = vmatprep.subr.mxu0 0.0
  %5117 = vmatpush1.msra.mxu0 0.0
  %5118 = vmatprep.subr.mxu0 0.0
  %5119 = vmatpush1.msra.mxu0 0.0
  %5120 = vmatprep.subr.mxu0 0.0
  %5121 = vmatpush1.msra.mxu0 0.0
  %5122 = vmatprep.subr.mxu0 0.0
  %5123 = vmatpush1.msra.mxu0 0.0
  %5124 = vmatprep.subr.mxu0 0.0
  %5125 = vmatpush1.msra.mxu0 0.0
  %5126 = vmatprep.subr.mxu0 0.0
  %5127 = vmatpush1.msra.mxu0 0.0
  %5128 = vmatprep.subr.mxu0 0.0
  %5129 = vmatpush1.msra.mxu0 0.0
  %5130 = vmatprep.subr.mxu0 0.0
  %5131 = vmatpush1.msra.mxu0 0.0
  %5132 = vmatprep.subr.mxu0 0.0
  %5133 = vmatpush1.msra.mxu0 0.0
  %5134 = vmatprep.subr.mxu0 0.0
  %5135 = vmatpush1.msra.mxu0 0.0
  %5136 = vmatprep.subr.mxu0 0.0
  %5137 = vmatpush1.msra.mxu0 0.0
  %5138 = vmatprep.subr.mxu0 0.0
  %5139 = vmatpush1.msra.mxu0 0.0
  %5140 = vmatprep.subr.mxu0 0.0
  %5141 = vmatpush1.msra.mxu0 0.0
  %5142 = vmatprep.subr.mxu0 0.0
  %5143 = vmatpush1.msra.mxu0 0.0
  %5144 = vmatprep.subr.mxu0 0.0
  %5145 = vmatpush1.msra.mxu0 0.0
  %5146 = vmatprep.subr.mxu0 0.0
  %5147 = vmatpush1.msra.mxu0 0.0
  %5148 = vmatprep.subr.mxu0 0.0
  %5149 = vmatpush1.msra.mxu0 0.0
  %5150 = vmatprep.subr.mxu0 0.0
  %5151 = vmatpush1.msra.mxu0 0.0
  %5152 = vmatprep.subr.mxu0 0.0
  %5153 = vmatpush1.msra.mxu0 0.0
  %5154 = vmatprep.subr.mxu0 0.0
  %5155 = vmatpush1.msra.mxu0 0.0
  %5156 = vmatprep.mubr.f32.mxu0 0.0
  %5157 = vmatmul.mubr.f32.gmra.mrb[0].mxu0 %v5090
  %v5158 = vpop.f32.mrb[0].mxu0
  %v5159 = vadd.f32 %v5087, %v5158
  %v5160 = vpop.f32.mrb[0].mxu0
  %5161 = vdwg.mxu0
  %v5162 = vmax.f32 %v5159, 0.0
  %v5163 = vmul.f32 %v5162, %v5162
  %vm5164 = vcmask 130048
  %v5165 = vsel %vm5164, %v5163, 0.0
  %5166 = vadd.xlane.f32.xlu0 %v5165
  %v5167 = vpop.xlane.xlu0 %5166
  %v5168 = vadd.f32 %v5167, 1e-12
  %v5169 = vrsqrt.pop %v5168
  %v5170 = vmul.f32 %v5162, %v5169
  %5171 = vst.msk [vmem:[%s12] sm:$0xff] %vm5164, %v5170
  // Predicated region
  $region50: #{voice_encoder_forward.1} parent=0 // pred_check
    _
  $region51: #{voice_encoder_forward.1} parent=0 // pred_check_branch
    %5173 = sbr.rel (0) target = $region53
  $region52: #{voice_encoder_forward.1} parent=0 // pred_region
    _
  $region53: #{voice_encoder_forward.1} parent=0 // pred_fallthru
    _
  // Predicated region
  $region54: #{voice_encoder_forward.1} parent=0 // pred_check
    _
  $region55: #{voice_encoder_forward.1} parent=0 // pred_check_branch
    %5175 = sbr.rel (0) target = $region57
  $region56: #{voice_encoder_forward.1} parent=0 // pred_region
    _
  $region57: #{voice_encoder_forward.1} parent=0 // pred_fallthru
    _

</llo_original>
